<compile_context>
chip_gen: v6e
topology: v6e:2x2x1
jax: 0.10.0
libtpu: 0.0.40
codegen_flags: <defaults>
</compile_context>

<pallas_src>
import functools
import math

import jax
import jax.numpy as jnp
from jax import lax
from jax.experimental import pallas as pl
from jax.experimental.pallas import tpu as pltpu


# ---------------------------------------------------------------------------
# Pallas kernel: one ConvLSTM layer over the full sequence (grid = (B, T))
# ---------------------------------------------------------------------------
def _convlstm_layer_kernel(x_ref, w_ref, b_ref, hseq_ref, c_ref, xh_pad,
                           *, H, W, Cin, Ch):
    """One (batch element, timestep) grid point of a ConvLSTM layer.

    x_ref   : (1, 1, H*W, Cin)        x_t for this batch element (streamed over T)
    w_ref   : (3, 3, Cin+Ch, 4*Ch)    [Wx*|Wh*] stacked on in-channels,
                                      gates [i|f|o|c] concatenated on out-channels
                                      (resident: constant index map)
    b_ref   : (1, 4*Ch)               bias vector, zero except the c-gate slot
    hseq_ref: (1, 1, H*W, Ch)         h_t output block (advances along T)
    c_ref   : (1, H*W, Ch)            cell state; resident output block
                                      (constant over t -> written to HBM once)
    xh_pad  : VMEM (H+2, W+2, Cin+Ch) zero-padded [x_t | h_{t-1}] staging buffer
    """
    t = pl.program_id(1)
    HW = H * W

    @pl.when(t == 0)
    def _init():
        # Zero padding ring + zero initial hidden state; zero initial cell
        # state lives directly in the resident output block.
        xh_pad[...] = jnp.zeros(xh_pad.shape, xh_pad.dtype)
        c_ref[...] = jnp.zeros(c_ref.shape, c_ref.dtype)

    # Stage x_t into the interior "x slot" of the combined padded buffer.
    # (The "h slot" already holds h_{t-1}: zeros at t==0, otherwise written at
    #  the end of the previous grid step.)
    xh_pad[1:H + 1, 1:W + 1, 0:Cin] = x_ref[0, 0].reshape(H, W, Cin)

    # 3x3 "same" conv over concatenated [x | h] channels, all 4 gates fused on
    # the output-channel axis: 9 MXU matmuls, K = Cin+Ch, N = 4*Ch, single
    # f32 accumulator.  The (Whc) bias is the accumulator's initial value.
    bias = b_ref[...].astype(jnp.float32)                 # (1, 4*Ch)
    acc = jnp.broadcast_to(bias, (HW, 4 * Ch))
    for ky in range(3):
        for kx in range(3):
            patch = xh_pad[ky:ky + H, kx:kx + W, :].reshape(HW, Cin + Ch)
            acc = acc + jnp.dot(patch, w_ref[ky, kx],
                                preferred_element_type=jnp.float32)

    # Gate nonlinearities.  Peephole terms Wci*c / Wcf*c / Wco*c are exactly
    # zero in the reference module (untrained torch.zeros buffers) -> dropped.
    ifo = jax.nn.sigmoid(acc[:, 0:3 * Ch])                # one EUP pass, 3*Ch lanes
    it = ifo[:, 0 * Ch:1 * Ch]
    ft = ifo[:, 1 * Ch:2 * Ch]
    ot = ifo[:, 2 * Ch:3 * Ch]
    g = jnp.tanh(acc[:, 3 * Ch:4 * Ch])

    c_prev = c_ref[0]
    ct = ft * c_prev + it * g
    ht = ot * jnp.tanh(ct)

    c_ref[0] = ct
    hseq_ref[0, 0] = ht.astype(hseq_ref.dtype)
    # Stash h_t into the "h slot" of the padded buffer for step t+1.
    xh_pad[1:H + 1, 1:W + 1, Cin:Cin + Ch] = ht.reshape(H, W, Ch)


def convlstm_layer(x_seq_flat, w, bias_vec, *, B, T, H, W, Cin, Ch):
    """Runs one ConvLSTM layer over the whole sequence in a single pallas_call.

    x_seq_flat: (T, B, H*W, Cin)  channels-last, spatially flattened inputs.
    Returns (h_seq (T, B, H*W, Ch), c_final (B, H*W, Ch)).
    """
    HW = H * W
    kernel = functools.partial(_convlstm_layer_kernel,
                               H=H, W=W, Cin=Cin, Ch=Ch)

    h_seq, c_fin = pl.pallas_call(
        kernel,
        out_shape=(jax.ShapeDtypeStruct((T, B, HW, Ch), jnp.float32),
                   jax.ShapeDtypeStruct((B, HW, Ch), jnp.float32)),
        grid_spec=pltpu.PrefetchScalarGridSpec(
            num_scalar_prefetch=0,
            grid=(B, T),
            in_specs=[
                # x_t block: streamed along T, per batch element.
                pl.BlockSpec((1, 1, HW, Cin), lambda b, t: (t, b, 0, 0)),
                # Weights / bias: constant block -> loaded once, resident.
                pl.BlockSpec((3, 3, Cin + Ch, 4 * Ch),
                             lambda b, t: (0, 0, 0, 0)),
                pl.BlockSpec((1, 4 * Ch), lambda b, t: (0, 0)),
            ],
            out_specs=(
                pl.BlockSpec((1, 1, HW, Ch), lambda b, t: (t, b, 0, 0)),
                # Cell state: constant block index over t -> stays in VMEM for
                # the whole sequence, written back once per batch element.
                pl.BlockSpec((1, HW, Ch), lambda b, t: (b, 0, 0)),
            ),
            scratch_shapes=[pltpu.VMEM((H + 2, W + 2, Cin + Ch), jnp.float32)],
        ),
        compiler_params=pltpu.CompilerParams(
            dimension_semantics=("parallel", "arbitrary")),
    )(x_seq_flat, w, bias_vec)
    return h_seq, c_fin


# ---------------------------------------------------------------------------
# Full ConvLSTM forward: one pallas_call per layer (layers are plain-JAX glue)
# ---------------------------------------------------------------------------
@functools.partial(jax.jit, static_argnames=("hidden_channels",))
def convlstm_forward(x_seq_nchw, layer_params, hidden_channels):
    """x_seq_nchw: (T, B, Cin, H, W) like the PyTorch module.

    Returns (output (T, B, Ch_last, H, W), [(h_final, c_final)] per layer
    in NHWC (B, H, W, Ch)).
    """
    T, B, Cin, H, W = x_seq_nchw.shape
    HW = H * W
    # (T, B, C, H, W) -> channels-last, spatially flattened (T, B, H*W, C).
    x = jnp.transpose(x_seq_nchw, (0, 1, 3, 4, 2)).reshape(T, B, HW, Cin)

    states = []
    in_c = Cin
    for i, p in enumerate(layer_params):
        ch = hidden_channels[i]
        h_seq, c_fin = convlstm_layer(x, p["w"], p["b"],
                                      B=B, T=T, H=H, W=W, Cin=in_c, Ch=ch)
        states.append((h_seq[-1].reshape(B, H, W, ch),
                       c_fin.reshape(B, H, W, ch)))
        x = h_seq
        in_c = ch

    out = x.reshape(T, B, H, W, hidden_channels[-1])
    out_nchw = jnp.transpose(out, (0, 1, 4, 2, 3))
    return out_nchw, states


# ---------------------------------------------------------------------------
# Pure-JAX reference (lax.conv) for correctness checking
# ---------------------------------------------------------------------------
def _conv_same(x, w):
    # x: (B, H, W, Cin), w: (3, 3, Cin, Cout)
    return lax.conv_general_dilated(
        x, w, window_strides=(1, 1), padding="SAME",
        dimension_numbers=("NHWC", "HWIO", "NHWC"),
        precision=lax.Precision.HIGHEST)


def convlstm_forward_ref(x_seq_nchw, layer_params, hidden_channels):
    T, B, _, H, W = x_seq_nchw.shape
    x_seq = jnp.transpose(x_seq_nchw, (0, 1, 3, 4, 2))   # NHWC
    states = [(jnp.zeros((B, H, W, ch), jnp.float32),
               jnp.zeros((B, H, W, ch), jnp.float32)) for ch in hidden_channels]
    outputs = []
    for t in range(T):
        x = x_seq[t]
        for i, p in enumerate(layer_params):
            Wxi, Wxf, Wxo, Wxc, Whi, Whf, Who, Whc = p["sep"]
            h, c = states[i]
            # Wci/Wcf/Wco are untrained zero buffers in the module -> omitted.
            it = jax.nn.sigmoid(_conv_same(x, Wxi) + _conv_same(h, Whi))
            ft = jax.nn.sigmoid(_conv_same(x, Wxf) + _conv_same(h, Whf))
            ot = jax.nn.sigmoid(_conv_same(x, Wxo) + _conv_same(h, Who))
            ct = ft * c + it * jnp.tanh(_conv_same(x, Wxc) + _conv_same(h, Whc)
                                        + p["b_c"])
            ht = ot * jnp.tanh(ct)
            states[i] = (ht, ct)
            x = ht
        outputs.append(x)
    out = jnp.stack(outputs, axis=0)                      # (T, B, H, W, Ch)
    return jnp.transpose(out, (0, 1, 4, 2, 3)), states


# ---------------------------------------------------------------------------
# Deterministic parameter init (mimics nn.Conv2d default uniform init shapes)
# ---------------------------------------------------------------------------
def init_layer_params(key, cin, ch):
    keys = jax.random.split(key, 9)

    def conv_w(k, in_c):
        bound = 1.0 / math.sqrt(in_c * 3 * 3)
        return jax.random.uniform(k, (3, 3, in_c, ch), jnp.float32, -bound, bound)

    Wxi, Wxf, Wxo, Wxc = (conv_w(keys[j], cin) for j in range(4))
    Whi, Whf, Who, Whc = (conv_w(keys[4 + j], ch) for j in range(4))
    b_bound = 1.0 / math.sqrt(ch * 3 * 3)
    b_c = jax.random.uniform(keys[8], (ch,), jnp.float32, -b_bound, b_bound)

    # Gates [i|f|o|c] on out-channels, then [x | h] on in-channels.
    wx = jnp.concatenate([Wxi, Wxf, Wxo, Wxc], axis=-1)   # (3,3,cin,4*ch)
    wh = jnp.concatenate([Whi, Whf, Who, Whc], axis=-1)   # (3,3,ch,4*ch)
    w = jnp.concatenate([wx, wh], axis=2)                 # (3,3,cin+ch,4*ch)
    bias_vec = jnp.concatenate(
        [jnp.zeros((3 * ch,), jnp.float32), b_c]).reshape(1, 4 * ch)

    return {"w": w, "b": bias_vec, "b_c": b_c,
            "sep": (Wxi, Wxf, Wxo, Wxc, Whi, Whf, Who, Whc)}


# ---------------------------------------------------------------------------
if __name__ == "__main__":
    # Small shapes consistent with the module's forward: input (T, B, Cin, H, W).
    T, B, Cin, H, W = 8, 2, 4, 16, 16
    hidden_channels = (32, 32)          # layer_numbers = 2; 4*Ch = 128 lanes
    layer_numbers = len(hidden_channels)

    key = jax.random.PRNGKey(0)
    k_x, *k_layers = jax.random.split(key, 1 + layer_numbers)

    x_nchw = jax.random.normal(k_x, (T, B, Cin, H, W), jnp.float32)

    params = []
    in_c = Cin
    for i in range(layer_numbers):
        params.append(init_layer_params(k_layers[i], in_c, hidden_channels[i]))
        in_c = hidden_channels[i]

    out_nchw, states = convlstm_forward(x_nchw, params, hidden_channels)
    out_nchw = jax.block_until_ready(out_nchw)

    # Correctness check against a pure-JAX (lax.conv) reference.
    ref_nchw, ref_states = convlstm_forward_ref(x_nchw, params, hidden_channels)
    ref_nchw = jax.block_until_ready(ref_nchw)

    assert out_nchw.shape == (T, B, hidden_channels[-1], H, W)
    max_err = float(jnp.max(jnp.abs(out_nchw - ref_nchw)))
    assert max_err < 1e-3, f"output mismatch vs reference: {max_err}"

    c_err = float(jnp.max(jnp.abs(states[-1][1] - ref_states[-1][1])))
    assert c_err < 1e-3, f"cell-state mismatch vs reference: {c_err}"

    print("KERNEL_OK")
</pallas_src>

<mosaic_0001>
module attributes {stable_mosaic.version = 11 : i64} {
  func.func @_convlstm_layer_kernel(%arg0: i32, %arg1: i32, %arg2: memref<1x1x256x4xf32, #tpu.memory_space<vmem>>, %arg3: memref<3x3x36x128xf32, #tpu.memory_space<vmem>>, %arg4: memref<1x128xf32, #tpu.memory_space<vmem>>, %arg5: memref<1x1x256x32xf32, #tpu.memory_space<vmem>>, %arg6: memref<1x256x32xf32, #tpu.memory_space<vmem>>, %arg7: memref<18x18x36xf32, #tpu.memory_space<vmem>>) attributes {dimension_semantics = [#tpu.dimension_semantics<parallel>, #tpu.dimension_semantics<arbitrary>], iteration_bounds = array<i64: 2, 8>, scalar_prefetch = 0 : i64, scratch_operands = 1 : i64, tpu.core_type = #tpu.core_type<tc>, window_params = [{transform_indices = @transform_0, window_bounds = array<i64: 1, 1, 256, 4>}, {pipeline_mode = #tpu.pipeline_mode<synchronous>, transform_indices = @transform_1, window_bounds = array<i64: 3, 3, 36, 128>}, {pipeline_mode = #tpu.pipeline_mode<synchronous>, transform_indices = @transform_2, window_bounds = array<i64: 1, 128>}, {transform_indices = @transform_3, window_bounds = array<i64: 1, 1, 256, 32>}, {transform_indices = @transform_4, window_bounds = array<i64: 1, 256, 32>}]} {
    %c0_i32 = arith.constant 0 : i32
    %0 = arith.cmpi eq, %arg1, %c0_i32 : i32
    %1 = arith.extui %0 : i1 to i32
    %c0_i32_0 = arith.constant 0 : i32
    %2 = arith.cmpi ne, %1, %c0_i32_0 : i32
    scf.if %2 {
      %cst_91 = arith.constant 0.000000e+00 : f32
      %90 = vector.broadcast %cst_91 : f32 to vector<18x18x36xf32>
      %c0_92 = arith.constant 0 : index
      %c0_93 = arith.constant 0 : index
      %c0_94 = arith.constant 0 : index
      %91 = vector.load %arg7[%c0_92, %c0_93, %c0_94] : memref<18x18x36xf32, #tpu.memory_space<vmem>>, vector<18x18x36xf32>
      tpu.vector_store %arg7[%c0_92, %c0_93, %c0_94], %90 {strides = array<i32>} : memref<18x18x36xf32, #tpu.memory_space<vmem>>, vector<18x18x36xf32>,
      %cst_95 = arith.constant 0.000000e+00 : f32
      %92 = vector.broadcast %cst_95 : f32 to vector<1x256x32xf32>
      %c0_96 = arith.constant 0 : index
      %c0_97 = arith.constant 0 : index
      %c0_98 = arith.constant 0 : index
      %93 = vector.load %arg6[%c0_96, %c0_97, %c0_98] : memref<1x256x32xf32, #tpu.memory_space<vmem>>, vector<1x256x32xf32>
      tpu.vector_store %arg6[%c0_96, %c0_97, %c0_98], %92 {strides = array<i32>} : memref<1x256x32xf32, #tpu.memory_space<vmem>>, vector<1x256x32xf32>,
    } else {
    }
    %c0 = arith.constant 0 : index
    %c0_1 = arith.constant 0 : index
    %c0_2 = arith.constant 0 : index
    %c0_3 = arith.constant 0 : index
    %3 = vector.load %arg2[%c0, %c0_1, %c0_2, %c0_3] : memref<1x1x256x4xf32, #tpu.memory_space<vmem>>, vector<1x1x256x4xf32>
    %4 = vector.shape_cast %3 : vector<1x1x256x4xf32> to vector<256x4xf32>
    %5 = vector.shape_cast %4 : vector<256x4xf32> to vector<16x16x4xf32>
    %c1 = arith.constant 1 : index
    %c1_4 = arith.constant 1 : index
    %c0_5 = arith.constant 0 : index
    %6 = vector.load %arg7[%c1, %c1_4, %c0_5] : memref<18x18x36xf32, #tpu.memory_space<vmem>>, vector<16x16x4xf32>
    tpu.vector_store %arg7[%c1, %c1_4, %c0_5], %5 {strides = array<i32>} : memref<18x18x36xf32, #tpu.memory_space<vmem>>, vector<16x16x4xf32>,
    %c0_6 = arith.constant 0 : index
    %c0_7 = arith.constant 0 : index
    %7 = vector.load %arg4[%c0_6, %c0_7] : memref<1x128xf32, #tpu.memory_space<vmem>>, vector<1x128xf32>
    %8 = vector.shape_cast %7 : vector<1x128xf32> to vector<1x128xf32>
    %9 = vector.broadcast %8 : vector<1x128xf32> to vector<256x128xf32>
    %c0_8 = arith.constant 0 : index
    %c0_9 = arith.constant 0 : index
    %c0_10 = arith.constant 0 : index
    %10 = vector.load %arg7[%c0_8, %c0_9, %c0_10] : memref<18x18x36xf32, #tpu.memory_space<vmem>>, vector<16x16x36xf32>
    %11 = vector.shape_cast %10 : vector<16x16x36xf32> to vector<256x36xf32>
    %c0_11 = arith.constant 0 : index
    %c0_12 = arith.constant 0 : index
    %c0_13 = arith.constant 0 : index
    %c0_14 = arith.constant 0 : index
    %12 = vector.load %arg3[%c0_11, %c0_12, %c0_13, %c0_14] : memref<3x3x36x128xf32, #tpu.memory_space<vmem>>, vector<1x1x36x128xf32>
    %13 = vector.shape_cast %12 : vector<1x1x36x128xf32> to vector<36x128xf32>
    %cst = arith.constant dense<0.000000e+00> : vector<256x128xf32>
    %14 = tpu.matmul %11, %13, %cst {dimension_numbers = #tpu.dot_dimension_numbers<[1], [0], [0], [1], [0, 0, 1, 1], [], []>} : vector<256x36xf32>, vector<36x128xf32>, vector<256x128xf32> -> vector<256x128xf32>
    %15 = arith.addf %9, %14 : vector<256x128xf32>
    %c0_15 = arith.constant 0 : index
    %c1_16 = arith.constant 1 : index
    %c0_17 = arith.constant 0 : index
    %16 = vector.load %arg7[%c0_15, %c1_16, %c0_17] : memref<18x18x36xf32, #tpu.memory_space<vmem>>, vector<16x16x36xf32>
    %17 = vector.shape_cast %16 : vector<16x16x36xf32> to vector<256x36xf32>
    %c0_18 = arith.constant 0 : index
    %c1_19 = arith.constant 1 : index
    %c0_20 = arith.constant 0 : index
    %c0_21 = arith.constant 0 : index
    %18 = vector.load %arg3[%c0_18, %c1_19, %c0_20, %c0_21] : memref<3x3x36x128xf32, #tpu.memory_space<vmem>>, vector<1x1x36x128xf32>
    %19 = vector.shape_cast %18 : vector<1x1x36x128xf32> to vector<36x128xf32>
    %cst_22 = arith.constant dense<0.000000e+00> : vector<256x128xf32>
    %20 = tpu.matmul %17, %19, %cst_22 {dimension_numbers = #tpu.dot_dimension_numbers<[1], [0], [0], [1], [0, 0, 1, 1], [], []>} : vector<256x36xf32>, vector<36x128xf32>, vector<256x128xf32> -> vector<256x128xf32>
    %21 = arith.addf %15, %20 : vector<256x128xf32>
    %c0_23 = arith.constant 0 : index
    %c2 = arith.constant 2 : index
    %c0_24 = arith.constant 0 : index
    %22 = vector.load %arg7[%c0_23, %c2, %c0_24] : memref<18x18x36xf32, #tpu.memory_space<vmem>>, vector<16x16x36xf32>
    %23 = vector.shape_cast %22 : vector<16x16x36xf32> to vector<256x36xf32>
    %c0_25 = arith.constant 0 : index
    %c2_26 = arith.constant 2 : index
    %c0_27 = arith.constant 0 : index
    %c0_28 = arith.constant 0 : index
    %24 = vector.load %arg3[%c0_25, %c2_26, %c0_27, %c0_28] : memref<3x3x36x128xf32, #tpu.memory_space<vmem>>, vector<1x1x36x128xf32>
    %25 = vector.shape_cast %24 : vector<1x1x36x128xf32> to vector<36x128xf32>
    %cst_29 = arith.constant dense<0.000000e+00> : vector<256x128xf32>
    %26 = tpu.matmul %23, %25, %cst_29 {dimension_numbers = #tpu.dot_dimension_numbers<[1], [0], [0], [1], [0, 0, 1, 1], [], []>} : vector<256x36xf32>, vector<36x128xf32>, vector<256x128xf32> -> vector<256x128xf32>
    %27 = arith.addf %21, %26 : vector<256x128xf32>
    %c1_30 = arith.constant 1 : index
    %c0_31 = arith.constant 0 : index
    %c0_32 = arith.constant 0 : index
    %28 = vector.load %arg7[%c1_30, %c0_31, %c0_32] : memref<18x18x36xf32, #tpu.memory_space<vmem>>, vector<16x16x36xf32>
    %29 = vector.shape_cast %28 : vector<16x16x36xf32> to vector<256x36xf32>
    %c1_33 = arith.constant 1 : index
    %c0_34 = arith.constant 0 : index
    %c0_35 = arith.constant 0 : index
    %c0_36 = arith.constant 0 : index
    %30 = vector.load %arg3[%c1_33, %c0_34, %c0_35, %c0_36] : memref<3x3x36x128xf32, #tpu.memory_space<vmem>>, vector<1x1x36x128xf32>
    %31 = vector.shape_cast %30 : vector<1x1x36x128xf32> to vector<36x128xf32>
    %cst_37 = arith.constant dense<0.000000e+00> : vector<256x128xf32>
    %32 = tpu.matmul %29, %31, %cst_37 {dimension_numbers = #tpu.dot_dimension_numbers<[1], [0], [0], [1], [0, 0, 1, 1], [], []>} : vector<256x36xf32>, vector<36x128xf32>, vector<256x128xf32> -> vector<256x128xf32>
    %33 = arith.addf %27, %32 : vector<256x128xf32>
    %c1_38 = arith.constant 1 : index
    %c1_39 = arith.constant 1 : index
    %c0_40 = arith.constant 0 : index
    %34 = vector.load %arg7[%c1_38, %c1_39, %c0_40] : memref<18x18x36xf32, #tpu.memory_space<vmem>>, vector<16x16x36xf32>
    %35 = vector.shape_cast %34 : vector<16x16x36xf32> to vector<256x36xf32>
    %c1_41 = arith.constant 1 : index
    %c1_42 = arith.constant 1 : index
    %c0_43 = arith.constant 0 : index
    %c0_44 = arith.constant 0 : index
    %36 = vector.load %arg3[%c1_41, %c1_42, %c0_43, %c0_44] : memref<3x3x36x128xf32, #tpu.memory_space<vmem>>, vector<1x1x36x128xf32>
    %37 = vector.shape_cast %36 : vector<1x1x36x128xf32> to vector<36x128xf32>
    %cst_45 = arith.constant dense<0.000000e+00> : vector<256x128xf32>
    %38 = tpu.matmul %35, %37, %cst_45 {dimension_numbers = #tpu.dot_dimension_numbers<[1], [0], [0], [1], [0, 0, 1, 1], [], []>} : vector<256x36xf32>, vector<36x128xf32>, vector<256x128xf32> -> vector<256x128xf32>
    %39 = arith.addf %33, %38 : vector<256x128xf32>
    %c1_46 = arith.constant 1 : index
    %c2_47 = arith.constant 2 : index
    %c0_48 = arith.constant 0 : index
    %40 = vector.load %arg7[%c1_46, %c2_47, %c0_48] : memref<18x18x36xf32, #tpu.memory_space<vmem>>, vector<16x16x36xf32>
    %41 = vector.shape_cast %40 : vector<16x16x36xf32> to vector<256x36xf32>
    %c1_49 = arith.constant 1 : index
    %c2_50 = arith.constant 2 : index
    %c0_51 = arith.constant 0 : index
    %c0_52 = arith.constant 0 : index
    %42 = vector.load %arg3[%c1_49, %c2_50, %c0_51, %c0_52] : memref<3x3x36x128xf32, #tpu.memory_space<vmem>>, vector<1x1x36x128xf32>
    %43 = vector.shape_cast %42 : vector<1x1x36x128xf32> to vector<36x128xf32>
    %cst_53 = arith.constant dense<0.000000e+00> : vector<256x128xf32>
    %44 = tpu.matmul %41, %43, %cst_53 {dimension_numbers = #tpu.dot_dimension_numbers<[1], [0], [0], [1], [0, 0, 1, 1], [], []>} : vector<256x36xf32>, vector<36x128xf32>, vector<256x128xf32> -> vector<256x128xf32>
    %45 = arith.addf %39, %44 : vector<256x128xf32>
    %c2_54 = arith.constant 2 : index
    %c0_55 = arith.constant 0 : index
    %c0_56 = arith.constant 0 : index
    %46 = vector.load %arg7[%c2_54, %c0_55, %c0_56] : memref<18x18x36xf32, #tpu.memory_space<vmem>>, vector<16x16x36xf32>
    %47 = vector.shape_cast %46 : vector<16x16x36xf32> to vector<256x36xf32>
    %c2_57 = arith.constant 2 : index
    %c0_58 = arith.constant 0 : index
    %c0_59 = arith.constant 0 : index
    %c0_60 = arith.constant 0 : index
    %48 = vector.load %arg3[%c2_57, %c0_58, %c0_59, %c0_60] : memref<3x3x36x128xf32, #tpu.memory_space<vmem>>, vector<1x1x36x128xf32>
    %49 = vector.shape_cast %48 : vector<1x1x36x128xf32> to vector<36x128xf32>
    %cst_61 = arith.constant dense<0.000000e+00> : vector<256x128xf32>
    %50 = tpu.matmul %47, %49, %cst_61 {dimension_numbers = #tpu.dot_dimension_numbers<[1], [0], [0], [1], [0, 0, 1, 1], [], []>} : vector<256x36xf32>, vector<36x128xf32>, vector<256x128xf32> -> vector<256x128xf32>
    %51 = arith.addf %45, %50 : vector<256x128xf32>
    %c2_62 = arith.constant 2 : index
    %c1_63 = arith.constant 1 : index
    %c0_64 = arith.constant 0 : index
    %52 = vector.load %arg7[%c2_62, %c1_63, %c0_64] : memref<18x18x36xf32, #tpu.memory_space<vmem>>, vector<16x16x36xf32>
    %53 = vector.shape_cast %52 : vector<16x16x36xf32> to vector<256x36xf32>
    %c2_65 = arith.constant 2 : index
    %c1_66 = arith.constant 1 : index
    %c0_67 = arith.constant 0 : index
    %c0_68 = arith.constant 0 : index
    %54 = vector.load %arg3[%c2_65, %c1_66, %c0_67, %c0_68] : memref<3x3x36x128xf32, #tpu.memory_space<vmem>>, vector<1x1x36x128xf32>
    %55 = vector.shape_cast %54 : vector<1x1x36x128xf32> to vector<36x128xf32>
    %cst_69 = arith.constant dense<0.000000e+00> : vector<256x128xf32>
    %56 = tpu.matmul %53, %55, %cst_69 {dimension_numbers = #tpu.dot_dimension_numbers<[1], [0], [0], [1], [0, 0, 1, 1], [], []>} : vector<256x36xf32>, vector<36x128xf32>, vector<256x128xf32> -> vector<256x128xf32>
    %57 = arith.addf %51, %56 : vector<256x128xf32>
    %c2_70 = arith.constant 2 : index
    %c2_71 = arith.constant 2 : index
    %c0_72 = arith.constant 0 : index
    %58 = vector.load %arg7[%c2_70, %c2_71, %c0_72] : memref<18x18x36xf32, #tpu.memory_space<vmem>>, vector<16x16x36xf32>
    %59 = vector.shape_cast %58 : vector<16x16x36xf32> to vector<256x36xf32>
    %c2_73 = arith.constant 2 : index
    %c2_74 = arith.constant 2 : index
    %c0_75 = arith.constant 0 : index
    %c0_76 = arith.constant 0 : index
    %60 = vector.load %arg3[%c2_73, %c2_74, %c0_75, %c0_76] : memref<3x3x36x128xf32, #tpu.memory_space<vmem>>, vector<1x1x36x128xf32>
    %61 = vector.shape_cast %60 : vector<1x1x36x128xf32> to vector<36x128xf32>
    %cst_77 = arith.constant dense<0.000000e+00> : vector<256x128xf32>
    %62 = tpu.matmul %59, %61, %cst_77 {dimension_numbers = #tpu.dot_dimension_numbers<[1], [0], [0], [1], [0, 0, 1, 1], [], []>} : vector<256x36xf32>, vector<36x128xf32>, vector<256x128xf32> -> vector<256x128xf32>
    %63 = arith.addf %57, %62 : vector<256x128xf32>
    %64 = vector.extract_strided_slice %63 {offsets = [0, 0], sizes = [256, 96], strides = [1, 1]} : vector<256x128xf32> to vector<256x96xf32>
    %65 = arith.negf %64 : vector<256x96xf32>
    %66 = math.exp %65 : vector<256x96xf32>
    %cst_78 = arith.constant 1.000000e+00 : f32
    %67 = vector.broadcast %cst_78 : f32 to vector<256x96xf32>
    %68 = arith.addf %67, %66 : vector<256x96xf32>
    %69 = arith.divf %67, %68 : vector<256x96xf32>
    %70 = vector.extract_strided_slice %69 {offsets = [0, 0], sizes = [256, 32], strides = [1, 1]} : vector<256x96xf32> to vector<256x32xf32>
    %71 = vector.extract_strided_slice %69 {offsets = [0, 32], sizes = [256, 32], strides = [1, 1]} : vector<256x96xf32> to vector<256x32xf32>
    %72 = vector.extract_strided_slice %69 {offsets = [0, 64], sizes = [256, 32], strides = [1, 1]} : vector<256x96xf32> to vector<256x32xf32>
    %73 = vector.extract_strided_slice %63 {offsets = [0, 96], sizes = [256, 32], strides = [1, 1]} : vector<256x128xf32> to vector<256x32xf32>
    %74 = math.tanh %73 : vector<256x32xf32>
    %c0_79 = arith.constant 0 : index
    %c0_80 = arith.constant 0 : index
    %c0_81 = arith.constant 0 : index
    %75 = vector.load %arg6[%c0_79, %c0_80, %c0_81] : memref<1x256x32xf32, #tpu.memory_space<vmem>>, vector<1x256x32xf32>
    %76 = vector.shape_cast %75 : vector<1x256x32xf32> to vector<256x32xf32>
    %77 = arith.mulf %71, %76 : vector<256x32xf32>
    %78 = arith.mulf %70, %74 : vector<256x32xf32>
    %79 = arith.addf %77, %78 : vector<256x32xf32>
    %80 = math.tanh %79 : vector<256x32xf32>
    %81 = arith.mulf %72, %80 : vector<256x32xf32>
    %c0_82 = arith.constant 0 : index
    %c0_83 = arith.constant 0 : index
    %c0_84 = arith.constant 0 : index
    %82 = vector.load %arg6[%c0_82, %c0_83, %c0_84] : memref<1x256x32xf32, #tpu.memory_space<vmem>>, vector<1x256x32xf32>
    %83 = vector.shape_cast %82 : vector<1x256x32xf32> to vector<256x32xf32>
    %84 = vector.shape_cast %79 : vector<256x32xf32> to vector<1x256x32xf32>
    tpu.vector_store %arg6[%c0_82, %c0_83, %c0_84], %84 {strides = array<i32>} : memref<1x256x32xf32, #tpu.memory_space<vmem>>, vector<1x256x32xf32>,
    %c0_85 = arith.constant 0 : index
    %c0_86 = arith.constant 0 : index
    %c0_87 = arith.constant 0 : index
    %c0_88 = arith.constant 0 : index
    %85 = vector.load %arg5[%c0_85, %c0_86, %c0_87, %c0_88] : memref<1x1x256x32xf32, #tpu.memory_space<vmem>>, vector<1x1x256x32xf32>
    %86 = vector.shape_cast %85 : vector<1x1x256x32xf32> to vector<256x32xf32>
    %87 = vector.shape_cast %81 : vector<256x32xf32> to vector<1x1x256x32xf32>
    tpu.vector_store %arg5[%c0_85, %c0_86, %c0_87, %c0_88], %87 {strides = array<i32>} : memref<1x1x256x32xf32, #tpu.memory_space<vmem>>, vector<1x1x256x32xf32>,
    %88 = vector.shape_cast %81 : vector<256x32xf32> to vector<16x16x32xf32>
    %c1_89 = arith.constant 1 : index
    %c1_90 = arith.constant 1 : index
    %c4 = arith.constant 4 : index
    %89 = vector.load %arg7[%c1_89, %c1_90, %c4] : memref<18x18x36xf32, #tpu.memory_space<vmem>>, vector<16x16x32xf32>
    tpu.vector_store %arg7[%c1_89, %c1_90, %c4], %88 {strides = array<i32>} : memref<18x18x36xf32, #tpu.memory_space<vmem>>, vector<16x16x32xf32>,
    return
  }
  func.func @transform_0(%arg0: i32, %arg1: i32) -> (i32, i32, i32, i32) {
    %c0_i32 = arith.constant 0 : i32
    %c0_i32_0 = arith.constant 0 : i32
    %c0_i32_1 = arith.constant 0 : i32
    return %arg1, %arg0, %c0_i32, %c0_i32_0 : i32, i32, i32, i32
  }
  func.func @transform_1(%arg0: i32, %arg1: i32) -> (i32, i32, i32, i32) {
    %c0_i32 = arith.constant 0 : i32
    %c0_i32_0 = arith.constant 0 : i32
    %c0_i32_1 = arith.constant 0 : i32
    %c0_i32_2 = arith.constant 0 : i32
    %c0_i32_3 = arith.constant 0 : i32
    return %c0_i32, %c0_i32_0, %c0_i32_1, %c0_i32_2 : i32, i32, i32, i32
  }
  func.func @transform_2(%arg0: i32, %arg1: i32) -> (i32, i32) {
    %c0_i32 = arith.constant 0 : i32
    %c0_i32_0 = arith.constant 0 : i32
    %c0_i32_1 = arith.constant 0 : i32
    return %c0_i32, %c0_i32_0 : i32, i32
  }
  func.func @transform_3(%arg0: i32, %arg1: i32) -> (i32, i32, i32, i32) {
    %c0_i32 = arith.constant 0 : i32
    %c0_i32_0 = arith.constant 0 : i32
    %c0_i32_1 = arith.constant 0 : i32
    return %arg1, %arg0, %c0_i32, %c0_i32_0 : i32, i32, i32, i32
  }
  func.func @transform_4(%arg0: i32, %arg1: i32) -> (i32, i32, i32) {
    %c0_i32 = arith.constant 0 : i32
    %c0_i32_0 = arith.constant 0 : i32
    %c0_i32_1 = arith.constant 0 : i32
    return %arg0, %c0_i32, %c0_i32_0 : i32, i32, i32
  }
}

module attributes {stable_mosaic.version = 11 : i64} {
  func.func @_convlstm_layer_kernel(%arg0: i32, %arg1: i32, %arg2: memref<1x1x256x32xf32, #tpu.memory_space<vmem>>, %arg3: memref<3x3x64x128xf32, #tpu.memory_space<vmem>>, %arg4: memref<1x128xf32, #tpu.memory_space<vmem>>, %arg5: memref<1x1x256x32xf32, #tpu.memory_space<vmem>>, %arg6: memref<1x256x32xf32, #tpu.memory_space<vmem>>, %arg7: memref<18x18x64xf32, #tpu.memory_space<vmem>>) attributes {dimension_semantics = [#tpu.dimension_semantics<parallel>, #tpu.dimension_semantics<arbitrary>], iteration_bounds = array<i64: 2, 8>, scalar_prefetch = 0 : i64, scratch_operands = 1 : i64, tpu.core_type = #tpu.core_type<tc>, window_params = [{transform_indices = @transform_0, window_bounds = array<i64: 1, 1, 256, 32>}, {pipeline_mode = #tpu.pipeline_mode<synchronous>, transform_indices = @transform_1, window_bounds = array<i64: 3, 3, 64, 128>}, {pipeline_mode = #tpu.pipeline_mode<synchronous>, transform_indices = @transform_2, window_bounds = array<i64: 1, 128>}, {transform_indices = @transform_3, window_bounds = array<i64: 1, 1, 256, 32>}, {transform_indices = @transform_4, window_bounds = array<i64: 1, 256, 32>}]} {
    %c0_i32 = arith.constant 0 : i32
    %0 = arith.cmpi eq, %arg1, %c0_i32 : i32
    %1 = arith.extui %0 : i1 to i32
    %c0_i32_0 = arith.constant 0 : i32
    %2 = arith.cmpi ne, %1, %c0_i32_0 : i32
    scf.if %2 {
      %cst_91 = arith.constant 0.000000e+00 : f32
      %90 = vector.broadcast %cst_91 : f32 to vector<18x18x64xf32>
      %c0_92 = arith.constant 0 : index
      %c0_93 = arith.constant 0 : index
      %c0_94 = arith.constant 0 : index
      %91 = vector.load %arg7[%c0_92, %c0_93, %c0_94] : memref<18x18x64xf32, #tpu.memory_space<vmem>>, vector<18x18x64xf32>
      tpu.vector_store %arg7[%c0_92, %c0_93, %c0_94], %90 {strides = array<i32>} : memref<18x18x64xf32, #tpu.memory_space<vmem>>, vector<18x18x64xf32>,
      %cst_95 = arith.constant 0.000000e+00 : f32
      %92 = vector.broadcast %cst_95 : f32 to vector<1x256x32xf32>
      %c0_96 = arith.constant 0 : index
      %c0_97 = arith.constant 0 : index
      %c0_98 = arith.constant 0 : index
      %93 = vector.load %arg6[%c0_96, %c0_97, %c0_98] : memref<1x256x32xf32, #tpu.memory_space<vmem>>, vector<1x256x32xf32>
      tpu.vector_store %arg6[%c0_96, %c0_97, %c0_98], %92 {strides = array<i32>} : memref<1x256x32xf32, #tpu.memory_space<vmem>>, vector<1x256x32xf32>,
    } else {
    }
    %c0 = arith.constant 0 : index
    %c0_1 = arith.constant 0 : index
    %c0_2 = arith.constant 0 : index
    %c0_3 = arith.constant 0 : index
    %3 = vector.load %arg2[%c0, %c0_1, %c0_2, %c0_3] : memref<1x1x256x32xf32, #tpu.memory_space<vmem>>, vector<1x1x256x32xf32>
    %4 = vector.shape_cast %3 : vector<1x1x256x32xf32> to vector<256x32xf32>
    %5 = vector.shape_cast %4 : vector<256x32xf32> to vector<16x16x32xf32>
    %c1 = arith.constant 1 : index
    %c1_4 = arith.constant 1 : index
    %c0_5 = arith.constant 0 : index
    %6 = vector.load %arg7[%c1, %c1_4, %c0_5] : memref<18x18x64xf32, #tpu.memory_space<vmem>>, vector<16x16x32xf32>
    tpu.vector_store %arg7[%c1, %c1_4, %c0_5], %5 {strides = array<i32>} : memref<18x18x64xf32, #tpu.memory_space<vmem>>, vector<16x16x32xf32>,
    %c0_6 = arith.constant 0 : index
    %c0_7 = arith.constant 0 : index
    %7 = vector.load %arg4[%c0_6, %c0_7] : memref<1x128xf32, #tpu.memory_space<vmem>>, vector<1x128xf32>
    %8 = vector.shape_cast %7 : vector<1x128xf32> to vector<1x128xf32>
    %9 = vector.broadcast %8 : vector<1x128xf32> to vector<256x128xf32>
    %c0_8 = arith.constant 0 : index
    %c0_9 = arith.constant 0 : index
    %c0_10 = arith.constant 0 : index
    %10 = vector.load %arg7[%c0_8, %c0_9, %c0_10] : memref<18x18x64xf32, #tpu.memory_space<vmem>>, vector<16x16x64xf32>
    %11 = vector.shape_cast %10 : vector<16x16x64xf32> to vector<256x64xf32>
    %c0_11 = arith.constant 0 : index
    %c0_12 = arith.constant 0 : index
    %c0_13 = arith.constant 0 : index
    %c0_14 = arith.constant 0 : index
    %12 = vector.load %arg3[%c0_11, %c0_12, %c0_13, %c0_14] : memref<3x3x64x128xf32, #tpu.memory_space<vmem>>, vector<1x1x64x128xf32>
    %13 = vector.shape_cast %12 : vector<1x1x64x128xf32> to vector<64x128xf32>
    %cst = arith.constant dense<0.000000e+00> : vector<256x128xf32>
    %14 = tpu.matmul %11, %13, %cst {dimension_numbers = #tpu.dot_dimension_numbers<[1], [0], [0], [1], [0, 0, 1, 1], [], []>} : vector<256x64xf32>, vector<64x128xf32>, vector<256x128xf32> -> vector<256x128xf32>
    %15 = arith.addf %9, %14 : vector<256x128xf32>
    %c0_15 = arith.constant 0 : index
    %c1_16 = arith.constant 1 : index
    %c0_17 = arith.constant 0 : index
    %16 = vector.load %arg7[%c0_15, %c1_16, %c0_17] : memref<18x18x64xf32, #tpu.memory_space<vmem>>, vector<16x16x64xf32>
    %17 = vector.shape_cast %16 : vector<16x16x64xf32> to vector<256x64xf32>
    %c0_18 = arith.constant 0 : index
    %c1_19 = arith.constant 1 : index
    %c0_20 = arith.constant 0 : index
    %c0_21 = arith.constant 0 : index
    %18 = vector.load %arg3[%c0_18, %c1_19, %c0_20, %c0_21] : memref<3x3x64x128xf32, #tpu.memory_space<vmem>>, vector<1x1x64x128xf32>
    %19 = vector.shape_cast %18 : vector<1x1x64x128xf32> to vector<64x128xf32>
    %cst_22 = arith.constant dense<0.000000e+00> : vector<256x128xf32>
    %20 = tpu.matmul %17, %19, %cst_22 {dimension_numbers = #tpu.dot_dimension_numbers<[1], [0], [0], [1], [0, 0, 1, 1], [], []>} : vector<256x64xf32>, vector<64x128xf32>, vector<256x128xf32> -> vector<256x128xf32>
    %21 = arith.addf %15, %20 : vector<256x128xf32>
    %c0_23 = arith.constant 0 : index
    %c2 = arith.constant 2 : index
    %c0_24 = arith.constant 0 : index
    %22 = vector.load %arg7[%c0_23, %c2, %c0_24] : memref<18x18x64xf32, #tpu.memory_space<vmem>>, vector<16x16x64xf32>
    %23 = vector.shape_cast %22 : vector<16x16x64xf32> to vector<256x64xf32>
    %c0_25 = arith.constant 0 : index
    %c2_26 = arith.constant 2 : index
    %c0_27 = arith.constant 0 : index
    %c0_28 = arith.constant 0 : index
    %24 = vector.load %arg3[%c0_25, %c2_26, %c0_27, %c0_28] : memref<3x3x64x128xf32, #tpu.memory_space<vmem>>, vector<1x1x64x128xf32>
    %25 = vector.shape_cast %24 : vector<1x1x64x128xf32> to vector<64x128xf32>
    %cst_29 = arith.constant dense<0.000000e+00> : vector<256x128xf32>
    %26 = tpu.matmul %23, %25, %cst_29 {dimension_numbers = #tpu.dot_dimension_numbers<[1], [0], [0], [1], [0, 0, 1, 1], [], []>} : vector<256x64xf32>, vector<64x128xf32>, vector<256x128xf32> -> vector<256x128xf32>
    %27 = arith.addf %21, %26 : vector<256x128xf32>
    %c1_30 = arith.constant 1 : index
    %c0_31 = arith.constant 0 : index
    %c0_32 = arith.constant 0 : index
    %28 = vector.load %arg7[%c1_30, %c0_31, %c0_32] : memref<18x18x64xf32, #tpu.memory_space<vmem>>, vector<16x16x64xf32>
    %29 = vector.shape_cast %28 : vector<16x16x64xf32> to vector<256x64xf32>
    %c1_33 = arith.constant 1 : index
    %c0_34 = arith.constant 0 : index
    %c0_35 = arith.constant 0 : index
    %c0_36 = arith.constant 0 : index
    %30 = vector.load %arg3[%c1_33, %c0_34, %c0_35, %c0_36] : memref<3x3x64x128xf32, #tpu.memory_space<vmem>>, vector<1x1x64x128xf32>
    %31 = vector.shape_cast %30 : vector<1x1x64x128xf32> to vector<64x128xf32>
    %cst_37 = arith.constant dense<0.000000e+00> : vector<256x128xf32>
    %32 = tpu.matmul %29, %31, %cst_37 {dimension_numbers = #tpu.dot_dimension_numbers<[1], [0], [0], [1], [0, 0, 1, 1], [], []>} : vector<256x64xf32>, vector<64x128xf32>, vector<256x128xf32> -> vector<256x128xf32>
    %33 = arith.addf %27, %32 : vector<256x128xf32>
    %c1_38 = arith.constant 1 : index
    %c1_39 = arith.constant 1 : index
    %c0_40 = arith.constant 0 : index
    %34 = vector.load %arg7[%c1_38, %c1_39, %c0_40] : memref<18x18x64xf32, #tpu.memory_space<vmem>>, vector<16x16x64xf32>
    %35 = vector.shape_cast %34 : vector<16x16x64xf32> to vector<256x64xf32>
    %c1_41 = arith.constant 1 : index
    %c1_42 = arith.constant 1 : index
    %c0_43 = arith.constant 0 : index
    %c0_44 = arith.constant 0 : index
    %36 = vector.load %arg3[%c1_41, %c1_42, %c0_43, %c0_44] : memref<3x3x64x128xf32, #tpu.memory_space<vmem>>, vector<1x1x64x128xf32>
    %37 = vector.shape_cast %36 : vector<1x1x64x128xf32> to vector<64x128xf32>
    %cst_45 = arith.constant dense<0.000000e+00> : vector<256x128xf32>
    %38 = tpu.matmul %35, %37, %cst_45 {dimension_numbers = #tpu.dot_dimension_numbers<[1], [0], [0], [1], [0, 0, 1, 1], [], []>} : vector<256x64xf32>, vector<64x128xf32>, vector<256x128xf32> -> vector<256x128xf32>
    %39 = arith.addf %33, %38 : vector<256x128xf32>
    %c1_46 = arith.constant 1 : index
    %c2_47 = arith.constant 2 : index
    %c0_48 = arith.constant 0 : index
    %40 = vector.load %arg7[%c1_46, %c2_47, %c0_48] : memref<18x18x64xf32, #tpu.memory_space<vmem>>, vector<16x16x64xf32>
    %41 = vector.shape_cast %40 : vector<16x16x64xf32> to vector<256x64xf32>
    %c1_49 = arith.constant 1 : index
    %c2_50 = arith.constant 2 : index
    %c0_51 = arith.constant 0 : index
    %c0_52 = arith.constant 0 : index
    %42 = vector.load %arg3[%c1_49, %c2_50, %c0_51, %c0_52] : memref<3x3x64x128xf32, #tpu.memory_space<vmem>>, vector<1x1x64x128xf32>
    %43 = vector.shape_cast %42 : vector<1x1x64x128xf32> to vector<64x128xf32>
    %cst_53 = arith.constant dense<0.000000e+00> : vector<256x128xf32>
    %44 = tpu.matmul %41, %43, %cst_53 {dimension_numbers = #tpu.dot_dimension_numbers<[1], [0], [0], [1], [0, 0, 1, 1], [], []>} : vector<256x64xf32>, vector<64x128xf32>, vector<256x128xf32> -> vector<256x128xf32>
    %45 = arith.addf %39, %44 : vector<256x128xf32>
    %c2_54 = arith.constant 2 : index
    %c0_55 = arith.constant 0 : index
    %c0_56 = arith.constant 0 : index
    %46 = vector.load %arg7[%c2_54, %c0_55, %c0_56] : memref<18x18x64xf32, #tpu.memory_space<vmem>>, vector<16x16x64xf32>
    %47 = vector.shape_cast %46 : vector<16x16x64xf32> to vector<256x64xf32>
    %c2_57 = arith.constant 2 : index
    %c0_58 = arith.constant 0 : index
    %c0_59 = arith.constant 0 : index
    %c0_60 = arith.constant 0 : index
    %48 = vector.load %arg3[%c2_57, %c0_58, %c0_59, %c0_60] : memref<3x3x64x128xf32, #tpu.memory_space<vmem>>, vector<1x1x64x128xf32>
    %49 = vector.shape_cast %48 : vector<1x1x64x128xf32> to vector<64x128xf32>
    %cst_61 = arith.constant dense<0.000000e+00> : vector<256x128xf32>
    %50 = tpu.matmul %47, %49, %cst_61 {dimension_numbers = #tpu.dot_dimension_numbers<[1], [0], [0], [1], [0, 0, 1, 1], [], []>} : vector<256x64xf32>, vector<64x128xf32>, vector<256x128xf32> -> vector<256x128xf32>
    %51 = arith.addf %45, %50 : vector<256x128xf32>
    %c2_62 = arith.constant 2 : index
    %c1_63 = arith.constant 1 : index
    %c0_64 = arith.constant 0 : index
    %52 = vector.load %arg7[%c2_62, %c1_63, %c0_64] : memref<18x18x64xf32, #tpu.memory_space<vmem>>, vector<16x16x64xf32>
    %53 = vector.shape_cast %52 : vector<16x16x64xf32> to vector<256x64xf32>
    %c2_65 = arith.constant 2 : index
    %c1_66 = arith.constant 1 : index
    %c0_67 = arith.constant 0 : index
    %c0_68 = arith.constant 0 : index
    %54 = vector.load %arg3[%c2_65, %c1_66, %c0_67, %c0_68] : memref<3x3x64x128xf32, #tpu.memory_space<vmem>>, vector<1x1x64x128xf32>
    %55 = vector.shape_cast %54 : vector<1x1x64x128xf32> to vector<64x128xf32>
    %cst_69 = arith.constant dense<0.000000e+00> : vector<256x128xf32>
    %56 = tpu.matmul %53, %55, %cst_69 {dimension_numbers = #tpu.dot_dimension_numbers<[1], [0], [0], [1], [0, 0, 1, 1], [], []>} : vector<256x64xf32>, vector<64x128xf32>, vector<256x128xf32> -> vector<256x128xf32>
    %57 = arith.addf %51, %56 : vector<256x128xf32>
    %c2_70 = arith.constant 2 : index
    %c2_71 = arith.constant 2 : index
    %c0_72 = arith.constant 0 : index
    %58 = vector.load %arg7[%c2_70, %c2_71, %c0_72] : memref<18x18x64xf32, #tpu.memory_space<vmem>>, vector<16x16x64xf32>
    %59 = vector.shape_cast %58 : vector<16x16x64xf32> to vector<256x64xf32>
    %c2_73 = arith.constant 2 : index
    %c2_74 = arith.constant 2 : index
    %c0_75 = arith.constant 0 : index
    %c0_76 = arith.constant 0 : index
    %60 = vector.load %arg3[%c2_73, %c2_74, %c0_75, %c0_76] : memref<3x3x64x128xf32, #tpu.memory_space<vmem>>, vector<1x1x64x128xf32>
    %61 = vector.shape_cast %60 : vector<1x1x64x128xf32> to vector<64x128xf32>
    %cst_77 = arith.constant dense<0.000000e+00> : vector<256x128xf32>
    %62 = tpu.matmul %59, %61, %cst_77 {dimension_numbers = #tpu.dot_dimension_numbers<[1], [0], [0], [1], [0, 0, 1, 1], [], []>} : vector<256x64xf32>, vector<64x128xf32>, vector<256x128xf32> -> vector<256x128xf32>
    %63 = arith.addf %57, %62 : vector<256x128xf32>
    %64 = vector.extract_strided_slice %63 {offsets = [0, 0], sizes = [256, 96], strides = [1, 1]} : vector<256x128xf32> to vector<256x96xf32>
    %65 = arith.negf %64 : vector<256x96xf32>
    %66 = math.exp %65 : vector<256x96xf32>
    %cst_78 = arith.constant 1.000000e+00 : f32
    %67 = vector.broadcast %cst_78 : f32 to vector<256x96xf32>
    %68 = arith.addf %67, %66 : vector<256x96xf32>
    %69 = arith.divf %67, %68 : vector<256x96xf32>
    %70 = vector.extract_strided_slice %69 {offsets = [0, 0], sizes = [256, 32], strides = [1, 1]} : vector<256x96xf32> to vector<256x32xf32>
    %71 = vector.extract_strided_slice %69 {offsets = [0, 32], sizes = [256, 32], strides = [1, 1]} : vector<256x96xf32> to vector<256x32xf32>
    %72 = vector.extract_strided_slice %69 {offsets = [0, 64], sizes = [256, 32], strides = [1, 1]} : vector<256x96xf32> to vector<256x32xf32>
    %73 = vector.extract_strided_slice %63 {offsets = [0, 96], sizes = [256, 32], strides = [1, 1]} : vector<256x128xf32> to vector<256x32xf32>
    %74 = math.tanh %73 : vector<256x32xf32>
    %c0_79 = arith.constant 0 : index
    %c0_80 = arith.constant 0 : index
    %c0_81 = arith.constant 0 : index
    %75 = vector.load %arg6[%c0_79, %c0_80, %c0_81] : memref<1x256x32xf32, #tpu.memory_space<vmem>>, vector<1x256x32xf32>
    %76 = vector.shape_cast %75 : vector<1x256x32xf32> to vector<256x32xf32>
    %77 = arith.mulf %71, %76 : vector<256x32xf32>
    %78 = arith.mulf %70, %74 : vector<256x32xf32>
    %79 = arith.addf %77, %78 : vector<256x32xf32>
    %80 = math.tanh %79 : vector<256x32xf32>
    %81 = arith.mulf %72, %80 : vector<256x32xf32>
    %c0_82 = arith.constant 0 : index
    %c0_83 = arith.constant 0 : index
    %c0_84 = arith.constant 0 : index
    %82 = vector.load %arg6[%c0_82, %c0_83, %c0_84] : memref<1x256x32xf32, #tpu.memory_space<vmem>>, vector<1x256x32xf32>
    %83 = vector.shape_cast %82 : vector<1x256x32xf32> to vector<256x32xf32>
    %84 = vector.shape_cast %79 : vector<256x32xf32> to vector<1x256x32xf32>
    tpu.vector_store %arg6[%c0_82, %c0_83, %c0_84], %84 {strides = array<i32>} : memref<1x256x32xf32, #tpu.memory_space<vmem>>, vector<1x256x32xf32>,
    %c0_85 = arith.constant 0 : index
    %c0_86 = arith.constant 0 : index
    %c0_87 = arith.constant 0 : index
    %c0_88 = arith.constant 0 : index
    %85 = vector.load %arg5[%c0_85, %c0_86, %c0_87, %c0_88] : memref<1x1x256x32xf32, #tpu.memory_space<vmem>>, vector<1x1x256x32xf32>
    %86 = vector.shape_cast %85 : vector<1x1x256x32xf32> to vector<256x32xf32>
    %87 = vector.shape_cast %81 : vector<256x32xf32> to vector<1x1x256x32xf32>
    tpu.vector_store %arg5[%c0_85, %c0_86, %c0_87, %c0_88], %87 {strides = array<i32>} : memref<1x1x256x32xf32, #tpu.memory_space<vmem>>, vector<1x1x256x32xf32>,
    %88 = vector.shape_cast %81 : vector<256x32xf32> to vector<16x16x32xf32>
    %c1_89 = arith.constant 1 : index
    %c1_90 = arith.constant 1 : index
    %c32 = arith.constant 32 : index
    %89 = vector.load %arg7[%c1_89, %c1_90, %c32] : memref<18x18x64xf32, #tpu.memory_space<vmem>>, vector<16x16x32xf32>
    tpu.vector_store %arg7[%c1_89, %c1_90, %c32], %88 {strides = array<i32>} : memref<18x18x64xf32, #tpu.memory_space<vmem>>, vector<16x16x32xf32>,
    return
  }
  func.func @transform_0(%arg0: i32, %arg1: i32) -> (i32, i32, i32, i32) {
    %c0_i32 = arith.constant 0 : i32
    %c0_i32_0 = arith.constant 0 : i32
    %c0_i32_1 = arith.constant 0 : i32
    return %arg1, %arg0, %c0_i32, %c0_i32_0 : i32, i32, i32, i32
  }
  func.func @transform_1(%arg0: i32, %arg1: i32) -> (i32, i32, i32, i32) {
    %c0_i32 = arith.constant 0 : i32
    %c0_i32_0 = arith.constant 0 : i32
    %c0_i32_1 = arith.constant 0 : i32
    %c0_i32_2 = arith.constant 0 : i32
    %c0_i32_3 = arith.constant 0 : i32
    return %c0_i32, %c0_i32_0, %c0_i32_1, %c0_i32_2 : i32, i32, i32, i32
  }
  func.func @transform_2(%arg0: i32, %arg1: i32) -> (i32, i32) {
    %c0_i32 = arith.constant 0 : i32
    %c0_i32_0 = arith.constant 0 : i32
    %c0_i32_1 = arith.constant 0 : i32
    return %c0_i32, %c0_i32_0 : i32, i32
  }
  func.func @transform_3(%arg0: i32, %arg1: i32) -> (i32, i32, i32, i32) {
    %c0_i32 = arith.constant 0 : i32
    %c0_i32_0 = arith.constant 0 : i32
    %c0_i32_1 = arith.constant 0 : i32
    return %arg1, %arg0, %c0_i32, %c0_i32_0 : i32, i32, i32, i32
  }
  func.func @transform_4(%arg0: i32, %arg1: i32) -> (i32, i32, i32) {
    %c0_i32 = arith.constant 0 : i32
    %c0_i32_0 = arith.constant 0 : i32
    %c0_i32_1 = arith.constant 0 : i32
    return %arg0, %c0_i32, %c0_i32_0 : i32, i32, i32
  }
}

</mosaic_0001>

<llo_original>
// kernel: convlstm_forward.3
$region0: #{convlstm_forward.3}
  #allocation0 [shape = 'u32[]', space=smem, size = 0x4, offset = 0x4, fixed_abs, tag = 'smem constant byte address 0x4 - core index']
  #allocation1 [shape = 'u32[144,128]{1,0:T(1,128)}', space=vmem, size = 0x12000, scoped, tag = 'internal scratch']
  #allocation2 [shape = 'f32[18,18,64]{2,1,0:T(8,128)}', space=vmem, size = 0x36000, scoped, tag = 'scratch operand']
  %s0 = inlined_call_operand.vmem [shape: f32[8,2,256,32], index: 0, kind: input, shape index: {}]
  %s1 = inlined_call_operand.vmem [shape: f32[3,3,64,128], index: 1, kind: input, shape index: {}]
  %s2 = inlined_call_operand.vmem [shape: f32[1,128], index: 2, kind: input, shape index: {}]
  %s3 = inlined_call_operand.vmem [shape: f32[8,2,256,32], index: 3, kind: output, shape index: {0}]
  %s4 = inlined_call_operand.hbm [shape: f32[2,256,32], index: 4, kind: output, shape index: {1}]
  %5 = xla_tuple %s3, %s4
  %s6 = sld [smem:[#allocation0]]
  $region57: #{convlstm_forward.3} parent=0
    _
  %s8 = ssub.s32 1, %s6
  %s9 = scalar_select 0, %s8, %s6
  $region1: #{convlstm_forward.3} parent=0
    #allocation3 [shape = 'u8[262144]{0}', space=vmem, size = 0x40000, scoped, tag = 'output window, operand 1']
    #allocation4 [shape = 's32[2]{0}', space=sflag, size = 0x8, scoped, tag = 'scoped memory for convlstm_forward.3']
    %10 = vsyncpa [#allocation4], 0
    %s11 = scalar_lea.sflag [#allocation4], 1
    %12 = vsyncpa %s11, 0
    loop: start=0, step=1, limit=18
    $region2: #{convlstm_forward.3} parent=1 // loop_pre_header
      _
    $region3: #{convlstm_forward.3} parent=1 // loop_header
      %s14 = sphi 0, %s18
      %p15 = scmp.ge.s32.totalorder %s14, 18
      %s21 = sphi 0, %s33
      %s22 = sphi 0, %s29
      %s23 = sphi 0, %s21
      %s24 = sphi 0, %s22
      %s25 = sphi 0, %s23
      %s26 = sphi 0, %s24
      %s38 = sphi 0, %s40
      %s41 = sphi 0, %s38
      %s42 = sphi 0, %s41
      %s58 = sphi 0, %s42
      %s62 = sphi 0, %s62
      %s64 = sphi 0, %s62
      %s65 = sphi 0, %s64
      %s79 = sphi 0, %s65
      %s83 = sphi 0, %s83
      %s85 = sphi 0, %s83
      %s86 = sphi 0, %s85
      %s100 = sphi 0, %s86
      %s108 = sphi 0, %s110
      %s111 = sphi 0, %s108
      %s112 = sphi 0, %s111
      %s128 = sphi 0, %s112
      %s134 = sphi 0, %s136
      %s137 = sphi 0, %s134
      %s138 = sphi 0, %s137
      %s154 = sphi 0, %s138
    $region4: #{convlstm_forward.3} parent=1 // loop_header_branch
      %17 = sbr.rel (%p15) target = $region8
    $region5: #{convlstm_forward.3} parent=1 // loop_body
      %s19 = ssub.s32 %s14, 1
      %s20 = ssub.s32 %s14, 2
      %s27 = sadd.s32 1, %s22
      %p28 = scmp.ge.s32.totalorder %s27, 8
      %s29 = scalar_select %p28, 0, %s27
      %s30 = sadd.s32 1, %s21
      %s31 = scalar_select %p28, %s30, %s21
      %p32 = scmp.ge.s32.totalorder %s31, 2
      %s33 = scalar_select %p32, 0, %s31
      %s34 = ssub.s32 %s22, %s29
      %s35 = ssub.s32 %s21, %s33
      %s36 = sor.u32 %s34, %s35
      %p37 = scmp.eq.s32.totalorder %s36, 0
      %s39 = sadd.s32 %s38, 1
      %s40 = scalar_select %p37, %s38, %s39
      %p43 = pneg %p37
      %p44 = scmp.eq.s32.totalorder %s14, 15
      %p45 = por %p43, %p44
      %p46 = scmp.ne.s32.totalorder %s38, %s41
      %p47 = scmp.eq.s32.totalorder %s14, 0
      %p48 = por %p46, %p47
      %p49 = scmp.ne.s32.totalorder %s38, %s41
      %p50 = scmp.eq.s32.totalorder %s19, 15
      %p51 = por %p49, %p50
      %p52 = scmp.ne.s32.totalorder %s41, %s42
      %p53 = scmp.eq.s32.totalorder %s19, 0
      %p54 = por %p52, %p53
      %p55 = scmp.ne.s32.totalorder %s41, %s42
      %p56 = scmp.eq.s32.totalorder %s20, 15
      %p57 = por %p55, %p56
      %p59 = scmp.ne.s32.totalorder %s42, %s58
      %p60 = scmp.eq.s32.totalorder %s20, 0
      %p61 = por %p59, %p60
      %s63 = sadd.s32 %s62, 1
      %p66 = scmp.eq.s32.totalorder %s14, 15
      %p67 = scmp.ne.s32.totalorder %s62, %s64
      %p68 = scmp.eq.s32.totalorder %s14, 0
      %p69 = por %p67, %p68
      %p70 = scmp.ne.s32.totalorder %s62, %s64
      %p71 = scmp.eq.s32.totalorder %s19, 15
      %p72 = por %p70, %p71
      %p73 = scmp.ne.s32.totalorder %s64, %s65
      %p74 = scmp.eq.s32.totalorder %s19, 0
      %p75 = por %p73, %p74
      %p76 = scmp.ne.s32.totalorder %s64, %s65
      %p77 = scmp.eq.s32.totalorder %s20, 15
      %p78 = por %p76, %p77
      %p80 = scmp.ne.s32.totalorder %s65, %s79
      %p81 = scmp.eq.s32.totalorder %s20, 0
      %p82 = por %p80, %p81
      %s84 = sadd.s32 %s83, 1
      %p87 = scmp.eq.s32.totalorder %s14, 15
      %p88 = scmp.ne.s32.totalorder %s83, %s85
      %p89 = scmp.eq.s32.totalorder %s14, 0
      %p90 = por %p88, %p89
      %p91 = scmp.ne.s32.totalorder %s83, %s85
      %p92 = scmp.eq.s32.totalorder %s19, 15
      %p93 = por %p91, %p92
      %p94 = scmp.ne.s32.totalorder %s85, %s86
      %p95 = scmp.eq.s32.totalorder %s19, 0
      %p96 = por %p94, %p95
      %p97 = scmp.ne.s32.totalorder %s85, %s86
      %p98 = scmp.eq.s32.totalorder %s20, 15
      %p99 = por %p97, %p98
      %p101 = scmp.ne.s32.totalorder %s86, %s100
      %p102 = scmp.eq.s32.totalorder %s20, 0
      %p103 = por %p101, %p102
      %s104 = ssub.s32 %s22, %s29
      %s105 = ssub.s32 %s21, %s33
      %s106 = sor.u32 %s104, %s105
      %p107 = scmp.eq.s32.totalorder %s106, 0
      %s109 = sadd.s32 %s108, 1
      %s110 = scalar_select %p107, %s108, %s109
      %p113 = pneg %p107
      %p114 = scmp.eq.s32.totalorder %s14, 15
      %p115 = por %p113, %p114
      %p116 = scmp.ne.s32.totalorder %s108, %s111
      %p117 = scmp.eq.s32.totalorder %s14, 0
      %p118 = por %p116, %p117
      %p119 = scmp.ne.s32.totalorder %s108, %s111
      %p120 = scmp.eq.s32.totalorder %s19, 15
      %p121 = por %p119, %p120
      %p122 = scmp.ne.s32.totalorder %s111, %s112
      %p123 = scmp.eq.s32.totalorder %s19, 0
      %p124 = por %p122, %p123
      %p125 = scmp.ne.s32.totalorder %s111, %s112
      %p126 = scmp.eq.s32.totalorder %s20, 15
      %p127 = por %p125, %p126
      %p129 = scmp.ne.s32.totalorder %s112, %s128
      %p130 = scmp.eq.s32.totalorder %s20, 0
      %p131 = por %p129, %p130
      %s132 = ssub.s32 %s21, %s33
      %p133 = scmp.eq.s32.totalorder %s132, 0
      %s135 = sadd.s32 %s134, 1
      %s136 = scalar_select %p133, %s134, %s135
      %p139 = pneg %p133
      %p140 = scmp.eq.s32.totalorder %s14, 15
      %p141 = por %p139, %p140
      %p142 = scmp.ne.s32.totalorder %s134, %s137
      %p143 = scmp.eq.s32.totalorder %s14, 0
      %p144 = por %p142, %p143
      %p145 = scmp.ne.s32.totalorder %s134, %s137
      %p146 = scmp.eq.s32.totalorder %s19, 15
      %p147 = por %p145, %p146
      %p148 = scmp.ne.s32.totalorder %s137, %s138
      %p149 = scmp.eq.s32.totalorder %s19, 0
      %p150 = por %p148, %p149
      %p151 = scmp.ne.s32.totalorder %s137, %s138
      %p152 = scmp.eq.s32.totalorder %s20, 15
      %p153 = por %p151, %p152
      %p155 = scmp.ne.s32.totalorder %s138, %s154
      %p156 = scmp.eq.s32.totalorder %s20, 0
      %p157 = por %p155, %p156
      %p158 = scmp.le.s32.totalorder 1, %s14
      %p159 = scmp.lt.s32.totalorder %s14, 17
      %p160 = pnand %p158, %p159
      %p161 = pneg %p160
      // Predicated region
      $region9: #{convlstm_forward.3} parent=5 // pred_check
        _
      $region10: #{convlstm_forward.3} parent=5 // pred_check_branch
        %163 = sbr.rel (%p160) target = $region12
      $region11: #{convlstm_forward.3} parent=5 // pred_region
        %s164 = ssub.s32 %s14, 1
        // Predicated region
        $region13: #{convlstm_forward.3} parent=11 // pred_check
          %p165 = pneg %p75
        $region14: #{convlstm_forward.3} parent=11 // pred_check_branch
          %167 = sbr.rel (%p165) target = $region16
        $region15: #{convlstm_forward.3} parent=11 // pred_region
          _
        $region16: #{convlstm_forward.3} parent=11 // pred_fallthru
          _
        // Predicated region
        $region17: #{convlstm_forward.3} parent=11 // pred_check
          %p168 = pneg %p96
        $region18: #{convlstm_forward.3} parent=11 // pred_check_branch
          %170 = sbr.rel (%p168) target = $region20
        $region19: #{convlstm_forward.3} parent=11 // pred_region
          _
        $region20: #{convlstm_forward.3} parent=11 // pred_fallthru
          _
      $region12: #{convlstm_forward.3} parent=5 // pred_fallthru
        _
      %p171 = scmp.lt.s32.totalorder %s14, 16
      // Predicated region
      $region21: #{convlstm_forward.3} parent=5 // pred_check
        %p172 = pneg %p171
      $region22: #{convlstm_forward.3} parent=5 // pred_check_branch
        %174 = sbr.rel (%p172) target = $region24
      $region23: #{convlstm_forward.3} parent=5 // pred_region
        // Predicated region
        $region25: #{convlstm_forward.3} parent=23 // pred_check
          %p175 = pneg %p48
        $region26: #{convlstm_forward.3} parent=23 // pred_check_branch
          %177 = sbr.rel (%p175) target = $region28
        $region27: #{convlstm_forward.3} parent=23 // pred_region
          %p178 = scmp.lt.s32.totalorder %s22, 7
          %s179 = scalar_select %p178, %s22, 7
          %p180 = scmp.lt.s32.totalorder %s21, 1
          %s181 = scalar_select %p180, %s21, 1
          %s182 = smul.addr %s181, 32
          %s183 = smul.addr %s179, 64
          %s184 = sadd.s32 %s182, %s183
          %s185 = smul.addr %s184, 8
          %s186 = scalar_lea.vmem %s0, %s185
        $region28: #{convlstm_forward.3} parent=23 // pred_fallthru
          _
      $region24: #{convlstm_forward.3} parent=5 // pred_fallthru
        _
      %p187 = scmp.le.s32.totalorder 1, %s14
      %p188 = scmp.lt.s32.totalorder %s14, 17
      %p189 = pnand %p187, %p188
      %p190 = pneg %p189
      // Predicated region
      $region29: #{convlstm_forward.3} parent=5 // pred_check
        _
      $region30: #{convlstm_forward.3} parent=5 // pred_check_branch
        %192 = sbr.rel (%p189) target = $region32
      $region31: #{convlstm_forward.3} parent=5 // pred_region
        %s193 = ssub.s32 %s14, 1
        %p194 = scmp.lt.s32.totalorder %s24, 7
        %s195 = scalar_select %p194, %s24, 7
        %p196 = scmp.lt.s32.totalorder %s23, 1
        %s197 = scalar_select %p196, %s23, 1
        %s198 = smul.addr %s197, 32
        %s199 = smul.addr %s195, 64
        %s200 = sadd.s32 %s198, %s199
        %s201 = smul.addr %s200, 8
        %s202 = scalar_lea.vmem %s0, %s201
        %p203 = pneg %p54
        %p204 = pneg %p51
        %p205 = pneg %p75
        %p206 = pneg %p72
        %p207 = pneg %p96
        %p208 = pneg %p93
        %p209 = pneg %p124
        %p210 = pneg %p121
        %p211 = scmp.lt.s32.totalorder %s24, 7
        %s212 = scalar_select %p211, %s24, 7
        %p213 = scmp.lt.s32.totalorder %s23, 1
        %s214 = scalar_select %p213, %s23, 1
        %s215 = smul.addr %s214, 32
        %s216 = smul.addr %s212, 64
        %s217 = sadd.s32 %s215, %s216
        %s218 = smul.addr %s217, 8
        %s219 = scalar_lea.vmem %s3, %s218
        %p220 = pneg %p150
        %p221 = pneg %p147
        %s222 = sand.u32 %s137, 1
        %s223 = scalar_lea.sflag [#allocation4], %s222
        %s224 = sand.u32 %s137, 1
        %s225 = smul.addr %s224, 256
        %s226 = scalar_lea.vmem [#allocation3], %s225
        %p227 = scmp.lt.s32.totalorder %s24, 7
        %s228 = scalar_select %p227, %s24, 7
        %p229 = scmp.lt.s32.totalorder %s23, 1
        %s230 = scalar_select %p229, %s23, 1
        %s231 = smul.addr %s230, 32
        %s232 = smul.addr %s228, 64
        %s233 = sadd.s32 %s231, %s232
        %s234 = smul.addr %s233, 8
        %s235 = scalar_lea.vmem %s0, %s234
        %p236 = scmp.lt.s32.totalorder %s24, 7
        %s237 = scalar_select %p236, %s24, 7
        %p238 = scmp.lt.s32.totalorder %s23, 1
        %s239 = scalar_select %p238, %s23, 1
        %s240 = smul.addr %s239, 32
        %s241 = smul.addr %s237, 64
        %s242 = sadd.s32 %s240, %s241
        %s243 = smul.addr %s242, 8
        %s244 = scalar_lea.vmem %s3, %s243
        %p245 = scmp.eq.s32.totalorder %s24, 0
        // Predicated region
        $region33: #{convlstm_forward.3} parent=31 // pred_check
          %p246 = pneg %p245
        $region34: #{convlstm_forward.3} parent=31 // pred_check_branch
          %248 = sbr.rel (%p246) target = $region36
        $region35: #{convlstm_forward.3} parent=31 // pred_region
          %vm249 = vcmask 523264
          %250 = vst.msk [vmem:[#allocation2] sm:$0xff] %vm249, 0.0
          %251 = vst.msk [vmem:[#allocation2 + $0x8] sm:$0xff] %vm249, 0.0
          %vm252 = vcmask 517120
          %253 = vst.msk [vmem:[#allocation2 + $0x10] sm:$0x3] %vm252, 0.0
          %254 = vst.msk [vmem:[#allocation2 + $0x18] sm:$0xff] %vm249, 0.0
          %255 = vst.msk [vmem:[#allocation2 + $0x20] sm:$0xff] %vm249, 0.0
          %256 = vst.msk [vmem:[#allocation2 + $0x28] sm:$0x3] %vm252, 0.0
          %257 = vst.msk [vmem:[#allocation2 + $0x30] sm:$0xff] %vm249, 0.0
          %258 = vst.msk [vmem:[#allocation2 + $0x38] sm:$0xff] %vm249, 0.0
          %259 = vst.msk [vmem:[#allocation2 + $0x40] sm:$0x3] %vm252, 0.0
          %260 = vst.msk [vmem:[#allocation2 + $0x48] sm:$0xff] %vm249, 0.0
          %261 = vst.msk [vmem:[#allocation2 + $0x50] sm:$0xff] %vm249, 0.0
          %262 = vst.msk [vmem:[#allocation2 + $0x58] sm:$0x3] %vm252, 0.0
          %263 = vst.msk [vmem:[#allocation2 + $0x60] sm:$0xff] %vm249, 0.0
          %264 = vst.msk [vmem:[#allocation2 + $0x68] sm:$0xff] %vm249, 0.0
          %265 = vst.msk [vmem:[#allocation2 + $0x70] sm:$0x3] %vm252, 0.0
          %266 = vst.msk [vmem:[#allocation2 + $0x78] sm:$0xff] %vm249, 0.0
          %267 = vst.msk [vmem:[#allocation2 + $0x80] sm:$0xff] %vm249, 0.0
          %268 = vst.msk [vmem:[#allocation2 + $0x88] sm:$0x3] %vm252, 0.0
          %269 = vst.msk [vmem:[#allocation2 + $0x90] sm:$0xff] %vm249, 0.0
          %270 = vst.msk [vmem:[#allocation2 + $0x98] sm:$0xff] %vm249, 0.0
          %271 = vst.msk [vmem:[#allocation2 + $0xa0] sm:$0x3] %vm252, 0.0
          %272 = vst.msk [vmem:[#allocation2 + $0xa8] sm:$0xff] %vm249, 0.0
          %273 = vst.msk [vmem:[#allocation2 + $0xb0] sm:$0xff] %vm249, 0.0
          %274 = vst.msk [vmem:[#allocation2 + $0xb8] sm:$0x3] %vm252, 0.0
          %275 = vst.msk [vmem:[#allocation2 + $0xc0] sm:$0xff] %vm249, 0.0
          %276 = vst.msk [vmem:[#allocation2 + $0xc8] sm:$0xff] %vm249, 0.0
          %277 = vst.msk [vmem:[#allocation2 + $0xd0] sm:$0x3] %vm252, 0.0
          %278 = vst.msk [vmem:[#allocation2 + $0xd8] sm:$0xff] %vm249, 0.0
          %279 = vst.msk [vmem:[#allocation2 + $0xe0] sm:$0xff] %vm249, 0.0
          %280 = vst.msk [vmem:[#allocation2 + $0xe8] sm:$0x3] %vm252, 0.0
          %281 = vst.msk [vmem:[#allocation2 + $0xf0] sm:$0xff] %vm249, 0.0
          %282 = vst.msk [vmem:[#allocation2 + $0xf8] sm:$0xff] %vm249, 0.0
          %283 = vst.msk [vmem:[#allocation2 + $0x100] sm:$0x3] %vm252, 0.0
          %284 = vst.msk [vmem:[#allocation2 + $0x108] sm:$0xff] %vm249, 0.0
          %285 = vst.msk [vmem:[#allocation2 + $0x110] sm:$0xff] %vm249, 0.0
          %286 = vst.msk [vmem:[#allocation2 + $0x118] sm:$0x3] %vm252, 0.0
          %287 = vst.msk [vmem:[#allocation2 + $0x120] sm:$0xff] %vm249, 0.0
          %288 = vst.msk [vmem:[#allocation2 + $0x128] sm:$0xff] %vm249, 0.0
          %289 = vst.msk [vmem:[#allocation2 + $0x130] sm:$0x3] %vm252, 0.0
          %290 = vst.msk [vmem:[#allocation2 + $0x138] sm:$0xff] %vm249, 0.0
          %291 = vst.msk [vmem:[#allocation2 + $0x140] sm:$0xff] %vm249, 0.0
          %292 = vst.msk [vmem:[#allocation2 + $0x148] sm:$0x3] %vm252, 0.0
          %293 = vst.msk [vmem:[#allocation2 + $0x150] sm:$0xff] %vm249, 0.0
          %294 = vst.msk [vmem:[#allocation2 + $0x158] sm:$0xff] %vm249, 0.0
          %295 = vst.msk [vmem:[#allocation2 + $0x160] sm:$0x3] %vm252, 0.0
          %296 = vst.msk [vmem:[#allocation2 + $0x168] sm:$0xff] %vm249, 0.0
          %297 = vst.msk [vmem:[#allocation2 + $0x170] sm:$0xff] %vm249, 0.0
          %298 = vst.msk [vmem:[#allocation2 + $0x178] sm:$0x3] %vm252, 0.0
          %299 = vst.msk [vmem:[#allocation2 + $0x180] sm:$0xff] %vm249, 0.0
          %300 = vst.msk [vmem:[#allocation2 + $0x188] sm:$0xff] %vm249, 0.0
          %301 = vst.msk [vmem:[#allocation2 + $0x190] sm:$0x3] %vm252, 0.0
          %302 = vst.msk [vmem:[#allocation2 + $0x198] sm:$0xff] %vm249, 0.0
          %303 = vst.msk [vmem:[#allocation2 + $0x1a0] sm:$0xff] %vm249, 0.0
          %304 = vst.msk [vmem:[#allocation2 + $0x1a8] sm:$0x3] %vm252, 0.0
          %vm305 = vcmask 261120
          %306 = vst.msk [vmem:[%s226] sm:$0xff] %vm305, 0.0
          %307 = vst.msk [vmem:[%s226 + $0x8] sm:$0xff] %vm305, 0.0
          %308 = vst.msk [vmem:[%s226 + $0x10] sm:$0xff] %vm305, 0.0
          %309 = vst.msk [vmem:[%s226 + $0x18] sm:$0xff] %vm305, 0.0
          %310 = vst.msk [vmem:[%s226 + $0x20] sm:$0xff] %vm305, 0.0
          %311 = vst.msk [vmem:[%s226 + $0x28] sm:$0xff] %vm305, 0.0
          %312 = vst.msk [vmem:[%s226 + $0x30] sm:$0xff] %vm305, 0.0
          %313 = vst.msk [vmem:[%s226 + $0x38] sm:$0xff] %vm305, 0.0
          %314 = vst.msk [vmem:[%s226 + $0x40] sm:$0xff] %vm305, 0.0
          %315 = vst.msk [vmem:[%s226 + $0x48] sm:$0xff] %vm305, 0.0
          %316 = vst.msk [vmem:[%s226 + $0x50] sm:$0xff] %vm305, 0.0
          %317 = vst.msk [vmem:[%s226 + $0x58] sm:$0xff] %vm305, 0.0
          %318 = vst.msk [vmem:[%s226 + $0x60] sm:$0xff] %vm305, 0.0
          %319 = vst.msk [vmem:[%s226 + $0x68] sm:$0xff] %vm305, 0.0
          %320 = vst.msk [vmem:[%s226 + $0x70] sm:$0xff] %vm305, 0.0
          %321 = vst.msk [vmem:[%s226 + $0x78] sm:$0xff] %vm305, 0.0
          %322 = vst.msk [vmem:[%s226 + $0x80] sm:$0xff] %vm305, 0.0
          %323 = vst.msk [vmem:[%s226 + $0x88] sm:$0xff] %vm305, 0.0
          %324 = vst.msk [vmem:[%s226 + $0x90] sm:$0xff] %vm305, 0.0
          %325 = vst.msk [vmem:[%s226 + $0x98] sm:$0xff] %vm305, 0.0
          %326 = vst.msk [vmem:[%s226 + $0xa0] sm:$0xff] %vm305, 0.0
          %327 = vst.msk [vmem:[%s226 + $0xa8] sm:$0xff] %vm305, 0.0
          %328 = vst.msk [vmem:[%s226 + $0xb0] sm:$0xff] %vm305, 0.0
          %329 = vst.msk [vmem:[%s226 + $0xb8] sm:$0xff] %vm305, 0.0
          %330 = vst.msk [vmem:[%s226 + $0xc0] sm:$0xff] %vm305, 0.0
          %331 = vst.msk [vmem:[%s226 + $0xc8] sm:$0xff] %vm305, 0.0
          %332 = vst.msk [vmem:[%s226 + $0xd0] sm:$0xff] %vm305, 0.0
          %333 = vst.msk [vmem:[%s226 + $0xd8] sm:$0xff] %vm305, 0.0
          %334 = vst.msk [vmem:[%s226 + $0xe0] sm:$0xff] %vm305, 0.0
          %335 = vst.msk [vmem:[%s226 + $0xe8] sm:$0xff] %vm305, 0.0
          %336 = vst.msk [vmem:[%s226 + $0xf0] sm:$0xff] %vm305, 0.0
          %337 = vst.msk [vmem:[%s226 + $0xf8] sm:$0xff] %vm305, 0.0
        $region36: #{convlstm_forward.3} parent=31 // pred_fallthru
          _
        %v338 = vld [vmem:[%s235] sm:$0xff]
        %v339 = vld [vmem:[%s235 + $0x8] sm:$0xff]
        %v340 = vld [vmem:[%s235 + $0x10] sm:$0xff]
        %v341 = vld [vmem:[%s235 + $0x18] sm:$0xff]
        %v342 = vld [vmem:[%s235 + $0x20] sm:$0xff]
        %v343 = vld [vmem:[%s235 + $0x28] sm:$0xff]
        %v344 = vld [vmem:[%s235 + $0x30] sm:$0xff]
        %v345 = vld [vmem:[%s235 + $0x38] sm:$0xff]
        %v346 = vld [vmem:[%s235 + $0x40] sm:$0xff]
        %v347 = vld [vmem:[%s235 + $0x48] sm:$0xff]
        %v348 = vld [vmem:[%s235 + $0x50] sm:$0xff]
        %v349 = vld [vmem:[%s235 + $0x58] sm:$0xff]
        %v350 = vld [vmem:[%s235 + $0x60] sm:$0xff]
        %v351 = vld [vmem:[%s235 + $0x68] sm:$0xff]
        %v352 = vld [vmem:[%s235 + $0x70] sm:$0xff]
        %v353 = vld [vmem:[%s235 + $0x78] sm:$0xff]
        %v354 = vld [vmem:[%s235 + $0x80] sm:$0xff]
        %v355 = vld [vmem:[%s235 + $0x88] sm:$0xff]
        %v356 = vld [vmem:[%s235 + $0x90] sm:$0xff]
        %v357 = vld [vmem:[%s235 + $0x98] sm:$0xff]
        %v358 = vld [vmem:[%s235 + $0xa0] sm:$0xff]
        %v359 = vld [vmem:[%s235 + $0xa8] sm:$0xff]
        %v360 = vld [vmem:[%s235 + $0xb0] sm:$0xff]
        %v361 = vld [vmem:[%s235 + $0xb8] sm:$0xff]
        %v362 = vld [vmem:[%s235 + $0xc0] sm:$0xff]
        %v363 = vld [vmem:[%s235 + $0xc8] sm:$0xff]
        %v364 = vld [vmem:[%s235 + $0xd0] sm:$0xff]
        %v365 = vld [vmem:[%s235 + $0xd8] sm:$0xff]
        %v366 = vld [vmem:[%s235 + $0xe0] sm:$0xff]
        %v367 = vld [vmem:[%s235 + $0xe8] sm:$0xff]
        %v368 = vld [vmem:[%s235 + $0xf0] sm:$0xff]
        %v369 = vld [vmem:[%s235 + $0xf8] sm:$0xff]
        %s370 = scalar_lea.vmem [#allocation2], 24
        %vm371 = vcmask 261120
        %372 = vst.msk [vmem:[%s370 + $0x1] sm:$0xff] %vm371, %v338
        %373 = vst.msk [vmem:[%s370 + $0x9] sm:$0xff] %vm371, %v339
        %374 = vst.msk [vmem:[%s370 + $0x19] sm:$0xff] %vm371, %v340
        %375 = vst.msk [vmem:[%s370 + $0x21] sm:$0xff] %vm371, %v341
        %376 = vst.msk [vmem:[%s370 + $0x31] sm:$0xff] %vm371, %v342
        %377 = vst.msk [vmem:[%s370 + $0x39] sm:$0xff] %vm371, %v343
        %378 = vst.msk [vmem:[%s370 + $0x49] sm:$0xff] %vm371, %v344
        %379 = vst.msk [vmem:[%s370 + $0x51] sm:$0xff] %vm371, %v345
        %380 = vst.msk [vmem:[%s370 + $0x61] sm:$0xff] %vm371, %v346
        %381 = vst.msk [vmem:[%s370 + $0x69] sm:$0xff] %vm371, %v347
        %382 = vst.msk [vmem:[%s370 + $0x79] sm:$0xff] %vm371, %v348
        %383 = vst.msk [vmem:[%s370 + $0x81] sm:$0xff] %vm371, %v349
        %384 = vst.msk [vmem:[%s370 + $0x91] sm:$0xff] %vm371, %v350
        %385 = vst.msk [vmem:[%s370 + $0x99] sm:$0xff] %vm371, %v351
        %386 = vst.msk [vmem:[%s370 + $0xa9] sm:$0xff] %vm371, %v352
        %387 = vst.msk [vmem:[%s370 + $0xb1] sm:$0xff] %vm371, %v353
        %388 = vst.msk [vmem:[%s370 + $0xc1] sm:$0xff] %vm371, %v354
        %389 = vst.msk [vmem:[%s370 + $0xc9] sm:$0xff] %vm371, %v355
        %390 = vst.msk [vmem:[%s370 + $0xd9] sm:$0xff] %vm371, %v356
        %391 = vst.msk [vmem:[%s370 + $0xe1] sm:$0xff] %vm371, %v357
        %392 = vst.msk [vmem:[%s370 + $0xf1] sm:$0xff] %vm371, %v358
        %393 = vst.msk [vmem:[%s370 + $0xf9] sm:$0xff] %vm371, %v359
        %394 = vst.msk [vmem:[%s370 + $0x109] sm:$0xff] %vm371, %v360
        %395 = vst.msk [vmem:[%s370 + $0x111] sm:$0xff] %vm371, %v361
        %396 = vst.msk [vmem:[%s370 + $0x121] sm:$0xff] %vm371, %v362
        %397 = vst.msk [vmem:[%s370 + $0x129] sm:$0xff] %vm371, %v363
        %398 = vst.msk [vmem:[%s370 + $0x139] sm:$0xff] %vm371, %v364
        %399 = vst.msk [vmem:[%s370 + $0x141] sm:$0xff] %vm371, %v365
        %400 = vst.msk [vmem:[%s370 + $0x151] sm:$0xff] %vm371, %v366
        %401 = vst.msk [vmem:[%s370 + $0x159] sm:$0xff] %vm371, %v367
        %402 = vst.msk [vmem:[%s370 + $0x169] sm:$0xff] %vm371, %v368
        %403 = vst.msk [vmem:[%s370 + $0x171] sm:$0xff] %vm371, %v369
        %v404 = vld [vmem:[%s2] sm:$0x1]
        %v406 = vlaneseq
        %v407 = vshrl.u32 %v406, 7
        %v408 = vsub.s32 0, %v407
        %v409 = vrot.slane %v404, %v408
        %v411 = vld [vmem:[#allocation2] sm:$0xff]
        %v412 = vld [vmem:[#allocation2 + $0x8] sm:$0xff]
        %v413 = vld [vmem:[#allocation2 + $0x18] sm:$0xff]
        %v414 = vld [vmem:[#allocation2 + $0x20] sm:$0xff]
        %v415 = vld [vmem:[#allocation2 + $0x30] sm:$0xff]
        %v416 = vld [vmem:[#allocation2 + $0x38] sm:$0xff]
        %v417 = vld [vmem:[#allocation2 + $0x48] sm:$0xff]
        %v418 = vld [vmem:[#allocation2 + $0x50] sm:$0xff]
        %v419 = vld [vmem:[#allocation2 + $0x60] sm:$0xff]
        %v420 = vld [vmem:[#allocation2 + $0x68] sm:$0xff]
        %v421 = vld [vmem:[#allocation2 + $0x78] sm:$0xff]
        %v422 = vld [vmem:[#allocation2 + $0x80] sm:$0xff]
        %v423 = vld [vmem:[#allocation2 + $0x90] sm:$0xff]
        %v424 = vld [vmem:[#allocation2 + $0x98] sm:$0xff]
        %v425 = vld [vmem:[#allocation2 + $0xa8] sm:$0xff]
        %v426 = vld [vmem:[#allocation2 + $0xb0] sm:$0xff]
        %v427 = vld [vmem:[#allocation2 + $0xc0] sm:$0xff]
        %v428 = vld [vmem:[#allocation2 + $0xc8] sm:$0xff]
        %v429 = vld [vmem:[#allocation2 + $0xd8] sm:$0xff]
        %v430 = vld [vmem:[#allocation2 + $0xe0] sm:$0xff]
        %v431 = vld [vmem:[#allocation2 + $0xf0] sm:$0xff]
        %v432 = vld [vmem:[#allocation2 + $0xf8] sm:$0xff]
        %v433 = vld [vmem:[#allocation2 + $0x108] sm:$0xff]
        %v434 = vld [vmem:[#allocation2 + $0x110] sm:$0xff]
        %v435 = vld [vmem:[#allocation2 + $0x120] sm:$0xff]
        %v436 = vld [vmem:[#allocation2 + $0x128] sm:$0xff]
        %v437 = vld [vmem:[#allocation2 + $0x138] sm:$0xff]
        %v438 = vld [vmem:[#allocation2 + $0x140] sm:$0xff]
        %v439 = vld [vmem:[#allocation2 + $0x150] sm:$0xff]
        %v440 = vld [vmem:[#allocation2 + $0x158] sm:$0xff]
        %v441 = vld [vmem:[#allocation2 + $0x168] sm:$0xff]
        %v442 = vld [vmem:[#allocation2 + $0x170] sm:$0xff]
        %v443 = vld [vmem:[%s1] sm:$0xff]
        %v444 = vld [vmem:[%s1 + $0x8] sm:$0xff]
        %v445 = vld [vmem:[%s1 + $0x10] sm:$0xff]
        %v446 = vld [vmem:[%s1 + $0x18] sm:$0xff]
        %v447 = vld [vmem:[%s1 + $0x20] sm:$0xff]
        %v448 = vld [vmem:[%s1 + $0x28] sm:$0xff]
        %v449 = vld [vmem:[%s1 + $0x30] sm:$0xff]
        %v450 = vld [vmem:[%s1 + $0x38] sm:$0xff]
        %vm451 = vcmask 523264
        %v453 = vsel %vm451, %v411, 0
        %v456 = vsel %vm451, %v412, 0
        %v459 = vsel %vm451, %v413, 0
        %v462 = vsel %vm451, %v414, 0
        %v465 = vsel %vm451, %v415, 0
        %v468 = vsel %vm451, %v416, 0
        %v471 = vsel %vm451, %v417, 0
        %v474 = vsel %vm451, %v418, 0
        %v477 = vsel %vm451, %v419, 0
        %v480 = vsel %vm451, %v420, 0
        %v483 = vsel %vm451, %v421, 0
        %v486 = vsel %vm451, %v422, 0
        %v489 = vsel %vm451, %v423, 0
        %v492 = vsel %vm451, %v424, 0
        %v495 = vsel %vm451, %v425, 0
        %v498 = vsel %vm451, %v426, 0
        %v501 = vsel %vm451, %v427, 0
        %v504 = vsel %vm451, %v428, 0
        %v507 = vsel %vm451, %v429, 0
        %v510 = vsel %vm451, %v430, 0
        %v513 = vsel %vm451, %v431, 0
        %v516 = vsel %vm451, %v432, 0
        %v519 = vsel %vm451, %v433, 0
        %v522 = vsel %vm451, %v434, 0
        %v525 = vsel %vm451, %v435, 0
        %v528 = vsel %vm451, %v436, 0
        %v531 = vsel %vm451, %v437, 0
        %v534 = vsel %vm451, %v438, 0
        %v537 = vsel %vm451, %v439, 0
        %v540 = vsel %vm451, %v440, 0
        %v543 = vsel %vm451, %v441, 0
        %v546 = vsel %vm451, %v442, 0
        %548 = vmatprep.subr.mxu0 0.0
        %549 = vmatpush1.msra.mxu0 0.0
        %550 = vmatprep.subr.mxu0 0.0
        %551 = vmatpush1.msra.mxu0 0.0
        %552 = vmatprep.subr.mxu0 0.0
        %553 = vmatpush1.msra.mxu0 0.0
        %554 = vmatprep.subr.mxu0 0.0
        %555 = vmatpush1.msra.mxu0 0.0
        %556 = vmatprep.subr.mxu0 0.0
        %557 = vmatpush1.msra.mxu0 0.0
        %558 = vmatprep.subr.mxu0 0.0
        %559 = vmatpush1.msra.mxu0 0.0
        %560 = vmatprep.subr.mxu0 0.0
        %561 = vmatpush1.msra.mxu0 0.0
        %562 = vmatprep.subr.mxu0 0.0
        %563 = vmatpush1.msra.mxu0 0.0
        %564 = vmatprep.subr.mxu0 0.0
        %565 = vmatpush1.msra.mxu0 %v450
        %566 = vmatprep.subr.mxu0 0.0
        %567 = vmatpush1.msra.mxu0 %v449
        %568 = vmatprep.subr.mxu0 0.0
        %569 = vmatpush1.msra.mxu0 %v448
        %570 = vmatprep.subr.mxu0 0.0
        %571 = vmatpush1.msra.mxu0 %v447
        %572 = vmatprep.subr.mxu0 0.0
        %573 = vmatpush1.msra.mxu0 %v446
        %574 = vmatprep.subr.mxu0 0.0
        %575 = vmatpush1.msra.mxu0 %v445
        %576 = vmatprep.subr.mxu0 0.0
        %577 = vmatpush1.msra.mxu0 %v444
        %578 = vmatprep.subr.mxu0 0.0
        %579 = vmatpush1.msra.mxu0 %v443
        %580 = vmatprep.subr.mxu0 0.0
        %581 = vmatpush2.msra.mxu0 0.0
        %582 = vmatprep.subr.mxu0 0.0
        %583 = vmatpush2.msra.mxu0 0.0
        %584 = vmatprep.subr.mxu0 0.0
        %585 = vmatpush2.msra.mxu0 0.0
        %586 = vmatprep.subr.mxu0 0.0
        %587 = vmatpush2.msra.mxu0 0.0
        %588 = vmatprep.subr.mxu0 0.0
        %589 = vmatpush2.msra.mxu0 0.0
        %590 = vmatprep.subr.mxu0 0.0
        %591 = vmatpush2.msra.mxu0 0.0
        %592 = vmatprep.subr.mxu0 0.0
        %593 = vmatpush2.msra.mxu0 0.0
        %594 = vmatprep.subr.mxu0 0.0
        %595 = vmatpush2.msra.mxu0 0.0
        %596 = vmatprep.subr.mxu0 0.0
        %597 = vmatpush2.msra.mxu0 0.0
        %598 = vmatprep.subr.mxu0 0.0
        %599 = vmatpush2.msra.mxu0 0.0
        %600 = vmatprep.subr.mxu0 0.0
        %601 = vmatpush2.msra.mxu0 0.0
        %602 = vmatprep.subr.mxu0 0.0
        %603 = vmatpush2.msra.mxu0 0.0
        %604 = vmatprep.subr.mxu0 0.0
        %605 = vmatpush2.msra.mxu0 0.0
        %606 = vmatprep.subr.mxu0 0.0
        %607 = vmatpush2.msra.mxu0 0.0
        %608 = vmatprep.subr.mxu0 0.0
        %609 = vmatpush2.msra.mxu0 0.0
        %610 = vmatprep.subr.mxu0 0.0
        %611 = vmatpush2.msra.mxu0 0.0
        %612 = vmatprep.mubr.f32.mxu0 0.0
        %613 = vmatmul.mubr.f32.gmra.mxu0 %v453
        %v614 = vpop.f32.mrf.mxu0
        %v615 = vadd.f32 0.0, %v614
        %v616 = vpop.f32.mrf.mxu0
        %617 = vmatprep.mubr.f32.mxu0 0.0
        %618 = vmatmul.mubr.f32.gmra.mxu0 %v456
        %v619 = vpop.f32.mrf.mxu0
        %v620 = vadd.f32 0.0, %v619
        %v621 = vpop.f32.mrf.mxu0
        %622 = vmatprep.mubr.f32.mxu0 0.0
        %623 = vmatmul.mubr.f32.gmra.mxu0 %v459
        %v624 = vpop.f32.mrf.mxu0
        %v625 = vadd.f32 0.0, %v624
        %v626 = vpop.f32.mrf.mxu0
        %627 = vmatprep.mubr.f32.mxu0 0.0
        %628 = vmatmul.mubr.f32.gmra.mxu0 %v462
        %v629 = vpop.f32.mrf.mxu0
        %v630 = vadd.f32 0.0, %v629
        %v631 = vpop.f32.mrf.mxu0
        %632 = vmatprep.mubr.f32.mxu0 0.0
        %633 = vmatmul.mubr.f32.gmra.mxu0 %v465
        %v634 = vpop.f32.mrf.mxu0
        %v635 = vadd.f32 0.0, %v634
        %v636 = vpop.f32.mrf.mxu0
        %637 = vmatprep.mubr.f32.mxu0 0.0
        %638 = vmatmul.mubr.f32.gmra.mxu0 %v468
        %v639 = vpop.f32.mrf.mxu0
        %v640 = vadd.f32 0.0, %v639
        %v641 = vpop.f32.mrf.mxu0
        %642 = vmatprep.mubr.f32.mxu0 0.0
        %643 = vmatmul.mubr.f32.gmra.mxu0 %v471
        %v644 = vpop.f32.mrf.mxu0
        %v645 = vadd.f32 0.0, %v644
        %v646 = vpop.f32.mrf.mxu0
        %647 = vmatprep.mubr.f32.mxu0 0.0
        %648 = vmatmul.mubr.f32.gmra.mxu0 %v474
        %v649 = vpop.f32.mrf.mxu0
        %v650 = vadd.f32 0.0, %v649
        %v651 = vpop.f32.mrf.mxu0
        %652 = vmatprep.mubr.f32.mxu0 0.0
        %653 = vmatmul.mubr.f32.gmra.mxu0 %v477
        %v654 = vpop.f32.mrf.mxu0
        %v655 = vadd.f32 0.0, %v654
        %v656 = vpop.f32.mrf.mxu0
        %657 = vmatprep.mubr.f32.mxu0 0.0
        %658 = vmatmul.mubr.f32.gmra.mxu0 %v480
        %v659 = vpop.f32.mrf.mxu0
        %v660 = vadd.f32 0.0, %v659
        %v661 = vpop.f32.mrf.mxu0
        %662 = vmatprep.mubr.f32.mxu0 0.0
        %663 = vmatmul.mubr.f32.gmra.mxu0 %v483
        %v664 = vpop.f32.mrf.mxu0
        %v665 = vadd.f32 0.0, %v664
        %v666 = vpop.f32.mrf.mxu0
        %667 = vmatprep.mubr.f32.mxu0 0.0
        %668 = vmatmul.mubr.f32.gmra.mxu0 %v486
        %v669 = vpop.f32.mrf.mxu0
        %v670 = vadd.f32 0.0, %v669
        %v671 = vpop.f32.mrf.mxu0
        %672 = vmatprep.mubr.f32.mxu0 0.0
        %673 = vmatmul.mubr.f32.gmra.mxu0 %v489
        %v674 = vpop.f32.mrf.mxu0
        %v675 = vadd.f32 0.0, %v674
        %v676 = vpop.f32.mrf.mxu0
        %677 = vmatprep.mubr.f32.mxu0 0.0
        %678 = vmatmul.mubr.f32.gmra.mxu0 %v492
        %v679 = vpop.f32.mrf.mxu0
        %v680 = vadd.f32 0.0, %v679
        %v681 = vpop.f32.mrf.mxu0
        %682 = vmatprep.mubr.f32.mxu0 0.0
        %683 = vmatmul.mubr.f32.gmra.mxu0 %v495
        %v684 = vpop.f32.mrf.mxu0
        %v685 = vadd.f32 0.0, %v684
        %v686 = vpop.f32.mrf.mxu0
        %687 = vmatprep.mubr.f32.mxu0 0.0
        %688 = vmatmul.mubr.f32.gmra.mxu0 %v498
        %v689 = vpop.f32.mrf.mxu0
        %v690 = vadd.f32 0.0, %v689
        %v691 = vpop.f32.mrf.mxu0
        %692 = vmatprep.mubr.f32.mxu0 0.0
        %693 = vmatmul.mubr.f32.gmra.mxu0 %v501
        %v694 = vpop.f32.mrf.mxu0
        %v695 = vadd.f32 0.0, %v694
        %v696 = vpop.f32.mrf.mxu0
        %697 = vmatprep.mubr.f32.mxu0 0.0
        %698 = vmatmul.mubr.f32.gmra.mxu0 %v504
        %v699 = vpop.f32.mrf.mxu0
        %v700 = vadd.f32 0.0, %v699
        %v701 = vpop.f32.mrf.mxu0
        %702 = vmatprep.mubr.f32.mxu0 0.0
        %703 = vmatmul.mubr.f32.gmra.mxu0 %v507
        %v704 = vpop.f32.mrf.mxu0
        %v705 = vadd.f32 0.0, %v704
        %v706 = vpop.f32.mrf.mxu0
        %707 = vmatprep.mubr.f32.mxu0 0.0
        %708 = vmatmul.mubr.f32.gmra.mxu0 %v510
        %v709 = vpop.f32.mrf.mxu0
        %v710 = vadd.f32 0.0, %v709
        %v711 = vpop.f32.mrf.mxu0
        %712 = vmatprep.mubr.f32.mxu0 0.0
        %713 = vmatmul.mubr.f32.gmra.mxu0 %v513
        %v714 = vpop.f32.mrf.mxu0
        %v715 = vadd.f32 0.0, %v714
        %v716 = vpop.f32.mrf.mxu0
        %717 = vmatprep.mubr.f32.mxu0 0.0
        %718 = vmatmul.mubr.f32.gmra.mxu0 %v516
        %v719 = vpop.f32.mrf.mxu0
        %v720 = vadd.f32 0.0, %v719
        %v721 = vpop.f32.mrf.mxu0
        %722 = vmatprep.mubr.f32.mxu0 0.0
        %723 = vmatmul.mubr.f32.gmra.mxu0 %v519
        %v724 = vpop.f32.mrf.mxu0
        %v725 = vadd.f32 0.0, %v724
        %v726 = vpop.f32.mrf.mxu0
        %727 = vmatprep.mubr.f32.mxu0 0.0
        %728 = vmatmul.mubr.f32.gmra.mxu0 %v522
        %v729 = vpop.f32.mrf.mxu0
        %v730 = vadd.f32 0.0, %v729
        %v731 = vpop.f32.mrf.mxu0
        %732 = vmatprep.mubr.f32.mxu0 0.0
        %733 = vmatmul.mubr.f32.gmra.mxu0 %v525
        %v734 = vpop.f32.mrf.mxu0
        %v735 = vadd.f32 0.0, %v734
        %v736 = vpop.f32.mrf.mxu0
        %737 = vmatprep.mubr.f32.mxu0 0.0
        %738 = vmatmul.mubr.f32.gmra.mxu0 %v528
        %v739 = vpop.f32.mrf.mxu0
        %v740 = vadd.f32 0.0, %v739
        %v741 = vpop.f32.mrf.mxu0
        %742 = vmatprep.mubr.f32.mxu0 0.0
        %743 = vmatmul.mubr.f32.gmra.mxu0 %v531
        %v744 = vpop.f32.mrf.mxu0
        %v745 = vadd.f32 0.0, %v744
        %v746 = vpop.f32.mrf.mxu0
        %747 = vmatprep.mubr.f32.mxu0 0.0
        %748 = vmatmul.mubr.f32.gmra.mxu0 %v534
        %v749 = vpop.f32.mrf.mxu0
        %v750 = vadd.f32 0.0, %v749
        %v751 = vpop.f32.mrf.mxu0
        %752 = vmatprep.mubr.f32.mxu0 0.0
        %753 = vmatmul.mubr.f32.gmra.mxu0 %v537
        %v754 = vpop.f32.mrf.mxu0
        %v755 = vadd.f32 0.0, %v754
        %v756 = vpop.f32.mrf.mxu0
        %757 = vmatprep.mubr.f32.mxu0 0.0
        %758 = vmatmul.mubr.f32.gmra.mxu0 %v540
        %v759 = vpop.f32.mrf.mxu0
        %v760 = vadd.f32 0.0, %v759
        %v761 = vpop.f32.mrf.mxu0
        %762 = vmatprep.mubr.f32.mxu0 0.0
        %763 = vmatmul.mubr.f32.gmra.mxu0 %v543
        %v764 = vpop.f32.mrf.mxu0
        %v765 = vadd.f32 0.0, %v764
        %v766 = vpop.f32.mrf.mxu0
        %767 = vmatprep.mubr.f32.mxu0 0.0
        %768 = vmatmul.mubr.f32.gmra.mxu0 %v546
        %v769 = vpop.f32.mrf.mxu0
        %v770 = vadd.f32 0.0, %v769
        %v771 = vpop.f32.mrf.mxu0
        %772 = vdwg.mxu0
        %v773 = vadd.f32 %v409, %v615
        %v774 = vadd.f32 %v409, %v620
        %v775 = vadd.f32 %v409, %v625
        %v776 = vadd.f32 %v409, %v630
        %v777 = vadd.f32 %v409, %v635
        %v778 = vadd.f32 %v409, %v640
        %v779 = vadd.f32 %v409, %v645
        %v780 = vadd.f32 %v409, %v650
        %v781 = vadd.f32 %v409, %v655
        %v782 = vadd.f32 %v409, %v660
        %v783 = vadd.f32 %v409, %v665
        %v784 = vadd.f32 %v409, %v670
        %v785 = vadd.f32 %v409, %v675
        %v786 = vadd.f32 %v409, %v680
        %v787 = vadd.f32 %v409, %v685
        %v788 = vadd.f32 %v409, %v690
        %v789 = vadd.f32 %v409, %v695
        %v790 = vadd.f32 %v409, %v700
        %v791 = vadd.f32 %v409, %v705
        %v792 = vadd.f32 %v409, %v710
        %v793 = vadd.f32 %v409, %v715
        %v794 = vadd.f32 %v409, %v720
        %v795 = vadd.f32 %v409, %v725
        %v796 = vadd.f32 %v409, %v730
        %v797 = vadd.f32 %v409, %v735
        %v798 = vadd.f32 %v409, %v740
        %v799 = vadd.f32 %v409, %v745
        %v800 = vadd.f32 %v409, %v750
        %v801 = vadd.f32 %v409, %v755
        %v802 = vadd.f32 %v409, %v760
        %v803 = vadd.f32 %v409, %v765
        %v804 = vadd.f32 %v409, %v770
        %v805 = vld [vmem:[#allocation2 + $0x1] sm:$0xff]
        %v806 = vld [vmem:[#allocation2 + $0x9] sm:$0xff]
        %v807 = vld [vmem:[#allocation2 + $0x19] sm:$0xff]
        %v808 = vld [vmem:[#allocation2 + $0x21] sm:$0xff]
        %v809 = vld [vmem:[#allocation2 + $0x31] sm:$0xff]
        %v810 = vld [vmem:[#allocation2 + $0x39] sm:$0xff]
        %v811 = vld [vmem:[#allocation2 + $0x49] sm:$0xff]
        %v812 = vld [vmem:[#allocation2 + $0x51] sm:$0xff]
        %v813 = vld [vmem:[#allocation2 + $0x61] sm:$0xff]
        %v814 = vld [vmem:[#allocation2 + $0x69] sm:$0xff]
        %v815 = vld [vmem:[#allocation2 + $0x79] sm:$0xff]
        %v816 = vld [vmem:[#allocation2 + $0x81] sm:$0xff]
        %v817 = vld [vmem:[#allocation2 + $0x91] sm:$0xff]
        %v818 = vld [vmem:[#allocation2 + $0x99] sm:$0xff]
        %v819 = vld [vmem:[#allocation2 + $0xa9] sm:$0xff]
        %v820 = vld [vmem:[#allocation2 + $0xb1] sm:$0xff]
        %v821 = vld [vmem:[#allocation2 + $0xc1] sm:$0xff]
        %v822 = vld [vmem:[#allocation2 + $0xc9] sm:$0xff]
        %v823 = vld [vmem:[#allocation2 + $0xd9] sm:$0xff]
        %v824 = vld [vmem:[#allocation2 + $0xe1] sm:$0xff]
        %v825 = vld [vmem:[#allocation2 + $0xf1] sm:$0xff]
        %v826 = vld [vmem:[#allocation2 + $0xf9] sm:$0xff]
        %v827 = vld [vmem:[#allocation2 + $0x109] sm:$0xff]
        %v828 = vld [vmem:[#allocation2 + $0x111] sm:$0xff]
        %v829 = vld [vmem:[#allocation2 + $0x121] sm:$0xff]
        %v830 = vld [vmem:[#allocation2 + $0x129] sm:$0xff]
        %v831 = vld [vmem:[#allocation2 + $0x139] sm:$0xff]
        %v832 = vld [vmem:[#allocation2 + $0x141] sm:$0xff]
        %v833 = vld [vmem:[#allocation2 + $0x151] sm:$0xff]
        %v834 = vld [vmem:[#allocation2 + $0x159] sm:$0xff]
        %v835 = vld [vmem:[#allocation2 + $0x169] sm:$0xff]
        %v836 = vld [vmem:[#allocation2 + $0x171] sm:$0xff]
        %s837 = scalar_lea.vmem %s1, 64
        %v838 = vld [vmem:[%s837] sm:$0xff]
        %v839 = vld [vmem:[%s837 + $0x8] sm:$0xff]
        %v840 = vld [vmem:[%s837 + $0x10] sm:$0xff]
        %v841 = vld [vmem:[%s837 + $0x18] sm:$0xff]
        %v842 = vld [vmem:[%s837 + $0x20] sm:$0xff]
        %v843 = vld [vmem:[%s837 + $0x28] sm:$0xff]
        %v844 = vld [vmem:[%s837 + $0x30] sm:$0xff]
        %v845 = vld [vmem:[%s837 + $0x38] sm:$0xff]
        %v847 = vsel %vm451, %v805, 0
        %v850 = vsel %vm451, %v806, 0
        %v853 = vsel %vm451, %v807, 0
        %v856 = vsel %vm451, %v808, 0
        %v859 = vsel %vm451, %v809, 0
        %v862 = vsel %vm451, %v810, 0
        %v865 = vsel %vm451, %v811, 0
        %v868 = vsel %vm451, %v812, 0
        %v871 = vsel %vm451, %v813, 0
        %v874 = vsel %vm451, %v814, 0
        %v877 = vsel %vm451, %v815, 0
        %v880 = vsel %vm451, %v816, 0
        %v883 = vsel %vm451, %v817, 0
        %v886 = vsel %vm451, %v818, 0
        %v889 = vsel %vm451, %v819, 0
        %v892 = vsel %vm451, %v820, 0
        %v895 = vsel %vm451, %v821, 0
        %v898 = vsel %vm451, %v822, 0
        %v901 = vsel %vm451, %v823, 0
        %v904 = vsel %vm451, %v824, 0
        %v907 = vsel %vm451, %v825, 0
        %v910 = vsel %vm451, %v826, 0
        %v913 = vsel %vm451, %v827, 0
        %v916 = vsel %vm451, %v828, 0
        %v919 = vsel %vm451, %v829, 0
        %v922 = vsel %vm451, %v830, 0
        %v925 = vsel %vm451, %v831, 0
        %v928 = vsel %vm451, %v832, 0
        %v931 = vsel %vm451, %v833, 0
        %v934 = vsel %vm451, %v834, 0
        %v937 = vsel %vm451, %v835, 0
        %v940 = vsel %vm451, %v836, 0
        %942 = vmatprep.subr.mxu0 0.0
        %943 = vmatpush1.msra.mxu0 0.0
        %944 = vmatprep.subr.mxu0 0.0
        %945 = vmatpush1.msra.mxu0 0.0
        %946 = vmatprep.subr.mxu0 0.0
        %947 = vmatpush1.msra.mxu0 0.0
        %948 = vmatprep.subr.mxu0 0.0
        %949 = vmatpush1.msra.mxu0 0.0
        %950 = vmatprep.subr.mxu0 0.0
        %951 = vmatpush1.msra.mxu0 0.0
        %952 = vmatprep.subr.mxu0 0.0
        %953 = vmatpush1.msra.mxu0 0.0
        %954 = vmatprep.subr.mxu0 0.0
        %955 = vmatpush1.msra.mxu0 0.0
        %956 = vmatprep.subr.mxu0 0.0
        %957 = vmatpush1.msra.mxu0 0.0
        %958 = vmatprep.subr.mxu0 0.0
        %959 = vmatpush1.msra.mxu0 %v845
        %960 = vmatprep.subr.mxu0 0.0
        %961 = vmatpush1.msra.mxu0 %v844
        %962 = vmatprep.subr.mxu0 0.0
        %963 = vmatpush1.msra.mxu0 %v843
        %964 = vmatprep.subr.mxu0 0.0
        %965 = vmatpush1.msra.mxu0 %v842
        %966 = vmatprep.subr.mxu0 0.0
        %967 = vmatpush1.msra.mxu0 %v841
        %968 = vmatprep.subr.mxu0 0.0
        %969 = vmatpush1.msra.mxu0 %v840
        %970 = vmatprep.subr.mxu0 0.0
        %971 = vmatpush1.msra.mxu0 %v839
        %972 = vmatprep.subr.mxu0 0.0
        %973 = vmatpush1.msra.mxu0 %v838
        %974 = vmatprep.subr.mxu0 0.0
        %975 = vmatpush2.msra.mxu0 0.0
        %976 = vmatprep.subr.mxu0 0.0
        %977 = vmatpush2.msra.mxu0 0.0
        %978 = vmatprep.subr.mxu0 0.0
        %979 = vmatpush2.msra.mxu0 0.0
        %980 = vmatprep.subr.mxu0 0.0
        %981 = vmatpush2.msra.mxu0 0.0
        %982 = vmatprep.subr.mxu0 0.0
        %983 = vmatpush2.msra.mxu0 0.0
        %984 = vmatprep.subr.mxu0 0.0
        %985 = vmatpush2.msra.mxu0 0.0
        %986 = vmatprep.subr.mxu0 0.0
        %987 = vmatpush2.msra.mxu0 0.0
        %988 = vmatprep.subr.mxu0 0.0
        %989 = vmatpush2.msra.mxu0 0.0
        %990 = vmatprep.subr.mxu0 0.0
        %991 = vmatpush2.msra.mxu0 0.0
        %992 = vmatprep.subr.mxu0 0.0
        %993 = vmatpush2.msra.mxu0 0.0
        %994 = vmatprep.subr.mxu0 0.0
        %995 = vmatpush2.msra.mxu0 0.0
        %996 = vmatprep.subr.mxu0 0.0
        %997 = vmatpush2.msra.mxu0 0.0
        %998 = vmatprep.subr.mxu0 0.0
        %999 = vmatpush2.msra.mxu0 0.0
        %1000 = vmatprep.subr.mxu0 0.0
        %1001 = vmatpush2.msra.mxu0 0.0
        %1002 = vmatprep.subr.mxu0 0.0
        %1003 = vmatpush2.msra.mxu0 0.0
        %1004 = vmatprep.subr.mxu0 0.0
        %1005 = vmatpush2.msra.mxu0 0.0
        %1006 = vmatprep.mubr.f32.mxu0 0.0
        %1007 = vmatmul.mubr.f32.gmra.mxu0 %v847
        %v1008 = vpop.f32.mrf.mxu0
        %v1009 = vadd.f32 0.0, %v1008
        %v1010 = vpop.f32.mrf.mxu0
        %1011 = vmatprep.mubr.f32.mxu0 0.0
        %1012 = vmatmul.mubr.f32.gmra.mxu0 %v850
        %v1013 = vpop.f32.mrf.mxu0
        %v1014 = vadd.f32 0.0, %v1013
        %v1015 = vpop.f32.mrf.mxu0
        %1016 = vmatprep.mubr.f32.mxu0 0.0
        %1017 = vmatmul.mubr.f32.gmra.mxu0 %v853
        %v1018 = vpop.f32.mrf.mxu0
        %v1019 = vadd.f32 0.0, %v1018
        %v1020 = vpop.f32.mrf.mxu0
        %1021 = vmatprep.mubr.f32.mxu0 0.0
        %1022 = vmatmul.mubr.f32.gmra.mxu0 %v856
        %v1023 = vpop.f32.mrf.mxu0
        %v1024 = vadd.f32 0.0, %v1023
        %v1025 = vpop.f32.mrf.mxu0
        %1026 = vmatprep.mubr.f32.mxu0 0.0
        %1027 = vmatmul.mubr.f32.gmra.mxu0 %v859
        %v1028 = vpop.f32.mrf.mxu0
        %v1029 = vadd.f32 0.0, %v1028
        %v1030 = vpop.f32.mrf.mxu0
        %1031 = vmatprep.mubr.f32.mxu0 0.0
        %1032 = vmatmul.mubr.f32.gmra.mxu0 %v862
        %v1033 = vpop.f32.mrf.mxu0
        %v1034 = vadd.f32 0.0, %v1033
        %v1035 = vpop.f32.mrf.mxu0
        %1036 = vmatprep.mubr.f32.mxu0 0.0
        %1037 = vmatmul.mubr.f32.gmra.mxu0 %v865
        %v1038 = vpop.f32.mrf.mxu0
        %v1039 = vadd.f32 0.0, %v1038
        %v1040 = vpop.f32.mrf.mxu0
        %1041 = vmatprep.mubr.f32.mxu0 0.0
        %1042 = vmatmul.mubr.f32.gmra.mxu0 %v868
        %v1043 = vpop.f32.mrf.mxu0
        %v1044 = vadd.f32 0.0, %v1043
        %v1045 = vpop.f32.mrf.mxu0
        %1046 = vmatprep.mubr.f32.mxu0 0.0
        %1047 = vmatmul.mubr.f32.gmra.mxu0 %v871
        %v1048 = vpop.f32.mrf.mxu0
        %v1049 = vadd.f32 0.0, %v1048
        %v1050 = vpop.f32.mrf.mxu0
        %1051 = vmatprep.mubr.f32.mxu0 0.0
        %1052 = vmatmul.mubr.f32.gmra.mxu0 %v874
        %v1053 = vpop.f32.mrf.mxu0
        %v1054 = vadd.f32 0.0, %v1053
        %v1055 = vpop.f32.mrf.mxu0
        %1056 = vmatprep.mubr.f32.mxu0 0.0
        %1057 = vmatmul.mubr.f32.gmra.mxu0 %v877
        %v1058 = vpop.f32.mrf.mxu0
        %v1059 = vadd.f32 0.0, %v1058
        %v1060 = vpop.f32.mrf.mxu0
        %1061 = vmatprep.mubr.f32.mxu0 0.0
        %1062 = vmatmul.mubr.f32.gmra.mxu0 %v880
        %v1063 = vpop.f32.mrf.mxu0
        %v1064 = vadd.f32 0.0, %v1063
        %v1065 = vpop.f32.mrf.mxu0
        %1066 = vmatprep.mubr.f32.mxu0 0.0
        %1067 = vmatmul.mubr.f32.gmra.mxu0 %v883
        %v1068 = vpop.f32.mrf.mxu0
        %v1069 = vadd.f32 0.0, %v1068
        %v1070 = vpop.f32.mrf.mxu0
        %1071 = vmatprep.mubr.f32.mxu0 0.0
        %1072 = vmatmul.mubr.f32.gmra.mxu0 %v886
        %v1073 = vpop.f32.mrf.mxu0
        %v1074 = vadd.f32 0.0, %v1073
        %v1075 = vpop.f32.mrf.mxu0
        %1076 = vmatprep.mubr.f32.mxu0 0.0
        %1077 = vmatmul.mubr.f32.gmra.mxu0 %v889
        %v1078 = vpop.f32.mrf.mxu0
        %v1079 = vadd.f32 0.0, %v1078
        %v1080 = vpop.f32.mrf.mxu0
        %1081 = vmatprep.mubr.f32.mxu0 0.0
        %1082 = vmatmul.mubr.f32.gmra.mxu0 %v892
        %v1083 = vpop.f32.mrf.mxu0
        %v1084 = vadd.f32 0.0, %v1083
        %v1085 = vpop.f32.mrf.mxu0
        %1086 = vmatprep.mubr.f32.mxu0 0.0
        %1087 = vmatmul.mubr.f32.gmra.mxu0 %v895
        %v1088 = vpop.f32.mrf.mxu0
        %v1089 = vadd.f32 0.0, %v1088
        %v1090 = vpop.f32.mrf.mxu0
        %1091 = vmatprep.mubr.f32.mxu0 0.0
        %1092 = vmatmul.mubr.f32.gmra.mxu0 %v898
        %v1093 = vpop.f32.mrf.mxu0
        %v1094 = vadd.f32 0.0, %v1093
        %v1095 = vpop.f32.mrf.mxu0
        %1096 = vmatprep.mubr.f32.mxu0 0.0
        %1097 = vmatmul.mubr.f32.gmra.mxu0 %v901
        %v1098 = vpop.f32.mrf.mxu0
        %v1099 = vadd.f32 0.0, %v1098
        %v1100 = vpop.f32.mrf.mxu0
        %1101 = vmatprep.mubr.f32.mxu0 0.0
        %1102 = vmatmul.mubr.f32.gmra.mxu0 %v904
        %v1103 = vpop.f32.mrf.mxu0
        %v1104 = vadd.f32 0.0, %v1103
        %v1105 = vpop.f32.mrf.mxu0
        %1106 = vmatprep.mubr.f32.mxu0 0.0
        %1107 = vmatmul.mubr.f32.gmra.mxu0 %v907
        %v1108 = vpop.f32.mrf.mxu0
        %v1109 = vadd.f32 0.0, %v1108
        %v1110 = vpop.f32.mrf.mxu0
        %1111 = vmatprep.mubr.f32.mxu0 0.0
        %1112 = vmatmul.mubr.f32.gmra.mxu0 %v910
        %v1113 = vpop.f32.mrf.mxu0
        %v1114 = vadd.f32 0.0, %v1113
        %v1115 = vpop.f32.mrf.mxu0
        %1116 = vmatprep.mubr.f32.mxu0 0.0
        %1117 = vmatmul.mubr.f32.gmra.mxu0 %v913
        %v1118 = vpop.f32.mrf.mxu0
        %v1119 = vadd.f32 0.0, %v1118
        %v1120 = vpop.f32.mrf.mxu0
        %1121 = vmatprep.mubr.f32.mxu0 0.0
        %1122 = vmatmul.mubr.f32.gmra.mxu0 %v916
        %v1123 = vpop.f32.mrf.mxu0
        %v1124 = vadd.f32 0.0, %v1123
        %v1125 = vpop.f32.mrf.mxu0
        %1126 = vmatprep.mubr.f32.mxu0 0.0
        %1127 = vmatmul.mubr.f32.gmra.mxu0 %v919
        %v1128 = vpop.f32.mrf.mxu0
        %v1129 = vadd.f32 0.0, %v1128
        %v1130 = vpop.f32.mrf.mxu0
        %1131 = vmatprep.mubr.f32.mxu0 0.0
        %1132 = vmatmul.mubr.f32.gmra.mxu0 %v922
        %v1133 = vpop.f32.mrf.mxu0
        %v1134 = vadd.f32 0.0, %v1133
        %v1135 = vpop.f32.mrf.mxu0
        %1136 = vmatprep.mubr.f32.mxu0 0.0
        %1137 = vmatmul.mubr.f32.gmra.mxu0 %v925
        %v1138 = vpop.f32.mrf.mxu0
        %v1139 = vadd.f32 0.0, %v1138
        %v1140 = vpop.f32.mrf.mxu0
        %1141 = vmatprep.mubr.f32.mxu0 0.0
        %1142 = vmatmul.mubr.f32.gmra.mxu0 %v928
        %v1143 = vpop.f32.mrf.mxu0
        %v1144 = vadd.f32 0.0, %v1143
        %v1145 = vpop.f32.mrf.mxu0
        %1146 = vmatprep.mubr.f32.mxu0 0.0
        %1147 = vmatmul.mubr.f32.gmra.mxu0 %v931
        %v1148 = vpop.f32.mrf.mxu0
        %v1149 = vadd.f32 0.0, %v1148
        %v1150 = vpop.f32.mrf.mxu0
        %1151 = vmatprep.mubr.f32.mxu0 0.0
        %1152 = vmatmul.mubr.f32.gmra.mxu0 %v934
        %v1153 = vpop.f32.mrf.mxu0
        %v1154 = vadd.f32 0.0, %v1153
        %v1155 = vpop.f32.mrf.mxu0
        %1156 = vmatprep.mubr.f32.mxu0 0.0
        %1157 = vmatmul.mubr.f32.gmra.mxu0 %v937
        %v1158 = vpop.f32.mrf.mxu0
        %v1159 = vadd.f32 0.0, %v1158
        %v1160 = vpop.f32.mrf.mxu0
        %1161 = vmatprep.mubr.f32.mxu0 0.0
        %1162 = vmatmul.mubr.f32.gmra.mxu0 %v940
        %v1163 = vpop.f32.mrf.mxu0
        %v1164 = vadd.f32 0.0, %v1163
        %v1165 = vpop.f32.mrf.mxu0
        %1166 = vdwg.mxu0
        %v1167 = vadd.f32 %v773, %v1009
        %v1168 = vadd.f32 %v774, %v1014
        %v1169 = vadd.f32 %v775, %v1019
        %v1170 = vadd.f32 %v776, %v1024
        %v1171 = vadd.f32 %v777, %v1029
        %v1172 = vadd.f32 %v778, %v1034
        %v1173 = vadd.f32 %v779, %v1039
        %v1174 = vadd.f32 %v780, %v1044
        %v1175 = vadd.f32 %v781, %v1049
        %v1176 = vadd.f32 %v782, %v1054
        %v1177 = vadd.f32 %v783, %v1059
        %v1178 = vadd.f32 %v784, %v1064
        %v1179 = vadd.f32 %v785, %v1069
        %v1180 = vadd.f32 %v786, %v1074
        %v1181 = vadd.f32 %v787, %v1079
        %v1182 = vadd.f32 %v788, %v1084
        %v1183 = vadd.f32 %v789, %v1089
        %v1184 = vadd.f32 %v790, %v1094
        %v1185 = vadd.f32 %v791, %v1099
        %v1186 = vadd.f32 %v792, %v1104
        %v1187 = vadd.f32 %v793, %v1109
        %v1188 = vadd.f32 %v794, %v1114
        %v1189 = vadd.f32 %v795, %v1119
        %v1190 = vadd.f32 %v796, %v1124
        %v1191 = vadd.f32 %v797, %v1129
        %v1192 = vadd.f32 %v798, %v1134
        %v1193 = vadd.f32 %v799, %v1139
        %v1194 = vadd.f32 %v800, %v1144
        %v1195 = vadd.f32 %v801, %v1149
        %v1196 = vadd.f32 %v802, %v1154
        %v1197 = vadd.f32 %v803, %v1159
        %v1198 = vadd.f32 %v804, %v1164
        %v1199 = vld [vmem:[#allocation2 + $0x2] sm:$0xff]
        %v1200 = vld [vmem:[#allocation2 + $0xa] sm:$0xff]
        %v1201 = vld [vmem:[#allocation2 + $0x1a] sm:$0xff]
        %v1202 = vld [vmem:[#allocation2 + $0x22] sm:$0xff]
        %v1203 = vld [vmem:[#allocation2 + $0x32] sm:$0xff]
        %v1204 = vld [vmem:[#allocation2 + $0x3a] sm:$0xff]
        %v1205 = vld [vmem:[#allocation2 + $0x4a] sm:$0xff]
        %v1206 = vld [vmem:[#allocation2 + $0x52] sm:$0xff]
        %v1207 = vld [vmem:[#allocation2 + $0x62] sm:$0xff]
        %v1208 = vld [vmem:[#allocation2 + $0x6a] sm:$0xff]
        %v1209 = vld [vmem:[#allocation2 + $0x7a] sm:$0xff]
        %v1210 = vld [vmem:[#allocation2 + $0x82] sm:$0xff]
        %v1211 = vld [vmem:[#allocation2 + $0x92] sm:$0xff]
        %v1212 = vld [vmem:[#allocation2 + $0x9a] sm:$0xff]
        %v1213 = vld [vmem:[#allocation2 + $0xaa] sm:$0xff]
        %v1214 = vld [vmem:[#allocation2 + $0xb2] sm:$0xff]
        %v1215 = vld [vmem:[#allocation2 + $0xc2] sm:$0xff]
        %v1216 = vld [vmem:[#allocation2 + $0xca] sm:$0xff]
        %v1217 = vld [vmem:[#allocation2 + $0xda] sm:$0xff]
        %v1218 = vld [vmem:[#allocation2 + $0xe2] sm:$0xff]
        %v1219 = vld [vmem:[#allocation2 + $0xf2] sm:$0xff]
        %v1220 = vld [vmem:[#allocation2 + $0xfa] sm:$0xff]
        %v1221 = vld [vmem:[#allocation2 + $0x10a] sm:$0xff]
        %v1222 = vld [vmem:[#allocation2 + $0x112] sm:$0xff]
        %v1223 = vld [vmem:[#allocation2 + $0x122] sm:$0xff]
        %v1224 = vld [vmem:[#allocation2 + $0x12a] sm:$0xff]
        %v1225 = vld [vmem:[#allocation2 + $0x13a] sm:$0xff]
        %v1226 = vld [vmem:[#allocation2 + $0x142] sm:$0xff]
        %v1227 = vld [vmem:[#allocation2 + $0x152] sm:$0xff]
        %v1228 = vld [vmem:[#allocation2 + $0x15a] sm:$0xff]
        %v1229 = vld [vmem:[#allocation2 + $0x16a] sm:$0xff]
        %v1230 = vld [vmem:[#allocation2 + $0x172] sm:$0xff]
        %s1231 = scalar_lea.vmem %s1, 128
        %v1232 = vld [vmem:[%s1231] sm:$0xff]
        %v1233 = vld [vmem:[%s1231 + $0x8] sm:$0xff]
        %v1234 = vld [vmem:[%s1231 + $0x10] sm:$0xff]
        %v1235 = vld [vmem:[%s1231 + $0x18] sm:$0xff]
        %v1236 = vld [vmem:[%s1231 + $0x20] sm:$0xff]
        %v1237 = vld [vmem:[%s1231 + $0x28] sm:$0xff]
        %v1238 = vld [vmem:[%s1231 + $0x30] sm:$0xff]
        %v1239 = vld [vmem:[%s1231 + $0x38] sm:$0xff]
        %v1241 = vsel %vm451, %v1199, 0
        %v1244 = vsel %vm451, %v1200, 0
        %v1247 = vsel %vm451, %v1201, 0
        %v1250 = vsel %vm451, %v1202, 0
        %v1253 = vsel %vm451, %v1203, 0
        %v1256 = vsel %vm451, %v1204, 0
        %v1259 = vsel %vm451, %v1205, 0
        %v1262 = vsel %vm451, %v1206, 0
        %v1265 = vsel %vm451, %v1207, 0
        %v1268 = vsel %vm451, %v1208, 0
        %v1271 = vsel %vm451, %v1209, 0
        %v1274 = vsel %vm451, %v1210, 0
        %v1277 = vsel %vm451, %v1211, 0
        %v1280 = vsel %vm451, %v1212, 0
        %v1283 = vsel %vm451, %v1213, 0
        %v1286 = vsel %vm451, %v1214, 0
        %v1289 = vsel %vm451, %v1215, 0
        %v1292 = vsel %vm451, %v1216, 0
        %v1295 = vsel %vm451, %v1217, 0
        %v1298 = vsel %vm451, %v1218, 0
        %v1301 = vsel %vm451, %v1219, 0
        %v1304 = vsel %vm451, %v1220, 0
        %v1307 = vsel %vm451, %v1221, 0
        %v1310 = vsel %vm451, %v1222, 0
        %v1313 = vsel %vm451, %v1223, 0
        %v1316 = vsel %vm451, %v1224, 0
        %v1319 = vsel %vm451, %v1225, 0
        %v1322 = vsel %vm451, %v1226, 0
        %v1325 = vsel %vm451, %v1227, 0
        %v1328 = vsel %vm451, %v1228, 0
        %v1331 = vsel %vm451, %v1229, 0
        %v1334 = vsel %vm451, %v1230, 0
        %1336 = vmatprep.subr.mxu0 0.0
        %1337 = vmatpush1.msra.mxu0 0.0
        %1338 = vmatprep.subr.mxu0 0.0
        %1339 = vmatpush1.msra.mxu0 0.0
        %1340 = vmatprep.subr.mxu0 0.0
        %1341 = vmatpush1.msra.mxu0 0.0
        %1342 = vmatprep.subr.mxu0 0.0
        %1343 = vmatpush1.msra.mxu0 0.0
        %1344 = vmatprep.subr.mxu0 0.0
        %1345 = vmatpush1.msra.mxu0 0.0
        %1346 = vmatprep.subr.mxu0 0.0
        %1347 = vmatpush1.msra.mxu0 0.0
        %1348 = vmatprep.subr.mxu0 0.0
        %1349 = vmatpush1.msra.mxu0 0.0
        %1350 = vmatprep.subr.mxu0 0.0
        %1351 = vmatpush1.msra.mxu0 0.0
        %1352 = vmatprep.subr.mxu0 0.0
        %1353 = vmatpush1.msra.mxu0 %v1239
        %1354 = vmatprep.subr.mxu0 0.0
        %1355 = vmatpush1.msra.mxu0 %v1238
        %1356 = vmatprep.subr.mxu0 0.0
        %1357 = vmatpush1.msra.mxu0 %v1237
        %1358 = vmatprep.subr.mxu0 0.0
        %1359 = vmatpush1.msra.mxu0 %v1236
        %1360 = vmatprep.subr.mxu0 0.0
        %1361 = vmatpush1.msra.mxu0 %v1235
        %1362 = vmatprep.subr.mxu0 0.0
        %1363 = vmatpush1.msra.mxu0 %v1234
        %1364 = vmatprep.subr.mxu0 0.0
        %1365 = vmatpush1.msra.mxu0 %v1233
        %1366 = vmatprep.subr.mxu0 0.0
        %1367 = vmatpush1.msra.mxu0 %v1232
        %1368 = vmatprep.subr.mxu0 0.0
        %1369 = vmatpush2.msra.mxu0 0.0
        %1370 = vmatprep.subr.mxu0 0.0
        %1371 = vmatpush2.msra.mxu0 0.0
        %1372 = vmatprep.subr.mxu0 0.0
        %1373 = vmatpush2.msra.mxu0 0.0
        %1374 = vmatprep.subr.mxu0 0.0
        %1375 = vmatpush2.msra.mxu0 0.0
        %1376 = vmatprep.subr.mxu0 0.0
        %1377 = vmatpush2.msra.mxu0 0.0
        %1378 = vmatprep.subr.mxu0 0.0
        %1379 = vmatpush2.msra.mxu0 0.0
        %1380 = vmatprep.subr.mxu0 0.0
        %1381 = vmatpush2.msra.mxu0 0.0
        %1382 = vmatprep.subr.mxu0 0.0
        %1383 = vmatpush2.msra.mxu0 0.0
        %1384 = vmatprep.subr.mxu0 0.0
        %1385 = vmatpush2.msra.mxu0 0.0
        %1386 = vmatprep.subr.mxu0 0.0
        %1387 = vmatpush2.msra.mxu0 0.0
        %1388 = vmatprep.subr.mxu0 0.0
        %1389 = vmatpush2.msra.mxu0 0.0
        %1390 = vmatprep.subr.mxu0 0.0
        %1391 = vmatpush2.msra.mxu0 0.0
        %1392 = vmatprep.subr.mxu0 0.0
        %1393 = vmatpush2.msra.mxu0 0.0
        %1394 = vmatprep.subr.mxu0 0.0
        %1395 = vmatpush2.msra.mxu0 0.0
        %1396 = vmatprep.subr.mxu0 0.0
        %1397 = vmatpush2.msra.mxu0 0.0
        %1398 = vmatprep.subr.mxu0 0.0
        %1399 = vmatpush2.msra.mxu0 0.0
        %1400 = vmatprep.mubr.f32.mxu0 0.0
        %1401 = vmatmul.mubr.f32.gmra.mxu0 %v1241
        %v1402 = vpop.f32.mrf.mxu0
        %v1403 = vadd.f32 0.0, %v1402
        %v1404 = vpop.f32.mrf.mxu0
        %1405 = vmatprep.mubr.f32.mxu0 0.0
        %1406 = vmatmul.mubr.f32.gmra.mxu0 %v1244
        %v1407 = vpop.f32.mrf.mxu0
        %v1408 = vadd.f32 0.0, %v1407
        %v1409 = vpop.f32.mrf.mxu0
        %1410 = vmatprep.mubr.f32.mxu0 0.0
        %1411 = vmatmul.mubr.f32.gmra.mxu0 %v1247
        %v1412 = vpop.f32.mrf.mxu0
        %v1413 = vadd.f32 0.0, %v1412
        %v1414 = vpop.f32.mrf.mxu0
        %1415 = vmatprep.mubr.f32.mxu0 0.0
        %1416 = vmatmul.mubr.f32.gmra.mxu0 %v1250
        %v1417 = vpop.f32.mrf.mxu0
        %v1418 = vadd.f32 0.0, %v1417
        %v1419 = vpop.f32.mrf.mxu0
        %1420 = vmatprep.mubr.f32.mxu0 0.0
        %1421 = vmatmul.mubr.f32.gmra.mxu0 %v1253
        %v1422 = vpop.f32.mrf.mxu0
        %v1423 = vadd.f32 0.0, %v1422
        %v1424 = vpop.f32.mrf.mxu0
        %1425 = vmatprep.mubr.f32.mxu0 0.0
        %1426 = vmatmul.mubr.f32.gmra.mxu0 %v1256
        %v1427 = vpop.f32.mrf.mxu0
        %v1428 = vadd.f32 0.0, %v1427
        %v1429 = vpop.f32.mrf.mxu0
        %1430 = vmatprep.mubr.f32.mxu0 0.0
        %1431 = vmatmul.mubr.f32.gmra.mxu0 %v1259
        %v1432 = vpop.f32.mrf.mxu0
        %v1433 = vadd.f32 0.0, %v1432
        %v1434 = vpop.f32.mrf.mxu0
        %1435 = vmatprep.mubr.f32.mxu0 0.0
        %1436 = vmatmul.mubr.f32.gmra.mxu0 %v1262
        %v1437 = vpop.f32.mrf.mxu0
        %v1438 = vadd.f32 0.0, %v1437
        %v1439 = vpop.f32.mrf.mxu0
        %1440 = vmatprep.mubr.f32.mxu0 0.0
        %1441 = vmatmul.mubr.f32.gmra.mxu0 %v1265
        %v1442 = vpop.f32.mrf.mxu0
        %v1443 = vadd.f32 0.0, %v1442
        %v1444 = vpop.f32.mrf.mxu0
        %1445 = vmatprep.mubr.f32.mxu0 0.0
        %1446 = vmatmul.mubr.f32.gmra.mxu0 %v1268
        %v1447 = vpop.f32.mrf.mxu0
        %v1448 = vadd.f32 0.0, %v1447
        %v1449 = vpop.f32.mrf.mxu0
        %1450 = vmatprep.mubr.f32.mxu0 0.0
        %1451 = vmatmul.mubr.f32.gmra.mxu0 %v1271
        %v1452 = vpop.f32.mrf.mxu0
        %v1453 = vadd.f32 0.0, %v1452
        %v1454 = vpop.f32.mrf.mxu0
        %1455 = vmatprep.mubr.f32.mxu0 0.0
        %1456 = vmatmul.mubr.f32.gmra.mxu0 %v1274
        %v1457 = vpop.f32.mrf.mxu0
        %v1458 = vadd.f32 0.0, %v1457
        %v1459 = vpop.f32.mrf.mxu0
        %1460 = vmatprep.mubr.f32.mxu0 0.0
        %1461 = vmatmul.mubr.f32.gmra.mxu0 %v1277
        %v1462 = vpop.f32.mrf.mxu0
        %v1463 = vadd.f32 0.0, %v1462
        %v1464 = vpop.f32.mrf.mxu0
        %1465 = vmatprep.mubr.f32.mxu0 0.0
        %1466 = vmatmul.mubr.f32.gmra.mxu0 %v1280
        %v1467 = vpop.f32.mrf.mxu0
        %v1468 = vadd.f32 0.0, %v1467
        %v1469 = vpop.f32.mrf.mxu0
        %1470 = vmatprep.mubr.f32.mxu0 0.0
        %1471 = vmatmul.mubr.f32.gmra.mxu0 %v1283
        %v1472 = vpop.f32.mrf.mxu0
        %v1473 = vadd.f32 0.0, %v1472
        %v1474 = vpop.f32.mrf.mxu0
        %1475 = vmatprep.mubr.f32.mxu0 0.0
        %1476 = vmatmul.mubr.f32.gmra.mxu0 %v1286
        %v1477 = vpop.f32.mrf.mxu0
        %v1478 = vadd.f32 0.0, %v1477
        %v1479 = vpop.f32.mrf.mxu0
        %1480 = vmatprep.mubr.f32.mxu0 0.0
        %1481 = vmatmul.mubr.f32.gmra.mxu0 %v1289
        %v1482 = vpop.f32.mrf.mxu0
        %v1483 = vadd.f32 0.0, %v1482
        %v1484 = vpop.f32.mrf.mxu0
        %1485 = vmatprep.mubr.f32.mxu0 0.0
        %1486 = vmatmul.mubr.f32.gmra.mxu0 %v1292
        %v1487 = vpop.f32.mrf.mxu0
        %v1488 = vadd.f32 0.0, %v1487
        %v1489 = vpop.f32.mrf.mxu0
        %1490 = vmatprep.mubr.f32.mxu0 0.0
        %1491 = vmatmul.mubr.f32.gmra.mxu0 %v1295
        %v1492 = vpop.f32.mrf.mxu0
        %v1493 = vadd.f32 0.0, %v1492
        %v1494 = vpop.f32.mrf.mxu0
        %1495 = vmatprep.mubr.f32.mxu0 0.0
        %1496 = vmatmul.mubr.f32.gmra.mxu0 %v1298
        %v1497 = vpop.f32.mrf.mxu0
        %v1498 = vadd.f32 0.0, %v1497
        %v1499 = vpop.f32.mrf.mxu0
        %1500 = vmatprep.mubr.f32.mxu0 0.0
        %1501 = vmatmul.mubr.f32.gmra.mxu0 %v1301
        %v1502 = vpop.f32.mrf.mxu0
        %v1503 = vadd.f32 0.0, %v1502
        %v1504 = vpop.f32.mrf.mxu0
        %1505 = vmatprep.mubr.f32.mxu0 0.0
        %1506 = vmatmul.mubr.f32.gmra.mxu0 %v1304
        %v1507 = vpop.f32.mrf.mxu0
        %v1508 = vadd.f32 0.0, %v1507
        %v1509 = vpop.f32.mrf.mxu0
        %1510 = vmatprep.mubr.f32.mxu0 0.0
        %1511 = vmatmul.mubr.f32.gmra.mxu0 %v1307
        %v1512 = vpop.f32.mrf.mxu0
        %v1513 = vadd.f32 0.0, %v1512
        %v1514 = vpop.f32.mrf.mxu0
        %1515 = vmatprep.mubr.f32.mxu0 0.0
        %1516 = vmatmul.mubr.f32.gmra.mxu0 %v1310
        %v1517 = vpop.f32.mrf.mxu0
        %v1518 = vadd.f32 0.0, %v1517
        %v1519 = vpop.f32.mrf.mxu0
        %1520 = vmatprep.mubr.f32.mxu0 0.0
        %1521 = vmatmul.mubr.f32.gmra.mxu0 %v1313
        %v1522 = vpop.f32.mrf.mxu0
        %v1523 = vadd.f32 0.0, %v1522
        %v1524 = vpop.f32.mrf.mxu0
        %1525 = vmatprep.mubr.f32.mxu0 0.0
        %1526 = vmatmul.mubr.f32.gmra.mxu0 %v1316
        %v1527 = vpop.f32.mrf.mxu0
        %v1528 = vadd.f32 0.0, %v1527
        %v1529 = vpop.f32.mrf.mxu0
        %1530 = vmatprep.mubr.f32.mxu0 0.0
        %1531 = vmatmul.mubr.f32.gmra.mxu0 %v1319
        %v1532 = vpop.f32.mrf.mxu0
        %v1533 = vadd.f32 0.0, %v1532
        %v1534 = vpop.f32.mrf.mxu0
        %1535 = vmatprep.mubr.f32.mxu0 0.0
        %1536 = vmatmul.mubr.f32.gmra.mxu0 %v1322
        %v1537 = vpop.f32.mrf.mxu0
        %v1538 = vadd.f32 0.0, %v1537
        %v1539 = vpop.f32.mrf.mxu0
        %1540 = vmatprep.mubr.f32.mxu0 0.0
        %1541 = vmatmul.mubr.f32.gmra.mxu0 %v1325
        %v1542 = vpop.f32.mrf.mxu0
        %v1543 = vadd.f32 0.0, %v1542
        %v1544 = vpop.f32.mrf.mxu0
        %1545 = vmatprep.mubr.f32.mxu0 0.0
        %1546 = vmatmul.mubr.f32.gmra.mxu0 %v1328
        %v1547 = vpop.f32.mrf.mxu0
        %v1548 = vadd.f32 0.0, %v1547
        %v1549 = vpop.f32.mrf.mxu0
        %1550 = vmatprep.mubr.f32.mxu0 0.0
        %1551 = vmatmul.mubr.f32.gmra.mxu0 %v1331
        %v1552 = vpop.f32.mrf.mxu0
        %v1553 = vadd.f32 0.0, %v1552
        %v1554 = vpop.f32.mrf.mxu0
        %1555 = vmatprep.mubr.f32.mxu0 0.0
        %1556 = vmatmul.mubr.f32.gmra.mxu0 %v1334
        %v1557 = vpop.f32.mrf.mxu0
        %v1558 = vadd.f32 0.0, %v1557
        %v1559 = vpop.f32.mrf.mxu0
        %1560 = vdwg.mxu0
        %v1561 = vadd.f32 %v1167, %v1403
        %v1562 = vadd.f32 %v1168, %v1408
        %v1563 = vadd.f32 %v1169, %v1413
        %v1564 = vadd.f32 %v1170, %v1418
        %v1565 = vadd.f32 %v1171, %v1423
        %v1566 = vadd.f32 %v1172, %v1428
        %v1567 = vadd.f32 %v1173, %v1433
        %v1568 = vadd.f32 %v1174, %v1438
        %v1569 = vadd.f32 %v1175, %v1443
        %v1570 = vadd.f32 %v1176, %v1448
        %v1571 = vadd.f32 %v1177, %v1453
        %v1572 = vadd.f32 %v1178, %v1458
        %v1573 = vadd.f32 %v1179, %v1463
        %v1574 = vadd.f32 %v1180, %v1468
        %v1575 = vadd.f32 %v1181, %v1473
        %v1576 = vadd.f32 %v1182, %v1478
        %v1577 = vadd.f32 %v1183, %v1483
        %v1578 = vadd.f32 %v1184, %v1488
        %v1579 = vadd.f32 %v1185, %v1493
        %v1580 = vadd.f32 %v1186, %v1498
        %v1581 = vadd.f32 %v1187, %v1503
        %v1582 = vadd.f32 %v1188, %v1508
        %v1583 = vadd.f32 %v1189, %v1513
        %v1584 = vadd.f32 %v1190, %v1518
        %v1585 = vadd.f32 %v1191, %v1523
        %v1586 = vadd.f32 %v1192, %v1528
        %v1587 = vadd.f32 %v1193, %v1533
        %v1588 = vadd.f32 %v1194, %v1538
        %v1589 = vadd.f32 %v1195, %v1543
        %v1590 = vadd.f32 %v1196, %v1548
        %v1591 = vadd.f32 %v1197, %v1553
        %v1592 = vadd.f32 %v1198, %v1558
        %v1593 = vld [vmem:[%s370] sm:$0xff]
        %v1594 = vld [vmem:[%s370 + $0x8] sm:$0xff]
        %v1595 = vld [vmem:[%s370 + $0x18] sm:$0xff]
        %v1596 = vld [vmem:[%s370 + $0x20] sm:$0xff]
        %v1597 = vld [vmem:[%s370 + $0x30] sm:$0xff]
        %v1598 = vld [vmem:[%s370 + $0x38] sm:$0xff]
        %v1599 = vld [vmem:[%s370 + $0x48] sm:$0xff]
        %v1600 = vld [vmem:[%s370 + $0x50] sm:$0xff]
        %v1601 = vld [vmem:[%s370 + $0x60] sm:$0xff]
        %v1602 = vld [vmem:[%s370 + $0x68] sm:$0xff]
        %v1603 = vld [vmem:[%s370 + $0x78] sm:$0xff]
        %v1604 = vld [vmem:[%s370 + $0x80] sm:$0xff]
        %v1605 = vld [vmem:[%s370 + $0x90] sm:$0xff]
        %v1606 = vld [vmem:[%s370 + $0x98] sm:$0xff]
        %v1607 = vld [vmem:[%s370 + $0xa8] sm:$0xff]
        %v1608 = vld [vmem:[%s370 + $0xb0] sm:$0xff]
        %v1609 = vld [vmem:[%s370 + $0xc0] sm:$0xff]
        %v1610 = vld [vmem:[%s370 + $0xc8] sm:$0xff]
        %v1611 = vld [vmem:[%s370 + $0xd8] sm:$0xff]
        %v1612 = vld [vmem:[%s370 + $0xe0] sm:$0xff]
        %v1613 = vld [vmem:[%s370 + $0xf0] sm:$0xff]
        %v1614 = vld [vmem:[%s370 + $0xf8] sm:$0xff]
        %v1615 = vld [vmem:[%s370 + $0x108] sm:$0xff]
        %v1616 = vld [vmem:[%s370 + $0x110] sm:$0xff]
        %v1617 = vld [vmem:[%s370 + $0x120] sm:$0xff]
        %v1618 = vld [vmem:[%s370 + $0x128] sm:$0xff]
        %v1619 = vld [vmem:[%s370 + $0x138] sm:$0xff]
        %v1620 = vld [vmem:[%s370 + $0x140] sm:$0xff]
        %v1621 = vld [vmem:[%s370 + $0x150] sm:$0xff]
        %v1622 = vld [vmem:[%s370 + $0x158] sm:$0xff]
        %v1623 = vld [vmem:[%s370 + $0x168] sm:$0xff]
        %v1624 = vld [vmem:[%s370 + $0x170] sm:$0xff]
        %s1625 = scalar_lea.vmem %s1, 192
        %v1626 = vld [vmem:[%s1625] sm:$0xff]
        %v1627 = vld [vmem:[%s1625 + $0x8] sm:$0xff]
        %v1628 = vld [vmem:[%s1625 + $0x10] sm:$0xff]
        %v1629 = vld [vmem:[%s1625 + $0x18] sm:$0xff]
        %v1630 = vld [vmem:[%s1625 + $0x20] sm:$0xff]
        %v1631 = vld [vmem:[%s1625 + $0x28] sm:$0xff]
        %v1632 = vld [vmem:[%s1625 + $0x30] sm:$0xff]
        %v1633 = vld [vmem:[%s1625 + $0x38] sm:$0xff]
        %v1635 = vsel %vm451, %v1593, 0
        %v1638 = vsel %vm451, %v1594, 0
        %v1641 = vsel %vm451, %v1595, 0
        %v1644 = vsel %vm451, %v1596, 0
        %v1647 = vsel %vm451, %v1597, 0
        %v1650 = vsel %vm451, %v1598, 0
        %v1653 = vsel %vm451, %v1599, 0
        %v1656 = vsel %vm451, %v1600, 0
        %v1659 = vsel %vm451, %v1601, 0
        %v1662 = vsel %vm451, %v1602, 0
        %v1665 = vsel %vm451, %v1603, 0
        %v1668 = vsel %vm451, %v1604, 0
        %v1671 = vsel %vm451, %v1605, 0
        %v1674 = vsel %vm451, %v1606, 0
        %v1677 = vsel %vm451, %v1607, 0
        %v1680 = vsel %vm451, %v1608, 0
        %v1683 = vsel %vm451, %v1609, 0
        %v1686 = vsel %vm451, %v1610, 0
        %v1689 = vsel %vm451, %v1611, 0
        %v1692 = vsel %vm451, %v1612, 0
        %v1695 = vsel %vm451, %v1613, 0
        %v1698 = vsel %vm451, %v1614, 0
        %v1701 = vsel %vm451, %v1615, 0
        %v1704 = vsel %vm451, %v1616, 0
        %v1707 = vsel %vm451, %v1617, 0
        %v1710 = vsel %vm451, %v1618, 0
        %v1713 = vsel %vm451, %v1619, 0
        %v1716 = vsel %vm451, %v1620, 0
        %v1719 = vsel %vm451, %v1621, 0
        %v1722 = vsel %vm451, %v1622, 0
        %v1725 = vsel %vm451, %v1623, 0
        %v1728 = vsel %vm451, %v1624, 0
        %1730 = vmatprep.subr.mxu0 0.0
        %1731 = vmatpush1.msra.mxu0 0.0
        %1732 = vmatprep.subr.mxu0 0.0
        %1733 = vmatpush1.msra.mxu0 0.0
        %1734 = vmatprep.subr.mxu0 0.0
        %1735 = vmatpush1.msra.mxu0 0.0
        %1736 = vmatprep.subr.mxu0 0.0
        %1737 = vmatpush1.msra.mxu0 0.0
        %1738 = vmatprep.subr.mxu0 0.0
        %1739 = vmatpush1.msra.mxu0 0.0
        %1740 = vmatprep.subr.mxu0 0.0
        %1741 = vmatpush1.msra.mxu0 0.0
        %1742 = vmatprep.subr.mxu0 0.0
        %1743 = vmatpush1.msra.mxu0 0.0
        %1744 = vmatprep.subr.mxu0 0.0
        %1745 = vmatpush1.msra.mxu0 0.0
        %1746 = vmatprep.subr.mxu0 0.0
        %1747 = vmatpush1.msra.mxu0 %v1633
        %1748 = vmatprep.subr.mxu0 0.0
        %1749 = vmatpush1.msra.mxu0 %v1632
        %1750 = vmatprep.subr.mxu0 0.0
        %1751 = vmatpush1.msra.mxu0 %v1631
        %1752 = vmatprep.subr.mxu0 0.0
        %1753 = vmatpush1.msra.mxu0 %v1630
        %1754 = vmatprep.subr.mxu0 0.0
        %1755 = vmatpush1.msra.mxu0 %v1629
        %1756 = vmatprep.subr.mxu0 0.0
        %1757 = vmatpush1.msra.mxu0 %v1628
        %1758 = vmatprep.subr.mxu0 0.0
        %1759 = vmatpush1.msra.mxu0 %v1627
        %1760 = vmatprep.subr.mxu0 0.0
        %1761 = vmatpush1.msra.mxu0 %v1626
        %1762 = vmatprep.subr.mxu0 0.0
        %1763 = vmatpush2.msra.mxu0 0.0
        %1764 = vmatprep.subr.mxu0 0.0
        %1765 = vmatpush2.msra.mxu0 0.0
        %1766 = vmatprep.subr.mxu0 0.0
        %1767 = vmatpush2.msra.mxu0 0.0
        %1768 = vmatprep.subr.mxu0 0.0
        %1769 = vmatpush2.msra.mxu0 0.0
        %1770 = vmatprep.subr.mxu0 0.0
        %1771 = vmatpush2.msra.mxu0 0.0
        %1772 = vmatprep.subr.mxu0 0.0
        %1773 = vmatpush2.msra.mxu0 0.0
        %1774 = vmatprep.subr.mxu0 0.0
        %1775 = vmatpush2.msra.mxu0 0.0
        %1776 = vmatprep.subr.mxu0 0.0
        %1777 = vmatpush2.msra.mxu0 0.0
        %1778 = vmatprep.subr.mxu0 0.0
        %1779 = vmatpush2.msra.mxu0 0.0
        %1780 = vmatprep.subr.mxu0 0.0
        %1781 = vmatpush2.msra.mxu0 0.0
        %1782 = vmatprep.subr.mxu0 0.0
        %1783 = vmatpush2.msra.mxu0 0.0
        %1784 = vmatprep.subr.mxu0 0.0
        %1785 = vmatpush2.msra.mxu0 0.0
        %1786 = vmatprep.subr.mxu0 0.0
        %1787 = vmatpush2.msra.mxu0 0.0
        %1788 = vmatprep.subr.mxu0 0.0
        %1789 = vmatpush2.msra.mxu0 0.0
        %1790 = vmatprep.subr.mxu0 0.0
        %1791 = vmatpush2.msra.mxu0 0.0
        %1792 = vmatprep.subr.mxu0 0.0
        %1793 = vmatpush2.msra.mxu0 0.0
        %1794 = vmatprep.mubr.f32.mxu0 0.0
        %1795 = vmatmul.mubr.f32.gmra.mxu0 %v1635
        %v1796 = vpop.f32.mrf.mxu0
        %v1797 = vadd.f32 0.0, %v1796
        %v1798 = vpop.f32.mrf.mxu0
        %1799 = vmatprep.mubr.f32.mxu0 0.0
        %1800 = vmatmul.mubr.f32.gmra.mxu0 %v1638
        %v1801 = vpop.f32.mrf.mxu0
        %v1802 = vadd.f32 0.0, %v1801
        %v1803 = vpop.f32.mrf.mxu0
        %1804 = vmatprep.mubr.f32.mxu0 0.0
        %1805 = vmatmul.mubr.f32.gmra.mxu0 %v1641
        %v1806 = vpop.f32.mrf.mxu0
        %v1807 = vadd.f32 0.0, %v1806
        %v1808 = vpop.f32.mrf.mxu0
        %1809 = vmatprep.mubr.f32.mxu0 0.0
        %1810 = vmatmul.mubr.f32.gmra.mxu0 %v1644
        %v1811 = vpop.f32.mrf.mxu0
        %v1812 = vadd.f32 0.0, %v1811
        %v1813 = vpop.f32.mrf.mxu0
        %1814 = vmatprep.mubr.f32.mxu0 0.0
        %1815 = vmatmul.mubr.f32.gmra.mxu0 %v1647
        %v1816 = vpop.f32.mrf.mxu0
        %v1817 = vadd.f32 0.0, %v1816
        %v1818 = vpop.f32.mrf.mxu0
        %1819 = vmatprep.mubr.f32.mxu0 0.0
        %1820 = vmatmul.mubr.f32.gmra.mxu0 %v1650
        %v1821 = vpop.f32.mrf.mxu0
        %v1822 = vadd.f32 0.0, %v1821
        %v1823 = vpop.f32.mrf.mxu0
        %1824 = vmatprep.mubr.f32.mxu0 0.0
        %1825 = vmatmul.mubr.f32.gmra.mxu0 %v1653
        %v1826 = vpop.f32.mrf.mxu0
        %v1827 = vadd.f32 0.0, %v1826
        %v1828 = vpop.f32.mrf.mxu0
        %1829 = vmatprep.mubr.f32.mxu0 0.0
        %1830 = vmatmul.mubr.f32.gmra.mxu0 %v1656
        %v1831 = vpop.f32.mrf.mxu0
        %v1832 = vadd.f32 0.0, %v1831
        %v1833 = vpop.f32.mrf.mxu0
        %1834 = vmatprep.mubr.f32.mxu0 0.0
        %1835 = vmatmul.mubr.f32.gmra.mxu0 %v1659
        %v1836 = vpop.f32.mrf.mxu0
        %v1837 = vadd.f32 0.0, %v1836
        %v1838 = vpop.f32.mrf.mxu0
        %1839 = vmatprep.mubr.f32.mxu0 0.0
        %1840 = vmatmul.mubr.f32.gmra.mxu0 %v1662
        %v1841 = vpop.f32.mrf.mxu0
        %v1842 = vadd.f32 0.0, %v1841
        %v1843 = vpop.f32.mrf.mxu0
        %1844 = vmatprep.mubr.f32.mxu0 0.0
        %1845 = vmatmul.mubr.f32.gmra.mxu0 %v1665
        %v1846 = vpop.f32.mrf.mxu0
        %v1847 = vadd.f32 0.0, %v1846
        %v1848 = vpop.f32.mrf.mxu0
        %1849 = vmatprep.mubr.f32.mxu0 0.0
        %1850 = vmatmul.mubr.f32.gmra.mxu0 %v1668
        %v1851 = vpop.f32.mrf.mxu0
        %v1852 = vadd.f32 0.0, %v1851
        %v1853 = vpop.f32.mrf.mxu0
        %1854 = vmatprep.mubr.f32.mxu0 0.0
        %1855 = vmatmul.mubr.f32.gmra.mxu0 %v1671
        %v1856 = vpop.f32.mrf.mxu0
        %v1857 = vadd.f32 0.0, %v1856
        %v1858 = vpop.f32.mrf.mxu0
        %1859 = vmatprep.mubr.f32.mxu0 0.0
        %1860 = vmatmul.mubr.f32.gmra.mxu0 %v1674
        %v1861 = vpop.f32.mrf.mxu0
        %v1862 = vadd.f32 0.0, %v1861
        %v1863 = vpop.f32.mrf.mxu0
        %1864 = vmatprep.mubr.f32.mxu0 0.0
        %1865 = vmatmul.mubr.f32.gmra.mxu0 %v1677
        %v1866 = vpop.f32.mrf.mxu0
        %v1867 = vadd.f32 0.0, %v1866
        %v1868 = vpop.f32.mrf.mxu0
        %1869 = vmatprep.mubr.f32.mxu0 0.0
        %1870 = vmatmul.mubr.f32.gmra.mxu0 %v1680
        %v1871 = vpop.f32.mrf.mxu0
        %v1872 = vadd.f32 0.0, %v1871
        %v1873 = vpop.f32.mrf.mxu0
        %1874 = vmatprep.mubr.f32.mxu0 0.0
        %1875 = vmatmul.mubr.f32.gmra.mxu0 %v1683
        %v1876 = vpop.f32.mrf.mxu0
        %v1877 = vadd.f32 0.0, %v1876
        %v1878 = vpop.f32.mrf.mxu0
        %1879 = vmatprep.mubr.f32.mxu0 0.0
        %1880 = vmatmul.mubr.f32.gmra.mxu0 %v1686
        %v1881 = vpop.f32.mrf.mxu0
        %v1882 = vadd.f32 0.0, %v1881
        %v1883 = vpop.f32.mrf.mxu0
        %1884 = vmatprep.mubr.f32.mxu0 0.0
        %1885 = vmatmul.mubr.f32.gmra.mxu0 %v1689
        %v1886 = vpop.f32.mrf.mxu0
        %v1887 = vadd.f32 0.0, %v1886
        %v1888 = vpop.f32.mrf.mxu0
        %1889 = vmatprep.mubr.f32.mxu0 0.0
        %1890 = vmatmul.mubr.f32.gmra.mxu0 %v1692
        %v1891 = vpop.f32.mrf.mxu0
        %v1892 = vadd.f32 0.0, %v1891
        %v1893 = vpop.f32.mrf.mxu0
        %1894 = vmatprep.mubr.f32.mxu0 0.0
        %1895 = vmatmul.mubr.f32.gmra.mxu0 %v1695
        %v1896 = vpop.f32.mrf.mxu0
        %v1897 = vadd.f32 0.0, %v1896
        %v1898 = vpop.f32.mrf.mxu0
        %1899 = vmatprep.mubr.f32.mxu0 0.0
        %1900 = vmatmul.mubr.f32.gmra.mxu0 %v1698
        %v1901 = vpop.f32.mrf.mxu0
        %v1902 = vadd.f32 0.0, %v1901
        %v1903 = vpop.f32.mrf.mxu0
        %1904 = vmatprep.mubr.f32.mxu0 0.0
        %1905 = vmatmul.mubr.f32.gmra.mxu0 %v1701
        %v1906 = vpop.f32.mrf.mxu0
        %v1907 = vadd.f32 0.0, %v1906
        %v1908 = vpop.f32.mrf.mxu0
        %1909 = vmatprep.mubr.f32.mxu0 0.0
        %1910 = vmatmul.mubr.f32.gmra.mxu0 %v1704
        %v1911 = vpop.f32.mrf.mxu0
        %v1912 = vadd.f32 0.0, %v1911
        %v1913 = vpop.f32.mrf.mxu0
        %1914 = vmatprep.mubr.f32.mxu0 0.0
        %1915 = vmatmul.mubr.f32.gmra.mxu0 %v1707
        %v1916 = vpop.f32.mrf.mxu0
        %v1917 = vadd.f32 0.0, %v1916
        %v1918 = vpop.f32.mrf.mxu0
        %1919 = vmatprep.mubr.f32.mxu0 0.0
        %1920 = vmatmul.mubr.f32.gmra.mxu0 %v1710
        %v1921 = vpop.f32.mrf.mxu0
        %v1922 = vadd.f32 0.0, %v1921
        %v1923 = vpop.f32.mrf.mxu0
        %1924 = vmatprep.mubr.f32.mxu0 0.0
        %1925 = vmatmul.mubr.f32.gmra.mxu0 %v1713
        %v1926 = vpop.f32.mrf.mxu0
        %v1927 = vadd.f32 0.0, %v1926
        %v1928 = vpop.f32.mrf.mxu0
        %1929 = vmatprep.mubr.f32.mxu0 0.0
        %1930 = vmatmul.mubr.f32.gmra.mxu0 %v1716
        %v1931 = vpop.f32.mrf.mxu0
        %v1932 = vadd.f32 0.0, %v1931
        %v1933 = vpop.f32.mrf.mxu0
        %1934 = vmatprep.mubr.f32.mxu0 0.0
        %1935 = vmatmul.mubr.f32.gmra.mxu0 %v1719
        %v1936 = vpop.f32.mrf.mxu0
        %v1937 = vadd.f32 0.0, %v1936
        %v1938 = vpop.f32.mrf.mxu0
        %1939 = vmatprep.mubr.f32.mxu0 0.0
        %1940 = vmatmul.mubr.f32.gmra.mxu0 %v1722
        %v1941 = vpop.f32.mrf.mxu0
        %v1942 = vadd.f32 0.0, %v1941
        %v1943 = vpop.f32.mrf.mxu0
        %1944 = vmatprep.mubr.f32.mxu0 0.0
        %1945 = vmatmul.mubr.f32.gmra.mxu0 %v1725
        %v1946 = vpop.f32.mrf.mxu0
        %v1947 = vadd.f32 0.0, %v1946
        %v1948 = vpop.f32.mrf.mxu0
        %1949 = vmatprep.mubr.f32.mxu0 0.0
        %1950 = vmatmul.mubr.f32.gmra.mxu0 %v1728
        %v1951 = vpop.f32.mrf.mxu0
        %v1952 = vadd.f32 0.0, %v1951
        %v1953 = vpop.f32.mrf.mxu0
        %1954 = vdwg.mxu0
        %v1955 = vadd.f32 %v1561, %v1797
        %v1956 = vadd.f32 %v1562, %v1802
        %v1957 = vadd.f32 %v1563, %v1807
        %v1958 = vadd.f32 %v1564, %v1812
        %v1959 = vadd.f32 %v1565, %v1817
        %v1960 = vadd.f32 %v1566, %v1822
        %v1961 = vadd.f32 %v1567, %v1827
        %v1962 = vadd.f32 %v1568, %v1832
        %v1963 = vadd.f32 %v1569, %v1837
        %v1964 = vadd.f32 %v1570, %v1842
        %v1965 = vadd.f32 %v1571, %v1847
        %v1966 = vadd.f32 %v1572, %v1852
        %v1967 = vadd.f32 %v1573, %v1857
        %v1968 = vadd.f32 %v1574, %v1862
        %v1969 = vadd.f32 %v1575, %v1867
        %v1970 = vadd.f32 %v1576, %v1872
        %v1971 = vadd.f32 %v1577, %v1877
        %v1972 = vadd.f32 %v1578, %v1882
        %v1973 = vadd.f32 %v1579, %v1887
        %v1974 = vadd.f32 %v1580, %v1892
        %v1975 = vadd.f32 %v1581, %v1897
        %v1976 = vadd.f32 %v1582, %v1902
        %v1977 = vadd.f32 %v1583, %v1907
        %v1978 = vadd.f32 %v1584, %v1912
        %v1979 = vadd.f32 %v1585, %v1917
        %v1980 = vadd.f32 %v1586, %v1922
        %v1981 = vadd.f32 %v1587, %v1927
        %v1982 = vadd.f32 %v1588, %v1932
        %v1983 = vadd.f32 %v1589, %v1937
        %v1984 = vadd.f32 %v1590, %v1942
        %v1985 = vadd.f32 %v1591, %v1947
        %v1986 = vadd.f32 %v1592, %v1952
        %v1987 = vld [vmem:[%s370 + $0x1] sm:$0xff]
        %v1988 = vld [vmem:[%s370 + $0x9] sm:$0xff]
        %v1989 = vld [vmem:[%s370 + $0x19] sm:$0xff]
        %v1990 = vld [vmem:[%s370 + $0x21] sm:$0xff]
        %v1991 = vld [vmem:[%s370 + $0x31] sm:$0xff]
        %v1992 = vld [vmem:[%s370 + $0x39] sm:$0xff]
        %v1993 = vld [vmem:[%s370 + $0x49] sm:$0xff]
        %v1994 = vld [vmem:[%s370 + $0x51] sm:$0xff]
        %v1995 = vld [vmem:[%s370 + $0x61] sm:$0xff]
        %v1996 = vld [vmem:[%s370 + $0x69] sm:$0xff]
        %v1997 = vld [vmem:[%s370 + $0x79] sm:$0xff]
        %v1998 = vld [vmem:[%s370 + $0x81] sm:$0xff]
        %v1999 = vld [vmem:[%s370 + $0x91] sm:$0xff]
        %v2000 = vld [vmem:[%s370 + $0x99] sm:$0xff]
        %v2001 = vld [vmem:[%s370 + $0xa9] sm:$0xff]
        %v2002 = vld [vmem:[%s370 + $0xb1] sm:$0xff]
        %v2003 = vld [vmem:[%s370 + $0xc1] sm:$0xff]
        %v2004 = vld [vmem:[%s370 + $0xc9] sm:$0xff]
        %v2005 = vld [vmem:[%s370 + $0xd9] sm:$0xff]
        %v2006 = vld [vmem:[%s370 + $0xe1] sm:$0xff]
        %v2007 = vld [vmem:[%s370 + $0xf1] sm:$0xff]
        %v2008 = vld [vmem:[%s370 + $0xf9] sm:$0xff]
        %v2009 = vld [vmem:[%s370 + $0x109] sm:$0xff]
        %v2010 = vld [vmem:[%s370 + $0x111] sm:$0xff]
        %v2011 = vld [vmem:[%s370 + $0x121] sm:$0xff]
        %v2012 = vld [vmem:[%s370 + $0x129] sm:$0xff]
        %v2013 = vld [vmem:[%s370 + $0x139] sm:$0xff]
        %v2014 = vld [vmem:[%s370 + $0x141] sm:$0xff]
        %v2015 = vld [vmem:[%s370 + $0x151] sm:$0xff]
        %v2016 = vld [vmem:[%s370 + $0x159] sm:$0xff]
        %v2017 = vld [vmem:[%s370 + $0x169] sm:$0xff]
        %v2018 = vld [vmem:[%s370 + $0x171] sm:$0xff]
        %s2019 = scalar_lea.vmem %s1, 256
        %v2020 = vld [vmem:[%s2019] sm:$0xff]
        %v2021 = vld [vmem:[%s2019 + $0x8] sm:$0xff]
        %v2022 = vld [vmem:[%s2019 + $0x10] sm:$0xff]
        %v2023 = vld [vmem:[%s2019 + $0x18] sm:$0xff]
        %v2024 = vld [vmem:[%s2019 + $0x20] sm:$0xff]
        %v2025 = vld [vmem:[%s2019 + $0x28] sm:$0xff]
        %v2026 = vld [vmem:[%s2019 + $0x30] sm:$0xff]
        %v2027 = vld [vmem:[%s2019 + $0x38] sm:$0xff]
        %v2029 = vsel %vm451, %v1987, 0
        %v2032 = vsel %vm451, %v1988, 0
        %v2035 = vsel %vm451, %v1989, 0
        %v2038 = vsel %vm451, %v1990, 0
        %v2041 = vsel %vm451, %v1991, 0
        %v2044 = vsel %vm451, %v1992, 0
        %v2047 = vsel %vm451, %v1993, 0
        %v2050 = vsel %vm451, %v1994, 0
        %v2053 = vsel %vm451, %v1995, 0
        %v2056 = vsel %vm451, %v1996, 0
        %v2059 = vsel %vm451, %v1997, 0
        %v2062 = vsel %vm451, %v1998, 0
        %v2065 = vsel %vm451, %v1999, 0
        %v2068 = vsel %vm451, %v2000, 0
        %v2071 = vsel %vm451, %v2001, 0
        %v2074 = vsel %vm451, %v2002, 0
        %v2077 = vsel %vm451, %v2003, 0
        %v2080 = vsel %vm451, %v2004, 0
        %v2083 = vsel %vm451, %v2005, 0
        %v2086 = vsel %vm451, %v2006, 0
        %v2089 = vsel %vm451, %v2007, 0
        %v2092 = vsel %vm451, %v2008, 0
        %v2095 = vsel %vm451, %v2009, 0
        %v2098 = vsel %vm451, %v2010, 0
        %v2101 = vsel %vm451, %v2011, 0
        %v2104 = vsel %vm451, %v2012, 0
        %v2107 = vsel %vm451, %v2013, 0
        %v2110 = vsel %vm451, %v2014, 0
        %v2113 = vsel %vm451, %v2015, 0
        %v2116 = vsel %vm451, %v2016, 0
        %v2119 = vsel %vm451, %v2017, 0
        %v2122 = vsel %vm451, %v2018, 0
        %2124 = vmatprep.subr.mxu0 0.0
        %2125 = vmatpush1.msra.mxu0 0.0
        %2126 = vmatprep.subr.mxu0 0.0
        %2127 = vmatpush1.msra.mxu0 0.0
        %2128 = vmatprep.subr.mxu0 0.0
        %2129 = vmatpush1.msra.mxu0 0.0
        %2130 = vmatprep.subr.mxu0 0.0
        %2131 = vmatpush1.msra.mxu0 0.0
        %2132 = vmatprep.subr.mxu0 0.0
        %2133 = vmatpush1.msra.mxu0 0.0
        %2134 = vmatprep.subr.mxu0 0.0
        %2135 = vmatpush1.msra.mxu0 0.0
        %2136 = vmatprep.subr.mxu0 0.0
        %2137 = vmatpush1.msra.mxu0 0.0
        %2138 = vmatprep.subr.mxu0 0.0
        %2139 = vmatpush1.msra.mxu0 0.0
        %2140 = vmatprep.subr.mxu0 0.0
        %2141 = vmatpush1.msra.mxu0 %v2027
        %2142 = vmatprep.subr.mxu0 0.0
        %2143 = vmatpush1.msra.mxu0 %v2026
        %2144 = vmatprep.subr.mxu0 0.0
        %2145 = vmatpush1.msra.mxu0 %v2025
        %2146 = vmatprep.subr.mxu0 0.0
        %2147 = vmatpush1.msra.mxu0 %v2024
        %2148 = vmatprep.subr.mxu0 0.0
        %2149 = vmatpush1.msra.mxu0 %v2023
        %2150 = vmatprep.subr.mxu0 0.0
        %2151 = vmatpush1.msra.mxu0 %v2022
        %2152 = vmatprep.subr.mxu0 0.0
        %2153 = vmatpush1.msra.mxu0 %v2021
        %2154 = vmatprep.subr.mxu0 0.0
        %2155 = vmatpush1.msra.mxu0 %v2020
        %2156 = vmatprep.subr.mxu0 0.0
        %2157 = vmatpush2.msra.mxu0 0.0
        %2158 = vmatprep.subr.mxu0 0.0
        %2159 = vmatpush2.msra.mxu0 0.0
        %2160 = vmatprep.subr.mxu0 0.0
        %2161 = vmatpush2.msra.mxu0 0.0
        %2162 = vmatprep.subr.mxu0 0.0
        %2163 = vmatpush2.msra.mxu0 0.0
        %2164 = vmatprep.subr.mxu0 0.0
        %2165 = vmatpush2.msra.mxu0 0.0
        %2166 = vmatprep.subr.mxu0 0.0
        %2167 = vmatpush2.msra.mxu0 0.0
        %2168 = vmatprep.subr.mxu0 0.0
        %2169 = vmatpush2.msra.mxu0 0.0
        %2170 = vmatprep.subr.mxu0 0.0
        %2171 = vmatpush2.msra.mxu0 0.0
        %2172 = vmatprep.subr.mxu0 0.0
        %2173 = vmatpush2.msra.mxu0 0.0
        %2174 = vmatprep.subr.mxu0 0.0
        %2175 = vmatpush2.msra.mxu0 0.0
        %2176 = vmatprep.subr.mxu0 0.0
        %2177 = vmatpush2.msra.mxu0 0.0
        %2178 = vmatprep.subr.mxu0 0.0
        %2179 = vmatpush2.msra.mxu0 0.0
        %2180 = vmatprep.subr.mxu0 0.0
        %2181 = vmatpush2.msra.mxu0 0.0
        %2182 = vmatprep.subr.mxu0 0.0
        %2183 = vmatpush2.msra.mxu0 0.0
        %2184 = vmatprep.subr.mxu0 0.0
        %2185 = vmatpush2.msra.mxu0 0.0
        %2186 = vmatprep.subr.mxu0 0.0
        %2187 = vmatpush2.msra.mxu0 0.0
        %2188 = vmatprep.mubr.f32.mxu0 0.0
        %2189 = vmatmul.mubr.f32.gmra.mxu0 %v2029
        %v2190 = vpop.f32.mrf.mxu0
        %v2191 = vadd.f32 0.0, %v2190
        %v2192 = vpop.f32.mrf.mxu0
        %2193 = vmatprep.mubr.f32.mxu0 0.0
        %2194 = vmatmul.mubr.f32.gmra.mxu0 %v2032
        %v2195 = vpop.f32.mrf.mxu0
        %v2196 = vadd.f32 0.0, %v2195
        %v2197 = vpop.f32.mrf.mxu0
        %2198 = vmatprep.mubr.f32.mxu0 0.0
        %2199 = vmatmul.mubr.f32.gmra.mxu0 %v2035
        %v2200 = vpop.f32.mrf.mxu0
        %v2201 = vadd.f32 0.0, %v2200
        %v2202 = vpop.f32.mrf.mxu0
        %2203 = vmatprep.mubr.f32.mxu0 0.0
        %2204 = vmatmul.mubr.f32.gmra.mxu0 %v2038
        %v2205 = vpop.f32.mrf.mxu0
        %v2206 = vadd.f32 0.0, %v2205
        %v2207 = vpop.f32.mrf.mxu0
        %2208 = vmatprep.mubr.f32.mxu0 0.0
        %2209 = vmatmul.mubr.f32.gmra.mxu0 %v2041
        %v2210 = vpop.f32.mrf.mxu0
        %v2211 = vadd.f32 0.0, %v2210
        %v2212 = vpop.f32.mrf.mxu0
        %2213 = vmatprep.mubr.f32.mxu0 0.0
        %2214 = vmatmul.mubr.f32.gmra.mxu0 %v2044
        %v2215 = vpop.f32.mrf.mxu0
        %v2216 = vadd.f32 0.0, %v2215
        %v2217 = vpop.f32.mrf.mxu0
        %2218 = vmatprep.mubr.f32.mxu0 0.0
        %2219 = vmatmul.mubr.f32.gmra.mxu0 %v2047
        %v2220 = vpop.f32.mrf.mxu0
        %v2221 = vadd.f32 0.0, %v2220
        %v2222 = vpop.f32.mrf.mxu0
        %2223 = vmatprep.mubr.f32.mxu0 0.0
        %2224 = vmatmul.mubr.f32.gmra.mxu0 %v2050
        %v2225 = vpop.f32.mrf.mxu0
        %v2226 = vadd.f32 0.0, %v2225
        %v2227 = vpop.f32.mrf.mxu0
        %2228 = vmatprep.mubr.f32.mxu0 0.0
        %2229 = vmatmul.mubr.f32.gmra.mxu0 %v2053
        %v2230 = vpop.f32.mrf.mxu0
        %v2231 = vadd.f32 0.0, %v2230
        %v2232 = vpop.f32.mrf.mxu0
        %2233 = vmatprep.mubr.f32.mxu0 0.0
        %2234 = vmatmul.mubr.f32.gmra.mxu0 %v2056
        %v2235 = vpop.f32.mrf.mxu0
        %v2236 = vadd.f32 0.0, %v2235
        %v2237 = vpop.f32.mrf.mxu0
        %2238 = vmatprep.mubr.f32.mxu0 0.0
        %2239 = vmatmul.mubr.f32.gmra.mxu0 %v2059
        %v2240 = vpop.f32.mrf.mxu0
        %v2241 = vadd.f32 0.0, %v2240
        %v2242 = vpop.f32.mrf.mxu0
        %2243 = vmatprep.mubr.f32.mxu0 0.0
        %2244 = vmatmul.mubr.f32.gmra.mxu0 %v2062
        %v2245 = vpop.f32.mrf.mxu0
        %v2246 = vadd.f32 0.0, %v2245
        %v2247 = vpop.f32.mrf.mxu0
        %2248 = vmatprep.mubr.f32.mxu0 0.0
        %2249 = vmatmul.mubr.f32.gmra.mxu0 %v2065
        %v2250 = vpop.f32.mrf.mxu0
        %v2251 = vadd.f32 0.0, %v2250
        %v2252 = vpop.f32.mrf.mxu0
        %2253 = vmatprep.mubr.f32.mxu0 0.0
        %2254 = vmatmul.mubr.f32.gmra.mxu0 %v2068
        %v2255 = vpop.f32.mrf.mxu0
        %v2256 = vadd.f32 0.0, %v2255
        %v2257 = vpop.f32.mrf.mxu0
        %2258 = vmatprep.mubr.f32.mxu0 0.0
        %2259 = vmatmul.mubr.f32.gmra.mxu0 %v2071
        %v2260 = vpop.f32.mrf.mxu0
        %v2261 = vadd.f32 0.0, %v2260
        %v2262 = vpop.f32.mrf.mxu0
        %2263 = vmatprep.mubr.f32.mxu0 0.0
        %2264 = vmatmul.mubr.f32.gmra.mxu0 %v2074
        %v2265 = vpop.f32.mrf.mxu0
        %v2266 = vadd.f32 0.0, %v2265
        %v2267 = vpop.f32.mrf.mxu0
        %2268 = vmatprep.mubr.f32.mxu0 0.0
        %2269 = vmatmul.mubr.f32.gmra.mxu0 %v2077
        %v2270 = vpop.f32.mrf.mxu0
        %v2271 = vadd.f32 0.0, %v2270
        %v2272 = vpop.f32.mrf.mxu0
        %2273 = vmatprep.mubr.f32.mxu0 0.0
        %2274 = vmatmul.mubr.f32.gmra.mxu0 %v2080
        %v2275 = vpop.f32.mrf.mxu0
        %v2276 = vadd.f32 0.0, %v2275
        %v2277 = vpop.f32.mrf.mxu0
        %2278 = vmatprep.mubr.f32.mxu0 0.0
        %2279 = vmatmul.mubr.f32.gmra.mxu0 %v2083
        %v2280 = vpop.f32.mrf.mxu0
        %v2281 = vadd.f32 0.0, %v2280
        %v2282 = vpop.f32.mrf.mxu0
        %2283 = vmatprep.mubr.f32.mxu0 0.0
        %2284 = vmatmul.mubr.f32.gmra.mxu0 %v2086
        %v2285 = vpop.f32.mrf.mxu0
        %v2286 = vadd.f32 0.0, %v2285
        %v2287 = vpop.f32.mrf.mxu0
        %2288 = vmatprep.mubr.f32.mxu0 0.0
        %2289 = vmatmul.mubr.f32.gmra.mxu0 %v2089
        %v2290 = vpop.f32.mrf.mxu0
        %v2291 = vadd.f32 0.0, %v2290
        %v2292 = vpop.f32.mrf.mxu0
        %2293 = vmatprep.mubr.f32.mxu0 0.0
        %2294 = vmatmul.mubr.f32.gmra.mxu0 %v2092
        %v2295 = vpop.f32.mrf.mxu0
        %v2296 = vadd.f32 0.0, %v2295
        %v2297 = vpop.f32.mrf.mxu0
        %2298 = vmatprep.mubr.f32.mxu0 0.0
        %2299 = vmatmul.mubr.f32.gmra.mxu0 %v2095
        %v2300 = vpop.f32.mrf.mxu0
        %v2301 = vadd.f32 0.0, %v2300
        %v2302 = vpop.f32.mrf.mxu0
        %2303 = vmatprep.mubr.f32.mxu0 0.0
        %2304 = vmatmul.mubr.f32.gmra.mxu0 %v2098
        %v2305 = vpop.f32.mrf.mxu0
        %v2306 = vadd.f32 0.0, %v2305
        %v2307 = vpop.f32.mrf.mxu0
        %2308 = vmatprep.mubr.f32.mxu0 0.0
        %2309 = vmatmul.mubr.f32.gmra.mxu0 %v2101
        %v2310 = vpop.f32.mrf.mxu0
        %v2311 = vadd.f32 0.0, %v2310
        %v2312 = vpop.f32.mrf.mxu0
        %2313 = vmatprep.mubr.f32.mxu0 0.0
        %2314 = vmatmul.mubr.f32.gmra.mxu0 %v2104
        %v2315 = vpop.f32.mrf.mxu0
        %v2316 = vadd.f32 0.0, %v2315
        %v2317 = vpop.f32.mrf.mxu0
        %2318 = vmatprep.mubr.f32.mxu0 0.0
        %2319 = vmatmul.mubr.f32.gmra.mxu0 %v2107
        %v2320 = vpop.f32.mrf.mxu0
        %v2321 = vadd.f32 0.0, %v2320
        %v2322 = vpop.f32.mrf.mxu0
        %2323 = vmatprep.mubr.f32.mxu0 0.0
        %2324 = vmatmul.mubr.f32.gmra.mxu0 %v2110
        %v2325 = vpop.f32.mrf.mxu0
        %v2326 = vadd.f32 0.0, %v2325
        %v2327 = vpop.f32.mrf.mxu0
        %2328 = vmatprep.mubr.f32.mxu0 0.0
        %2329 = vmatmul.mubr.f32.gmra.mxu0 %v2113
        %v2330 = vpop.f32.mrf.mxu0
        %v2331 = vadd.f32 0.0, %v2330
        %v2332 = vpop.f32.mrf.mxu0
        %2333 = vmatprep.mubr.f32.mxu0 0.0
        %2334 = vmatmul.mubr.f32.gmra.mxu0 %v2116
        %v2335 = vpop.f32.mrf.mxu0
        %v2336 = vadd.f32 0.0, %v2335
        %v2337 = vpop.f32.mrf.mxu0
        %2338 = vmatprep.mubr.f32.mxu0 0.0
        %2339 = vmatmul.mubr.f32.gmra.mxu0 %v2119
        %v2340 = vpop.f32.mrf.mxu0
        %v2341 = vadd.f32 0.0, %v2340
        %v2342 = vpop.f32.mrf.mxu0
        %2343 = vmatprep.mubr.f32.mxu0 0.0
        %2344 = vmatmul.mubr.f32.gmra.mxu0 %v2122
        %v2345 = vpop.f32.mrf.mxu0
        %v2346 = vadd.f32 0.0, %v2345
        %v2347 = vpop.f32.mrf.mxu0
        %2348 = vdwg.mxu0
        %v2349 = vadd.f32 %v1955, %v2191
        %v2350 = vadd.f32 %v1956, %v2196
        %v2351 = vadd.f32 %v1957, %v2201
        %v2352 = vadd.f32 %v1958, %v2206
        %v2353 = vadd.f32 %v1959, %v2211
        %v2354 = vadd.f32 %v1960, %v2216
        %v2355 = vadd.f32 %v1961, %v2221
        %v2356 = vadd.f32 %v1962, %v2226
        %v2357 = vadd.f32 %v1963, %v2231
        %v2358 = vadd.f32 %v1964, %v2236
        %v2359 = vadd.f32 %v1965, %v2241
        %v2360 = vadd.f32 %v1966, %v2246
        %v2361 = vadd.f32 %v1967, %v2251
        %v2362 = vadd.f32 %v1968, %v2256
        %v2363 = vadd.f32 %v1969, %v2261
        %v2364 = vadd.f32 %v1970, %v2266
        %v2365 = vadd.f32 %v1971, %v2271
        %v2366 = vadd.f32 %v1972, %v2276
        %v2367 = vadd.f32 %v1973, %v2281
        %v2368 = vadd.f32 %v1974, %v2286
        %v2369 = vadd.f32 %v1975, %v2291
        %v2370 = vadd.f32 %v1976, %v2296
        %v2371 = vadd.f32 %v1977, %v2301
        %v2372 = vadd.f32 %v1978, %v2306
        %v2373 = vadd.f32 %v1979, %v2311
        %v2374 = vadd.f32 %v1980, %v2316
        %v2375 = vadd.f32 %v1981, %v2321
        %v2376 = vadd.f32 %v1982, %v2326
        %v2377 = vadd.f32 %v1983, %v2331
        %v2378 = vadd.f32 %v1984, %v2336
        %v2379 = vadd.f32 %v1985, %v2341
        %v2380 = vadd.f32 %v1986, %v2346
        %v2381 = vld [vmem:[%s370 + $0x2] sm:$0xff]
        %v2382 = vld [vmem:[%s370 + $0xa] sm:$0xff]
        %v2383 = vld [vmem:[%s370 + $0x1a] sm:$0xff]
        %v2384 = vld [vmem:[%s370 + $0x22] sm:$0xff]
        %v2385 = vld [vmem:[%s370 + $0x32] sm:$0xff]
        %v2386 = vld [vmem:[%s370 + $0x3a] sm:$0xff]
        %v2387 = vld [vmem:[%s370 + $0x4a] sm:$0xff]
        %v2388 = vld [vmem:[%s370 + $0x52] sm:$0xff]
        %v2389 = vld [vmem:[%s370 + $0x62] sm:$0xff]
        %v2390 = vld [vmem:[%s370 + $0x6a] sm:$0xff]
        %v2391 = vld [vmem:[%s370 + $0x7a] sm:$0xff]
        %v2392 = vld [vmem:[%s370 + $0x82] sm:$0xff]
        %v2393 = vld [vmem:[%s370 + $0x92] sm:$0xff]
        %v2394 = vld [vmem:[%s370 + $0x9a] sm:$0xff]
        %v2395 = vld [vmem:[%s370 + $0xaa] sm:$0xff]
        %v2396 = vld [vmem:[%s370 + $0xb2] sm:$0xff]
        %v2397 = vld [vmem:[%s370 + $0xc2] sm:$0xff]
        %v2398 = vld [vmem:[%s370 + $0xca] sm:$0xff]
        %v2399 = vld [vmem:[%s370 + $0xda] sm:$0xff]
        %v2400 = vld [vmem:[%s370 + $0xe2] sm:$0xff]
        %v2401 = vld [vmem:[%s370 + $0xf2] sm:$0xff]
        %v2402 = vld [vmem:[%s370 + $0xfa] sm:$0xff]
        %v2403 = vld [vmem:[%s370 + $0x10a] sm:$0xff]
        %v2404 = vld [vmem:[%s370 + $0x112] sm:$0xff]
        %v2405 = vld [vmem:[%s370 + $0x122] sm:$0xff]
        %v2406 = vld [vmem:[%s370 + $0x12a] sm:$0xff]
        %v2407 = vld [vmem:[%s370 + $0x13a] sm:$0xff]
        %v2408 = vld [vmem:[%s370 + $0x142] sm:$0xff]
        %v2409 = vld [vmem:[%s370 + $0x152] sm:$0xff]
        %v2410 = vld [vmem:[%s370 + $0x15a] sm:$0xff]
        %v2411 = vld [vmem:[%s370 + $0x16a] sm:$0xff]
        %v2412 = vld [vmem:[%s370 + $0x172] sm:$0xff]
        %s2413 = scalar_lea.vmem %s1, 320
        %v2414 = vld [vmem:[%s2413] sm:$0xff]
        %v2415 = vld [vmem:[%s2413 + $0x8] sm:$0xff]
        %v2416 = vld [vmem:[%s2413 + $0x10] sm:$0xff]
        %v2417 = vld [vmem:[%s2413 + $0x18] sm:$0xff]
        %v2418 = vld [vmem:[%s2413 + $0x20] sm:$0xff]
        %v2419 = vld [vmem:[%s2413 + $0x28] sm:$0xff]
        %v2420 = vld [vmem:[%s2413 + $0x30] sm:$0xff]
        %v2421 = vld [vmem:[%s2413 + $0x38] sm:$0xff]
        %v2423 = vsel %vm451, %v2381, 0
        %v2426 = vsel %vm451, %v2382, 0
        %v2429 = vsel %vm451, %v2383, 0
        %v2432 = vsel %vm451, %v2384, 0
        %v2435 = vsel %vm451, %v2385, 0
        %v2438 = vsel %vm451, %v2386, 0
        %v2441 = vsel %vm451, %v2387, 0
        %v2444 = vsel %vm451, %v2388, 0
        %v2447 = vsel %vm451, %v2389, 0
        %v2450 = vsel %vm451, %v2390, 0
        %v2453 = vsel %vm451, %v2391, 0
        %v2456 = vsel %vm451, %v2392, 0
        %v2459 = vsel %vm451, %v2393, 0
        %v2462 = vsel %vm451, %v2394, 0
        %v2465 = vsel %vm451, %v2395, 0
        %v2468 = vsel %vm451, %v2396, 0
        %v2471 = vsel %vm451, %v2397, 0
        %v2474 = vsel %vm451, %v2398, 0
        %v2477 = vsel %vm451, %v2399, 0
        %v2480 = vsel %vm451, %v2400, 0
        %v2483 = vsel %vm451, %v2401, 0
        %v2486 = vsel %vm451, %v2402, 0
        %v2489 = vsel %vm451, %v2403, 0
        %v2492 = vsel %vm451, %v2404, 0
        %v2495 = vsel %vm451, %v2405, 0
        %v2498 = vsel %vm451, %v2406, 0
        %v2501 = vsel %vm451, %v2407, 0
        %v2504 = vsel %vm451, %v2408, 0
        %v2507 = vsel %vm451, %v2409, 0
        %v2510 = vsel %vm451, %v2410, 0
        %v2513 = vsel %vm451, %v2411, 0
        %v2516 = vsel %vm451, %v2412, 0
        %2518 = vmatprep.subr.mxu0 0.0
        %2519 = vmatpush1.msra.mxu0 0.0
        %2520 = vmatprep.subr.mxu0 0.0
        %2521 = vmatpush1.msra.mxu0 0.0
        %2522 = vmatprep.subr.mxu0 0.0
        %2523 = vmatpush1.msra.mxu0 0.0
        %2524 = vmatprep.subr.mxu0 0.0
        %2525 = vmatpush1.msra.mxu0 0.0
        %2526 = vmatprep.subr.mxu0 0.0
        %2527 = vmatpush1.msra.mxu0 0.0
        %2528 = vmatprep.subr.mxu0 0.0
        %2529 = vmatpush1.msra.mxu0 0.0
        %2530 = vmatprep.subr.mxu0 0.0
        %2531 = vmatpush1.msra.mxu0 0.0
        %2532 = vmatprep.subr.mxu0 0.0
        %2533 = vmatpush1.msra.mxu0 0.0
        %2534 = vmatprep.subr.mxu0 0.0
        %2535 = vmatpush1.msra.mxu0 %v2421
        %2536 = vmatprep.subr.mxu0 0.0
        %2537 = vmatpush1.msra.mxu0 %v2420
        %2538 = vmatprep.subr.mxu0 0.0
        %2539 = vmatpush1.msra.mxu0 %v2419
        %2540 = vmatprep.subr.mxu0 0.0
        %2541 = vmatpush1.msra.mxu0 %v2418
        %2542 = vmatprep.subr.mxu0 0.0
        %2543 = vmatpush1.msra.mxu0 %v2417
        %2544 = vmatprep.subr.mxu0 0.0
        %2545 = vmatpush1.msra.mxu0 %v2416
        %2546 = vmatprep.subr.mxu0 0.0
        %2547 = vmatpush1.msra.mxu0 %v2415
        %2548 = vmatprep.subr.mxu0 0.0
        %2549 = vmatpush1.msra.mxu0 %v2414
        %2550 = vmatprep.subr.mxu0 0.0
        %2551 = vmatpush2.msra.mxu0 0.0
        %2552 = vmatprep.subr.mxu0 0.0
        %2553 = vmatpush2.msra.mxu0 0.0
        %2554 = vmatprep.subr.mxu0 0.0
        %2555 = vmatpush2.msra.mxu0 0.0
        %2556 = vmatprep.subr.mxu0 0.0
        %2557 = vmatpush2.msra.mxu0 0.0
        %2558 = vmatprep.subr.mxu0 0.0
        %2559 = vmatpush2.msra.mxu0 0.0
        %2560 = vmatprep.subr.mxu0 0.0
        %2561 = vmatpush2.msra.mxu0 0.0
        %2562 = vmatprep.subr.mxu0 0.0
        %2563 = vmatpush2.msra.mxu0 0.0
        %2564 = vmatprep.subr.mxu0 0.0
        %2565 = vmatpush2.msra.mxu0 0.0
        %2566 = vmatprep.subr.mxu0 0.0
        %2567 = vmatpush2.msra.mxu0 0.0
        %2568 = vmatprep.subr.mxu0 0.0
        %2569 = vmatpush2.msra.mxu0 0.0
        %2570 = vmatprep.subr.mxu0 0.0
        %2571 = vmatpush2.msra.mxu0 0.0
        %2572 = vmatprep.subr.mxu0 0.0
        %2573 = vmatpush2.msra.mxu0 0.0
        %2574 = vmatprep.subr.mxu0 0.0
        %2575 = vmatpush2.msra.mxu0 0.0
        %2576 = vmatprep.subr.mxu0 0.0
        %2577 = vmatpush2.msra.mxu0 0.0
        %2578 = vmatprep.subr.mxu0 0.0
        %2579 = vmatpush2.msra.mxu0 0.0
        %2580 = vmatprep.subr.mxu0 0.0
        %2581 = vmatpush2.msra.mxu0 0.0
        %2582 = vmatprep.mubr.f32.mxu0 0.0
        %2583 = vmatmul.mubr.f32.gmra.mxu0 %v2423
        %v2584 = vpop.f32.mrf.mxu0
        %v2585 = vadd.f32 0.0, %v2584
        %v2586 = vpop.f32.mrf.mxu0
        %2587 = vmatprep.mubr.f32.mxu0 0.0
        %2588 = vmatmul.mubr.f32.gmra.mxu0 %v2426
        %v2589 = vpop.f32.mrf.mxu0
        %v2590 = vadd.f32 0.0, %v2589
        %v2591 = vpop.f32.mrf.mxu0
        %2592 = vmatprep.mubr.f32.mxu0 0.0
        %2593 = vmatmul.mubr.f32.gmra.mxu0 %v2429
        %v2594 = vpop.f32.mrf.mxu0
        %v2595 = vadd.f32 0.0, %v2594
        %v2596 = vpop.f32.mrf.mxu0
        %2597 = vmatprep.mubr.f32.mxu0 0.0
        %2598 = vmatmul.mubr.f32.gmra.mxu0 %v2432
        %v2599 = vpop.f32.mrf.mxu0
        %v2600 = vadd.f32 0.0, %v2599
        %v2601 = vpop.f32.mrf.mxu0
        %2602 = vmatprep.mubr.f32.mxu0 0.0
        %2603 = vmatmul.mubr.f32.gmra.mxu0 %v2435
        %v2604 = vpop.f32.mrf.mxu0
        %v2605 = vadd.f32 0.0, %v2604
        %v2606 = vpop.f32.mrf.mxu0
        %2607 = vmatprep.mubr.f32.mxu0 0.0
        %2608 = vmatmul.mubr.f32.gmra.mxu0 %v2438
        %v2609 = vpop.f32.mrf.mxu0
        %v2610 = vadd.f32 0.0, %v2609
        %v2611 = vpop.f32.mrf.mxu0
        %2612 = vmatprep.mubr.f32.mxu0 0.0
        %2613 = vmatmul.mubr.f32.gmra.mxu0 %v2441
        %v2614 = vpop.f32.mrf.mxu0
        %v2615 = vadd.f32 0.0, %v2614
        %v2616 = vpop.f32.mrf.mxu0
        %2617 = vmatprep.mubr.f32.mxu0 0.0
        %2618 = vmatmul.mubr.f32.gmra.mxu0 %v2444
        %v2619 = vpop.f32.mrf.mxu0
        %v2620 = vadd.f32 0.0, %v2619
        %v2621 = vpop.f32.mrf.mxu0
        %2622 = vmatprep.mubr.f32.mxu0 0.0
        %2623 = vmatmul.mubr.f32.gmra.mxu0 %v2447
        %v2624 = vpop.f32.mrf.mxu0
        %v2625 = vadd.f32 0.0, %v2624
        %v2626 = vpop.f32.mrf.mxu0
        %2627 = vmatprep.mubr.f32.mxu0 0.0
        %2628 = vmatmul.mubr.f32.gmra.mxu0 %v2450
        %v2629 = vpop.f32.mrf.mxu0
        %v2630 = vadd.f32 0.0, %v2629
        %v2631 = vpop.f32.mrf.mxu0
        %2632 = vmatprep.mubr.f32.mxu0 0.0
        %2633 = vmatmul.mubr.f32.gmra.mxu0 %v2453
        %v2634 = vpop.f32.mrf.mxu0
        %v2635 = vadd.f32 0.0, %v2634
        %v2636 = vpop.f32.mrf.mxu0
        %2637 = vmatprep.mubr.f32.mxu0 0.0
        %2638 = vmatmul.mubr.f32.gmra.mxu0 %v2456
        %v2639 = vpop.f32.mrf.mxu0
        %v2640 = vadd.f32 0.0, %v2639
        %v2641 = vpop.f32.mrf.mxu0
        %2642 = vmatprep.mubr.f32.mxu0 0.0
        %2643 = vmatmul.mubr.f32.gmra.mxu0 %v2459
        %v2644 = vpop.f32.mrf.mxu0
        %v2645 = vadd.f32 0.0, %v2644
        %v2646 = vpop.f32.mrf.mxu0
        %2647 = vmatprep.mubr.f32.mxu0 0.0
        %2648 = vmatmul.mubr.f32.gmra.mxu0 %v2462
        %v2649 = vpop.f32.mrf.mxu0
        %v2650 = vadd.f32 0.0, %v2649
        %v2651 = vpop.f32.mrf.mxu0
        %2652 = vmatprep.mubr.f32.mxu0 0.0
        %2653 = vmatmul.mubr.f32.gmra.mxu0 %v2465
        %v2654 = vpop.f32.mrf.mxu0
        %v2655 = vadd.f32 0.0, %v2654
        %v2656 = vpop.f32.mrf.mxu0
        %2657 = vmatprep.mubr.f32.mxu0 0.0
        %2658 = vmatmul.mubr.f32.gmra.mxu0 %v2468
        %v2659 = vpop.f32.mrf.mxu0
        %v2660 = vadd.f32 0.0, %v2659
        %v2661 = vpop.f32.mrf.mxu0
        %2662 = vmatprep.mubr.f32.mxu0 0.0
        %2663 = vmatmul.mubr.f32.gmra.mxu0 %v2471
        %v2664 = vpop.f32.mrf.mxu0
        %v2665 = vadd.f32 0.0, %v2664
        %v2666 = vpop.f32.mrf.mxu0
        %2667 = vmatprep.mubr.f32.mxu0 0.0
        %2668 = vmatmul.mubr.f32.gmra.mxu0 %v2474
        %v2669 = vpop.f32.mrf.mxu0
        %v2670 = vadd.f32 0.0, %v2669
        %v2671 = vpop.f32.mrf.mxu0
        %2672 = vmatprep.mubr.f32.mxu0 0.0
        %2673 = vmatmul.mubr.f32.gmra.mxu0 %v2477
        %v2674 = vpop.f32.mrf.mxu0
        %v2675 = vadd.f32 0.0, %v2674
        %v2676 = vpop.f32.mrf.mxu0
        %2677 = vmatprep.mubr.f32.mxu0 0.0
        %2678 = vmatmul.mubr.f32.gmra.mxu0 %v2480
        %v2679 = vpop.f32.mrf.mxu0
        %v2680 = vadd.f32 0.0, %v2679
        %v2681 = vpop.f32.mrf.mxu0
        %2682 = vmatprep.mubr.f32.mxu0 0.0
        %2683 = vmatmul.mubr.f32.gmra.mxu0 %v2483
        %v2684 = vpop.f32.mrf.mxu0
        %v2685 = vadd.f32 0.0, %v2684
        %v2686 = vpop.f32.mrf.mxu0
        %2687 = vmatprep.mubr.f32.mxu0 0.0
        %2688 = vmatmul.mubr.f32.gmra.mxu0 %v2486
        %v2689 = vpop.f32.mrf.mxu0
        %v2690 = vadd.f32 0.0, %v2689
        %v2691 = vpop.f32.mrf.mxu0
        %2692 = vmatprep.mubr.f32.mxu0 0.0
        %2693 = vmatmul.mubr.f32.gmra.mxu0 %v2489
        %v2694 = vpop.f32.mrf.mxu0
        %v2695 = vadd.f32 0.0, %v2694
        %v2696 = vpop.f32.mrf.mxu0
        %2697 = vmatprep.mubr.f32.mxu0 0.0
        %2698 = vmatmul.mubr.f32.gmra.mxu0 %v2492
        %v2699 = vpop.f32.mrf.mxu0
        %v2700 = vadd.f32 0.0, %v2699
        %v2701 = vpop.f32.mrf.mxu0
        %2702 = vmatprep.mubr.f32.mxu0 0.0
        %2703 = vmatmul.mubr.f32.gmra.mxu0 %v2495
        %v2704 = vpop.f32.mrf.mxu0
        %v2705 = vadd.f32 0.0, %v2704
        %v2706 = vpop.f32.mrf.mxu0
        %2707 = vmatprep.mubr.f32.mxu0 0.0
        %2708 = vmatmul.mubr.f32.gmra.mxu0 %v2498
        %v2709 = vpop.f32.mrf.mxu0
        %v2710 = vadd.f32 0.0, %v2709
        %v2711 = vpop.f32.mrf.mxu0
        %2712 = vmatprep.mubr.f32.mxu0 0.0
        %2713 = vmatmul.mubr.f32.gmra.mxu0 %v2501
        %v2714 = vpop.f32.mrf.mxu0
        %v2715 = vadd.f32 0.0, %v2714
        %v2716 = vpop.f32.mrf.mxu0
        %2717 = vmatprep.mubr.f32.mxu0 0.0
        %2718 = vmatmul.mubr.f32.gmra.mxu0 %v2504
        %v2719 = vpop.f32.mrf.mxu0
        %v2720 = vadd.f32 0.0, %v2719
        %v2721 = vpop.f32.mrf.mxu0
        %2722 = vmatprep.mubr.f32.mxu0 0.0
        %2723 = vmatmul.mubr.f32.gmra.mxu0 %v2507
        %v2724 = vpop.f32.mrf.mxu0
        %v2725 = vadd.f32 0.0, %v2724
        %v2726 = vpop.f32.mrf.mxu0
        %2727 = vmatprep.mubr.f32.mxu0 0.0
        %2728 = vmatmul.mubr.f32.gmra.mxu0 %v2510
        %v2729 = vpop.f32.mrf.mxu0
        %v2730 = vadd.f32 0.0, %v2729
        %v2731 = vpop.f32.mrf.mxu0
        %2732 = vmatprep.mubr.f32.mxu0 0.0
        %2733 = vmatmul.mubr.f32.gmra.mxu0 %v2513
        %v2734 = vpop.f32.mrf.mxu0
        %v2735 = vadd.f32 0.0, %v2734
        %v2736 = vpop.f32.mrf.mxu0
        %2737 = vmatprep.mubr.f32.mxu0 0.0
        %2738 = vmatmul.mubr.f32.gmra.mxu0 %v2516
        %v2739 = vpop.f32.mrf.mxu0
        %v2740 = vadd.f32 0.0, %v2739
        %v2741 = vpop.f32.mrf.mxu0
        %2742 = vdwg.mxu0
        %v2743 = vadd.f32 %v2349, %v2585
        %v2744 = vadd.f32 %v2350, %v2590
        %v2745 = vadd.f32 %v2351, %v2595
        %v2746 = vadd.f32 %v2352, %v2600
        %v2747 = vadd.f32 %v2353, %v2605
        %v2748 = vadd.f32 %v2354, %v2610
        %v2749 = vadd.f32 %v2355, %v2615
        %v2750 = vadd.f32 %v2356, %v2620
        %v2751 = vadd.f32 %v2357, %v2625
        %v2752 = vadd.f32 %v2358, %v2630
        %v2753 = vadd.f32 %v2359, %v2635
        %v2754 = vadd.f32 %v2360, %v2640
        %v2755 = vadd.f32 %v2361, %v2645
        %v2756 = vadd.f32 %v2362, %v2650
        %v2757 = vadd.f32 %v2363, %v2655
        %v2758 = vadd.f32 %v2364, %v2660
        %v2759 = vadd.f32 %v2365, %v2665
        %v2760 = vadd.f32 %v2366, %v2670
        %v2761 = vadd.f32 %v2367, %v2675
        %v2762 = vadd.f32 %v2368, %v2680
        %v2763 = vadd.f32 %v2369, %v2685
        %v2764 = vadd.f32 %v2370, %v2690
        %v2765 = vadd.f32 %v2371, %v2695
        %v2766 = vadd.f32 %v2372, %v2700
        %v2767 = vadd.f32 %v2373, %v2705
        %v2768 = vadd.f32 %v2374, %v2710
        %v2769 = vadd.f32 %v2375, %v2715
        %v2770 = vadd.f32 %v2376, %v2720
        %v2771 = vadd.f32 %v2377, %v2725
        %v2772 = vadd.f32 %v2378, %v2730
        %v2773 = vadd.f32 %v2379, %v2735
        %v2774 = vadd.f32 %v2380, %v2740
        %s2775 = scalar_lea.vmem [#allocation2], 48
        %v2776 = vld [vmem:[%s2775] sm:$0xff]
        %v2777 = vld [vmem:[%s2775 + $0x8] sm:$0xff]
        %v2778 = vld [vmem:[%s2775 + $0x18] sm:$0xff]
        %v2779 = vld [vmem:[%s2775 + $0x20] sm:$0xff]
        %v2780 = vld [vmem:[%s2775 + $0x30] sm:$0xff]
        %v2781 = vld [vmem:[%s2775 + $0x38] sm:$0xff]
        %v2782 = vld [vmem:[%s2775 + $0x48] sm:$0xff]
        %v2783 = vld [vmem:[%s2775 + $0x50] sm:$0xff]
        %v2784 = vld [vmem:[%s2775 + $0x60] sm:$0xff]
        %v2785 = vld [vmem:[%s2775 + $0x68] sm:$0xff]
        %v2786 = vld [vmem:[%s2775 + $0x78] sm:$0xff]
        %v2787 = vld [vmem:[%s2775 + $0x80] sm:$0xff]
        %v2788 = vld [vmem:[%s2775 + $0x90] sm:$0xff]
        %v2789 = vld [vmem:[%s2775 + $0x98] sm:$0xff]
        %v2790 = vld [vmem:[%s2775 + $0xa8] sm:$0xff]
        %v2791 = vld [vmem:[%s2775 + $0xb0] sm:$0xff]
        %v2792 = vld [vmem:[%s2775 + $0xc0] sm:$0xff]
        %v2793 = vld [vmem:[%s2775 + $0xc8] sm:$0xff]
        %v2794 = vld [vmem:[%s2775 + $0xd8] sm:$0xff]
        %v2795 = vld [vmem:[%s2775 + $0xe0] sm:$0xff]
        %v2796 = vld [vmem:[%s2775 + $0xf0] sm:$0xff]
        %v2797 = vld [vmem:[%s2775 + $0xf8] sm:$0xff]
        %v2798 = vld [vmem:[%s2775 + $0x108] sm:$0xff]
        %v2799 = vld [vmem:[%s2775 + $0x110] sm:$0xff]
        %v2800 = vld [vmem:[%s2775 + $0x120] sm:$0xff]
        %v2801 = vld [vmem:[%s2775 + $0x128] sm:$0xff]
        %v2802 = vld [vmem:[%s2775 + $0x138] sm:$0xff]
        %v2803 = vld [vmem:[%s2775 + $0x140] sm:$0xff]
        %v2804 = vld [vmem:[%s2775 + $0x150] sm:$0xff]
        %v2805 = vld [vmem:[%s2775 + $0x158] sm:$0xff]
        %v2806 = vld [vmem:[%s2775 + $0x168] sm:$0xff]
        %v2807 = vld [vmem:[%s2775 + $0x170] sm:$0xff]
        %s2808 = scalar_lea.vmem %s1, 384
        %v2809 = vld [vmem:[%s2808] sm:$0xff]
        %v2810 = vld [vmem:[%s2808 + $0x8] sm:$0xff]
        %v2811 = vld [vmem:[%s2808 + $0x10] sm:$0xff]
        %v2812 = vld [vmem:[%s2808 + $0x18] sm:$0xff]
        %v2813 = vld [vmem:[%s2808 + $0x20] sm:$0xff]
        %v2814 = vld [vmem:[%s2808 + $0x28] sm:$0xff]
        %v2815 = vld [vmem:[%s2808 + $0x30] sm:$0xff]
        %v2816 = vld [vmem:[%s2808 + $0x38] sm:$0xff]
        %v2818 = vsel %vm451, %v2776, 0
        %v2821 = vsel %vm451, %v2777, 0
        %v2824 = vsel %vm451, %v2778, 0
        %v2827 = vsel %vm451, %v2779, 0
        %v2830 = vsel %vm451, %v2780, 0
        %v2833 = vsel %vm451, %v2781, 0
        %v2836 = vsel %vm451, %v2782, 0
        %v2839 = vsel %vm451, %v2783, 0
        %v2842 = vsel %vm451, %v2784, 0
        %v2845 = vsel %vm451, %v2785, 0
        %v2848 = vsel %vm451, %v2786, 0
        %v2851 = vsel %vm451, %v2787, 0
        %v2854 = vsel %vm451, %v2788, 0
        %v2857 = vsel %vm451, %v2789, 0
        %v2860 = vsel %vm451, %v2790, 0
        %v2863 = vsel %vm451, %v2791, 0
        %v2866 = vsel %vm451, %v2792, 0
        %v2869 = vsel %vm451, %v2793, 0
        %v2872 = vsel %vm451, %v2794, 0
        %v2875 = vsel %vm451, %v2795, 0
        %v2878 = vsel %vm451, %v2796, 0
        %v2881 = vsel %vm451, %v2797, 0
        %v2884 = vsel %vm451, %v2798, 0
        %v2887 = vsel %vm451, %v2799, 0
        %v2890 = vsel %vm451, %v2800, 0
        %v2893 = vsel %vm451, %v2801, 0
        %v2896 = vsel %vm451, %v2802, 0
        %v2899 = vsel %vm451, %v2803, 0
        %v2902 = vsel %vm451, %v2804, 0
        %v2905 = vsel %vm451, %v2805, 0
        %v2908 = vsel %vm451, %v2806, 0
        %v2911 = vsel %vm451, %v2807, 0
        %2913 = vmatprep.subr.mxu0 0.0
        %2914 = vmatpush1.msra.mxu0 0.0
        %2915 = vmatprep.subr.mxu0 0.0
        %2916 = vmatpush1.msra.mxu0 0.0
        %2917 = vmatprep.subr.mxu0 0.0
        %2918 = vmatpush1.msra.mxu0 0.0
        %2919 = vmatprep.subr.mxu0 0.0
        %2920 = vmatpush1.msra.mxu0 0.0
        %2921 = vmatprep.subr.mxu0 0.0
        %2922 = vmatpush1.msra.mxu0 0.0
        %2923 = vmatprep.subr.mxu0 0.0
        %2924 = vmatpush1.msra.mxu0 0.0
        %2925 = vmatprep.subr.mxu0 0.0
        %2926 = vmatpush1.msra.mxu0 0.0
        %2927 = vmatprep.subr.mxu0 0.0
        %2928 = vmatpush1.msra.mxu0 0.0
        %2929 = vmatprep.subr.mxu0 0.0
        %2930 = vmatpush1.msra.mxu0 %v2816
        %2931 = vmatprep.subr.mxu0 0.0
        %2932 = vmatpush1.msra.mxu0 %v2815
        %2933 = vmatprep.subr.mxu0 0.0
        %2934 = vmatpush1.msra.mxu0 %v2814
        %2935 = vmatprep.subr.mxu0 0.0
        %2936 = vmatpush1.msra.mxu0 %v2813
        %2937 = vmatprep.subr.mxu0 0.0
        %2938 = vmatpush1.msra.mxu0 %v2812
        %2939 = vmatprep.subr.mxu0 0.0
        %2940 = vmatpush1.msra.mxu0 %v2811
        %2941 = vmatprep.subr.mxu0 0.0
        %2942 = vmatpush1.msra.mxu0 %v2810
        %2943 = vmatprep.subr.mxu0 0.0
        %2944 = vmatpush1.msra.mxu0 %v2809
        %2945 = vmatprep.subr.mxu0 0.0
        %2946 = vmatpush2.msra.mxu0 0.0
        %2947 = vmatprep.subr.mxu0 0.0
        %2948 = vmatpush2.msra.mxu0 0.0
        %2949 = vmatprep.subr.mxu0 0.0
        %2950 = vmatpush2.msra.mxu0 0.0
        %2951 = vmatprep.subr.mxu0 0.0
        %2952 = vmatpush2.msra.mxu0 0.0
        %2953 = vmatprep.subr.mxu0 0.0
        %2954 = vmatpush2.msra.mxu0 0.0
        %2955 = vmatprep.subr.mxu0 0.0
        %2956 = vmatpush2.msra.mxu0 0.0
        %2957 = vmatprep.subr.mxu0 0.0
        %2958 = vmatpush2.msra.mxu0 0.0
        %2959 = vmatprep.subr.mxu0 0.0
        %2960 = vmatpush2.msra.mxu0 0.0
        %2961 = vmatprep.subr.mxu0 0.0
        %2962 = vmatpush2.msra.mxu0 0.0
        %2963 = vmatprep.subr.mxu0 0.0
        %2964 = vmatpush2.msra.mxu0 0.0
        %2965 = vmatprep.subr.mxu0 0.0
        %2966 = vmatpush2.msra.mxu0 0.0
        %2967 = vmatprep.subr.mxu0 0.0
        %2968 = vmatpush2.msra.mxu0 0.0
        %2969 = vmatprep.subr.mxu0 0.0
        %2970 = vmatpush2.msra.mxu0 0.0
        %2971 = vmatprep.subr.mxu0 0.0
        %2972 = vmatpush2.msra.mxu0 0.0
        %2973 = vmatprep.subr.mxu0 0.0
        %2974 = vmatpush2.msra.mxu0 0.0
        %2975 = vmatprep.subr.mxu0 0.0
        %2976 = vmatpush2.msra.mxu0 0.0
        %2977 = vmatprep.mubr.f32.mxu0 0.0
        %2978 = vmatmul.mubr.f32.gmra.mxu0 %v2818
        %v2979 = vpop.f32.mrf.mxu0
        %v2980 = vadd.f32 0.0, %v2979
        %v2981 = vpop.f32.mrf.mxu0
        %2982 = vmatprep.mubr.f32.mxu0 0.0
        %2983 = vmatmul.mubr.f32.gmra.mxu0 %v2821
        %v2984 = vpop.f32.mrf.mxu0
        %v2985 = vadd.f32 0.0, %v2984
        %v2986 = vpop.f32.mrf.mxu0
        %2987 = vmatprep.mubr.f32.mxu0 0.0
        %2988 = vmatmul.mubr.f32.gmra.mxu0 %v2824
        %v2989 = vpop.f32.mrf.mxu0
        %v2990 = vadd.f32 0.0, %v2989
        %v2991 = vpop.f32.mrf.mxu0
        %2992 = vmatprep.mubr.f32.mxu0 0.0
        %2993 = vmatmul.mubr.f32.gmra.mxu0 %v2827
        %v2994 = vpop.f32.mrf.mxu0
        %v2995 = vadd.f32 0.0, %v2994
        %v2996 = vpop.f32.mrf.mxu0
        %2997 = vmatprep.mubr.f32.mxu0 0.0
        %2998 = vmatmul.mubr.f32.gmra.mxu0 %v2830
        %v2999 = vpop.f32.mrf.mxu0
        %v3000 = vadd.f32 0.0, %v2999
        %v3001 = vpop.f32.mrf.mxu0
        %3002 = vmatprep.mubr.f32.mxu0 0.0
        %3003 = vmatmul.mubr.f32.gmra.mxu0 %v2833
        %v3004 = vpop.f32.mrf.mxu0
        %v3005 = vadd.f32 0.0, %v3004
        %v3006 = vpop.f32.mrf.mxu0
        %3007 = vmatprep.mubr.f32.mxu0 0.0
        %3008 = vmatmul.mubr.f32.gmra.mxu0 %v2836
        %v3009 = vpop.f32.mrf.mxu0
        %v3010 = vadd.f32 0.0, %v3009
        %v3011 = vpop.f32.mrf.mxu0
        %3012 = vmatprep.mubr.f32.mxu0 0.0
        %3013 = vmatmul.mubr.f32.gmra.mxu0 %v2839
        %v3014 = vpop.f32.mrf.mxu0
        %v3015 = vadd.f32 0.0, %v3014
        %v3016 = vpop.f32.mrf.mxu0
        %3017 = vmatprep.mubr.f32.mxu0 0.0
        %3018 = vmatmul.mubr.f32.gmra.mxu0 %v2842
        %v3019 = vpop.f32.mrf.mxu0
        %v3020 = vadd.f32 0.0, %v3019
        %v3021 = vpop.f32.mrf.mxu0
        %3022 = vmatprep.mubr.f32.mxu0 0.0
        %3023 = vmatmul.mubr.f32.gmra.mxu0 %v2845
        %v3024 = vpop.f32.mrf.mxu0
        %v3025 = vadd.f32 0.0, %v3024
        %v3026 = vpop.f32.mrf.mxu0
        %3027 = vmatprep.mubr.f32.mxu0 0.0
        %3028 = vmatmul.mubr.f32.gmra.mxu0 %v2848
        %v3029 = vpop.f32.mrf.mxu0
        %v3030 = vadd.f32 0.0, %v3029
        %v3031 = vpop.f32.mrf.mxu0
        %3032 = vmatprep.mubr.f32.mxu0 0.0
        %3033 = vmatmul.mubr.f32.gmra.mxu0 %v2851
        %v3034 = vpop.f32.mrf.mxu0
        %v3035 = vadd.f32 0.0, %v3034
        %v3036 = vpop.f32.mrf.mxu0
        %3037 = vmatprep.mubr.f32.mxu0 0.0
        %3038 = vmatmul.mubr.f32.gmra.mxu0 %v2854
        %v3039 = vpop.f32.mrf.mxu0
        %v3040 = vadd.f32 0.0, %v3039
        %v3041 = vpop.f32.mrf.mxu0
        %3042 = vmatprep.mubr.f32.mxu0 0.0
        %3043 = vmatmul.mubr.f32.gmra.mxu0 %v2857
        %v3044 = vpop.f32.mrf.mxu0
        %v3045 = vadd.f32 0.0, %v3044
        %v3046 = vpop.f32.mrf.mxu0
        %3047 = vmatprep.mubr.f32.mxu0 0.0
        %3048 = vmatmul.mubr.f32.gmra.mxu0 %v2860
        %v3049 = vpop.f32.mrf.mxu0
        %v3050 = vadd.f32 0.0, %v3049
        %v3051 = vpop.f32.mrf.mxu0
        %3052 = vmatprep.mubr.f32.mxu0 0.0
        %3053 = vmatmul.mubr.f32.gmra.mxu0 %v2863
        %v3054 = vpop.f32.mrf.mxu0
        %v3055 = vadd.f32 0.0, %v3054
        %v3056 = vpop.f32.mrf.mxu0
        %3057 = vmatprep.mubr.f32.mxu0 0.0
        %3058 = vmatmul.mubr.f32.gmra.mxu0 %v2866
        %v3059 = vpop.f32.mrf.mxu0
        %v3060 = vadd.f32 0.0, %v3059
        %v3061 = vpop.f32.mrf.mxu0
        %3062 = vmatprep.mubr.f32.mxu0 0.0
        %3063 = vmatmul.mubr.f32.gmra.mxu0 %v2869
        %v3064 = vpop.f32.mrf.mxu0
        %v3065 = vadd.f32 0.0, %v3064
        %v3066 = vpop.f32.mrf.mxu0
        %3067 = vmatprep.mubr.f32.mxu0 0.0
        %3068 = vmatmul.mubr.f32.gmra.mxu0 %v2872
        %v3069 = vpop.f32.mrf.mxu0
        %v3070 = vadd.f32 0.0, %v3069
        %v3071 = vpop.f32.mrf.mxu0
        %3072 = vmatprep.mubr.f32.mxu0 0.0
        %3073 = vmatmul.mubr.f32.gmra.mxu0 %v2875
        %v3074 = vpop.f32.mrf.mxu0
        %v3075 = vadd.f32 0.0, %v3074
        %v3076 = vpop.f32.mrf.mxu0
        %3077 = vmatprep.mubr.f32.mxu0 0.0
        %3078 = vmatmul.mubr.f32.gmra.mxu0 %v2878
        %v3079 = vpop.f32.mrf.mxu0
        %v3080 = vadd.f32 0.0, %v3079
        %v3081 = vpop.f32.mrf.mxu0
        %3082 = vmatprep.mubr.f32.mxu0 0.0
        %3083 = vmatmul.mubr.f32.gmra.mxu0 %v2881
        %v3084 = vpop.f32.mrf.mxu0
        %v3085 = vadd.f32 0.0, %v3084
        %v3086 = vpop.f32.mrf.mxu0
        %3087 = vmatprep.mubr.f32.mxu0 0.0
        %3088 = vmatmul.mubr.f32.gmra.mxu0 %v2884
        %v3089 = vpop.f32.mrf.mxu0
        %v3090 = vadd.f32 0.0, %v3089
        %v3091 = vpop.f32.mrf.mxu0
        %3092 = vmatprep.mubr.f32.mxu0 0.0
        %3093 = vmatmul.mubr.f32.gmra.mxu0 %v2887
        %v3094 = vpop.f32.mrf.mxu0
        %v3095 = vadd.f32 0.0, %v3094
        %v3096 = vpop.f32.mrf.mxu0
        %3097 = vmatprep.mubr.f32.mxu0 0.0
        %3098 = vmatmul.mubr.f32.gmra.mxu0 %v2890
        %v3099 = vpop.f32.mrf.mxu0
        %v3100 = vadd.f32 0.0, %v3099
        %v3101 = vpop.f32.mrf.mxu0
        %3102 = vmatprep.mubr.f32.mxu0 0.0
        %3103 = vmatmul.mubr.f32.gmra.mxu0 %v2893
        %v3104 = vpop.f32.mrf.mxu0
        %v3105 = vadd.f32 0.0, %v3104
        %v3106 = vpop.f32.mrf.mxu0
        %3107 = vmatprep.mubr.f32.mxu0 0.0
        %3108 = vmatmul.mubr.f32.gmra.mxu0 %v2896
        %v3109 = vpop.f32.mrf.mxu0
        %v3110 = vadd.f32 0.0, %v3109
        %v3111 = vpop.f32.mrf.mxu0
        %3112 = vmatprep.mubr.f32.mxu0 0.0
        %3113 = vmatmul.mubr.f32.gmra.mxu0 %v2899
        %v3114 = vpop.f32.mrf.mxu0
        %v3115 = vadd.f32 0.0, %v3114
        %v3116 = vpop.f32.mrf.mxu0
        %3117 = vmatprep.mubr.f32.mxu0 0.0
        %3118 = vmatmul.mubr.f32.gmra.mxu0 %v2902
        %v3119 = vpop.f32.mrf.mxu0
        %v3120 = vadd.f32 0.0, %v3119
        %v3121 = vpop.f32.mrf.mxu0
        %3122 = vmatprep.mubr.f32.mxu0 0.0
        %3123 = vmatmul.mubr.f32.gmra.mxu0 %v2905
        %v3124 = vpop.f32.mrf.mxu0
        %v3125 = vadd.f32 0.0, %v3124
        %v3126 = vpop.f32.mrf.mxu0
        %3127 = vmatprep.mubr.f32.mxu0 0.0
        %3128 = vmatmul.mubr.f32.gmra.mxu0 %v2908
        %v3129 = vpop.f32.mrf.mxu0
        %v3130 = vadd.f32 0.0, %v3129
        %v3131 = vpop.f32.mrf.mxu0
        %3132 = vmatprep.mubr.f32.mxu0 0.0
        %3133 = vmatmul.mubr.f32.gmra.mxu0 %v2911
        %v3134 = vpop.f32.mrf.mxu0
        %v3135 = vadd.f32 0.0, %v3134
        %v3136 = vpop.f32.mrf.mxu0
        %3137 = vdwg.mxu0
        %v3138 = vadd.f32 %v2743, %v2980
        %v3139 = vadd.f32 %v2744, %v2985
        %v3140 = vadd.f32 %v2745, %v2990
        %v3141 = vadd.f32 %v2746, %v2995
        %v3142 = vadd.f32 %v2747, %v3000
        %v3143 = vadd.f32 %v2748, %v3005
        %v3144 = vadd.f32 %v2749, %v3010
        %v3145 = vadd.f32 %v2750, %v3015
        %v3146 = vadd.f32 %v2751, %v3020
        %v3147 = vadd.f32 %v2752, %v3025
        %v3148 = vadd.f32 %v2753, %v3030
        %v3149 = vadd.f32 %v2754, %v3035
        %v3150 = vadd.f32 %v2755, %v3040
        %v3151 = vadd.f32 %v2756, %v3045
        %v3152 = vadd.f32 %v2757, %v3050
        %v3153 = vadd.f32 %v2758, %v3055
        %v3154 = vadd.f32 %v2759, %v3060
        %v3155 = vadd.f32 %v2760, %v3065
        %v3156 = vadd.f32 %v2761, %v3070
        %v3157 = vadd.f32 %v2762, %v3075
        %v3158 = vadd.f32 %v2763, %v3080
        %v3159 = vadd.f32 %v2764, %v3085
        %v3160 = vadd.f32 %v2765, %v3090
        %v3161 = vadd.f32 %v2766, %v3095
        %v3162 = vadd.f32 %v2767, %v3100
        %v3163 = vadd.f32 %v2768, %v3105
        %v3164 = vadd.f32 %v2769, %v3110
        %v3165 = vadd.f32 %v2770, %v3115
        %v3166 = vadd.f32 %v2771, %v3120
        %v3167 = vadd.f32 %v2772, %v3125
        %v3168 = vadd.f32 %v2773, %v3130
        %v3169 = vadd.f32 %v2774, %v3135
        %v3170 = vld [vmem:[%s2775 + $0x1] sm:$0xff]
        %v3171 = vld [vmem:[%s2775 + $0x9] sm:$0xff]
        %v3172 = vld [vmem:[%s2775 + $0x19] sm:$0xff]
        %v3173 = vld [vmem:[%s2775 + $0x21] sm:$0xff]
        %v3174 = vld [vmem:[%s2775 + $0x31] sm:$0xff]
        %v3175 = vld [vmem:[%s2775 + $0x39] sm:$0xff]
        %v3176 = vld [vmem:[%s2775 + $0x49] sm:$0xff]
        %v3177 = vld [vmem:[%s2775 + $0x51] sm:$0xff]
        %v3178 = vld [vmem:[%s2775 + $0x61] sm:$0xff]
        %v3179 = vld [vmem:[%s2775 + $0x69] sm:$0xff]
        %v3180 = vld [vmem:[%s2775 + $0x79] sm:$0xff]
        %v3181 = vld [vmem:[%s2775 + $0x81] sm:$0xff]
        %v3182 = vld [vmem:[%s2775 + $0x91] sm:$0xff]
        %v3183 = vld [vmem:[%s2775 + $0x99] sm:$0xff]
        %v3184 = vld [vmem:[%s2775 + $0xa9] sm:$0xff]
        %v3185 = vld [vmem:[%s2775 + $0xb1] sm:$0xff]
        %v3186 = vld [vmem:[%s2775 + $0xc1] sm:$0xff]
        %v3187 = vld [vmem:[%s2775 + $0xc9] sm:$0xff]
        %v3188 = vld [vmem:[%s2775 + $0xd9] sm:$0xff]
        %v3189 = vld [vmem:[%s2775 + $0xe1] sm:$0xff]
        %v3190 = vld [vmem:[%s2775 + $0xf1] sm:$0xff]
        %v3191 = vld [vmem:[%s2775 + $0xf9] sm:$0xff]
        %v3192 = vld [vmem:[%s2775 + $0x109] sm:$0xff]
        %v3193 = vld [vmem:[%s2775 + $0x111] sm:$0xff]
        %v3194 = vld [vmem:[%s2775 + $0x121] sm:$0xff]
        %v3195 = vld [vmem:[%s2775 + $0x129] sm:$0xff]
        %v3196 = vld [vmem:[%s2775 + $0x139] sm:$0xff]
        %v3197 = vld [vmem:[%s2775 + $0x141] sm:$0xff]
        %v3198 = vld [vmem:[%s2775 + $0x151] sm:$0xff]
        %v3199 = vld [vmem:[%s2775 + $0x159] sm:$0xff]
        %v3200 = vld [vmem:[%s2775 + $0x169] sm:$0xff]
        %v3201 = vld [vmem:[%s2775 + $0x171] sm:$0xff]
        %s3202 = scalar_lea.vmem %s1, 448
        %v3203 = vld [vmem:[%s3202] sm:$0xff]
        %v3204 = vld [vmem:[%s3202 + $0x8] sm:$0xff]
        %v3205 = vld [vmem:[%s3202 + $0x10] sm:$0xff]
        %v3206 = vld [vmem:[%s3202 + $0x18] sm:$0xff]
        %v3207 = vld [vmem:[%s3202 + $0x20] sm:$0xff]
        %v3208 = vld [vmem:[%s3202 + $0x28] sm:$0xff]
        %v3209 = vld [vmem:[%s3202 + $0x30] sm:$0xff]
        %v3210 = vld [vmem:[%s3202 + $0x38] sm:$0xff]
        %v3212 = vsel %vm451, %v3170, 0
        %v3215 = vsel %vm451, %v3171, 0
        %v3218 = vsel %vm451, %v3172, 0
        %v3221 = vsel %vm451, %v3173, 0
        %v3224 = vsel %vm451, %v3174, 0
        %v3227 = vsel %vm451, %v3175, 0
        %v3230 = vsel %vm451, %v3176, 0
        %v3233 = vsel %vm451, %v3177, 0
        %v3236 = vsel %vm451, %v3178, 0
        %v3239 = vsel %vm451, %v3179, 0
        %v3242 = vsel %vm451, %v3180, 0
        %v3245 = vsel %vm451, %v3181, 0
        %v3248 = vsel %vm451, %v3182, 0
        %v3251 = vsel %vm451, %v3183, 0
        %v3254 = vsel %vm451, %v3184, 0
        %v3257 = vsel %vm451, %v3185, 0
        %v3260 = vsel %vm451, %v3186, 0
        %v3263 = vsel %vm451, %v3187, 0
        %v3266 = vsel %vm451, %v3188, 0
        %v3269 = vsel %vm451, %v3189, 0
        %v3272 = vsel %vm451, %v3190, 0
        %v3275 = vsel %vm451, %v3191, 0
        %v3278 = vsel %vm451, %v3192, 0
        %v3281 = vsel %vm451, %v3193, 0
        %v3284 = vsel %vm451, %v3194, 0
        %v3287 = vsel %vm451, %v3195, 0
        %v3290 = vsel %vm451, %v3196, 0
        %v3293 = vsel %vm451, %v3197, 0
        %v3296 = vsel %vm451, %v3198, 0
        %v3299 = vsel %vm451, %v3199, 0
        %v3302 = vsel %vm451, %v3200, 0
        %v3305 = vsel %vm451, %v3201, 0
        %3307 = vmatprep.subr.mxu0 0.0
        %3308 = vmatpush1.msra.mxu0 0.0
        %3309 = vmatprep.subr.mxu0 0.0
        %3310 = vmatpush1.msra.mxu0 0.0
        %3311 = vmatprep.subr.mxu0 0.0
        %3312 = vmatpush1.msra.mxu0 0.0
        %3313 = vmatprep.subr.mxu0 0.0
        %3314 = vmatpush1.msra.mxu0 0.0
        %3315 = vmatprep.subr.mxu0 0.0
        %3316 = vmatpush1.msra.mxu0 0.0
        %3317 = vmatprep.subr.mxu0 0.0
        %3318 = vmatpush1.msra.mxu0 0.0
        %3319 = vmatprep.subr.mxu0 0.0
        %3320 = vmatpush1.msra.mxu0 0.0
        %3321 = vmatprep.subr.mxu0 0.0
        %3322 = vmatpush1.msra.mxu0 0.0
        %3323 = vmatprep.subr.mxu0 0.0
        %3324 = vmatpush1.msra.mxu0 %v3210
        %3325 = vmatprep.subr.mxu0 0.0
        %3326 = vmatpush1.msra.mxu0 %v3209
        %3327 = vmatprep.subr.mxu0 0.0
        %3328 = vmatpush1.msra.mxu0 %v3208
        %3329 = vmatprep.subr.mxu0 0.0
        %3330 = vmatpush1.msra.mxu0 %v3207
        %3331 = vmatprep.subr.mxu0 0.0
        %3332 = vmatpush1.msra.mxu0 %v3206
        %3333 = vmatprep.subr.mxu0 0.0
        %3334 = vmatpush1.msra.mxu0 %v3205
        %3335 = vmatprep.subr.mxu0 0.0
        %3336 = vmatpush1.msra.mxu0 %v3204
        %3337 = vmatprep.subr.mxu0 0.0
        %3338 = vmatpush1.msra.mxu0 %v3203
        %3339 = vmatprep.subr.mxu0 0.0
        %3340 = vmatpush2.msra.mxu0 0.0
        %3341 = vmatprep.subr.mxu0 0.0
        %3342 = vmatpush2.msra.mxu0 0.0
        %3343 = vmatprep.subr.mxu0 0.0
        %3344 = vmatpush2.msra.mxu0 0.0
        %3345 = vmatprep.subr.mxu0 0.0
        %3346 = vmatpush2.msra.mxu0 0.0
        %3347 = vmatprep.subr.mxu0 0.0
        %3348 = vmatpush2.msra.mxu0 0.0
        %3349 = vmatprep.subr.mxu0 0.0
        %3350 = vmatpush2.msra.mxu0 0.0
        %3351 = vmatprep.subr.mxu0 0.0
        %3352 = vmatpush2.msra.mxu0 0.0
        %3353 = vmatprep.subr.mxu0 0.0
        %3354 = vmatpush2.msra.mxu0 0.0
        %3355 = vmatprep.subr.mxu0 0.0
        %3356 = vmatpush2.msra.mxu0 0.0
        %3357 = vmatprep.subr.mxu0 0.0
        %3358 = vmatpush2.msra.mxu0 0.0
        %3359 = vmatprep.subr.mxu0 0.0
        %3360 = vmatpush2.msra.mxu0 0.0
        %3361 = vmatprep.subr.mxu0 0.0
        %3362 = vmatpush2.msra.mxu0 0.0
        %3363 = vmatprep.subr.mxu0 0.0
        %3364 = vmatpush2.msra.mxu0 0.0
        %3365 = vmatprep.subr.mxu0 0.0
        %3366 = vmatpush2.msra.mxu0 0.0
        %3367 = vmatprep.subr.mxu0 0.0
        %3368 = vmatpush2.msra.mxu0 0.0
        %3369 = vmatprep.subr.mxu0 0.0
        %3370 = vmatpush2.msra.mxu0 0.0
        %3371 = vmatprep.mubr.f32.mxu0 0.0
        %3372 = vmatmul.mubr.f32.gmra.mxu0 %v3212
        %v3373 = vpop.f32.mrf.mxu0
        %v3374 = vadd.f32 0.0, %v3373
        %v3375 = vpop.f32.mrf.mxu0
        %3376 = vmatprep.mubr.f32.mxu0 0.0
        %3377 = vmatmul.mubr.f32.gmra.mxu0 %v3215
        %v3378 = vpop.f32.mrf.mxu0
        %v3379 = vadd.f32 0.0, %v3378
        %v3380 = vpop.f32.mrf.mxu0
        %3381 = vmatprep.mubr.f32.mxu0 0.0
        %3382 = vmatmul.mubr.f32.gmra.mxu0 %v3218
        %v3383 = vpop.f32.mrf.mxu0
        %v3384 = vadd.f32 0.0, %v3383
        %v3385 = vpop.f32.mrf.mxu0
        %3386 = vmatprep.mubr.f32.mxu0 0.0
        %3387 = vmatmul.mubr.f32.gmra.mxu0 %v3221
        %v3388 = vpop.f32.mrf.mxu0
        %v3389 = vadd.f32 0.0, %v3388
        %v3390 = vpop.f32.mrf.mxu0
        %3391 = vmatprep.mubr.f32.mxu0 0.0
        %3392 = vmatmul.mubr.f32.gmra.mxu0 %v3224
        %v3393 = vpop.f32.mrf.mxu0
        %v3394 = vadd.f32 0.0, %v3393
        %v3395 = vpop.f32.mrf.mxu0
        %3396 = vmatprep.mubr.f32.mxu0 0.0
        %3397 = vmatmul.mubr.f32.gmra.mxu0 %v3227
        %v3398 = vpop.f32.mrf.mxu0
        %v3399 = vadd.f32 0.0, %v3398
        %v3400 = vpop.f32.mrf.mxu0
        %3401 = vmatprep.mubr.f32.mxu0 0.0
        %3402 = vmatmul.mubr.f32.gmra.mxu0 %v3230
        %v3403 = vpop.f32.mrf.mxu0
        %v3404 = vadd.f32 0.0, %v3403
        %v3405 = vpop.f32.mrf.mxu0
        %3406 = vmatprep.mubr.f32.mxu0 0.0
        %3407 = vmatmul.mubr.f32.gmra.mxu0 %v3233
        %v3408 = vpop.f32.mrf.mxu0
        %v3409 = vadd.f32 0.0, %v3408
        %v3410 = vpop.f32.mrf.mxu0
        %3411 = vmatprep.mubr.f32.mxu0 0.0
        %3412 = vmatmul.mubr.f32.gmra.mxu0 %v3236
        %v3413 = vpop.f32.mrf.mxu0
        %v3414 = vadd.f32 0.0, %v3413
        %v3415 = vpop.f32.mrf.mxu0
        %3416 = vmatprep.mubr.f32.mxu0 0.0
        %3417 = vmatmul.mubr.f32.gmra.mxu0 %v3239
        %v3418 = vpop.f32.mrf.mxu0
        %v3419 = vadd.f32 0.0, %v3418
        %v3420 = vpop.f32.mrf.mxu0
        %3421 = vmatprep.mubr.f32.mxu0 0.0
        %3422 = vmatmul.mubr.f32.gmra.mxu0 %v3242
        %v3423 = vpop.f32.mrf.mxu0
        %v3424 = vadd.f32 0.0, %v3423
        %v3425 = vpop.f32.mrf.mxu0
        %3426 = vmatprep.mubr.f32.mxu0 0.0
        %3427 = vmatmul.mubr.f32.gmra.mxu0 %v3245
        %v3428 = vpop.f32.mrf.mxu0
        %v3429 = vadd.f32 0.0, %v3428
        %v3430 = vpop.f32.mrf.mxu0
        %3431 = vmatprep.mubr.f32.mxu0 0.0
        %3432 = vmatmul.mubr.f32.gmra.mxu0 %v3248
        %v3433 = vpop.f32.mrf.mxu0
        %v3434 = vadd.f32 0.0, %v3433
        %v3435 = vpop.f32.mrf.mxu0
        %3436 = vmatprep.mubr.f32.mxu0 0.0
        %3437 = vmatmul.mubr.f32.gmra.mxu0 %v3251
        %v3438 = vpop.f32.mrf.mxu0
        %v3439 = vadd.f32 0.0, %v3438
        %v3440 = vpop.f32.mrf.mxu0
        %3441 = vmatprep.mubr.f32.mxu0 0.0
        %3442 = vmatmul.mubr.f32.gmra.mxu0 %v3254
        %v3443 = vpop.f32.mrf.mxu0
        %v3444 = vadd.f32 0.0, %v3443
        %v3445 = vpop.f32.mrf.mxu0
        %3446 = vmatprep.mubr.f32.mxu0 0.0
        %3447 = vmatmul.mubr.f32.gmra.mxu0 %v3257
        %v3448 = vpop.f32.mrf.mxu0
        %v3449 = vadd.f32 0.0, %v3448
        %v3450 = vpop.f32.mrf.mxu0
        %3451 = vmatprep.mubr.f32.mxu0 0.0
        %3452 = vmatmul.mubr.f32.gmra.mxu0 %v3260
        %v3453 = vpop.f32.mrf.mxu0
        %v3454 = vadd.f32 0.0, %v3453
        %v3455 = vpop.f32.mrf.mxu0
        %3456 = vmatprep.mubr.f32.mxu0 0.0
        %3457 = vmatmul.mubr.f32.gmra.mxu0 %v3263
        %v3458 = vpop.f32.mrf.mxu0
        %v3459 = vadd.f32 0.0, %v3458
        %v3460 = vpop.f32.mrf.mxu0
        %3461 = vmatprep.mubr.f32.mxu0 0.0
        %3462 = vmatmul.mubr.f32.gmra.mxu0 %v3266
        %v3463 = vpop.f32.mrf.mxu0
        %v3464 = vadd.f32 0.0, %v3463
        %v3465 = vpop.f32.mrf.mxu0
        %3466 = vmatprep.mubr.f32.mxu0 0.0
        %3467 = vmatmul.mubr.f32.gmra.mxu0 %v3269
        %v3468 = vpop.f32.mrf.mxu0
        %v3469 = vadd.f32 0.0, %v3468
        %v3470 = vpop.f32.mrf.mxu0
        %3471 = vmatprep.mubr.f32.mxu0 0.0
        %3472 = vmatmul.mubr.f32.gmra.mxu0 %v3272
        %v3473 = vpop.f32.mrf.mxu0
        %v3474 = vadd.f32 0.0, %v3473
        %v3475 = vpop.f32.mrf.mxu0
        %3476 = vmatprep.mubr.f32.mxu0 0.0
        %3477 = vmatmul.mubr.f32.gmra.mxu0 %v3275
        %v3478 = vpop.f32.mrf.mxu0
        %v3479 = vadd.f32 0.0, %v3478
        %v3480 = vpop.f32.mrf.mxu0
        %3481 = vmatprep.mubr.f32.mxu0 0.0
        %3482 = vmatmul.mubr.f32.gmra.mxu0 %v3278
        %v3483 = vpop.f32.mrf.mxu0
        %v3484 = vadd.f32 0.0, %v3483
        %v3485 = vpop.f32.mrf.mxu0
        %3486 = vmatprep.mubr.f32.mxu0 0.0
        %3487 = vmatmul.mubr.f32.gmra.mxu0 %v3281
        %v3488 = vpop.f32.mrf.mxu0
        %v3489 = vadd.f32 0.0, %v3488
        %v3490 = vpop.f32.mrf.mxu0
        %3491 = vmatprep.mubr.f32.mxu0 0.0
        %3492 = vmatmul.mubr.f32.gmra.mxu0 %v3284
        %v3493 = vpop.f32.mrf.mxu0
        %v3494 = vadd.f32 0.0, %v3493
        %v3495 = vpop.f32.mrf.mxu0
        %3496 = vmatprep.mubr.f32.mxu0 0.0
        %3497 = vmatmul.mubr.f32.gmra.mxu0 %v3287
        %v3498 = vpop.f32.mrf.mxu0
        %v3499 = vadd.f32 0.0, %v3498
        %v3500 = vpop.f32.mrf.mxu0
        %3501 = vmatprep.mubr.f32.mxu0 0.0
        %3502 = vmatmul.mubr.f32.gmra.mxu0 %v3290
        %v3503 = vpop.f32.mrf.mxu0
        %v3504 = vadd.f32 0.0, %v3503
        %v3505 = vpop.f32.mrf.mxu0
        %3506 = vmatprep.mubr.f32.mxu0 0.0
        %3507 = vmatmul.mubr.f32.gmra.mxu0 %v3293
        %v3508 = vpop.f32.mrf.mxu0
        %v3509 = vadd.f32 0.0, %v3508
        %v3510 = vpop.f32.mrf.mxu0
        %3511 = vmatprep.mubr.f32.mxu0 0.0
        %3512 = vmatmul.mubr.f32.gmra.mxu0 %v3296
        %v3513 = vpop.f32.mrf.mxu0
        %v3514 = vadd.f32 0.0, %v3513
        %v3515 = vpop.f32.mrf.mxu0
        %3516 = vmatprep.mubr.f32.mxu0 0.0
        %3517 = vmatmul.mubr.f32.gmra.mxu0 %v3299
        %v3518 = vpop.f32.mrf.mxu0
        %v3519 = vadd.f32 0.0, %v3518
        %v3520 = vpop.f32.mrf.mxu0
        %3521 = vmatprep.mubr.f32.mxu0 0.0
        %3522 = vmatmul.mubr.f32.gmra.mxu0 %v3302
        %v3523 = vpop.f32.mrf.mxu0
        %v3524 = vadd.f32 0.0, %v3523
        %v3525 = vpop.f32.mrf.mxu0
        %3526 = vmatprep.mubr.f32.mxu0 0.0
        %3527 = vmatmul.mubr.f32.gmra.mxu0 %v3305
        %v3528 = vpop.f32.mrf.mxu0
        %v3529 = vadd.f32 0.0, %v3528
        %v3530 = vpop.f32.mrf.mxu0
        %3531 = vdwg.mxu0
        %v3532 = vadd.f32 %v3138, %v3374
        %v3533 = vadd.f32 %v3139, %v3379
        %v3534 = vadd.f32 %v3140, %v3384
        %v3535 = vadd.f32 %v3141, %v3389
        %v3536 = vadd.f32 %v3142, %v3394
        %v3537 = vadd.f32 %v3143, %v3399
        %v3538 = vadd.f32 %v3144, %v3404
        %v3539 = vadd.f32 %v3145, %v3409
        %v3540 = vadd.f32 %v3146, %v3414
        %v3541 = vadd.f32 %v3147, %v3419
        %v3542 = vadd.f32 %v3148, %v3424
        %v3543 = vadd.f32 %v3149, %v3429
        %v3544 = vadd.f32 %v3150, %v3434
        %v3545 = vadd.f32 %v3151, %v3439
        %v3546 = vadd.f32 %v3152, %v3444
        %v3547 = vadd.f32 %v3153, %v3449
        %v3548 = vadd.f32 %v3154, %v3454
        %v3549 = vadd.f32 %v3155, %v3459
        %v3550 = vadd.f32 %v3156, %v3464
        %v3551 = vadd.f32 %v3157, %v3469
        %v3552 = vadd.f32 %v3158, %v3474
        %v3553 = vadd.f32 %v3159, %v3479
        %v3554 = vadd.f32 %v3160, %v3484
        %v3555 = vadd.f32 %v3161, %v3489
        %v3556 = vadd.f32 %v3162, %v3494
        %v3557 = vadd.f32 %v3163, %v3499
        %v3558 = vadd.f32 %v3164, %v3504
        %v3559 = vadd.f32 %v3165, %v3509
        %v3560 = vadd.f32 %v3166, %v3514
        %v3561 = vadd.f32 %v3167, %v3519
        %v3562 = vadd.f32 %v3168, %v3524
        %v3563 = vadd.f32 %v3169, %v3529
        %v3564 = vld [vmem:[%s2775 + $0x2] sm:$0xff]
        %v3565 = vld [vmem:[%s2775 + $0xa] sm:$0xff]
        %v3566 = vld [vmem:[%s2775 + $0x1a] sm:$0xff]
        %v3567 = vld [vmem:[%s2775 + $0x22] sm:$0xff]
        %v3568 = vld [vmem:[%s2775 + $0x32] sm:$0xff]
        %v3569 = vld [vmem:[%s2775 + $0x3a] sm:$0xff]
        %v3570 = vld [vmem:[%s2775 + $0x4a] sm:$0xff]
        %v3571 = vld [vmem:[%s2775 + $0x52] sm:$0xff]
        %v3572 = vld [vmem:[%s2775 + $0x62] sm:$0xff]
        %v3573 = vld [vmem:[%s2775 + $0x6a] sm:$0xff]
        %v3574 = vld [vmem:[%s2775 + $0x7a] sm:$0xff]
        %v3575 = vld [vmem:[%s2775 + $0x82] sm:$0xff]
        %v3576 = vld [vmem:[%s2775 + $0x92] sm:$0xff]
        %v3577 = vld [vmem:[%s2775 + $0x9a] sm:$0xff]
        %v3578 = vld [vmem:[%s2775 + $0xaa] sm:$0xff]
        %v3579 = vld [vmem:[%s2775 + $0xb2] sm:$0xff]
        %v3580 = vld [vmem:[%s2775 + $0xc2] sm:$0xff]
        %v3581 = vld [vmem:[%s2775 + $0xca] sm:$0xff]
        %v3582 = vld [vmem:[%s2775 + $0xda] sm:$0xff]
        %v3583 = vld [vmem:[%s2775 + $0xe2] sm:$0xff]
        %v3584 = vld [vmem:[%s2775 + $0xf2] sm:$0xff]
        %v3585 = vld [vmem:[%s2775 + $0xfa] sm:$0xff]
        %v3586 = vld [vmem:[%s2775 + $0x10a] sm:$0xff]
        %v3587 = vld [vmem:[%s2775 + $0x112] sm:$0xff]
        %v3588 = vld [vmem:[%s2775 + $0x122] sm:$0xff]
        %v3589 = vld [vmem:[%s2775 + $0x12a] sm:$0xff]
        %v3590 = vld [vmem:[%s2775 + $0x13a] sm:$0xff]
        %v3591 = vld [vmem:[%s2775 + $0x142] sm:$0xff]
        %v3592 = vld [vmem:[%s2775 + $0x152] sm:$0xff]
        %v3593 = vld [vmem:[%s2775 + $0x15a] sm:$0xff]
        %v3594 = vld [vmem:[%s2775 + $0x16a] sm:$0xff]
        %v3595 = vld [vmem:[%s2775 + $0x172] sm:$0xff]
        %s3596 = scalar_lea.vmem %s1, 512
        %v3597 = vld [vmem:[%s3596] sm:$0xff]
        %v3598 = vld [vmem:[%s3596 + $0x8] sm:$0xff]
        %v3599 = vld [vmem:[%s3596 + $0x10] sm:$0xff]
        %v3600 = vld [vmem:[%s3596 + $0x18] sm:$0xff]
        %v3601 = vld [vmem:[%s3596 + $0x20] sm:$0xff]
        %v3602 = vld [vmem:[%s3596 + $0x28] sm:$0xff]
        %v3603 = vld [vmem:[%s3596 + $0x30] sm:$0xff]
        %v3604 = vld [vmem:[%s3596 + $0x38] sm:$0xff]
        %v3606 = vsel %vm451, %v3564, 0
        %v3609 = vsel %vm451, %v3565, 0
        %v3612 = vsel %vm451, %v3566, 0
        %v3615 = vsel %vm451, %v3567, 0
        %v3618 = vsel %vm451, %v3568, 0
        %v3621 = vsel %vm451, %v3569, 0
        %v3624 = vsel %vm451, %v3570, 0
        %v3627 = vsel %vm451, %v3571, 0
        %v3630 = vsel %vm451, %v3572, 0
        %v3633 = vsel %vm451, %v3573, 0
        %v3636 = vsel %vm451, %v3574, 0
        %v3639 = vsel %vm451, %v3575, 0
        %v3642 = vsel %vm451, %v3576, 0
        %v3645 = vsel %vm451, %v3577, 0
        %v3648 = vsel %vm451, %v3578, 0
        %v3651 = vsel %vm451, %v3579, 0
        %v3654 = vsel %vm451, %v3580, 0
        %v3657 = vsel %vm451, %v3581, 0
        %v3660 = vsel %vm451, %v3582, 0
        %v3663 = vsel %vm451, %v3583, 0
        %v3666 = vsel %vm451, %v3584, 0
        %v3669 = vsel %vm451, %v3585, 0
        %v3672 = vsel %vm451, %v3586, 0
        %v3675 = vsel %vm451, %v3587, 0
        %v3678 = vsel %vm451, %v3588, 0
        %v3681 = vsel %vm451, %v3589, 0
        %v3684 = vsel %vm451, %v3590, 0
        %v3687 = vsel %vm451, %v3591, 0
        %v3690 = vsel %vm451, %v3592, 0
        %v3693 = vsel %vm451, %v3593, 0
        %v3696 = vsel %vm451, %v3594, 0
        %v3699 = vsel %vm451, %v3595, 0
        %3701 = vmatprep.subr.mxu0 0.0
        %3702 = vmatpush1.msra.mxu0 0.0
        %3703 = vmatprep.subr.mxu0 0.0
        %3704 = vmatpush1.msra.mxu0 0.0
        %3705 = vmatprep.subr.mxu0 0.0
        %3706 = vmatpush1.msra.mxu0 0.0
        %3707 = vmatprep.subr.mxu0 0.0
        %3708 = vmatpush1.msra.mxu0 0.0
        %3709 = vmatprep.subr.mxu0 0.0
        %3710 = vmatpush1.msra.mxu0 0.0
        %3711 = vmatprep.subr.mxu0 0.0
        %3712 = vmatpush1.msra.mxu0 0.0
        %3713 = vmatprep.subr.mxu0 0.0
        %3714 = vmatpush1.msra.mxu0 0.0
        %3715 = vmatprep.subr.mxu0 0.0
        %3716 = vmatpush1.msra.mxu0 0.0
        %3717 = vmatprep.subr.mxu0 0.0
        %3718 = vmatpush1.msra.mxu0 %v3604
        %3719 = vmatprep.subr.mxu0 0.0
        %3720 = vmatpush1.msra.mxu0 %v3603
        %3721 = vmatprep.subr.mxu0 0.0
        %3722 = vmatpush1.msra.mxu0 %v3602
        %3723 = vmatprep.subr.mxu0 0.0
        %3724 = vmatpush1.msra.mxu0 %v3601
        %3725 = vmatprep.subr.mxu0 0.0
        %3726 = vmatpush1.msra.mxu0 %v3600
        %3727 = vmatprep.subr.mxu0 0.0
        %3728 = vmatpush1.msra.mxu0 %v3599
        %3729 = vmatprep.subr.mxu0 0.0
        %3730 = vmatpush1.msra.mxu0 %v3598
        %3731 = vmatprep.subr.mxu0 0.0
        %3732 = vmatpush1.msra.mxu0 %v3597
        %3733 = vmatprep.subr.mxu0 0.0
        %3734 = vmatpush2.msra.mxu0 0.0
        %3735 = vmatprep.subr.mxu0 0.0
        %3736 = vmatpush2.msra.mxu0 0.0
        %3737 = vmatprep.subr.mxu0 0.0
        %3738 = vmatpush2.msra.mxu0 0.0
        %3739 = vmatprep.subr.mxu0 0.0
        %3740 = vmatpush2.msra.mxu0 0.0
        %3741 = vmatprep.subr.mxu0 0.0
        %3742 = vmatpush2.msra.mxu0 0.0
        %3743 = vmatprep.subr.mxu0 0.0
        %3744 = vmatpush2.msra.mxu0 0.0
        %3745 = vmatprep.subr.mxu0 0.0
        %3746 = vmatpush2.msra.mxu0 0.0
        %3747 = vmatprep.subr.mxu0 0.0
        %3748 = vmatpush2.msra.mxu0 0.0
        %3749 = vmatprep.subr.mxu0 0.0
        %3750 = vmatpush2.msra.mxu0 0.0
        %3751 = vmatprep.subr.mxu0 0.0
        %3752 = vmatpush2.msra.mxu0 0.0
        %3753 = vmatprep.subr.mxu0 0.0
        %3754 = vmatpush2.msra.mxu0 0.0
        %3755 = vmatprep.subr.mxu0 0.0
        %3756 = vmatpush2.msra.mxu0 0.0
        %3757 = vmatprep.subr.mxu0 0.0
        %3758 = vmatpush2.msra.mxu0 0.0
        %3759 = vmatprep.subr.mxu0 0.0
        %3760 = vmatpush2.msra.mxu0 0.0
        %3761 = vmatprep.subr.mxu0 0.0
        %3762 = vmatpush2.msra.mxu0 0.0
        %3763 = vmatprep.subr.mxu0 0.0
        %3764 = vmatpush2.msra.mxu0 0.0
        %3765 = vmatprep.mubr.f32.mxu0 0.0
        %3766 = vmatmul.mubr.f32.gmra.mxu0 %v3606
        %v3767 = vpop.f32.mrf.mxu0
        %v3768 = vadd.f32 0.0, %v3767
        %v3769 = vpop.f32.mrf.mxu0
        %3770 = vmatprep.mubr.f32.mxu0 0.0
        %3771 = vmatmul.mubr.f32.gmra.mxu0 %v3609
        %v3772 = vpop.f32.mrf.mxu0
        %v3773 = vadd.f32 0.0, %v3772
        %v3774 = vpop.f32.mrf.mxu0
        %3775 = vmatprep.mubr.f32.mxu0 0.0
        %3776 = vmatmul.mubr.f32.gmra.mxu0 %v3612
        %v3777 = vpop.f32.mrf.mxu0
        %v3778 = vadd.f32 0.0, %v3777
        %v3779 = vpop.f32.mrf.mxu0
        %3780 = vmatprep.mubr.f32.mxu0 0.0
        %3781 = vmatmul.mubr.f32.gmra.mxu0 %v3615
        %v3782 = vpop.f32.mrf.mxu0
        %v3783 = vadd.f32 0.0, %v3782
        %v3784 = vpop.f32.mrf.mxu0
        %3785 = vmatprep.mubr.f32.mxu0 0.0
        %3786 = vmatmul.mubr.f32.gmra.mxu0 %v3618
        %v3787 = vpop.f32.mrf.mxu0
        %v3788 = vadd.f32 0.0, %v3787
        %v3789 = vpop.f32.mrf.mxu0
        %3790 = vmatprep.mubr.f32.mxu0 0.0
        %3791 = vmatmul.mubr.f32.gmra.mxu0 %v3621
        %v3792 = vpop.f32.mrf.mxu0
        %v3793 = vadd.f32 0.0, %v3792
        %v3794 = vpop.f32.mrf.mxu0
        %3795 = vmatprep.mubr.f32.mxu0 0.0
        %3796 = vmatmul.mubr.f32.gmra.mxu0 %v3624
        %v3797 = vpop.f32.mrf.mxu0
        %v3798 = vadd.f32 0.0, %v3797
        %v3799 = vpop.f32.mrf.mxu0
        %3800 = vmatprep.mubr.f32.mxu0 0.0
        %3801 = vmatmul.mubr.f32.gmra.mxu0 %v3627
        %v3802 = vpop.f32.mrf.mxu0
        %v3803 = vadd.f32 0.0, %v3802
        %v3804 = vpop.f32.mrf.mxu0
        %3805 = vmatprep.mubr.f32.mxu0 0.0
        %3806 = vmatmul.mubr.f32.gmra.mxu0 %v3630
        %v3807 = vpop.f32.mrf.mxu0
        %v3808 = vadd.f32 0.0, %v3807
        %v3809 = vpop.f32.mrf.mxu0
        %3810 = vmatprep.mubr.f32.mxu0 0.0
        %3811 = vmatmul.mubr.f32.gmra.mxu0 %v3633
        %v3812 = vpop.f32.mrf.mxu0
        %v3813 = vadd.f32 0.0, %v3812
        %v3814 = vpop.f32.mrf.mxu0
        %3815 = vmatprep.mubr.f32.mxu0 0.0
        %3816 = vmatmul.mubr.f32.gmra.mxu0 %v3636
        %v3817 = vpop.f32.mrf.mxu0
        %v3818 = vadd.f32 0.0, %v3817
        %v3819 = vpop.f32.mrf.mxu0
        %3820 = vmatprep.mubr.f32.mxu0 0.0
        %3821 = vmatmul.mubr.f32.gmra.mxu0 %v3639
        %v3822 = vpop.f32.mrf.mxu0
        %v3823 = vadd.f32 0.0, %v3822
        %v3824 = vpop.f32.mrf.mxu0
        %3825 = vmatprep.mubr.f32.mxu0 0.0
        %3826 = vmatmul.mubr.f32.gmra.mxu0 %v3642
        %v3827 = vpop.f32.mrf.mxu0
        %v3828 = vadd.f32 0.0, %v3827
        %v3829 = vpop.f32.mrf.mxu0
        %3830 = vmatprep.mubr.f32.mxu0 0.0
        %3831 = vmatmul.mubr.f32.gmra.mxu0 %v3645
        %v3832 = vpop.f32.mrf.mxu0
        %v3833 = vadd.f32 0.0, %v3832
        %v3834 = vpop.f32.mrf.mxu0
        %3835 = vmatprep.mubr.f32.mxu0 0.0
        %3836 = vmatmul.mubr.f32.gmra.mxu0 %v3648
        %v3837 = vpop.f32.mrf.mxu0
        %v3838 = vadd.f32 0.0, %v3837
        %v3839 = vpop.f32.mrf.mxu0
        %3840 = vmatprep.mubr.f32.mxu0 0.0
        %3841 = vmatmul.mubr.f32.gmra.mxu0 %v3651
        %v3842 = vpop.f32.mrf.mxu0
        %v3843 = vadd.f32 0.0, %v3842
        %v3844 = vpop.f32.mrf.mxu0
        %3845 = vmatprep.mubr.f32.mxu0 0.0
        %3846 = vmatmul.mubr.f32.gmra.mxu0 %v3654
        %v3847 = vpop.f32.mrf.mxu0
        %v3848 = vadd.f32 0.0, %v3847
        %v3849 = vpop.f32.mrf.mxu0
        %3850 = vmatprep.mubr.f32.mxu0 0.0
        %3851 = vmatmul.mubr.f32.gmra.mxu0 %v3657
        %v3852 = vpop.f32.mrf.mxu0
        %v3853 = vadd.f32 0.0, %v3852
        %v3854 = vpop.f32.mrf.mxu0
        %3855 = vmatprep.mubr.f32.mxu0 0.0
        %3856 = vmatmul.mubr.f32.gmra.mxu0 %v3660
        %v3857 = vpop.f32.mrf.mxu0
        %v3858 = vadd.f32 0.0, %v3857
        %v3859 = vpop.f32.mrf.mxu0
        %3860 = vmatprep.mubr.f32.mxu0 0.0
        %3861 = vmatmul.mubr.f32.gmra.mxu0 %v3663
        %v3862 = vpop.f32.mrf.mxu0
        %v3863 = vadd.f32 0.0, %v3862
        %v3864 = vpop.f32.mrf.mxu0
        %3865 = vmatprep.mubr.f32.mxu0 0.0
        %3866 = vmatmul.mubr.f32.gmra.mxu0 %v3666
        %v3867 = vpop.f32.mrf.mxu0
        %v3868 = vadd.f32 0.0, %v3867
        %v3869 = vpop.f32.mrf.mxu0
        %3870 = vmatprep.mubr.f32.mxu0 0.0
        %3871 = vmatmul.mubr.f32.gmra.mxu0 %v3669
        %v3872 = vpop.f32.mrf.mxu0
        %v3873 = vadd.f32 0.0, %v3872
        %v3874 = vpop.f32.mrf.mxu0
        %3875 = vmatprep.mubr.f32.mxu0 0.0
        %3876 = vmatmul.mubr.f32.gmra.mxu0 %v3672
        %v3877 = vpop.f32.mrf.mxu0
        %v3878 = vadd.f32 0.0, %v3877
        %v3879 = vpop.f32.mrf.mxu0
        %3880 = vmatprep.mubr.f32.mxu0 0.0
        %3881 = vmatmul.mubr.f32.gmra.mxu0 %v3675
        %v3882 = vpop.f32.mrf.mxu0
        %v3883 = vadd.f32 0.0, %v3882
        %v3884 = vpop.f32.mrf.mxu0
        %3885 = vmatprep.mubr.f32.mxu0 0.0
        %3886 = vmatmul.mubr.f32.gmra.mxu0 %v3678
        %v3887 = vpop.f32.mrf.mxu0
        %v3888 = vadd.f32 0.0, %v3887
        %v3889 = vpop.f32.mrf.mxu0
        %3890 = vmatprep.mubr.f32.mxu0 0.0
        %3891 = vmatmul.mubr.f32.gmra.mxu0 %v3681
        %v3892 = vpop.f32.mrf.mxu0
        %v3893 = vadd.f32 0.0, %v3892
        %v3894 = vpop.f32.mrf.mxu0
        %3895 = vmatprep.mubr.f32.mxu0 0.0
        %3896 = vmatmul.mubr.f32.gmra.mxu0 %v3684
        %v3897 = vpop.f32.mrf.mxu0
        %v3898 = vadd.f32 0.0, %v3897
        %v3899 = vpop.f32.mrf.mxu0
        %3900 = vmatprep.mubr.f32.mxu0 0.0
        %3901 = vmatmul.mubr.f32.gmra.mxu0 %v3687
        %v3902 = vpop.f32.mrf.mxu0
        %v3903 = vadd.f32 0.0, %v3902
        %v3904 = vpop.f32.mrf.mxu0
        %3905 = vmatprep.mubr.f32.mxu0 0.0
        %3906 = vmatmul.mubr.f32.gmra.mxu0 %v3690
        %v3907 = vpop.f32.mrf.mxu0
        %v3908 = vadd.f32 0.0, %v3907
        %v3909 = vpop.f32.mrf.mxu0
        %3910 = vmatprep.mubr.f32.mxu0 0.0
        %3911 = vmatmul.mubr.f32.gmra.mxu0 %v3693
        %v3912 = vpop.f32.mrf.mxu0
        %v3913 = vadd.f32 0.0, %v3912
        %v3914 = vpop.f32.mrf.mxu0
        %3915 = vmatprep.mubr.f32.mxu0 0.0
        %3916 = vmatmul.mubr.f32.gmra.mxu0 %v3696
        %v3917 = vpop.f32.mrf.mxu0
        %v3918 = vadd.f32 0.0, %v3917
        %v3919 = vpop.f32.mrf.mxu0
        %3920 = vmatprep.mubr.f32.mxu0 0.0
        %3921 = vmatmul.mubr.f32.gmra.mxu0 %v3699
        %v3922 = vpop.f32.mrf.mxu0
        %v3923 = vadd.f32 0.0, %v3922
        %v3924 = vpop.f32.mrf.mxu0
        %3925 = vdwg.mxu0
        %v3926 = vadd.f32 %v3532, %v3768
        %v3927 = vadd.f32 %v3533, %v3773
        %v3928 = vadd.f32 %v3534, %v3778
        %v3929 = vadd.f32 %v3535, %v3783
        %v3930 = vadd.f32 %v3536, %v3788
        %v3931 = vadd.f32 %v3537, %v3793
        %v3932 = vadd.f32 %v3538, %v3798
        %v3933 = vadd.f32 %v3539, %v3803
        %v3934 = vadd.f32 %v3540, %v3808
        %v3935 = vadd.f32 %v3541, %v3813
        %v3936 = vadd.f32 %v3542, %v3818
        %v3937 = vadd.f32 %v3543, %v3823
        %v3938 = vadd.f32 %v3544, %v3828
        %v3939 = vadd.f32 %v3545, %v3833
        %v3940 = vadd.f32 %v3546, %v3838
        %v3941 = vadd.f32 %v3547, %v3843
        %v3942 = vadd.f32 %v3548, %v3848
        %v3943 = vadd.f32 %v3549, %v3853
        %v3944 = vadd.f32 %v3550, %v3858
        %v3945 = vadd.f32 %v3551, %v3863
        %v3946 = vadd.f32 %v3552, %v3868
        %v3947 = vadd.f32 %v3553, %v3873
        %v3948 = vadd.f32 %v3554, %v3878
        %v3949 = vadd.f32 %v3555, %v3883
        %v3950 = vadd.f32 %v3556, %v3888
        %v3951 = vadd.f32 %v3557, %v3893
        %v3952 = vadd.f32 %v3558, %v3898
        %v3953 = vadd.f32 %v3559, %v3903
        %v3954 = vadd.f32 %v3560, %v3908
        %v3955 = vadd.f32 %v3561, %v3913
        %v3956 = vadd.f32 %v3562, %v3918
        %v3957 = vadd.f32 %v3563, %v3923
        %v3958 = vxor.u32 %v3926, 2147483648
        %v3959 = vxor.u32 %v3927, 2147483648
        %v3960 = vxor.u32 %v3928, 2147483648
        %v3961 = vxor.u32 %v3929, 2147483648
        %v3962 = vxor.u32 %v3930, 2147483648
        %v3963 = vxor.u32 %v3931, 2147483648
        %v3964 = vxor.u32 %v3932, 2147483648
        %v3965 = vxor.u32 %v3933, 2147483648
        %v3966 = vxor.u32 %v3934, 2147483648
        %v3967 = vxor.u32 %v3935, 2147483648
        %v3968 = vxor.u32 %v3936, 2147483648
        %v3969 = vxor.u32 %v3937, 2147483648
        %v3970 = vxor.u32 %v3938, 2147483648
        %v3971 = vxor.u32 %v3939, 2147483648
        %v3972 = vxor.u32 %v3940, 2147483648
        %v3973 = vxor.u32 %v3941, 2147483648
        %v3974 = vxor.u32 %v3942, 2147483648
        %v3975 = vxor.u32 %v3943, 2147483648
        %v3976 = vxor.u32 %v3944, 2147483648
        %v3977 = vxor.u32 %v3945, 2147483648
        %v3978 = vxor.u32 %v3946, 2147483648
        %v3979 = vxor.u32 %v3947, 2147483648
        %v3980 = vxor.u32 %v3948, 2147483648
        %v3981 = vxor.u32 %v3949, 2147483648
        %v3982 = vxor.u32 %v3950, 2147483648
        %v3983 = vxor.u32 %v3951, 2147483648
        %v3984 = vxor.u32 %v3952, 2147483648
        %v3985 = vxor.u32 %v3953, 2147483648
        %v3986 = vxor.u32 %v3954, 2147483648
        %v3987 = vxor.u32 %v3955, 2147483648
        %v3988 = vxor.u32 %v3956, 2147483648
        %v3989 = vxor.u32 %v3957, 2147483648
        %v3990 = vmul.f32 %v3958, 1.442695
        %v3991 = vpow.pop %v3990
        %v3992 = vmul.f32 %v3959, 1.442695
        %v3993 = vpow.pop %v3992
        %v3994 = vmul.f32 %v3960, 1.442695
        %v3995 = vpow.pop %v3994
        %v3996 = vmul.f32 %v3961, 1.442695
        %v3997 = vpow.pop %v3996
        %v3998 = vmul.f32 %v3962, 1.442695
        %v3999 = vpow.pop %v3998
        %v4000 = vmul.f32 %v3963, 1.442695
        %v4001 = vpow.pop %v4000
        %v4002 = vmul.f32 %v3964, 1.442695
        %v4003 = vpow.pop %v4002
        %v4004 = vmul.f32 %v3965, 1.442695
        %v4005 = vpow.pop %v4004
        %v4006 = vmul.f32 %v3966, 1.442695
        %v4007 = vpow.pop %v4006
        %v4008 = vmul.f32 %v3967, 1.442695
        %v4009 = vpow.pop %v4008
        %v4010 = vmul.f32 %v3968, 1.442695
        %v4011 = vpow.pop %v4010
        %v4012 = vmul.f32 %v3969, 1.442695
        %v4013 = vpow.pop %v4012
        %v4014 = vmul.f32 %v3970, 1.442695
        %v4015 = vpow.pop %v4014
        %v4016 = vmul.f32 %v3971, 1.442695
        %v4017 = vpow.pop %v4016
        %v4018 = vmul.f32 %v3972, 1.442695
        %v4019 = vpow.pop %v4018
        %v4020 = vmul.f32 %v3973, 1.442695
        %v4021 = vpow.pop %v4020
        %v4022 = vmul.f32 %v3974, 1.442695
        %v4023 = vpow.pop %v4022
        %v4024 = vmul.f32 %v3975, 1.442695
        %v4025 = vpow.pop %v4024
        %v4026 = vmul.f32 %v3976, 1.442695
        %v4027 = vpow.pop %v4026
        %v4028 = vmul.f32 %v3977, 1.442695
        %v4029 = vpow.pop %v4028
        %v4030 = vmul.f32 %v3978, 1.442695
        %v4031 = vpow.pop %v4030
        %v4032 = vmul.f32 %v3979, 1.442695
        %v4033 = vpow.pop %v4032
        %v4034 = vmul.f32 %v3980, 1.442695
        %v4035 = vpow.pop %v4034
        %v4036 = vmul.f32 %v3981, 1.442695
        %v4037 = vpow.pop %v4036
        %v4038 = vmul.f32 %v3982, 1.442695
        %v4039 = vpow.pop %v4038
        %v4040 = vmul.f32 %v3983, 1.442695
        %v4041 = vpow.pop %v4040
        %v4042 = vmul.f32 %v3984, 1.442695
        %v4043 = vpow.pop %v4042
        %v4044 = vmul.f32 %v3985, 1.442695
        %v4045 = vpow.pop %v4044
        %v4046 = vmul.f32 %v3986, 1.442695
        %v4047 = vpow.pop %v4046
        %v4048 = vmul.f32 %v3987, 1.442695
        %v4049 = vpow.pop %v4048
        %v4050 = vmul.f32 %v3988, 1.442695
        %v4051 = vpow.pop %v4050
        %v4052 = vmul.f32 %v3989, 1.442695
        %v4053 = vpow.pop %v4052
        %v4054 = vadd.f32 %v3991, 1.0
        %v4055 = vadd.f32 %v3993, 1.0
        %v4056 = vadd.f32 %v3995, 1.0
        %v4057 = vadd.f32 %v3997, 1.0
        %v4058 = vadd.f32 %v3999, 1.0
        %v4059 = vadd.f32 %v4001, 1.0
        %v4060 = vadd.f32 %v4003, 1.0
        %v4061 = vadd.f32 %v4005, 1.0
        %v4062 = vadd.f32 %v4007, 1.0
        %v4063 = vadd.f32 %v4009, 1.0
        %v4064 = vadd.f32 %v4011, 1.0
        %v4065 = vadd.f32 %v4013, 1.0
        %v4066 = vadd.f32 %v4015, 1.0
        %v4067 = vadd.f32 %v4017, 1.0
        %v4068 = vadd.f32 %v4019, 1.0
        %v4069 = vadd.f32 %v4021, 1.0
        %v4070 = vadd.f32 %v4023, 1.0
        %v4071 = vadd.f32 %v4025, 1.0
        %v4072 = vadd.f32 %v4027, 1.0
        %v4073 = vadd.f32 %v4029, 1.0
        %v4074 = vadd.f32 %v4031, 1.0
        %v4075 = vadd.f32 %v4033, 1.0
        %v4076 = vadd.f32 %v4035, 1.0
        %v4077 = vadd.f32 %v4037, 1.0
        %v4078 = vadd.f32 %v4039, 1.0
        %v4079 = vadd.f32 %v4041, 1.0
        %v4080 = vadd.f32 %v4043, 1.0
        %v4081 = vadd.f32 %v4045, 1.0
        %v4082 = vadd.f32 %v4047, 1.0
        %v4083 = vadd.f32 %v4049, 1.0
        %v4084 = vadd.f32 %v4051, 1.0
        %v4085 = vadd.f32 %v4053, 1.0
        %v4086 = vrcp.pop %v4054
        %v4087 = vmul.f32 1.0, %v4086
        %v4088 = vrcp.pop %v4055
        %v4089 = vmul.f32 1.0, %v4088
        %v4090 = vrcp.pop %v4056
        %v4091 = vmul.f32 1.0, %v4090
        %v4092 = vrcp.pop %v4057
        %v4093 = vmul.f32 1.0, %v4092
        %v4094 = vrcp.pop %v4058
        %v4095 = vmul.f32 1.0, %v4094
        %v4096 = vrcp.pop %v4059
        %v4097 = vmul.f32 1.0, %v4096
        %v4098 = vrcp.pop %v4060
        %v4099 = vmul.f32 1.0, %v4098
        %v4100 = vrcp.pop %v4061
        %v4101 = vmul.f32 1.0, %v4100
        %v4102 = vrcp.pop %v4062
        %v4103 = vmul.f32 1.0, %v4102
        %v4104 = vrcp.pop %v4063
        %v4105 = vmul.f32 1.0, %v4104
        %v4106 = vrcp.pop %v4064
        %v4107 = vmul.f32 1.0, %v4106
        %v4108 = vrcp.pop %v4065
        %v4109 = vmul.f32 1.0, %v4108
        %v4110 = vrcp.pop %v4066
        %v4111 = vmul.f32 1.0, %v4110
        %v4112 = vrcp.pop %v4067
        %v4113 = vmul.f32 1.0, %v4112
        %v4114 = vrcp.pop %v4068
        %v4115 = vmul.f32 1.0, %v4114
        %v4116 = vrcp.pop %v4069
        %v4117 = vmul.f32 1.0, %v4116
        %v4118 = vrcp.pop %v4070
        %v4119 = vmul.f32 1.0, %v4118
        %v4120 = vrcp.pop %v4071
        %v4121 = vmul.f32 1.0, %v4120
        %v4122 = vrcp.pop %v4072
        %v4123 = vmul.f32 1.0, %v4122
        %v4124 = vrcp.pop %v4073
        %v4125 = vmul.f32 1.0, %v4124
        %v4126 = vrcp.pop %v4074
        %v4127 = vmul.f32 1.0, %v4126
        %v4128 = vrcp.pop %v4075
        %v4129 = vmul.f32 1.0, %v4128
        %v4130 = vrcp.pop %v4076
        %v4131 = vmul.f32 1.0, %v4130
        %v4132 = vrcp.pop %v4077
        %v4133 = vmul.f32 1.0, %v4132
        %v4134 = vrcp.pop %v4078
        %v4135 = vmul.f32 1.0, %v4134
        %v4136 = vrcp.pop %v4079
        %v4137 = vmul.f32 1.0, %v4136
        %v4138 = vrcp.pop %v4080
        %v4139 = vmul.f32 1.0, %v4138
        %v4140 = vrcp.pop %v4081
        %v4141 = vmul.f32 1.0, %v4140
        %v4142 = vrcp.pop %v4082
        %v4143 = vmul.f32 1.0, %v4142
        %v4144 = vrcp.pop %v4083
        %v4145 = vmul.f32 1.0, %v4144
        %v4146 = vrcp.pop %v4084
        %v4147 = vmul.f32 1.0, %v4146
        %v4148 = vrcp.pop %v4085
        %v4149 = vmul.f32 1.0, %v4148
        %v4150 = vtanh.pop %v3926
        %v4151 = vtanh.pop %v3927
        %v4152 = vtanh.pop %v3928
        %v4153 = vtanh.pop %v3929
        %v4154 = vtanh.pop %v3930
        %v4155 = vtanh.pop %v3931
        %v4156 = vtanh.pop %v3932
        %v4157 = vtanh.pop %v3933
        %v4158 = vtanh.pop %v3934
        %v4159 = vtanh.pop %v3935
        %v4160 = vtanh.pop %v3936
        %v4161 = vtanh.pop %v3937
        %v4162 = vtanh.pop %v3938
        %v4163 = vtanh.pop %v3939
        %v4164 = vtanh.pop %v3940
        %v4165 = vtanh.pop %v3941
        %v4166 = vtanh.pop %v3942
        %v4167 = vtanh.pop %v3943
        %v4168 = vtanh.pop %v3944
        %v4169 = vtanh.pop %v3945
        %v4170 = vtanh.pop %v3946
        %v4171 = vtanh.pop %v3947
        %v4172 = vtanh.pop %v3948
        %v4173 = vtanh.pop %v3949
        %v4174 = vtanh.pop %v3950
        %v4175 = vtanh.pop %v3951
        %v4176 = vtanh.pop %v3952
        %v4177 = vtanh.pop %v3953
        %v4178 = vtanh.pop %v3954
        %v4179 = vtanh.pop %v3955
        %v4180 = vtanh.pop %v3956
        %v4181 = vtanh.pop %v3957
        %v4182 = vld [vmem:[%s226] sm:$0xff]
        %v4183 = vld [vmem:[%s226 + $0x8] sm:$0xff]
        %v4184 = vld [vmem:[%s226 + $0x10] sm:$0xff]
        %v4185 = vld [vmem:[%s226 + $0x18] sm:$0xff]
        %v4186 = vld [vmem:[%s226 + $0x20] sm:$0xff]
        %v4187 = vld [vmem:[%s226 + $0x28] sm:$0xff]
        %v4188 = vld [vmem:[%s226 + $0x30] sm:$0xff]
        %v4189 = vld [vmem:[%s226 + $0x38] sm:$0xff]
        %v4190 = vld [vmem:[%s226 + $0x40] sm:$0xff]
        %v4191 = vld [vmem:[%s226 + $0x48] sm:$0xff]
        %v4192 = vld [vmem:[%s226 + $0x50] sm:$0xff]
        %v4193 = vld [vmem:[%s226 + $0x58] sm:$0xff]
        %v4194 = vld [vmem:[%s226 + $0x60] sm:$0xff]
        %v4195 = vld [vmem:[%s226 + $0x68] sm:$0xff]
        %v4196 = vld [vmem:[%s226 + $0x70] sm:$0xff]
        %v4197 = vld [vmem:[%s226 + $0x78] sm:$0xff]
        %v4198 = vld [vmem:[%s226 + $0x80] sm:$0xff]
        %v4199 = vld [vmem:[%s226 + $0x88] sm:$0xff]
        %v4200 = vld [vmem:[%s226 + $0x90] sm:$0xff]
        %v4201 = vld [vmem:[%s226 + $0x98] sm:$0xff]
        %v4202 = vld [vmem:[%s226 + $0xa0] sm:$0xff]
        %v4203 = vld [vmem:[%s226 + $0xa8] sm:$0xff]
        %v4204 = vld [vmem:[%s226 + $0xb0] sm:$0xff]
        %v4205 = vld [vmem:[%s226 + $0xb8] sm:$0xff]
        %v4206 = vld [vmem:[%s226 + $0xc0] sm:$0xff]
        %v4207 = vld [vmem:[%s226 + $0xc8] sm:$0xff]
        %v4208 = vld [vmem:[%s226 + $0xd0] sm:$0xff]
        %v4209 = vld [vmem:[%s226 + $0xd8] sm:$0xff]
        %v4210 = vld [vmem:[%s226 + $0xe0] sm:$0xff]
        %v4211 = vld [vmem:[%s226 + $0xe8] sm:$0xff]
        %v4212 = vld [vmem:[%s226 + $0xf0] sm:$0xff]
        %v4213 = vld [vmem:[%s226 + $0xf8] sm:$0xff]
        %4246 = vrot.lane.b32.xlu0 %v4182, 32
        %v4247 = vpop.permute.xlu0 %4246
        %4248 = vrot.lane.b32.xlu0 %v4183, 32
        %v4249 = vpop.permute.xlu0 %4248
        %4250 = vrot.lane.b32.xlu0 %v4184, 32
        %v4251 = vpop.permute.xlu0 %4250
        %4252 = vrot.lane.b32.xlu0 %v4185, 32
        %v4253 = vpop.permute.xlu0 %4252
        %4254 = vrot.lane.b32.xlu0 %v4186, 32
        %v4255 = vpop.permute.xlu0 %4254
        %4256 = vrot.lane.b32.xlu0 %v4187, 32
        %v4257 = vpop.permute.xlu0 %4256
        %4258 = vrot.lane.b32.xlu0 %v4188, 32
        %v4259 = vpop.permute.xlu0 %4258
        %4260 = vrot.lane.b32.xlu0 %v4189, 32
        %v4261 = vpop.permute.xlu0 %4260
        %4262 = vrot.lane.b32.xlu0 %v4190, 32
        %v4263 = vpop.permute.xlu0 %4262
        %4264 = vrot.lane.b32.xlu0 %v4191, 32
        %v4265 = vpop.permute.xlu0 %4264
        %4266 = vrot.lane.b32.xlu0 %v4192, 32
        %v4267 = vpop.permute.xlu0 %4266
        %4268 = vrot.lane.b32.xlu0 %v4193, 32
        %v4269 = vpop.permute.xlu0 %4268
        %4270 = vrot.lane.b32.xlu0 %v4194, 32
        %v4271 = vpop.permute.xlu0 %4270
        %4272 = vrot.lane.b32.xlu0 %v4195, 32
        %v4273 = vpop.permute.xlu0 %4272
        %4274 = vrot.lane.b32.xlu0 %v4196, 32
        %v4275 = vpop.permute.xlu0 %4274
        %4276 = vrot.lane.b32.xlu0 %v4197, 32
        %v4277 = vpop.permute.xlu0 %4276
        %4278 = vrot.lane.b32.xlu0 %v4198, 32
        %v4279 = vpop.permute.xlu0 %4278
        %4280 = vrot.lane.b32.xlu0 %v4199, 32
        %v4281 = vpop.permute.xlu0 %4280
        %4282 = vrot.lane.b32.xlu0 %v4200, 32
        %v4283 = vpop.permute.xlu0 %4282
        %4284 = vrot.lane.b32.xlu0 %v4201, 32
        %v4285 = vpop.permute.xlu0 %4284
        %4286 = vrot.lane.b32.xlu0 %v4202, 32
        %v4287 = vpop.permute.xlu0 %4286
        %4288 = vrot.lane.b32.xlu0 %v4203, 32
        %v4289 = vpop.permute.xlu0 %4288
        %4290 = vrot.lane.b32.xlu0 %v4204, 32
        %v4291 = vpop.permute.xlu0 %4290
        %4292 = vrot.lane.b32.xlu0 %v4205, 32
        %v4293 = vpop.permute.xlu0 %4292
        %4294 = vrot.lane.b32.xlu0 %v4206, 32
        %v4295 = vpop.permute.xlu0 %4294
        %4296 = vrot.lane.b32.xlu0 %v4207, 32
        %v4297 = vpop.permute.xlu0 %4296
        %4298 = vrot.lane.b32.xlu0 %v4208, 32
        %v4299 = vpop.permute.xlu0 %4298
        %4300 = vrot.lane.b32.xlu0 %v4209, 32
        %v4301 = vpop.permute.xlu0 %4300
        %4302 = vrot.lane.b32.xlu0 %v4210, 32
        %v4303 = vpop.permute.xlu0 %4302
        %4304 = vrot.lane.b32.xlu0 %v4211, 32
        %v4305 = vpop.permute.xlu0 %4304
        %4306 = vrot.lane.b32.xlu0 %v4212, 32
        %v4307 = vpop.permute.xlu0 %4306
        %4308 = vrot.lane.b32.xlu0 %v4213, 32
        %v4309 = vpop.permute.xlu0 %4308
        %v4342 = vmul.f32 %v4087, %v4247
        %v4343 = vmul.f32 %v4089, %v4249
        %v4344 = vmul.f32 %v4091, %v4251
        %v4345 = vmul.f32 %v4093, %v4253
        %v4346 = vmul.f32 %v4095, %v4255
        %v4347 = vmul.f32 %v4097, %v4257
        %v4348 = vmul.f32 %v4099, %v4259
        %v4349 = vmul.f32 %v4101, %v4261
        %v4350 = vmul.f32 %v4103, %v4263
        %v4351 = vmul.f32 %v4105, %v4265
        %v4352 = vmul.f32 %v4107, %v4267
        %v4353 = vmul.f32 %v4109, %v4269
        %v4354 = vmul.f32 %v4111, %v4271
        %v4355 = vmul.f32 %v4113, %v4273
        %v4356 = vmul.f32 %v4115, %v4275
        %v4357 = vmul.f32 %v4117, %v4277
        %v4358 = vmul.f32 %v4119, %v4279
        %v4359 = vmul.f32 %v4121, %v4281
        %v4360 = vmul.f32 %v4123, %v4283
        %v4361 = vmul.f32 %v4125, %v4285
        %v4362 = vmul.f32 %v4127, %v4287
        %v4363 = vmul.f32 %v4129, %v4289
        %v4364 = vmul.f32 %v4131, %v4291
        %v4365 = vmul.f32 %v4133, %v4293
        %v4366 = vmul.f32 %v4135, %v4295
        %v4367 = vmul.f32 %v4137, %v4297
        %v4368 = vmul.f32 %v4139, %v4299
        %v4369 = vmul.f32 %v4141, %v4301
        %v4370 = vmul.f32 %v4143, %v4303
        %v4371 = vmul.f32 %v4145, %v4305
        %v4372 = vmul.f32 %v4147, %v4307
        %v4373 = vmul.f32 %v4149, %v4309
        %4406 = vrot.lane.b32.xlu0 %v4150, 32
        %v4407 = vpop.permute.xlu0 %4406
        %4408 = vrot.lane.b32.xlu0 %v4151, 32
        %v4409 = vpop.permute.xlu0 %4408
        %4410 = vrot.lane.b32.xlu0 %v4152, 32
        %v4411 = vpop.permute.xlu0 %4410
        %4412 = vrot.lane.b32.xlu0 %v4153, 32
        %v4413 = vpop.permute.xlu0 %4412
        %4414 = vrot.lane.b32.xlu0 %v4154, 32
        %v4415 = vpop.permute.xlu0 %4414
        %4416 = vrot.lane.b32.xlu0 %v4155, 32
        %v4417 = vpop.permute.xlu0 %4416
        %4418 = vrot.lane.b32.xlu0 %v4156, 32
        %v4419 = vpop.permute.xlu0 %4418
        %4420 = vrot.lane.b32.xlu0 %v4157, 32
        %v4421 = vpop.permute.xlu0 %4420
        %4422 = vrot.lane.b32.xlu0 %v4158, 32
        %v4423 = vpop.permute.xlu0 %4422
        %4424 = vrot.lane.b32.xlu0 %v4159, 32
        %v4425 = vpop.permute.xlu0 %4424
        %4426 = vrot.lane.b32.xlu0 %v4160, 32
        %v4427 = vpop.permute.xlu0 %4426
        %4428 = vrot.lane.b32.xlu0 %v4161, 32
        %v4429 = vpop.permute.xlu0 %4428
        %4430 = vrot.lane.b32.xlu0 %v4162, 32
        %v4431 = vpop.permute.xlu0 %4430
        %4432 = vrot.lane.b32.xlu0 %v4163, 32
        %v4433 = vpop.permute.xlu0 %4432
        %4434 = vrot.lane.b32.xlu0 %v4164, 32
        %v4435 = vpop.permute.xlu0 %4434
        %4436 = vrot.lane.b32.xlu0 %v4165, 32
        %v4437 = vpop.permute.xlu0 %4436
        %4438 = vrot.lane.b32.xlu0 %v4166, 32
        %v4439 = vpop.permute.xlu0 %4438
        %4440 = vrot.lane.b32.xlu0 %v4167, 32
        %v4441 = vpop.permute.xlu0 %4440
        %4442 = vrot.lane.b32.xlu0 %v4168, 32
        %v4443 = vpop.permute.xlu0 %4442
        %4444 = vrot.lane.b32.xlu0 %v4169, 32
        %v4445 = vpop.permute.xlu0 %4444
        %4446 = vrot.lane.b32.xlu0 %v4170, 32
        %v4447 = vpop.permute.xlu0 %4446
        %4448 = vrot.lane.b32.xlu0 %v4171, 32
        %v4449 = vpop.permute.xlu0 %4448
        %4450 = vrot.lane.b32.xlu0 %v4172, 32
        %v4451 = vpop.permute.xlu0 %4450
        %4452 = vrot.lane.b32.xlu0 %v4173, 32
        %v4453 = vpop.permute.xlu0 %4452
        %4454 = vrot.lane.b32.xlu0 %v4174, 32
        %v4455 = vpop.permute.xlu0 %4454
        %4456 = vrot.lane.b32.xlu0 %v4175, 32
        %v4457 = vpop.permute.xlu0 %4456
        %4458 = vrot.lane.b32.xlu0 %v4176, 32
        %v4459 = vpop.permute.xlu0 %4458
        %4460 = vrot.lane.b32.xlu0 %v4177, 32
        %v4461 = vpop.permute.xlu0 %4460
        %4462 = vrot.lane.b32.xlu0 %v4178, 32
        %v4463 = vpop.permute.xlu0 %4462
        %4464 = vrot.lane.b32.xlu0 %v4179, 32
        %v4465 = vpop.permute.xlu0 %4464
        %4466 = vrot.lane.b32.xlu0 %v4180, 32
        %v4467 = vpop.permute.xlu0 %4466
        %4468 = vrot.lane.b32.xlu0 %v4181, 32
        %v4469 = vpop.permute.xlu0 %4468
        %v4502 = vmul.f32 %v4087, %v4407
        %v4503 = vmul.f32 %v4089, %v4409
        %v4504 = vmul.f32 %v4091, %v4411
        %v4505 = vmul.f32 %v4093, %v4413
        %v4506 = vmul.f32 %v4095, %v4415
        %v4507 = vmul.f32 %v4097, %v4417
        %v4508 = vmul.f32 %v4099, %v4419
        %v4509 = vmul.f32 %v4101, %v4421
        %v4510 = vmul.f32 %v4103, %v4423
        %v4511 = vmul.f32 %v4105, %v4425
        %v4512 = vmul.f32 %v4107, %v4427
        %v4513 = vmul.f32 %v4109, %v4429
        %v4514 = vmul.f32 %v4111, %v4431
        %v4515 = vmul.f32 %v4113, %v4433
        %v4516 = vmul.f32 %v4115, %v4435
        %v4517 = vmul.f32 %v4117, %v4437
        %v4518 = vmul.f32 %v4119, %v4439
        %v4519 = vmul.f32 %v4121, %v4441
        %v4520 = vmul.f32 %v4123, %v4443
        %v4521 = vmul.f32 %v4125, %v4445
        %v4522 = vmul.f32 %v4127, %v4447
        %v4523 = vmul.f32 %v4129, %v4449
        %v4524 = vmul.f32 %v4131, %v4451
        %v4525 = vmul.f32 %v4133, %v4453
        %v4526 = vmul.f32 %v4135, %v4455
        %v4527 = vmul.f32 %v4137, %v4457
        %v4528 = vmul.f32 %v4139, %v4459
        %v4529 = vmul.f32 %v4141, %v4461
        %v4530 = vmul.f32 %v4143, %v4463
        %v4531 = vmul.f32 %v4145, %v4465
        %v4532 = vmul.f32 %v4147, %v4467
        %v4533 = vmul.f32 %v4149, %v4469
        %4566 = vrot.lane.b32.xlu0 %v4502, 32
        %v4567 = vpop.permute.xlu0 %4566
        %4568 = vrot.lane.b32.xlu0 %v4503, 32
        %v4569 = vpop.permute.xlu0 %4568
        %4570 = vrot.lane.b32.xlu0 %v4504, 32
        %v4571 = vpop.permute.xlu0 %4570
        %4572 = vrot.lane.b32.xlu0 %v4505, 32
        %v4573 = vpop.permute.xlu0 %4572
        %4574 = vrot.lane.b32.xlu0 %v4506, 32
        %v4575 = vpop.permute.xlu0 %4574
        %4576 = vrot.lane.b32.xlu0 %v4507, 32
        %v4577 = vpop.permute.xlu0 %4576
        %4578 = vrot.lane.b32.xlu0 %v4508, 32
        %v4579 = vpop.permute.xlu0 %4578
        %4580 = vrot.lane.b32.xlu0 %v4509, 32
        %v4581 = vpop.permute.xlu0 %4580
        %4582 = vrot.lane.b32.xlu0 %v4510, 32
        %v4583 = vpop.permute.xlu0 %4582
        %4584 = vrot.lane.b32.xlu0 %v4511, 32
        %v4585 = vpop.permute.xlu0 %4584
        %4586 = vrot.lane.b32.xlu0 %v4512, 32
        %v4587 = vpop.permute.xlu0 %4586
        %4588 = vrot.lane.b32.xlu0 %v4513, 32
        %v4589 = vpop.permute.xlu0 %4588
        %4590 = vrot.lane.b32.xlu0 %v4514, 32
        %v4591 = vpop.permute.xlu0 %4590
        %4592 = vrot.lane.b32.xlu0 %v4515, 32
        %v4593 = vpop.permute.xlu0 %4592
        %4594 = vrot.lane.b32.xlu0 %v4516, 32
        %v4595 = vpop.permute.xlu0 %4594
        %4596 = vrot.lane.b32.xlu0 %v4517, 32
        %v4597 = vpop.permute.xlu0 %4596
        %4598 = vrot.lane.b32.xlu0 %v4518, 32
        %v4599 = vpop.permute.xlu0 %4598
        %4600 = vrot.lane.b32.xlu0 %v4519, 32
        %v4601 = vpop.permute.xlu0 %4600
        %4602 = vrot.lane.b32.xlu0 %v4520, 32
        %v4603 = vpop.permute.xlu0 %4602
        %4604 = vrot.lane.b32.xlu0 %v4521, 32
        %v4605 = vpop.permute.xlu0 %4604
        %4606 = vrot.lane.b32.xlu0 %v4522, 32
        %v4607 = vpop.permute.xlu0 %4606
        %4608 = vrot.lane.b32.xlu0 %v4523, 32
        %v4609 = vpop.permute.xlu0 %4608
        %4610 = vrot.lane.b32.xlu0 %v4524, 32
        %v4611 = vpop.permute.xlu0 %4610
        %4612 = vrot.lane.b32.xlu0 %v4525, 32
        %v4613 = vpop.permute.xlu0 %4612
        %4614 = vrot.lane.b32.xlu0 %v4526, 32
        %v4615 = vpop.permute.xlu0 %4614
        %4616 = vrot.lane.b32.xlu0 %v4527, 32
        %v4617 = vpop.permute.xlu0 %4616
        %4618 = vrot.lane.b32.xlu0 %v4528, 32
        %v4619 = vpop.permute.xlu0 %4618
        %4620 = vrot.lane.b32.xlu0 %v4529, 32
        %v4621 = vpop.permute.xlu0 %4620
        %4622 = vrot.lane.b32.xlu0 %v4530, 32
        %v4623 = vpop.permute.xlu0 %4622
        %4624 = vrot.lane.b32.xlu0 %v4531, 32
        %v4625 = vpop.permute.xlu0 %4624
        %4626 = vrot.lane.b32.xlu0 %v4532, 32
        %v4627 = vpop.permute.xlu0 %4626
        %4628 = vrot.lane.b32.xlu0 %v4533, 32
        %v4629 = vpop.permute.xlu0 %4628
        %v4662 = vadd.f32 %v4342, %v4567
        %v4663 = vadd.f32 %v4343, %v4569
        %v4664 = vadd.f32 %v4344, %v4571
        %v4665 = vadd.f32 %v4345, %v4573
        %v4666 = vadd.f32 %v4346, %v4575
        %v4667 = vadd.f32 %v4347, %v4577
        %v4668 = vadd.f32 %v4348, %v4579
        %v4669 = vadd.f32 %v4349, %v4581
        %v4670 = vadd.f32 %v4350, %v4583
        %v4671 = vadd.f32 %v4351, %v4585
        %v4672 = vadd.f32 %v4352, %v4587
        %v4673 = vadd.f32 %v4353, %v4589
        %v4674 = vadd.f32 %v4354, %v4591
        %v4675 = vadd.f32 %v4355, %v4593
        %v4676 = vadd.f32 %v4356, %v4595
        %v4677 = vadd.f32 %v4357, %v4597
        %v4678 = vadd.f32 %v4358, %v4599
        %v4679 = vadd.f32 %v4359, %v4601
        %v4680 = vadd.f32 %v4360, %v4603
        %v4681 = vadd.f32 %v4361, %v4605
        %v4682 = vadd.f32 %v4362, %v4607
        %v4683 = vadd.f32 %v4363, %v4609
        %v4684 = vadd.f32 %v4364, %v4611
        %v4685 = vadd.f32 %v4365, %v4613
        %v4686 = vadd.f32 %v4366, %v4615
        %v4687 = vadd.f32 %v4367, %v4617
        %v4688 = vadd.f32 %v4368, %v4619
        %v4689 = vadd.f32 %v4369, %v4621
        %v4690 = vadd.f32 %v4370, %v4623
        %v4691 = vadd.f32 %v4371, %v4625
        %v4692 = vadd.f32 %v4372, %v4627
        %v4693 = vadd.f32 %v4373, %v4629
        %v4694 = vtanh.pop %v4662
        %v4695 = vtanh.pop %v4663
        %v4696 = vtanh.pop %v4664
        %v4697 = vtanh.pop %v4665
        %v4698 = vtanh.pop %v4666
        %v4699 = vtanh.pop %v4667
        %v4700 = vtanh.pop %v4668
        %v4701 = vtanh.pop %v4669
        %v4702 = vtanh.pop %v4670
        %v4703 = vtanh.pop %v4671
        %v4704 = vtanh.pop %v4672
        %v4705 = vtanh.pop %v4673
        %v4706 = vtanh.pop %v4674
        %v4707 = vtanh.pop %v4675
        %v4708 = vtanh.pop %v4676
        %v4709 = vtanh.pop %v4677
        %v4710 = vtanh.pop %v4678
        %v4711 = vtanh.pop %v4679
        %v4712 = vtanh.pop %v4680
        %v4713 = vtanh.pop %v4681
        %v4714 = vtanh.pop %v4682
        %v4715 = vtanh.pop %v4683
        %v4716 = vtanh.pop %v4684
        %v4717 = vtanh.pop %v4685
        %v4718 = vtanh.pop %v4686
        %v4719 = vtanh.pop %v4687
        %v4720 = vtanh.pop %v4688
        %v4721 = vtanh.pop %v4689
        %v4722 = vtanh.pop %v4690
        %v4723 = vtanh.pop %v4691
        %v4724 = vtanh.pop %v4692
        %v4725 = vtanh.pop %v4693
        %4758 = vrot.lane.b32.xlu0 %v4694, 32
        %v4759 = vpop.permute.xlu0 %4758
        %4760 = vrot.lane.b32.xlu0 %v4695, 32
        %v4761 = vpop.permute.xlu0 %4760
        %4762 = vrot.lane.b32.xlu0 %v4696, 32
        %v4763 = vpop.permute.xlu0 %4762
        %4764 = vrot.lane.b32.xlu0 %v4697, 32
        %v4765 = vpop.permute.xlu0 %4764
        %4766 = vrot.lane.b32.xlu0 %v4698, 32
        %v4767 = vpop.permute.xlu0 %4766
        %4768 = vrot.lane.b32.xlu0 %v4699, 32
        %v4769 = vpop.permute.xlu0 %4768
        %4770 = vrot.lane.b32.xlu0 %v4700, 32
        %v4771 = vpop.permute.xlu0 %4770
        %4772 = vrot.lane.b32.xlu0 %v4701, 32
        %v4773 = vpop.permute.xlu0 %4772
        %4774 = vrot.lane.b32.xlu0 %v4702, 32
        %v4775 = vpop.permute.xlu0 %4774
        %4776 = vrot.lane.b32.xlu0 %v4703, 32
        %v4777 = vpop.permute.xlu0 %4776
        %4778 = vrot.lane.b32.xlu0 %v4704, 32
        %v4779 = vpop.permute.xlu0 %4778
        %4780 = vrot.lane.b32.xlu0 %v4705, 32
        %v4781 = vpop.permute.xlu0 %4780
        %4782 = vrot.lane.b32.xlu0 %v4706, 32
        %v4783 = vpop.permute.xlu0 %4782
        %4784 = vrot.lane.b32.xlu0 %v4707, 32
        %v4785 = vpop.permute.xlu0 %4784
        %4786 = vrot.lane.b32.xlu0 %v4708, 32
        %v4787 = vpop.permute.xlu0 %4786
        %4788 = vrot.lane.b32.xlu0 %v4709, 32
        %v4789 = vpop.permute.xlu0 %4788
        %4790 = vrot.lane.b32.xlu0 %v4710, 32
        %v4791 = vpop.permute.xlu0 %4790
        %4792 = vrot.lane.b32.xlu0 %v4711, 32
        %v4793 = vpop.permute.xlu0 %4792
        %4794 = vrot.lane.b32.xlu0 %v4712, 32
        %v4795 = vpop.permute.xlu0 %4794
        %4796 = vrot.lane.b32.xlu0 %v4713, 32
        %v4797 = vpop.permute.xlu0 %4796
        %4798 = vrot.lane.b32.xlu0 %v4714, 32
        %v4799 = vpop.permute.xlu0 %4798
        %4800 = vrot.lane.b32.xlu0 %v4715, 32
        %v4801 = vpop.permute.xlu0 %4800
        %4802 = vrot.lane.b32.xlu0 %v4716, 32
        %v4803 = vpop.permute.xlu0 %4802
        %4804 = vrot.lane.b32.xlu0 %v4717, 32
        %v4805 = vpop.permute.xlu0 %4804
        %4806 = vrot.lane.b32.xlu0 %v4718, 32
        %v4807 = vpop.permute.xlu0 %4806
        %4808 = vrot.lane.b32.xlu0 %v4719, 32
        %v4809 = vpop.permute.xlu0 %4808
        %4810 = vrot.lane.b32.xlu0 %v4720, 32
        %v4811 = vpop.permute.xlu0 %4810
        %4812 = vrot.lane.b32.xlu0 %v4721, 32
        %v4813 = vpop.permute.xlu0 %4812
        %4814 = vrot.lane.b32.xlu0 %v4722, 32
        %v4815 = vpop.permute.xlu0 %4814
        %4816 = vrot.lane.b32.xlu0 %v4723, 32
        %v4817 = vpop.permute.xlu0 %4816
        %4818 = vrot.lane.b32.xlu0 %v4724, 32
        %v4819 = vpop.permute.xlu0 %4818
        %4820 = vrot.lane.b32.xlu0 %v4725, 32
        %v4821 = vpop.permute.xlu0 %4820
        %v4854 = vmul.f32 %v4087, %v4759
        %v4855 = vmul.f32 %v4089, %v4761
        %v4856 = vmul.f32 %v4091, %v4763
        %v4857 = vmul.f32 %v4093, %v4765
        %v4858 = vmul.f32 %v4095, %v4767
        %v4859 = vmul.f32 %v4097, %v4769
        %v4860 = vmul.f32 %v4099, %v4771
        %v4861 = vmul.f32 %v4101, %v4773
        %v4862 = vmul.f32 %v4103, %v4775
        %v4863 = vmul.f32 %v4105, %v4777
        %v4864 = vmul.f32 %v4107, %v4779
        %v4865 = vmul.f32 %v4109, %v4781
        %v4866 = vmul.f32 %v4111, %v4783
        %v4867 = vmul.f32 %v4113, %v4785
        %v4868 = vmul.f32 %v4115, %v4787
        %v4869 = vmul.f32 %v4117, %v4789
        %v4870 = vmul.f32 %v4119, %v4791
        %v4871 = vmul.f32 %v4121, %v4793
        %v4872 = vmul.f32 %v4123, %v4795
        %v4873 = vmul.f32 %v4125, %v4797
        %v4874 = vmul.f32 %v4127, %v4799
        %v4875 = vmul.f32 %v4129, %v4801
        %v4876 = vmul.f32 %v4131, %v4803
        %v4877 = vmul.f32 %v4133, %v4805
        %v4878 = vmul.f32 %v4135, %v4807
        %v4879 = vmul.f32 %v4137, %v4809
        %v4880 = vmul.f32 %v4139, %v4811
        %v4881 = vmul.f32 %v4141, %v4813
        %v4882 = vmul.f32 %v4143, %v4815
        %v4883 = vmul.f32 %v4145, %v4817
        %v4884 = vmul.f32 %v4147, %v4819
        %v4885 = vmul.f32 %v4149, %v4821
        %4918 = vrot.lane.b32.xlu0 %v4662, 96
        %v4919 = vpop.permute.xlu0 %4918
        %4920 = vrot.lane.b32.xlu0 %v4663, 96
        %v4921 = vpop.permute.xlu0 %4920
        %4922 = vrot.lane.b32.xlu0 %v4664, 96
        %v4923 = vpop.permute.xlu0 %4922
        %4924 = vrot.lane.b32.xlu0 %v4665, 96
        %v4925 = vpop.permute.xlu0 %4924
        %4926 = vrot.lane.b32.xlu0 %v4666, 96
        %v4927 = vpop.permute.xlu0 %4926
        %4928 = vrot.lane.b32.xlu0 %v4667, 96
        %v4929 = vpop.permute.xlu0 %4928
        %4930 = vrot.lane.b32.xlu0 %v4668, 96
        %v4931 = vpop.permute.xlu0 %4930
        %4932 = vrot.lane.b32.xlu0 %v4669, 96
        %v4933 = vpop.permute.xlu0 %4932
        %4934 = vrot.lane.b32.xlu0 %v4670, 96
        %v4935 = vpop.permute.xlu0 %4934
        %4936 = vrot.lane.b32.xlu0 %v4671, 96
        %v4937 = vpop.permute.xlu0 %4936
        %4938 = vrot.lane.b32.xlu0 %v4672, 96
        %v4939 = vpop.permute.xlu0 %4938
        %4940 = vrot.lane.b32.xlu0 %v4673, 96
        %v4941 = vpop.permute.xlu0 %4940
        %4942 = vrot.lane.b32.xlu0 %v4674, 96
        %v4943 = vpop.permute.xlu0 %4942
        %4944 = vrot.lane.b32.xlu0 %v4675, 96
        %v4945 = vpop.permute.xlu0 %4944
        %4946 = vrot.lane.b32.xlu0 %v4676, 96
        %v4947 = vpop.permute.xlu0 %4946
        %4948 = vrot.lane.b32.xlu0 %v4677, 96
        %v4949 = vpop.permute.xlu0 %4948
        %4950 = vrot.lane.b32.xlu0 %v4678, 96
        %v4951 = vpop.permute.xlu0 %4950
        %4952 = vrot.lane.b32.xlu0 %v4679, 96
        %v4953 = vpop.permute.xlu0 %4952
        %4954 = vrot.lane.b32.xlu0 %v4680, 96
        %v4955 = vpop.permute.xlu0 %4954
        %4956 = vrot.lane.b32.xlu0 %v4681, 96
        %v4957 = vpop.permute.xlu0 %4956
        %4958 = vrot.lane.b32.xlu0 %v4682, 96
        %v4959 = vpop.permute.xlu0 %4958
        %4960 = vrot.lane.b32.xlu0 %v4683, 96
        %v4961 = vpop.permute.xlu0 %4960
        %4962 = vrot.lane.b32.xlu0 %v4684, 96
        %v4963 = vpop.permute.xlu0 %4962
        %4964 = vrot.lane.b32.xlu0 %v4685, 96
        %v4965 = vpop.permute.xlu0 %4964
        %4966 = vrot.lane.b32.xlu0 %v4686, 96
        %v4967 = vpop.permute.xlu0 %4966
        %4968 = vrot.lane.b32.xlu0 %v4687, 96
        %v4969 = vpop.permute.xlu0 %4968
        %4970 = vrot.lane.b32.xlu0 %v4688, 96
        %v4971 = vpop.permute.xlu0 %4970
        %4972 = vrot.lane.b32.xlu0 %v4689, 96
        %v4973 = vpop.permute.xlu0 %4972
        %4974 = vrot.lane.b32.xlu0 %v4690, 96
        %v4975 = vpop.permute.xlu0 %4974
        %4976 = vrot.lane.b32.xlu0 %v4691, 96
        %v4977 = vpop.permute.xlu0 %4976
        %4978 = vrot.lane.b32.xlu0 %v4692, 96
        %v4979 = vpop.permute.xlu0 %4978
        %4980 = vrot.lane.b32.xlu0 %v4693, 96
        %v4981 = vpop.permute.xlu0 %4980
        %5014 = vst.msk [vmem:[%s226] sm:$0xff] %vm371, %v4919
        %5015 = vst.msk [vmem:[%s226 + $0x8] sm:$0xff] %vm371, %v4921
        %5016 = vst.msk [vmem:[%s226 + $0x10] sm:$0xff] %vm371, %v4923
        %5017 = vst.msk [vmem:[%s226 + $0x18] sm:$0xff] %vm371, %v4925
        %5018 = vst.msk [vmem:[%s226 + $0x20] sm:$0xff] %vm371, %v4927
        %5019 = vst.msk [vmem:[%s226 + $0x28] sm:$0xff] %vm371, %v4929
        %5020 = vst.msk [vmem:[%s226 + $0x30] sm:$0xff] %vm371, %v4931
        %5021 = vst.msk [vmem:[%s226 + $0x38] sm:$0xff] %vm371, %v4933
        %5022 = vst.msk [vmem:[%s226 + $0x40] sm:$0xff] %vm371, %v4935
        %5023 = vst.msk [vmem:[%s226 + $0x48] sm:$0xff] %vm371, %v4937
        %5024 = vst.msk [vmem:[%s226 + $0x50] sm:$0xff] %vm371, %v4939
        %5025 = vst.msk [vmem:[%s226 + $0x58] sm:$0xff] %vm371, %v4941
        %5026 = vst.msk [vmem:[%s226 + $0x60] sm:$0xff] %vm371, %v4943
        %5027 = vst.msk [vmem:[%s226 + $0x68] sm:$0xff] %vm371, %v4945
        %5028 = vst.msk [vmem:[%s226 + $0x70] sm:$0xff] %vm371, %v4947
        %5029 = vst.msk [vmem:[%s226 + $0x78] sm:$0xff] %vm371, %v4949
        %5030 = vst.msk [vmem:[%s226 + $0x80] sm:$0xff] %vm371, %v4951
        %5031 = vst.msk [vmem:[%s226 + $0x88] sm:$0xff] %vm371, %v4953
        %5032 = vst.msk [vmem:[%s226 + $0x90] sm:$0xff] %vm371, %v4955
        %5033 = vst.msk [vmem:[%s226 + $0x98] sm:$0xff] %vm371, %v4957
        %5034 = vst.msk [vmem:[%s226 + $0xa0] sm:$0xff] %vm371, %v4959
        %5035 = vst.msk [vmem:[%s226 + $0xa8] sm:$0xff] %vm371, %v4961
        %5036 = vst.msk [vmem:[%s226 + $0xb0] sm:$0xff] %vm371, %v4963
        %5037 = vst.msk [vmem:[%s226 + $0xb8] sm:$0xff] %vm371, %v4965
        %5038 = vst.msk [vmem:[%s226 + $0xc0] sm:$0xff] %vm371, %v4967
        %5039 = vst.msk [vmem:[%s226 + $0xc8] sm:$0xff] %vm371, %v4969
        %5040 = vst.msk [vmem:[%s226 + $0xd0] sm:$0xff] %vm371, %v4971
        %5041 = vst.msk [vmem:[%s226 + $0xd8] sm:$0xff] %vm371, %v4973
        %5042 = vst.msk [vmem:[%s226 + $0xe0] sm:$0xff] %vm371, %v4975
        %5043 = vst.msk [vmem:[%s226 + $0xe8] sm:$0xff] %vm371, %v4977
        %5044 = vst.msk [vmem:[%s226 + $0xf0] sm:$0xff] %vm371, %v4979
        %5045 = vst.msk [vmem:[%s226 + $0xf8] sm:$0xff] %vm371, %v4981
        %5078 = vrot.lane.b32.xlu0 %v4854, 64
        %v5079 = vpop.permute.xlu0 %5078
        %5080 = vrot.lane.b32.xlu0 %v4855, 64
        %v5081 = vpop.permute.xlu0 %5080
        %5082 = vrot.lane.b32.xlu0 %v4856, 64
        %v5083 = vpop.permute.xlu0 %5082
        %5084 = vrot.lane.b32.xlu0 %v4857, 64
        %v5085 = vpop.permute.xlu0 %5084
        %5086 = vrot.lane.b32.xlu0 %v4858, 64
        %v5087 = vpop.permute.xlu0 %5086
        %5088 = vrot.lane.b32.xlu0 %v4859, 64
        %v5089 = vpop.permute.xlu0 %5088
        %5090 = vrot.lane.b32.xlu0 %v4860, 64
        %v5091 = vpop.permute.xlu0 %5090
        %5092 = vrot.lane.b32.xlu0 %v4861, 64
        %v5093 = vpop.permute.xlu0 %5092
        %5094 = vrot.lane.b32.xlu0 %v4862, 64
        %v5095 = vpop.permute.xlu0 %5094
        %5096 = vrot.lane.b32.xlu0 %v4863, 64
        %v5097 = vpop.permute.xlu0 %5096
        %5098 = vrot.lane.b32.xlu0 %v4864, 64
        %v5099 = vpop.permute.xlu0 %5098
        %5100 = vrot.lane.b32.xlu0 %v4865, 64
        %v5101 = vpop.permute.xlu0 %5100
        %5102 = vrot.lane.b32.xlu0 %v4866, 64
        %v5103 = vpop.permute.xlu0 %5102
        %5104 = vrot.lane.b32.xlu0 %v4867, 64
        %v5105 = vpop.permute.xlu0 %5104
        %5106 = vrot.lane.b32.xlu0 %v4868, 64
        %v5107 = vpop.permute.xlu0 %5106
        %5108 = vrot.lane.b32.xlu0 %v4869, 64
        %v5109 = vpop.permute.xlu0 %5108
        %5110 = vrot.lane.b32.xlu0 %v4870, 64
        %v5111 = vpop.permute.xlu0 %5110
        %5112 = vrot.lane.b32.xlu0 %v4871, 64
        %v5113 = vpop.permute.xlu0 %5112
        %5114 = vrot.lane.b32.xlu0 %v4872, 64
        %v5115 = vpop.permute.xlu0 %5114
        %5116 = vrot.lane.b32.xlu0 %v4873, 64
        %v5117 = vpop.permute.xlu0 %5116
        %5118 = vrot.lane.b32.xlu0 %v4874, 64
        %v5119 = vpop.permute.xlu0 %5118
        %5120 = vrot.lane.b32.xlu0 %v4875, 64
        %v5121 = vpop.permute.xlu0 %5120
        %5122 = vrot.lane.b32.xlu0 %v4876, 64
        %v5123 = vpop.permute.xlu0 %5122
        %5124 = vrot.lane.b32.xlu0 %v4877, 64
        %v5125 = vpop.permute.xlu0 %5124
        %5126 = vrot.lane.b32.xlu0 %v4878, 64
        %v5127 = vpop.permute.xlu0 %5126
        %5128 = vrot.lane.b32.xlu0 %v4879, 64
        %v5129 = vpop.permute.xlu0 %5128
        %5130 = vrot.lane.b32.xlu0 %v4880, 64
        %v5131 = vpop.permute.xlu0 %5130
        %5132 = vrot.lane.b32.xlu0 %v4881, 64
        %v5133 = vpop.permute.xlu0 %5132
        %5134 = vrot.lane.b32.xlu0 %v4882, 64
        %v5135 = vpop.permute.xlu0 %5134
        %5136 = vrot.lane.b32.xlu0 %v4883, 64
        %v5137 = vpop.permute.xlu0 %5136
        %5138 = vrot.lane.b32.xlu0 %v4884, 64
        %v5139 = vpop.permute.xlu0 %5138
        %5140 = vrot.lane.b32.xlu0 %v4885, 64
        %v5141 = vpop.permute.xlu0 %5140
        %5174 = vst.msk [vmem:[%s244] sm:$0xff] %vm371, %v5079
        %5175 = vst.msk [vmem:[%s244 + $0x8] sm:$0xff] %vm371, %v5081
        %5176 = vst.msk [vmem:[%s244 + $0x10] sm:$0xff] %vm371, %v5083
        %5177 = vst.msk [vmem:[%s244 + $0x18] sm:$0xff] %vm371, %v5085
        %5178 = vst.msk [vmem:[%s244 + $0x20] sm:$0xff] %vm371, %v5087
        %5179 = vst.msk [vmem:[%s244 + $0x28] sm:$0xff] %vm371, %v5089
        %5180 = vst.msk [vmem:[%s244 + $0x30] sm:$0xff] %vm371, %v5091
        %5181 = vst.msk [vmem:[%s244 + $0x38] sm:$0xff] %vm371, %v5093
        %5182 = vst.msk [vmem:[%s244 + $0x40] sm:$0xff] %vm371, %v5095
        %5183 = vst.msk [vmem:[%s244 + $0x48] sm:$0xff] %vm371, %v5097
        %5184 = vst.msk [vmem:[%s244 + $0x50] sm:$0xff] %vm371, %v5099
        %5185 = vst.msk [vmem:[%s244 + $0x58] sm:$0xff] %vm371, %v5101
        %5186 = vst.msk [vmem:[%s244 + $0x60] sm:$0xff] %vm371, %v5103
        %5187 = vst.msk [vmem:[%s244 + $0x68] sm:$0xff] %vm371, %v5105
        %5188 = vst.msk [vmem:[%s244 + $0x70] sm:$0xff] %vm371, %v5107
        %5189 = vst.msk [vmem:[%s244 + $0x78] sm:$0xff] %vm371, %v5109
        %5190 = vst.msk [vmem:[%s244 + $0x80] sm:$0xff] %vm371, %v5111
        %5191 = vst.msk [vmem:[%s244 + $0x88] sm:$0xff] %vm371, %v5113
        %5192 = vst.msk [vmem:[%s244 + $0x90] sm:$0xff] %vm371, %v5115
        %5193 = vst.msk [vmem:[%s244 + $0x98] sm:$0xff] %vm371, %v5117
        %5194 = vst.msk [vmem:[%s244 + $0xa0] sm:$0xff] %vm371, %v5119
        %5195 = vst.msk [vmem:[%s244 + $0xa8] sm:$0xff] %vm371, %v5121
        %5196 = vst.msk [vmem:[%s244 + $0xb0] sm:$0xff] %vm371, %v5123
        %5197 = vst.msk [vmem:[%s244 + $0xb8] sm:$0xff] %vm371, %v5125
        %5198 = vst.msk [vmem:[%s244 + $0xc0] sm:$0xff] %vm371, %v5127
        %5199 = vst.msk [vmem:[%s244 + $0xc8] sm:$0xff] %vm371, %v5129
        %5200 = vst.msk [vmem:[%s244 + $0xd0] sm:$0xff] %vm371, %v5131
        %5201 = vst.msk [vmem:[%s244 + $0xd8] sm:$0xff] %vm371, %v5133
        %5202 = vst.msk [vmem:[%s244 + $0xe0] sm:$0xff] %vm371, %v5135
        %5203 = vst.msk [vmem:[%s244 + $0xe8] sm:$0xff] %vm371, %v5137
        %5204 = vst.msk [vmem:[%s244 + $0xf0] sm:$0xff] %vm371, %v5139
        %5205 = vst.msk [vmem:[%s244 + $0xf8] sm:$0xff] %vm371, %v5141
        %5206 = vrot.lane.b32.xlu0 %v4854, 96
        %v5207 = vpop.permute.xlu0 %5206
        %5208 = vrot.lane.b32.xlu0 %v4855, 96
        %v5209 = vpop.permute.xlu0 %5208
        %5210 = vrot.lane.b32.xlu0 %v4856, 96
        %v5211 = vpop.permute.xlu0 %5210
        %5212 = vrot.lane.b32.xlu0 %v4857, 96
        %v5213 = vpop.permute.xlu0 %5212
        %5214 = vrot.lane.b32.xlu0 %v4858, 96
        %v5215 = vpop.permute.xlu0 %5214
        %5216 = vrot.lane.b32.xlu0 %v4859, 96
        %v5217 = vpop.permute.xlu0 %5216
        %5218 = vrot.lane.b32.xlu0 %v4860, 96
        %v5219 = vpop.permute.xlu0 %5218
        %5220 = vrot.lane.b32.xlu0 %v4861, 96
        %v5221 = vpop.permute.xlu0 %5220
        %5222 = vrot.lane.b32.xlu0 %v4862, 96
        %v5223 = vpop.permute.xlu0 %5222
        %5224 = vrot.lane.b32.xlu0 %v4863, 96
        %v5225 = vpop.permute.xlu0 %5224
        %5226 = vrot.lane.b32.xlu0 %v4864, 96
        %v5227 = vpop.permute.xlu0 %5226
        %5228 = vrot.lane.b32.xlu0 %v4865, 96
        %v5229 = vpop.permute.xlu0 %5228
        %5230 = vrot.lane.b32.xlu0 %v4866, 96
        %v5231 = vpop.permute.xlu0 %5230
        %5232 = vrot.lane.b32.xlu0 %v4867, 96
        %v5233 = vpop.permute.xlu0 %5232
        %5234 = vrot.lane.b32.xlu0 %v4868, 96
        %v5235 = vpop.permute.xlu0 %5234
        %5236 = vrot.lane.b32.xlu0 %v4869, 96
        %v5237 = vpop.permute.xlu0 %5236
        %5238 = vrot.lane.b32.xlu0 %v4870, 96
        %v5239 = vpop.permute.xlu0 %5238
        %5240 = vrot.lane.b32.xlu0 %v4871, 96
        %v5241 = vpop.permute.xlu0 %5240
        %5242 = vrot.lane.b32.xlu0 %v4872, 96
        %v5243 = vpop.permute.xlu0 %5242
        %5244 = vrot.lane.b32.xlu0 %v4873, 96
        %v5245 = vpop.permute.xlu0 %5244
        %5246 = vrot.lane.b32.xlu0 %v4874, 96
        %v5247 = vpop.permute.xlu0 %5246
        %5248 = vrot.lane.b32.xlu0 %v4875, 96
        %v5249 = vpop.permute.xlu0 %5248
        %5250 = vrot.lane.b32.xlu0 %v4876, 96
        %v5251 = vpop.permute.xlu0 %5250
        %5252 = vrot.lane.b32.xlu0 %v4877, 96
        %v5253 = vpop.permute.xlu0 %5252
        %5254 = vrot.lane.b32.xlu0 %v4878, 96
        %v5255 = vpop.permute.xlu0 %5254
        %5256 = vrot.lane.b32.xlu0 %v4879, 96
        %v5257 = vpop.permute.xlu0 %5256
        %5258 = vrot.lane.b32.xlu0 %v4880, 96
        %v5259 = vpop.permute.xlu0 %5258
        %5260 = vrot.lane.b32.xlu0 %v4881, 96
        %v5261 = vpop.permute.xlu0 %5260
        %5262 = vrot.lane.b32.xlu0 %v4882, 96
        %v5263 = vpop.permute.xlu0 %5262
        %5264 = vrot.lane.b32.xlu0 %v4883, 96
        %v5265 = vpop.permute.xlu0 %5264
        %5266 = vrot.lane.b32.xlu0 %v4884, 96
        %v5267 = vpop.permute.xlu0 %5266
        %5268 = vrot.lane.b32.xlu0 %v4885, 96
        %v5269 = vpop.permute.xlu0 %5268
        %vm5302 = vcmask 523520
        %5303 = vst.msk [vmem:[%s370 + $0x1] sm:$0xff] %vm5302, %v5207
        %5304 = vst.msk [vmem:[%s370 + $0x9] sm:$0xff] %vm5302, %v5209
        %5305 = vst.msk [vmem:[%s370 + $0x19] sm:$0xff] %vm5302, %v5211
        %5306 = vst.msk [vmem:[%s370 + $0x21] sm:$0xff] %vm5302, %v5213
        %5307 = vst.msk [vmem:[%s370 + $0x31] sm:$0xff] %vm5302, %v5215
        %5308 = vst.msk [vmem:[%s370 + $0x39] sm:$0xff] %vm5302, %v5217
        %5309 = vst.msk [vmem:[%s370 + $0x49] sm:$0xff] %vm5302, %v5219
        %5310 = vst.msk [vmem:[%s370 + $0x51] sm:$0xff] %vm5302, %v5221
        %5311 = vst.msk [vmem:[%s370 + $0x61] sm:$0xff] %vm5302, %v5223
        %5312 = vst.msk [vmem:[%s370 + $0x69] sm:$0xff] %vm5302, %v5225
        %5313 = vst.msk [vmem:[%s370 + $0x79] sm:$0xff] %vm5302, %v5227
        %5314 = vst.msk [vmem:[%s370 + $0x81] sm:$0xff] %vm5302, %v5229
        %5315 = vst.msk [vmem:[%s370 + $0x91] sm:$0xff] %vm5302, %v5231
        %5316 = vst.msk [vmem:[%s370 + $0x99] sm:$0xff] %vm5302, %v5233
        %5317 = vst.msk [vmem:[%s370 + $0xa9] sm:$0xff] %vm5302, %v5235
        %5318 = vst.msk [vmem:[%s370 + $0xb1] sm:$0xff] %vm5302, %v5237
        %5319 = vst.msk [vmem:[%s370 + $0xc1] sm:$0xff] %vm5302, %v5239
        %5320 = vst.msk [vmem:[%s370 + $0xc9] sm:$0xff] %vm5302, %v5241
        %5321 = vst.msk [vmem:[%s370 + $0xd9] sm:$0xff] %vm5302, %v5243
        %5322 = vst.msk [vmem:[%s370 + $0xe1] sm:$0xff] %vm5302, %v5245
        %5323 = vst.msk [vmem:[%s370 + $0xf1] sm:$0xff] %vm5302, %v5247
        %5324 = vst.msk [vmem:[%s370 + $0xf9] sm:$0xff] %vm5302, %v5249
        %5325 = vst.msk [vmem:[%s370 + $0x109] sm:$0xff] %vm5302, %v5251
        %5326 = vst.msk [vmem:[%s370 + $0x111] sm:$0xff] %vm5302, %v5253
        %5327 = vst.msk [vmem:[%s370 + $0x121] sm:$0xff] %vm5302, %v5255
        %5328 = vst.msk [vmem:[%s370 + $0x129] sm:$0xff] %vm5302, %v5257
        %5329 = vst.msk [vmem:[%s370 + $0x139] sm:$0xff] %vm5302, %v5259
        %5330 = vst.msk [vmem:[%s370 + $0x141] sm:$0xff] %vm5302, %v5261
        %5331 = vst.msk [vmem:[%s370 + $0x151] sm:$0xff] %vm5302, %v5263
        %5332 = vst.msk [vmem:[%s370 + $0x159] sm:$0xff] %vm5302, %v5265
        %5333 = vst.msk [vmem:[%s370 + $0x169] sm:$0xff] %vm5302, %v5267
        %5334 = vst.msk [vmem:[%s370 + $0x171] sm:$0xff] %vm5302, %v5269
        %p5335 = scmp.lt.s32.totalorder %s24, 7
        %s5336 = scalar_select %p5335, %s24, 7
        %p5337 = scmp.lt.s32.totalorder %s23, 1
        %s5338 = scalar_select %p5337, %s23, 1
        %s5339 = smul.addr %s5338, 32
        %s5340 = smul.addr %s5336, 64
        %s5341 = sadd.s32 %s5339, %s5340
        %s5342 = smul.addr %s5341, 8
        %s5343 = scalar_lea.vmem %s3, %s5342
        %s5344 = sand.u32 %s137, 1
        %s5345 = scalar_lea.sflag [#allocation4], %s5344
        %s5346 = sand.u32 %s137, 1
        %s5347 = smul.addr %s5346, 256
        %s5348 = scalar_lea.vmem [#allocation3], %s5347
        // Predicated region
        $region37: #{convlstm_forward.3} parent=31 // pred_check
          %p5349 = pneg %p121
        $region38: #{convlstm_forward.3} parent=31 // pred_check_branch
          %5351 = sbr.rel (%p5349) target = $region40
        $region39: #{convlstm_forward.3} parent=31 // pred_region
          _
        $region40: #{convlstm_forward.3} parent=31 // pred_fallthru
          _
        // Predicated region
        $region41: #{convlstm_forward.3} parent=31 // pred_check
          %p5352 = pneg %p147
        $region42: #{convlstm_forward.3} parent=31 // pred_check_branch
          %5354 = sbr.rel (%p5352) target = $region44
        $region43: #{convlstm_forward.3} parent=31 // pred_region
          %s5356 = ssub.s32 4096, 4096
          %5357 = vsyncadd %s5345, %s5356
          %s5358 = smul.addr %s23, 32
          %s5359 = smul.addr %s5358, 128
          %s5360 = scalar_lea.hbm %s4, %s5359
          %s5361 = sshll.u32 %s5348, 4
          %s5362 = int_to_ptr.vmem [resolvable:$true] %s5361
          %5367 = dma.vmem_to_hbm [thread:$0]  %s5362, 4096, %s5360, %s5345, 128, 128, 8
        $region44: #{convlstm_forward.3} parent=31 // pred_fallthru
          _
      $region32: #{convlstm_forward.3} parent=5 // pred_fallthru
        _
      %p5368 = scmp.le.s32.totalorder 2, %s14
      // Predicated region
      $region45: #{convlstm_forward.3} parent=5 // pred_check
        %p5369 = pneg %p5368
      $region46: #{convlstm_forward.3} parent=5 // pred_check_branch
        %5371 = sbr.rel (%p5369) target = $region48
      $region47: #{convlstm_forward.3} parent=5 // pred_region
        %s5372 = ssub.s32 %s14, 2
        // Predicated region
        $region49: #{convlstm_forward.3} parent=47 // pred_check
          %p5373 = pneg %p127
        $region50: #{convlstm_forward.3} parent=47 // pred_check_branch
          %5375 = sbr.rel (%p5373) target = $region52
        $region51: #{convlstm_forward.3} parent=47 // pred_region
          %p5376 = scmp.lt.s32.totalorder %s26, 7
          %s5377 = scalar_select %p5376, %s26, 7
          %p5378 = scmp.lt.s32.totalorder %s25, 1
          %s5379 = scalar_select %p5378, %s25, 1
          %s5380 = smul.addr %s5379, 32
          %s5381 = smul.addr %s5377, 64
          %s5382 = sadd.s32 %s5380, %s5381
          %s5383 = smul.addr %s5382, 8
          %s5384 = scalar_lea.vmem %s3, %s5383
        $region52: #{convlstm_forward.3} parent=47 // pred_fallthru
          _
        // Predicated region
        $region53: #{convlstm_forward.3} parent=47 // pred_check
          %p5385 = pneg %p153
        $region54: #{convlstm_forward.3} parent=47 // pred_check_branch
          %5387 = sbr.rel (%p5385) target = $region56
        $region55: #{convlstm_forward.3} parent=47 // pred_region
          %s5388 = sand.u32 %s138, 1
          %s5389 = scalar_lea.sflag [#allocation4], %s5388
          %s5390 = sand.u32 %s138, 1
          %s5391 = smul.addr %s5390, 256
          %s5392 = scalar_lea.vmem [#allocation3], %s5391
          %5393 = dma.done %s5389, 4096
        $region56: #{convlstm_forward.3} parent=47 // pred_fallthru
          _
      $region48: #{convlstm_forward.3} parent=5 // pred_fallthru
        _
    $region6: #{convlstm_forward.3} parent=1 // loop_footer
      %s18 = sadd.s32 1, %s14
    $region7: #{convlstm_forward.3} parent=1 // loop_footer_branch
      %13 = sbr.rel target = $region3
    $region8: #{convlstm_forward.3} parent=1 // loop_exit
      _
    %5394 = vsyncpa [#allocation4], 1
    %s5395 = scalar_lea.sflag [#allocation4], 1
    %5396 = vsyncpa %s5395, 1

// kernel: convlstm_forward.2
$region0: #{convlstm_forward.2}
  #allocation0 [shape = 'u32[]', space=smem, size = 0x4, offset = 0x4, fixed_abs, tag = 'smem constant byte address 0x4 - core index']
  #allocation1 [shape = 'u32[144,128]{1,0:T(1,128)}', space=vmem, size = 0x12000, scoped, tag = 'internal scratch']
  #allocation2 [shape = 'f32[18,18,36]{2,1,0:T(8,128)}', space=vmem, size = 0x36000, scoped, tag = 'scratch operand']
  %s0 = inlined_call_operand.vmem [shape: f32[8,2,256,4], index: 0, kind: input, shape index: {}]
  %s1 = inlined_call_operand.vmem [shape: f32[3,3,36,128], index: 1, kind: input, shape index: {}]
  %s2 = inlined_call_operand.vmem [shape: f32[1,128], index: 2, kind: input, shape index: {}]
  %s3 = inlined_call_operand.vmem [shape: f32[8,2,256,32], index: 3, kind: output, shape index: {0}]
  %s4 = inlined_call_operand.hbm [shape: f32[2,256,32], index: 4, kind: output, shape index: {1}]
  %5 = xla_tuple %s3, %s4
  %s6 = sld [smem:[#allocation0]]
  $region57: #{convlstm_forward.2} parent=0
    _
  %s8 = ssub.s32 1, %s6
  %s9 = scalar_select 0, %s8, %s6
  $region1: #{convlstm_forward.2} parent=0
    #allocation3 [shape = 'u8[262144]{0}', space=vmem, size = 0x40000, scoped, tag = 'output window, operand 1']
    #allocation4 [shape = 's32[2]{0}', space=sflag, size = 0x8, scoped, tag = 'scoped memory for convlstm_forward.2']
    %10 = vsyncpa [#allocation4], 0
    %s11 = scalar_lea.sflag [#allocation4], 1
    %12 = vsyncpa %s11, 0
    loop: start=0, step=1, limit=18
    $region2: #{convlstm_forward.2} parent=1 // loop_pre_header
      _
    $region3: #{convlstm_forward.2} parent=1 // loop_header
      %s14 = sphi 0, %s18
      %p15 = scmp.ge.s32.totalorder %s14, 18
      %s21 = sphi 0, %s33
      %s22 = sphi 0, %s29
      %s23 = sphi 0, %s21
      %s24 = sphi 0, %s22
      %s25 = sphi 0, %s23
      %s26 = sphi 0, %s24
      %s38 = sphi 0, %s40
      %s41 = sphi 0, %s38
      %s42 = sphi 0, %s41
      %s58 = sphi 0, %s42
      %s62 = sphi 0, %s62
      %s64 = sphi 0, %s62
      %s65 = sphi 0, %s64
      %s79 = sphi 0, %s65
      %s83 = sphi 0, %s83
      %s85 = sphi 0, %s83
      %s86 = sphi 0, %s85
      %s100 = sphi 0, %s86
      %s108 = sphi 0, %s110
      %s111 = sphi 0, %s108
      %s112 = sphi 0, %s111
      %s128 = sphi 0, %s112
      %s134 = sphi 0, %s136
      %s137 = sphi 0, %s134
      %s138 = sphi 0, %s137
      %s154 = sphi 0, %s138
    $region4: #{convlstm_forward.2} parent=1 // loop_header_branch
      %17 = sbr.rel (%p15) target = $region8
    $region5: #{convlstm_forward.2} parent=1 // loop_body
      %s19 = ssub.s32 %s14, 1
      %s20 = ssub.s32 %s14, 2
      %s27 = sadd.s32 1, %s22
      %p28 = scmp.ge.s32.totalorder %s27, 8
      %s29 = scalar_select %p28, 0, %s27
      %s30 = sadd.s32 1, %s21
      %s31 = scalar_select %p28, %s30, %s21
      %p32 = scmp.ge.s32.totalorder %s31, 2
      %s33 = scalar_select %p32, 0, %s31
      %s34 = ssub.s32 %s22, %s29
      %s35 = ssub.s32 %s21, %s33
      %s36 = sor.u32 %s34, %s35
      %p37 = scmp.eq.s32.totalorder %s36, 0
      %s39 = sadd.s32 %s38, 1
      %s40 = scalar_select %p37, %s38, %s39
      %p43 = pneg %p37
      %p44 = scmp.eq.s32.totalorder %s14, 15
      %p45 = por %p43, %p44
      %p46 = scmp.ne.s32.totalorder %s38, %s41
      %p47 = scmp.eq.s32.totalorder %s14, 0
      %p48 = por %p46, %p47
      %p49 = scmp.ne.s32.totalorder %s38, %s41
      %p50 = scmp.eq.s32.totalorder %s19, 15
      %p51 = por %p49, %p50
      %p52 = scmp.ne.s32.totalorder %s41, %s42
      %p53 = scmp.eq.s32.totalorder %s19, 0
      %p54 = por %p52, %p53
      %p55 = scmp.ne.s32.totalorder %s41, %s42
      %p56 = scmp.eq.s32.totalorder %s20, 15
      %p57 = por %p55, %p56
      %p59 = scmp.ne.s32.totalorder %s42, %s58
      %p60 = scmp.eq.s32.totalorder %s20, 0
      %p61 = por %p59, %p60
      %s63 = sadd.s32 %s62, 1
      %p66 = scmp.eq.s32.totalorder %s14, 15
      %p67 = scmp.ne.s32.totalorder %s62, %s64
      %p68 = scmp.eq.s32.totalorder %s14, 0
      %p69 = por %p67, %p68
      %p70 = scmp.ne.s32.totalorder %s62, %s64
      %p71 = scmp.eq.s32.totalorder %s19, 15
      %p72 = por %p70, %p71
      %p73 = scmp.ne.s32.totalorder %s64, %s65
      %p74 = scmp.eq.s32.totalorder %s19, 0
      %p75 = por %p73, %p74
      %p76 = scmp.ne.s32.totalorder %s64, %s65
      %p77 = scmp.eq.s32.totalorder %s20, 15
      %p78 = por %p76, %p77
      %p80 = scmp.ne.s32.totalorder %s65, %s79
      %p81 = scmp.eq.s32.totalorder %s20, 0
      %p82 = por %p80, %p81
      %s84 = sadd.s32 %s83, 1
      %p87 = scmp.eq.s32.totalorder %s14, 15
      %p88 = scmp.ne.s32.totalorder %s83, %s85
      %p89 = scmp.eq.s32.totalorder %s14, 0
      %p90 = por %p88, %p89
      %p91 = scmp.ne.s32.totalorder %s83, %s85
      %p92 = scmp.eq.s32.totalorder %s19, 15
      %p93 = por %p91, %p92
      %p94 = scmp.ne.s32.totalorder %s85, %s86
      %p95 = scmp.eq.s32.totalorder %s19, 0
      %p96 = por %p94, %p95
      %p97 = scmp.ne.s32.totalorder %s85, %s86
      %p98 = scmp.eq.s32.totalorder %s20, 15
      %p99 = por %p97, %p98
      %p101 = scmp.ne.s32.totalorder %s86, %s100
      %p102 = scmp.eq.s32.totalorder %s20, 0
      %p103 = por %p101, %p102
      %s104 = ssub.s32 %s22, %s29
      %s105 = ssub.s32 %s21, %s33
      %s106 = sor.u32 %s104, %s105
      %p107 = scmp.eq.s32.totalorder %s106, 0
      %s109 = sadd.s32 %s108, 1
      %s110 = scalar_select %p107, %s108, %s109
      %p113 = pneg %p107
      %p114 = scmp.eq.s32.totalorder %s14, 15
      %p115 = por %p113, %p114
      %p116 = scmp.ne.s32.totalorder %s108, %s111
      %p117 = scmp.eq.s32.totalorder %s14, 0
      %p118 = por %p116, %p117
      %p119 = scmp.ne.s32.totalorder %s108, %s111
      %p120 = scmp.eq.s32.totalorder %s19, 15
      %p121 = por %p119, %p120
      %p122 = scmp.ne.s32.totalorder %s111, %s112
      %p123 = scmp.eq.s32.totalorder %s19, 0
      %p124 = por %p122, %p123
      %p125 = scmp.ne.s32.totalorder %s111, %s112
      %p126 = scmp.eq.s32.totalorder %s20, 15
      %p127 = por %p125, %p126
      %p129 = scmp.ne.s32.totalorder %s112, %s128
      %p130 = scmp.eq.s32.totalorder %s20, 0
      %p131 = por %p129, %p130
      %s132 = ssub.s32 %s21, %s33
      %p133 = scmp.eq.s32.totalorder %s132, 0
      %s135 = sadd.s32 %s134, 1
      %s136 = scalar_select %p133, %s134, %s135
      %p139 = pneg %p133
      %p140 = scmp.eq.s32.totalorder %s14, 15
      %p141 = por %p139, %p140
      %p142 = scmp.ne.s32.totalorder %s134, %s137
      %p143 = scmp.eq.s32.totalorder %s14, 0
      %p144 = por %p142, %p143
      %p145 = scmp.ne.s32.totalorder %s134, %s137
      %p146 = scmp.eq.s32.totalorder %s19, 15
      %p147 = por %p145, %p146
      %p148 = scmp.ne.s32.totalorder %s137, %s138
      %p149 = scmp.eq.s32.totalorder %s19, 0
      %p150 = por %p148, %p149
      %p151 = scmp.ne.s32.totalorder %s137, %s138
      %p152 = scmp.eq.s32.totalorder %s20, 15
      %p153 = por %p151, %p152
      %p155 = scmp.ne.s32.totalorder %s138, %s154
      %p156 = scmp.eq.s32.totalorder %s20, 0
      %p157 = por %p155, %p156
      %p158 = scmp.le.s32.totalorder 1, %s14
      %p159 = scmp.lt.s32.totalorder %s14, 17
      %p160 = pnand %p158, %p159
      %p161 = pneg %p160
      // Predicated region
      $region9: #{convlstm_forward.2} parent=5 // pred_check
        _
      $region10: #{convlstm_forward.2} parent=5 // pred_check_branch
        %163 = sbr.rel (%p160) target = $region12
      $region11: #{convlstm_forward.2} parent=5 // pred_region
        %s164 = ssub.s32 %s14, 1
        // Predicated region
        $region13: #{convlstm_forward.2} parent=11 // pred_check
          %p165 = pneg %p75
        $region14: #{convlstm_forward.2} parent=11 // pred_check_branch
          %167 = sbr.rel (%p165) target = $region16
        $region15: #{convlstm_forward.2} parent=11 // pred_region
          _
        $region16: #{convlstm_forward.2} parent=11 // pred_fallthru
          _
        // Predicated region
        $region17: #{convlstm_forward.2} parent=11 // pred_check
          %p168 = pneg %p96
        $region18: #{convlstm_forward.2} parent=11 // pred_check_branch
          %170 = sbr.rel (%p168) target = $region20
        $region19: #{convlstm_forward.2} parent=11 // pred_region
          _
        $region20: #{convlstm_forward.2} parent=11 // pred_fallthru
          _
      $region12: #{convlstm_forward.2} parent=5 // pred_fallthru
        _
      %p171 = scmp.lt.s32.totalorder %s14, 16
      // Predicated region
      $region21: #{convlstm_forward.2} parent=5 // pred_check
        %p172 = pneg %p171
      $region22: #{convlstm_forward.2} parent=5 // pred_check_branch
        %174 = sbr.rel (%p172) target = $region24
      $region23: #{convlstm_forward.2} parent=5 // pred_region
        // Predicated region
        $region25: #{convlstm_forward.2} parent=23 // pred_check
          %p175 = pneg %p48
        $region26: #{convlstm_forward.2} parent=23 // pred_check_branch
          %177 = sbr.rel (%p175) target = $region28
        $region27: #{convlstm_forward.2} parent=23 // pred_region
          %p178 = scmp.lt.s32.totalorder %s22, 7
          %s179 = scalar_select %p178, %s22, 7
          %p180 = scmp.lt.s32.totalorder %s21, 1
          %s181 = scalar_select %p180, %s21, 1
          %s182 = smul.addr %s181, 32
          %s183 = smul.addr %s179, 64
          %s184 = sadd.s32 %s182, %s183
          %s185 = smul.addr %s184, 8
          %s186 = scalar_lea.vmem %s0, %s185
        $region28: #{convlstm_forward.2} parent=23 // pred_fallthru
          _
      $region24: #{convlstm_forward.2} parent=5 // pred_fallthru
        _
      %p187 = scmp.le.s32.totalorder 1, %s14
      %p188 = scmp.lt.s32.totalorder %s14, 17
      %p189 = pnand %p187, %p188
      %p190 = pneg %p189
      // Predicated region
      $region29: #{convlstm_forward.2} parent=5 // pred_check
        _
      $region30: #{convlstm_forward.2} parent=5 // pred_check_branch
        %192 = sbr.rel (%p189) target = $region32
      $region31: #{convlstm_forward.2} parent=5 // pred_region
        %s193 = ssub.s32 %s14, 1
        %p194 = scmp.lt.s32.totalorder %s24, 7
        %s195 = scalar_select %p194, %s24, 7
        %p196 = scmp.lt.s32.totalorder %s23, 1
        %s197 = scalar_select %p196, %s23, 1
        %s198 = smul.addr %s197, 32
        %s199 = smul.addr %s195, 64
        %s200 = sadd.s32 %s198, %s199
        %s201 = smul.addr %s200, 8
        %s202 = scalar_lea.vmem %s0, %s201
        %p203 = pneg %p54
        %p204 = pneg %p51
        %p205 = pneg %p75
        %p206 = pneg %p72
        %p207 = pneg %p96
        %p208 = pneg %p93
        %p209 = pneg %p124
        %p210 = pneg %p121
        %p211 = scmp.lt.s32.totalorder %s24, 7
        %s212 = scalar_select %p211, %s24, 7
        %p213 = scmp.lt.s32.totalorder %s23, 1
        %s214 = scalar_select %p213, %s23, 1
        %s215 = smul.addr %s214, 32
        %s216 = smul.addr %s212, 64
        %s217 = sadd.s32 %s215, %s216
        %s218 = smul.addr %s217, 8
        %s219 = scalar_lea.vmem %s3, %s218
        %p220 = pneg %p150
        %p221 = pneg %p147
        %s222 = sand.u32 %s137, 1
        %s223 = scalar_lea.sflag [#allocation4], %s222
        %s224 = sand.u32 %s137, 1
        %s225 = smul.addr %s224, 256
        %s226 = scalar_lea.vmem [#allocation3], %s225
        %p227 = scmp.lt.s32.totalorder %s24, 7
        %s228 = scalar_select %p227, %s24, 7
        %p229 = scmp.lt.s32.totalorder %s23, 1
        %s230 = scalar_select %p229, %s23, 1
        %s231 = smul.addr %s230, 32
        %s232 = smul.addr %s228, 64
        %s233 = sadd.s32 %s231, %s232
        %s234 = smul.addr %s233, 8
        %s235 = scalar_lea.vmem %s0, %s234
        %p236 = scmp.lt.s32.totalorder %s24, 7
        %s237 = scalar_select %p236, %s24, 7
        %p238 = scmp.lt.s32.totalorder %s23, 1
        %s239 = scalar_select %p238, %s23, 1
        %s240 = smul.addr %s239, 32
        %s241 = smul.addr %s237, 64
        %s242 = sadd.s32 %s240, %s241
        %s243 = smul.addr %s242, 8
        %s244 = scalar_lea.vmem %s3, %s243
        %p245 = scmp.eq.s32.totalorder %s24, 0
        // Predicated region
        $region33: #{convlstm_forward.2} parent=31 // pred_check
          %p246 = pneg %p245
        $region34: #{convlstm_forward.2} parent=31 // pred_check_branch
          %248 = sbr.rel (%p246) target = $region36
        $region35: #{convlstm_forward.2} parent=31 // pred_region
          %vm249 = vcmask 293888
          %250 = vst.msk [vmem:[#allocation2] sm:$0xff] %vm249, 0.0
          %251 = vst.msk [vmem:[#allocation2 + $0x8] sm:$0xff] %vm249, 0.0
          %vm252 = vcmask 287744
          %253 = vst.msk [vmem:[#allocation2 + $0x10] sm:$0x3] %vm252, 0.0
          %254 = vst.msk [vmem:[#allocation2 + $0x18] sm:$0xff] %vm249, 0.0
          %255 = vst.msk [vmem:[#allocation2 + $0x20] sm:$0xff] %vm249, 0.0
          %256 = vst.msk [vmem:[#allocation2 + $0x28] sm:$0x3] %vm252, 0.0
          %257 = vst.msk [vmem:[#allocation2 + $0x30] sm:$0xff] %vm249, 0.0
          %258 = vst.msk [vmem:[#allocation2 + $0x38] sm:$0xff] %vm249, 0.0
          %259 = vst.msk [vmem:[#allocation2 + $0x40] sm:$0x3] %vm252, 0.0
          %260 = vst.msk [vmem:[#allocation2 + $0x48] sm:$0xff] %vm249, 0.0
          %261 = vst.msk [vmem:[#allocation2 + $0x50] sm:$0xff] %vm249, 0.0
          %262 = vst.msk [vmem:[#allocation2 + $0x58] sm:$0x3] %vm252, 0.0
          %263 = vst.msk [vmem:[#allocation2 + $0x60] sm:$0xff] %vm249, 0.0
          %264 = vst.msk [vmem:[#allocation2 + $0x68] sm:$0xff] %vm249, 0.0
          %265 = vst.msk [vmem:[#allocation2 + $0x70] sm:$0x3] %vm252, 0.0
          %266 = vst.msk [vmem:[#allocation2 + $0x78] sm:$0xff] %vm249, 0.0
          %267 = vst.msk [vmem:[#allocation2 + $0x80] sm:$0xff] %vm249, 0.0
          %268 = vst.msk [vmem:[#allocation2 + $0x88] sm:$0x3] %vm252, 0.0
          %269 = vst.msk [vmem:[#allocation2 + $0x90] sm:$0xff] %vm249, 0.0
          %270 = vst.msk [vmem:[#allocation2 + $0x98] sm:$0xff] %vm249, 0.0
          %271 = vst.msk [vmem:[#allocation2 + $0xa0] sm:$0x3] %vm252, 0.0
          %272 = vst.msk [vmem:[#allocation2 + $0xa8] sm:$0xff] %vm249, 0.0
          %273 = vst.msk [vmem:[#allocation2 + $0xb0] sm:$0xff] %vm249, 0.0
          %274 = vst.msk [vmem:[#allocation2 + $0xb8] sm:$0x3] %vm252, 0.0
          %275 = vst.msk [vmem:[#allocation2 + $0xc0] sm:$0xff] %vm249, 0.0
          %276 = vst.msk [vmem:[#allocation2 + $0xc8] sm:$0xff] %vm249, 0.0
          %277 = vst.msk [vmem:[#allocation2 + $0xd0] sm:$0x3] %vm252, 0.0
          %278 = vst.msk [vmem:[#allocation2 + $0xd8] sm:$0xff] %vm249, 0.0
          %279 = vst.msk [vmem:[#allocation2 + $0xe0] sm:$0xff] %vm249, 0.0
          %280 = vst.msk [vmem:[#allocation2 + $0xe8] sm:$0x3] %vm252, 0.0
          %281 = vst.msk [vmem:[#allocation2 + $0xf0] sm:$0xff] %vm249, 0.0
          %282 = vst.msk [vmem:[#allocation2 + $0xf8] sm:$0xff] %vm249, 0.0
          %283 = vst.msk [vmem:[#allocation2 + $0x100] sm:$0x3] %vm252, 0.0
          %284 = vst.msk [vmem:[#allocation2 + $0x108] sm:$0xff] %vm249, 0.0
          %285 = vst.msk [vmem:[#allocation2 + $0x110] sm:$0xff] %vm249, 0.0
          %286 = vst.msk [vmem:[#allocation2 + $0x118] sm:$0x3] %vm252, 0.0
          %287 = vst.msk [vmem:[#allocation2 + $0x120] sm:$0xff] %vm249, 0.0
          %288 = vst.msk [vmem:[#allocation2 + $0x128] sm:$0xff] %vm249, 0.0
          %289 = vst.msk [vmem:[#allocation2 + $0x130] sm:$0x3] %vm252, 0.0
          %290 = vst.msk [vmem:[#allocation2 + $0x138] sm:$0xff] %vm249, 0.0
          %291 = vst.msk [vmem:[#allocation2 + $0x140] sm:$0xff] %vm249, 0.0
          %292 = vst.msk [vmem:[#allocation2 + $0x148] sm:$0x3] %vm252, 0.0
          %293 = vst.msk [vmem:[#allocation2 + $0x150] sm:$0xff] %vm249, 0.0
          %294 = vst.msk [vmem:[#allocation2 + $0x158] sm:$0xff] %vm249, 0.0
          %295 = vst.msk [vmem:[#allocation2 + $0x160] sm:$0x3] %vm252, 0.0
          %296 = vst.msk [vmem:[#allocation2 + $0x168] sm:$0xff] %vm249, 0.0
          %297 = vst.msk [vmem:[#allocation2 + $0x170] sm:$0xff] %vm249, 0.0
          %298 = vst.msk [vmem:[#allocation2 + $0x178] sm:$0x3] %vm252, 0.0
          %299 = vst.msk [vmem:[#allocation2 + $0x180] sm:$0xff] %vm249, 0.0
          %300 = vst.msk [vmem:[#allocation2 + $0x188] sm:$0xff] %vm249, 0.0
          %301 = vst.msk [vmem:[#allocation2 + $0x190] sm:$0x3] %vm252, 0.0
          %302 = vst.msk [vmem:[#allocation2 + $0x198] sm:$0xff] %vm249, 0.0
          %303 = vst.msk [vmem:[#allocation2 + $0x1a0] sm:$0xff] %vm249, 0.0
          %304 = vst.msk [vmem:[#allocation2 + $0x1a8] sm:$0x3] %vm252, 0.0
          %vm305 = vcmask 261120
          %306 = vst.msk [vmem:[%s226] sm:$0xff] %vm305, 0.0
          %307 = vst.msk [vmem:[%s226 + $0x8] sm:$0xff] %vm305, 0.0
          %308 = vst.msk [vmem:[%s226 + $0x10] sm:$0xff] %vm305, 0.0
          %309 = vst.msk [vmem:[%s226 + $0x18] sm:$0xff] %vm305, 0.0
          %310 = vst.msk [vmem:[%s226 + $0x20] sm:$0xff] %vm305, 0.0
          %311 = vst.msk [vmem:[%s226 + $0x28] sm:$0xff] %vm305, 0.0
          %312 = vst.msk [vmem:[%s226 + $0x30] sm:$0xff] %vm305, 0.0
          %313 = vst.msk [vmem:[%s226 + $0x38] sm:$0xff] %vm305, 0.0
          %314 = vst.msk [vmem:[%s226 + $0x40] sm:$0xff] %vm305, 0.0
          %315 = vst.msk [vmem:[%s226 + $0x48] sm:$0xff] %vm305, 0.0
          %316 = vst.msk [vmem:[%s226 + $0x50] sm:$0xff] %vm305, 0.0
          %317 = vst.msk [vmem:[%s226 + $0x58] sm:$0xff] %vm305, 0.0
          %318 = vst.msk [vmem:[%s226 + $0x60] sm:$0xff] %vm305, 0.0
          %319 = vst.msk [vmem:[%s226 + $0x68] sm:$0xff] %vm305, 0.0
          %320 = vst.msk [vmem:[%s226 + $0x70] sm:$0xff] %vm305, 0.0
          %321 = vst.msk [vmem:[%s226 + $0x78] sm:$0xff] %vm305, 0.0
          %322 = vst.msk [vmem:[%s226 + $0x80] sm:$0xff] %vm305, 0.0
          %323 = vst.msk [vmem:[%s226 + $0x88] sm:$0xff] %vm305, 0.0
          %324 = vst.msk [vmem:[%s226 + $0x90] sm:$0xff] %vm305, 0.0
          %325 = vst.msk [vmem:[%s226 + $0x98] sm:$0xff] %vm305, 0.0
          %326 = vst.msk [vmem:[%s226 + $0xa0] sm:$0xff] %vm305, 0.0
          %327 = vst.msk [vmem:[%s226 + $0xa8] sm:$0xff] %vm305, 0.0
          %328 = vst.msk [vmem:[%s226 + $0xb0] sm:$0xff] %vm305, 0.0
          %329 = vst.msk [vmem:[%s226 + $0xb8] sm:$0xff] %vm305, 0.0
          %330 = vst.msk [vmem:[%s226 + $0xc0] sm:$0xff] %vm305, 0.0
          %331 = vst.msk [vmem:[%s226 + $0xc8] sm:$0xff] %vm305, 0.0
          %332 = vst.msk [vmem:[%s226 + $0xd0] sm:$0xff] %vm305, 0.0
          %333 = vst.msk [vmem:[%s226 + $0xd8] sm:$0xff] %vm305, 0.0
          %334 = vst.msk [vmem:[%s226 + $0xe0] sm:$0xff] %vm305, 0.0
          %335 = vst.msk [vmem:[%s226 + $0xe8] sm:$0xff] %vm305, 0.0
          %336 = vst.msk [vmem:[%s226 + $0xf0] sm:$0xff] %vm305, 0.0
          %337 = vst.msk [vmem:[%s226 + $0xf8] sm:$0xff] %vm305, 0.0
        $region36: #{convlstm_forward.2} parent=31 // pred_fallthru
          _
        %v338 = vld [vmem:[%s235] sm:$0xff]
        %v339 = vld [vmem:[%s235 + $0x8] sm:$0xff]
        %v340 = vld [vmem:[%s235 + $0x10] sm:$0xff]
        %v341 = vld [vmem:[%s235 + $0x18] sm:$0xff]
        %v342 = vld [vmem:[%s235 + $0x20] sm:$0xff]
        %v343 = vld [vmem:[%s235 + $0x28] sm:$0xff]
        %v344 = vld [vmem:[%s235 + $0x30] sm:$0xff]
        %v345 = vld [vmem:[%s235 + $0x38] sm:$0xff]
        %v346 = vld [vmem:[%s235 + $0x40] sm:$0xff]
        %v347 = vld [vmem:[%s235 + $0x48] sm:$0xff]
        %v348 = vld [vmem:[%s235 + $0x50] sm:$0xff]
        %v349 = vld [vmem:[%s235 + $0x58] sm:$0xff]
        %v350 = vld [vmem:[%s235 + $0x60] sm:$0xff]
        %v351 = vld [vmem:[%s235 + $0x68] sm:$0xff]
        %v352 = vld [vmem:[%s235 + $0x70] sm:$0xff]
        %v353 = vld [vmem:[%s235 + $0x78] sm:$0xff]
        %v354 = vld [vmem:[%s235 + $0x80] sm:$0xff]
        %v355 = vld [vmem:[%s235 + $0x88] sm:$0xff]
        %v356 = vld [vmem:[%s235 + $0x90] sm:$0xff]
        %v357 = vld [vmem:[%s235 + $0x98] sm:$0xff]
        %v358 = vld [vmem:[%s235 + $0xa0] sm:$0xff]
        %v359 = vld [vmem:[%s235 + $0xa8] sm:$0xff]
        %v360 = vld [vmem:[%s235 + $0xb0] sm:$0xff]
        %v361 = vld [vmem:[%s235 + $0xb8] sm:$0xff]
        %v362 = vld [vmem:[%s235 + $0xc0] sm:$0xff]
        %v363 = vld [vmem:[%s235 + $0xc8] sm:$0xff]
        %v364 = vld [vmem:[%s235 + $0xd0] sm:$0xff]
        %v365 = vld [vmem:[%s235 + $0xd8] sm:$0xff]
        %v366 = vld [vmem:[%s235 + $0xe0] sm:$0xff]
        %v367 = vld [vmem:[%s235 + $0xe8] sm:$0xff]
        %v368 = vld [vmem:[%s235 + $0xf0] sm:$0xff]
        %v369 = vld [vmem:[%s235 + $0xf8] sm:$0xff]
        %s370 = scalar_lea.vmem [#allocation2], 24
        %vm371 = vcmask 31744
        %372 = vst.msk [vmem:[%s370 + $0x1] sm:$0xff] %vm371, %v338
        %373 = vst.msk [vmem:[%s370 + $0x9] sm:$0xff] %vm371, %v339
        %374 = vst.msk [vmem:[%s370 + $0x19] sm:$0xff] %vm371, %v340
        %375 = vst.msk [vmem:[%s370 + $0x21] sm:$0xff] %vm371, %v341
        %376 = vst.msk [vmem:[%s370 + $0x31] sm:$0xff] %vm371, %v342
        %377 = vst.msk [vmem:[%s370 + $0x39] sm:$0xff] %vm371, %v343
        %378 = vst.msk [vmem:[%s370 + $0x49] sm:$0xff] %vm371, %v344
        %379 = vst.msk [vmem:[%s370 + $0x51] sm:$0xff] %vm371, %v345
        %380 = vst.msk [vmem:[%s370 + $0x61] sm:$0xff] %vm371, %v346
        %381 = vst.msk [vmem:[%s370 + $0x69] sm:$0xff] %vm371, %v347
        %382 = vst.msk [vmem:[%s370 + $0x79] sm:$0xff] %vm371, %v348
        %383 = vst.msk [vmem:[%s370 + $0x81] sm:$0xff] %vm371, %v349
        %384 = vst.msk [vmem:[%s370 + $0x91] sm:$0xff] %vm371, %v350
        %385 = vst.msk [vmem:[%s370 + $0x99] sm:$0xff] %vm371, %v351
        %386 = vst.msk [vmem:[%s370 + $0xa9] sm:$0xff] %vm371, %v352
        %387 = vst.msk [vmem:[%s370 + $0xb1] sm:$0xff] %vm371, %v353
        %388 = vst.msk [vmem:[%s370 + $0xc1] sm:$0xff] %vm371, %v354
        %389 = vst.msk [vmem:[%s370 + $0xc9] sm:$0xff] %vm371, %v355
        %390 = vst.msk [vmem:[%s370 + $0xd9] sm:$0xff] %vm371, %v356
        %391 = vst.msk [vmem:[%s370 + $0xe1] sm:$0xff] %vm371, %v357
        %392 = vst.msk [vmem:[%s370 + $0xf1] sm:$0xff] %vm371, %v358
        %393 = vst.msk [vmem:[%s370 + $0xf9] sm:$0xff] %vm371, %v359
        %394 = vst.msk [vmem:[%s370 + $0x109] sm:$0xff] %vm371, %v360
        %395 = vst.msk [vmem:[%s370 + $0x111] sm:$0xff] %vm371, %v361
        %396 = vst.msk [vmem:[%s370 + $0x121] sm:$0xff] %vm371, %v362
        %397 = vst.msk [vmem:[%s370 + $0x129] sm:$0xff] %vm371, %v363
        %398 = vst.msk [vmem:[%s370 + $0x139] sm:$0xff] %vm371, %v364
        %399 = vst.msk [vmem:[%s370 + $0x141] sm:$0xff] %vm371, %v365
        %400 = vst.msk [vmem:[%s370 + $0x151] sm:$0xff] %vm371, %v366
        %401 = vst.msk [vmem:[%s370 + $0x159] sm:$0xff] %vm371, %v367
        %402 = vst.msk [vmem:[%s370 + $0x169] sm:$0xff] %vm371, %v368
        %403 = vst.msk [vmem:[%s370 + $0x171] sm:$0xff] %vm371, %v369
        %v404 = vld [vmem:[%s2] sm:$0x1]
        %v406 = vlaneseq
        %v407 = vshrl.u32 %v406, 7
        %v408 = vsub.s32 0, %v407
        %v409 = vrot.slane %v404, %v408
        %v411 = vld [vmem:[#allocation2] sm:$0xff]
        %v412 = vld [vmem:[#allocation2 + $0x8] sm:$0xff]
        %v413 = vld [vmem:[#allocation2 + $0x18] sm:$0xff]
        %v414 = vld [vmem:[#allocation2 + $0x20] sm:$0xff]
        %v415 = vld [vmem:[#allocation2 + $0x30] sm:$0xff]
        %v416 = vld [vmem:[#allocation2 + $0x38] sm:$0xff]
        %v417 = vld [vmem:[#allocation2 + $0x48] sm:$0xff]
        %v418 = vld [vmem:[#allocation2 + $0x50] sm:$0xff]
        %v419 = vld [vmem:[#allocation2 + $0x60] sm:$0xff]
        %v420 = vld [vmem:[#allocation2 + $0x68] sm:$0xff]
        %v421 = vld [vmem:[#allocation2 + $0x78] sm:$0xff]
        %v422 = vld [vmem:[#allocation2 + $0x80] sm:$0xff]
        %v423 = vld [vmem:[#allocation2 + $0x90] sm:$0xff]
        %v424 = vld [vmem:[#allocation2 + $0x98] sm:$0xff]
        %v425 = vld [vmem:[#allocation2 + $0xa8] sm:$0xff]
        %v426 = vld [vmem:[#allocation2 + $0xb0] sm:$0xff]
        %v427 = vld [vmem:[#allocation2 + $0xc0] sm:$0xff]
        %v428 = vld [vmem:[#allocation2 + $0xc8] sm:$0xff]
        %v429 = vld [vmem:[#allocation2 + $0xd8] sm:$0xff]
        %v430 = vld [vmem:[#allocation2 + $0xe0] sm:$0xff]
        %v431 = vld [vmem:[#allocation2 + $0xf0] sm:$0xff]
        %v432 = vld [vmem:[#allocation2 + $0xf8] sm:$0xff]
        %v433 = vld [vmem:[#allocation2 + $0x108] sm:$0xff]
        %v434 = vld [vmem:[#allocation2 + $0x110] sm:$0xff]
        %v435 = vld [vmem:[#allocation2 + $0x120] sm:$0xff]
        %v436 = vld [vmem:[#allocation2 + $0x128] sm:$0xff]
        %v437 = vld [vmem:[#allocation2 + $0x138] sm:$0xff]
        %v438 = vld [vmem:[#allocation2 + $0x140] sm:$0xff]
        %v439 = vld [vmem:[#allocation2 + $0x150] sm:$0xff]
        %v440 = vld [vmem:[#allocation2 + $0x158] sm:$0xff]
        %v441 = vld [vmem:[#allocation2 + $0x168] sm:$0xff]
        %v442 = vld [vmem:[#allocation2 + $0x170] sm:$0xff]
        %v443 = vld [vmem:[%s1] sm:$0xff]
        %v444 = vld [vmem:[%s1 + $0x8] sm:$0xff]
        %v445 = vld [vmem:[%s1 + $0x10] sm:$0xff]
        %v446 = vld [vmem:[%s1 + $0x18] sm:$0xff]
        %v447 = vld [vmem:[%s1 + $0x20] sm:$0xf]
        %vm448 = vcmask 293888
        %v450 = vsel %vm448, %v411, 0
        %v453 = vsel %vm448, %v412, 0
        %v456 = vsel %vm448, %v413, 0
        %v459 = vsel %vm448, %v414, 0
        %v462 = vsel %vm448, %v415, 0
        %v465 = vsel %vm448, %v416, 0
        %v468 = vsel %vm448, %v417, 0
        %v471 = vsel %vm448, %v418, 0
        %v474 = vsel %vm448, %v419, 0
        %v477 = vsel %vm448, %v420, 0
        %v480 = vsel %vm448, %v421, 0
        %v483 = vsel %vm448, %v422, 0
        %v486 = vsel %vm448, %v423, 0
        %v489 = vsel %vm448, %v424, 0
        %v492 = vsel %vm448, %v425, 0
        %v495 = vsel %vm448, %v426, 0
        %v498 = vsel %vm448, %v427, 0
        %v501 = vsel %vm448, %v428, 0
        %v504 = vsel %vm448, %v429, 0
        %v507 = vsel %vm448, %v430, 0
        %v510 = vsel %vm448, %v431, 0
        %v513 = vsel %vm448, %v432, 0
        %v516 = vsel %vm448, %v433, 0
        %v519 = vsel %vm448, %v434, 0
        %v522 = vsel %vm448, %v435, 0
        %v525 = vsel %vm448, %v436, 0
        %v528 = vsel %vm448, %v437, 0
        %v531 = vsel %vm448, %v438, 0
        %v534 = vsel %vm448, %v439, 0
        %v537 = vsel %vm448, %v440, 0
        %v540 = vsel %vm448, %v441, 0
        %v543 = vsel %vm448, %v442, 0
        %vm545 = vcmask 1043456
        %v547 = vsel %vm545, %v447, 0
        %549 = vmatprep.subr.mxu0 0.0
        %550 = vmatpush1.msra.mxu0 0.0
        %551 = vmatprep.subr.mxu0 0.0
        %552 = vmatpush1.msra.mxu0 0.0
        %553 = vmatprep.subr.mxu0 0.0
        %554 = vmatpush1.msra.mxu0 0.0
        %555 = vmatprep.subr.mxu0 0.0
        %556 = vmatpush1.msra.mxu0 0.0
        %557 = vmatprep.subr.mxu0 0.0
        %558 = vmatpush1.msra.mxu0 0.0
        %559 = vmatprep.subr.mxu0 0.0
        %560 = vmatpush1.msra.mxu0 0.0
        %561 = vmatprep.subr.mxu0 0.0
        %562 = vmatpush1.msra.mxu0 0.0
        %563 = vmatprep.subr.mxu0 0.0
        %564 = vmatpush1.msra.mxu0 0.0
        %565 = vmatprep.subr.mxu0 0.0
        %566 = vmatpush1.msra.mxu0 0.0
        %567 = vmatprep.subr.mxu0 0.0
        %568 = vmatpush1.msra.mxu0 0.0
        %569 = vmatprep.subr.mxu0 0.0
        %570 = vmatpush1.msra.mxu0 0.0
        %571 = vmatprep.subr.mxu0 0.0
        %572 = vmatpush1.msra.mxu0 %v547
        %573 = vmatprep.subr.mxu0 0.0
        %574 = vmatpush1.msra.mxu0 %v446
        %575 = vmatprep.subr.mxu0 0.0
        %576 = vmatpush1.msra.mxu0 %v445
        %577 = vmatprep.subr.mxu0 0.0
        %578 = vmatpush1.msra.mxu0 %v444
        %579 = vmatprep.subr.mxu0 0.0
        %580 = vmatpush1.msra.mxu0 %v443
        %581 = vmatprep.subr.mxu0 0.0
        %582 = vmatpush2.msra.mxu0 0.0
        %583 = vmatprep.subr.mxu0 0.0
        %584 = vmatpush2.msra.mxu0 0.0
        %585 = vmatprep.subr.mxu0 0.0
        %586 = vmatpush2.msra.mxu0 0.0
        %587 = vmatprep.subr.mxu0 0.0
        %588 = vmatpush2.msra.mxu0 0.0
        %589 = vmatprep.subr.mxu0 0.0
        %590 = vmatpush2.msra.mxu0 0.0
        %591 = vmatprep.subr.mxu0 0.0
        %592 = vmatpush2.msra.mxu0 0.0
        %593 = vmatprep.subr.mxu0 0.0
        %594 = vmatpush2.msra.mxu0 0.0
        %595 = vmatprep.subr.mxu0 0.0
        %596 = vmatpush2.msra.mxu0 0.0
        %597 = vmatprep.subr.mxu0 0.0
        %598 = vmatpush2.msra.mxu0 0.0
        %599 = vmatprep.subr.mxu0 0.0
        %600 = vmatpush2.msra.mxu0 0.0
        %601 = vmatprep.subr.mxu0 0.0
        %602 = vmatpush2.msra.mxu0 0.0
        %603 = vmatprep.subr.mxu0 0.0
        %604 = vmatpush2.msra.mxu0 0.0
        %605 = vmatprep.subr.mxu0 0.0
        %606 = vmatpush2.msra.mxu0 0.0
        %607 = vmatprep.subr.mxu0 0.0
        %608 = vmatpush2.msra.mxu0 0.0
        %609 = vmatprep.subr.mxu0 0.0
        %610 = vmatpush2.msra.mxu0 0.0
        %611 = vmatprep.subr.mxu0 0.0
        %612 = vmatpush2.msra.mxu0 0.0
        %613 = vmatprep.mubr.f32.mxu0 0.0
        %614 = vmatmul.mubr.f32.gmra.mxu0 %v450
        %v615 = vpop.f32.mrf.mxu0
        %v616 = vadd.f32 0.0, %v615
        %v617 = vpop.f32.mrf.mxu0
        %618 = vmatprep.mubr.f32.mxu0 0.0
        %619 = vmatmul.mubr.f32.gmra.mxu0 %v453
        %v620 = vpop.f32.mrf.mxu0
        %v621 = vadd.f32 0.0, %v620
        %v622 = vpop.f32.mrf.mxu0
        %623 = vmatprep.mubr.f32.mxu0 0.0
        %624 = vmatmul.mubr.f32.gmra.mxu0 %v456
        %v625 = vpop.f32.mrf.mxu0
        %v626 = vadd.f32 0.0, %v625
        %v627 = vpop.f32.mrf.mxu0
        %628 = vmatprep.mubr.f32.mxu0 0.0
        %629 = vmatmul.mubr.f32.gmra.mxu0 %v459
        %v630 = vpop.f32.mrf.mxu0
        %v631 = vadd.f32 0.0, %v630
        %v632 = vpop.f32.mrf.mxu0
        %633 = vmatprep.mubr.f32.mxu0 0.0
        %634 = vmatmul.mubr.f32.gmra.mxu0 %v462
        %v635 = vpop.f32.mrf.mxu0
        %v636 = vadd.f32 0.0, %v635
        %v637 = vpop.f32.mrf.mxu0
        %638 = vmatprep.mubr.f32.mxu0 0.0
        %639 = vmatmul.mubr.f32.gmra.mxu0 %v465
        %v640 = vpop.f32.mrf.mxu0
        %v641 = vadd.f32 0.0, %v640
        %v642 = vpop.f32.mrf.mxu0
        %643 = vmatprep.mubr.f32.mxu0 0.0
        %644 = vmatmul.mubr.f32.gmra.mxu0 %v468
        %v645 = vpop.f32.mrf.mxu0
        %v646 = vadd.f32 0.0, %v645
        %v647 = vpop.f32.mrf.mxu0
        %648 = vmatprep.mubr.f32.mxu0 0.0
        %649 = vmatmul.mubr.f32.gmra.mxu0 %v471
        %v650 = vpop.f32.mrf.mxu0
        %v651 = vadd.f32 0.0, %v650
        %v652 = vpop.f32.mrf.mxu0
        %653 = vmatprep.mubr.f32.mxu0 0.0
        %654 = vmatmul.mubr.f32.gmra.mxu0 %v474
        %v655 = vpop.f32.mrf.mxu0
        %v656 = vadd.f32 0.0, %v655
        %v657 = vpop.f32.mrf.mxu0
        %658 = vmatprep.mubr.f32.mxu0 0.0
        %659 = vmatmul.mubr.f32.gmra.mxu0 %v477
        %v660 = vpop.f32.mrf.mxu0
        %v661 = vadd.f32 0.0, %v660
        %v662 = vpop.f32.mrf.mxu0
        %663 = vmatprep.mubr.f32.mxu0 0.0
        %664 = vmatmul.mubr.f32.gmra.mxu0 %v480
        %v665 = vpop.f32.mrf.mxu0
        %v666 = vadd.f32 0.0, %v665
        %v667 = vpop.f32.mrf.mxu0
        %668 = vmatprep.mubr.f32.mxu0 0.0
        %669 = vmatmul.mubr.f32.gmra.mxu0 %v483
        %v670 = vpop.f32.mrf.mxu0
        %v671 = vadd.f32 0.0, %v670
        %v672 = vpop.f32.mrf.mxu0
        %673 = vmatprep.mubr.f32.mxu0 0.0
        %674 = vmatmul.mubr.f32.gmra.mxu0 %v486
        %v675 = vpop.f32.mrf.mxu0
        %v676 = vadd.f32 0.0, %v675
        %v677 = vpop.f32.mrf.mxu0
        %678 = vmatprep.mubr.f32.mxu0 0.0
        %679 = vmatmul.mubr.f32.gmra.mxu0 %v489
        %v680 = vpop.f32.mrf.mxu0
        %v681 = vadd.f32 0.0, %v680
        %v682 = vpop.f32.mrf.mxu0
        %683 = vmatprep.mubr.f32.mxu0 0.0
        %684 = vmatmul.mubr.f32.gmra.mxu0 %v492
        %v685 = vpop.f32.mrf.mxu0
        %v686 = vadd.f32 0.0, %v685
        %v687 = vpop.f32.mrf.mxu0
        %688 = vmatprep.mubr.f32.mxu0 0.0
        %689 = vmatmul.mubr.f32.gmra.mxu0 %v495
        %v690 = vpop.f32.mrf.mxu0
        %v691 = vadd.f32 0.0, %v690
        %v692 = vpop.f32.mrf.mxu0
        %693 = vmatprep.mubr.f32.mxu0 0.0
        %694 = vmatmul.mubr.f32.gmra.mxu0 %v498
        %v695 = vpop.f32.mrf.mxu0
        %v696 = vadd.f32 0.0, %v695
        %v697 = vpop.f32.mrf.mxu0
        %698 = vmatprep.mubr.f32.mxu0 0.0
        %699 = vmatmul.mubr.f32.gmra.mxu0 %v501
        %v700 = vpop.f32.mrf.mxu0
        %v701 = vadd.f32 0.0, %v700
        %v702 = vpop.f32.mrf.mxu0
        %703 = vmatprep.mubr.f32.mxu0 0.0
        %704 = vmatmul.mubr.f32.gmra.mxu0 %v504
        %v705 = vpop.f32.mrf.mxu0
        %v706 = vadd.f32 0.0, %v705
        %v707 = vpop.f32.mrf.mxu0
        %708 = vmatprep.mubr.f32.mxu0 0.0
        %709 = vmatmul.mubr.f32.gmra.mxu0 %v507
        %v710 = vpop.f32.mrf.mxu0
        %v711 = vadd.f32 0.0, %v710
        %v712 = vpop.f32.mrf.mxu0
        %713 = vmatprep.mubr.f32.mxu0 0.0
        %714 = vmatmul.mubr.f32.gmra.mxu0 %v510
        %v715 = vpop.f32.mrf.mxu0
        %v716 = vadd.f32 0.0, %v715
        %v717 = vpop.f32.mrf.mxu0
        %718 = vmatprep.mubr.f32.mxu0 0.0
        %719 = vmatmul.mubr.f32.gmra.mxu0 %v513
        %v720 = vpop.f32.mrf.mxu0
        %v721 = vadd.f32 0.0, %v720
        %v722 = vpop.f32.mrf.mxu0
        %723 = vmatprep.mubr.f32.mxu0 0.0
        %724 = vmatmul.mubr.f32.gmra.mxu0 %v516
        %v725 = vpop.f32.mrf.mxu0
        %v726 = vadd.f32 0.0, %v725
        %v727 = vpop.f32.mrf.mxu0
        %728 = vmatprep.mubr.f32.mxu0 0.0
        %729 = vmatmul.mubr.f32.gmra.mxu0 %v519
        %v730 = vpop.f32.mrf.mxu0
        %v731 = vadd.f32 0.0, %v730
        %v732 = vpop.f32.mrf.mxu0
        %733 = vmatprep.mubr.f32.mxu0 0.0
        %734 = vmatmul.mubr.f32.gmra.mxu0 %v522
        %v735 = vpop.f32.mrf.mxu0
        %v736 = vadd.f32 0.0, %v735
        %v737 = vpop.f32.mrf.mxu0
        %738 = vmatprep.mubr.f32.mxu0 0.0
        %739 = vmatmul.mubr.f32.gmra.mxu0 %v525
        %v740 = vpop.f32.mrf.mxu0
        %v741 = vadd.f32 0.0, %v740
        %v742 = vpop.f32.mrf.mxu0
        %743 = vmatprep.mubr.f32.mxu0 0.0
        %744 = vmatmul.mubr.f32.gmra.mxu0 %v528
        %v745 = vpop.f32.mrf.mxu0
        %v746 = vadd.f32 0.0, %v745
        %v747 = vpop.f32.mrf.mxu0
        %748 = vmatprep.mubr.f32.mxu0 0.0
        %749 = vmatmul.mubr.f32.gmra.mxu0 %v531
        %v750 = vpop.f32.mrf.mxu0
        %v751 = vadd.f32 0.0, %v750
        %v752 = vpop.f32.mrf.mxu0
        %753 = vmatprep.mubr.f32.mxu0 0.0
        %754 = vmatmul.mubr.f32.gmra.mxu0 %v534
        %v755 = vpop.f32.mrf.mxu0
        %v756 = vadd.f32 0.0, %v755
        %v757 = vpop.f32.mrf.mxu0
        %758 = vmatprep.mubr.f32.mxu0 0.0
        %759 = vmatmul.mubr.f32.gmra.mxu0 %v537
        %v760 = vpop.f32.mrf.mxu0
        %v761 = vadd.f32 0.0, %v760
        %v762 = vpop.f32.mrf.mxu0
        %763 = vmatprep.mubr.f32.mxu0 0.0
        %764 = vmatmul.mubr.f32.gmra.mxu0 %v540
        %v765 = vpop.f32.mrf.mxu0
        %v766 = vadd.f32 0.0, %v765
        %v767 = vpop.f32.mrf.mxu0
        %768 = vmatprep.mubr.f32.mxu0 0.0
        %769 = vmatmul.mubr.f32.gmra.mxu0 %v543
        %v770 = vpop.f32.mrf.mxu0
        %v771 = vadd.f32 0.0, %v770
        %v772 = vpop.f32.mrf.mxu0
        %773 = vdwg.mxu0
        %v774 = vadd.f32 %v409, %v616
        %v775 = vadd.f32 %v409, %v621
        %v776 = vadd.f32 %v409, %v626
        %v777 = vadd.f32 %v409, %v631
        %v778 = vadd.f32 %v409, %v636
        %v779 = vadd.f32 %v409, %v641
        %v780 = vadd.f32 %v409, %v646
        %v781 = vadd.f32 %v409, %v651
        %v782 = vadd.f32 %v409, %v656
        %v783 = vadd.f32 %v409, %v661
        %v784 = vadd.f32 %v409, %v666
        %v785 = vadd.f32 %v409, %v671
        %v786 = vadd.f32 %v409, %v676
        %v787 = vadd.f32 %v409, %v681
        %v788 = vadd.f32 %v409, %v686
        %v789 = vadd.f32 %v409, %v691
        %v790 = vadd.f32 %v409, %v696
        %v791 = vadd.f32 %v409, %v701
        %v792 = vadd.f32 %v409, %v706
        %v793 = vadd.f32 %v409, %v711
        %v794 = vadd.f32 %v409, %v716
        %v795 = vadd.f32 %v409, %v721
        %v796 = vadd.f32 %v409, %v726
        %v797 = vadd.f32 %v409, %v731
        %v798 = vadd.f32 %v409, %v736
        %v799 = vadd.f32 %v409, %v741
        %v800 = vadd.f32 %v409, %v746
        %v801 = vadd.f32 %v409, %v751
        %v802 = vadd.f32 %v409, %v756
        %v803 = vadd.f32 %v409, %v761
        %v804 = vadd.f32 %v409, %v766
        %v805 = vadd.f32 %v409, %v771
        %v806 = vld [vmem:[#allocation2 + $0x1] sm:$0xff]
        %v807 = vld [vmem:[#allocation2 + $0x9] sm:$0xff]
        %v808 = vld [vmem:[#allocation2 + $0x19] sm:$0xff]
        %v809 = vld [vmem:[#allocation2 + $0x21] sm:$0xff]
        %v810 = vld [vmem:[#allocation2 + $0x31] sm:$0xff]
        %v811 = vld [vmem:[#allocation2 + $0x39] sm:$0xff]
        %v812 = vld [vmem:[#allocation2 + $0x49] sm:$0xff]
        %v813 = vld [vmem:[#allocation2 + $0x51] sm:$0xff]
        %v814 = vld [vmem:[#allocation2 + $0x61] sm:$0xff]
        %v815 = vld [vmem:[#allocation2 + $0x69] sm:$0xff]
        %v816 = vld [vmem:[#allocation2 + $0x79] sm:$0xff]
        %v817 = vld [vmem:[#allocation2 + $0x81] sm:$0xff]
        %v818 = vld [vmem:[#allocation2 + $0x91] sm:$0xff]
        %v819 = vld [vmem:[#allocation2 + $0x99] sm:$0xff]
        %v820 = vld [vmem:[#allocation2 + $0xa9] sm:$0xff]
        %v821 = vld [vmem:[#allocation2 + $0xb1] sm:$0xff]
        %v822 = vld [vmem:[#allocation2 + $0xc1] sm:$0xff]
        %v823 = vld [vmem:[#allocation2 + $0xc9] sm:$0xff]
        %v824 = vld [vmem:[#allocation2 + $0xd9] sm:$0xff]
        %v825 = vld [vmem:[#allocation2 + $0xe1] sm:$0xff]
        %v826 = vld [vmem:[#allocation2 + $0xf1] sm:$0xff]
        %v827 = vld [vmem:[#allocation2 + $0xf9] sm:$0xff]
        %v828 = vld [vmem:[#allocation2 + $0x109] sm:$0xff]
        %v829 = vld [vmem:[#allocation2 + $0x111] sm:$0xff]
        %v830 = vld [vmem:[#allocation2 + $0x121] sm:$0xff]
        %v831 = vld [vmem:[#allocation2 + $0x129] sm:$0xff]
        %v832 = vld [vmem:[#allocation2 + $0x139] sm:$0xff]
        %v833 = vld [vmem:[#allocation2 + $0x141] sm:$0xff]
        %v834 = vld [vmem:[#allocation2 + $0x151] sm:$0xff]
        %v835 = vld [vmem:[#allocation2 + $0x159] sm:$0xff]
        %v836 = vld [vmem:[#allocation2 + $0x169] sm:$0xff]
        %v837 = vld [vmem:[#allocation2 + $0x171] sm:$0xff]
        %s838 = scalar_lea.vmem %s1, 40
        %v839 = vld [vmem:[%s838] sm:$0xff]
        %v840 = vld [vmem:[%s838 + $0x8] sm:$0xff]
        %v841 = vld [vmem:[%s838 + $0x10] sm:$0xff]
        %v842 = vld [vmem:[%s838 + $0x18] sm:$0xff]
        %v843 = vld [vmem:[%s838 + $0x20] sm:$0xf]
        %v845 = vsel %vm448, %v806, 0
        %v848 = vsel %vm448, %v807, 0
        %v851 = vsel %vm448, %v808, 0
        %v854 = vsel %vm448, %v809, 0
        %v857 = vsel %vm448, %v810, 0
        %v860 = vsel %vm448, %v811, 0
        %v863 = vsel %vm448, %v812, 0
        %v866 = vsel %vm448, %v813, 0
        %v869 = vsel %vm448, %v814, 0
        %v872 = vsel %vm448, %v815, 0
        %v875 = vsel %vm448, %v816, 0
        %v878 = vsel %vm448, %v817, 0
        %v881 = vsel %vm448, %v818, 0
        %v884 = vsel %vm448, %v819, 0
        %v887 = vsel %vm448, %v820, 0
        %v890 = vsel %vm448, %v821, 0
        %v893 = vsel %vm448, %v822, 0
        %v896 = vsel %vm448, %v823, 0
        %v899 = vsel %vm448, %v824, 0
        %v902 = vsel %vm448, %v825, 0
        %v905 = vsel %vm448, %v826, 0
        %v908 = vsel %vm448, %v827, 0
        %v911 = vsel %vm448, %v828, 0
        %v914 = vsel %vm448, %v829, 0
        %v917 = vsel %vm448, %v830, 0
        %v920 = vsel %vm448, %v831, 0
        %v923 = vsel %vm448, %v832, 0
        %v926 = vsel %vm448, %v833, 0
        %v929 = vsel %vm448, %v834, 0
        %v932 = vsel %vm448, %v835, 0
        %v935 = vsel %vm448, %v836, 0
        %v938 = vsel %vm448, %v837, 0
        %v941 = vsel %vm545, %v843, 0
        %943 = vmatprep.subr.mxu0 0.0
        %944 = vmatpush1.msra.mxu0 0.0
        %945 = vmatprep.subr.mxu0 0.0
        %946 = vmatpush1.msra.mxu0 0.0
        %947 = vmatprep.subr.mxu0 0.0
        %948 = vmatpush1.msra.mxu0 0.0
        %949 = vmatprep.subr.mxu0 0.0
        %950 = vmatpush1.msra.mxu0 0.0
        %951 = vmatprep.subr.mxu0 0.0
        %952 = vmatpush1.msra.mxu0 0.0
        %953 = vmatprep.subr.mxu0 0.0
        %954 = vmatpush1.msra.mxu0 0.0
        %955 = vmatprep.subr.mxu0 0.0
        %956 = vmatpush1.msra.mxu0 0.0
        %957 = vmatprep.subr.mxu0 0.0
        %958 = vmatpush1.msra.mxu0 0.0
        %959 = vmatprep.subr.mxu0 0.0
        %960 = vmatpush1.msra.mxu0 0.0
        %961 = vmatprep.subr.mxu0 0.0
        %962 = vmatpush1.msra.mxu0 0.0
        %963 = vmatprep.subr.mxu0 0.0
        %964 = vmatpush1.msra.mxu0 0.0
        %965 = vmatprep.subr.mxu0 0.0
        %966 = vmatpush1.msra.mxu0 %v941
        %967 = vmatprep.subr.mxu0 0.0
        %968 = vmatpush1.msra.mxu0 %v842
        %969 = vmatprep.subr.mxu0 0.0
        %970 = vmatpush1.msra.mxu0 %v841
        %971 = vmatprep.subr.mxu0 0.0
        %972 = vmatpush1.msra.mxu0 %v840
        %973 = vmatprep.subr.mxu0 0.0
        %974 = vmatpush1.msra.mxu0 %v839
        %975 = vmatprep.subr.mxu0 0.0
        %976 = vmatpush2.msra.mxu0 0.0
        %977 = vmatprep.subr.mxu0 0.0
        %978 = vmatpush2.msra.mxu0 0.0
        %979 = vmatprep.subr.mxu0 0.0
        %980 = vmatpush2.msra.mxu0 0.0
        %981 = vmatprep.subr.mxu0 0.0
        %982 = vmatpush2.msra.mxu0 0.0
        %983 = vmatprep.subr.mxu0 0.0
        %984 = vmatpush2.msra.mxu0 0.0
        %985 = vmatprep.subr.mxu0 0.0
        %986 = vmatpush2.msra.mxu0 0.0
        %987 = vmatprep.subr.mxu0 0.0
        %988 = vmatpush2.msra.mxu0 0.0
        %989 = vmatprep.subr.mxu0 0.0
        %990 = vmatpush2.msra.mxu0 0.0
        %991 = vmatprep.subr.mxu0 0.0
        %992 = vmatpush2.msra.mxu0 0.0
        %993 = vmatprep.subr.mxu0 0.0
        %994 = vmatpush2.msra.mxu0 0.0
        %995 = vmatprep.subr.mxu0 0.0
        %996 = vmatpush2.msra.mxu0 0.0
        %997 = vmatprep.subr.mxu0 0.0
        %998 = vmatpush2.msra.mxu0 0.0
        %999 = vmatprep.subr.mxu0 0.0
        %1000 = vmatpush2.msra.mxu0 0.0
        %1001 = vmatprep.subr.mxu0 0.0
        %1002 = vmatpush2.msra.mxu0 0.0
        %1003 = vmatprep.subr.mxu0 0.0
        %1004 = vmatpush2.msra.mxu0 0.0
        %1005 = vmatprep.subr.mxu0 0.0
        %1006 = vmatpush2.msra.mxu0 0.0
        %1007 = vmatprep.mubr.f32.mxu0 0.0
        %1008 = vmatmul.mubr.f32.gmra.mxu0 %v845
        %v1009 = vpop.f32.mrf.mxu0
        %v1010 = vadd.f32 0.0, %v1009
        %v1011 = vpop.f32.mrf.mxu0
        %1012 = vmatprep.mubr.f32.mxu0 0.0
        %1013 = vmatmul.mubr.f32.gmra.mxu0 %v848
        %v1014 = vpop.f32.mrf.mxu0
        %v1015 = vadd.f32 0.0, %v1014
        %v1016 = vpop.f32.mrf.mxu0
        %1017 = vmatprep.mubr.f32.mxu0 0.0
        %1018 = vmatmul.mubr.f32.gmra.mxu0 %v851
        %v1019 = vpop.f32.mrf.mxu0
        %v1020 = vadd.f32 0.0, %v1019
        %v1021 = vpop.f32.mrf.mxu0
        %1022 = vmatprep.mubr.f32.mxu0 0.0
        %1023 = vmatmul.mubr.f32.gmra.mxu0 %v854
        %v1024 = vpop.f32.mrf.mxu0
        %v1025 = vadd.f32 0.0, %v1024
        %v1026 = vpop.f32.mrf.mxu0
        %1027 = vmatprep.mubr.f32.mxu0 0.0
        %1028 = vmatmul.mubr.f32.gmra.mxu0 %v857
        %v1029 = vpop.f32.mrf.mxu0
        %v1030 = vadd.f32 0.0, %v1029
        %v1031 = vpop.f32.mrf.mxu0
        %1032 = vmatprep.mubr.f32.mxu0 0.0
        %1033 = vmatmul.mubr.f32.gmra.mxu0 %v860
        %v1034 = vpop.f32.mrf.mxu0
        %v1035 = vadd.f32 0.0, %v1034
        %v1036 = vpop.f32.mrf.mxu0
        %1037 = vmatprep.mubr.f32.mxu0 0.0
        %1038 = vmatmul.mubr.f32.gmra.mxu0 %v863
        %v1039 = vpop.f32.mrf.mxu0
        %v1040 = vadd.f32 0.0, %v1039
        %v1041 = vpop.f32.mrf.mxu0
        %1042 = vmatprep.mubr.f32.mxu0 0.0
        %1043 = vmatmul.mubr.f32.gmra.mxu0 %v866
        %v1044 = vpop.f32.mrf.mxu0
        %v1045 = vadd.f32 0.0, %v1044
        %v1046 = vpop.f32.mrf.mxu0
        %1047 = vmatprep.mubr.f32.mxu0 0.0
        %1048 = vmatmul.mubr.f32.gmra.mxu0 %v869
        %v1049 = vpop.f32.mrf.mxu0
        %v1050 = vadd.f32 0.0, %v1049
        %v1051 = vpop.f32.mrf.mxu0
        %1052 = vmatprep.mubr.f32.mxu0 0.0
        %1053 = vmatmul.mubr.f32.gmra.mxu0 %v872
        %v1054 = vpop.f32.mrf.mxu0
        %v1055 = vadd.f32 0.0, %v1054
        %v1056 = vpop.f32.mrf.mxu0
        %1057 = vmatprep.mubr.f32.mxu0 0.0
        %1058 = vmatmul.mubr.f32.gmra.mxu0 %v875
        %v1059 = vpop.f32.mrf.mxu0
        %v1060 = vadd.f32 0.0, %v1059
        %v1061 = vpop.f32.mrf.mxu0
        %1062 = vmatprep.mubr.f32.mxu0 0.0
        %1063 = vmatmul.mubr.f32.gmra.mxu0 %v878
        %v1064 = vpop.f32.mrf.mxu0
        %v1065 = vadd.f32 0.0, %v1064
        %v1066 = vpop.f32.mrf.mxu0
        %1067 = vmatprep.mubr.f32.mxu0 0.0
        %1068 = vmatmul.mubr.f32.gmra.mxu0 %v881
        %v1069 = vpop.f32.mrf.mxu0
        %v1070 = vadd.f32 0.0, %v1069
        %v1071 = vpop.f32.mrf.mxu0
        %1072 = vmatprep.mubr.f32.mxu0 0.0
        %1073 = vmatmul.mubr.f32.gmra.mxu0 %v884
        %v1074 = vpop.f32.mrf.mxu0
        %v1075 = vadd.f32 0.0, %v1074
        %v1076 = vpop.f32.mrf.mxu0
        %1077 = vmatprep.mubr.f32.mxu0 0.0
        %1078 = vmatmul.mubr.f32.gmra.mxu0 %v887
        %v1079 = vpop.f32.mrf.mxu0
        %v1080 = vadd.f32 0.0, %v1079
        %v1081 = vpop.f32.mrf.mxu0
        %1082 = vmatprep.mubr.f32.mxu0 0.0
        %1083 = vmatmul.mubr.f32.gmra.mxu0 %v890
        %v1084 = vpop.f32.mrf.mxu0
        %v1085 = vadd.f32 0.0, %v1084
        %v1086 = vpop.f32.mrf.mxu0
        %1087 = vmatprep.mubr.f32.mxu0 0.0
        %1088 = vmatmul.mubr.f32.gmra.mxu0 %v893
        %v1089 = vpop.f32.mrf.mxu0
        %v1090 = vadd.f32 0.0, %v1089
        %v1091 = vpop.f32.mrf.mxu0
        %1092 = vmatprep.mubr.f32.mxu0 0.0
        %1093 = vmatmul.mubr.f32.gmra.mxu0 %v896
        %v1094 = vpop.f32.mrf.mxu0
        %v1095 = vadd.f32 0.0, %v1094
        %v1096 = vpop.f32.mrf.mxu0
        %1097 = vmatprep.mubr.f32.mxu0 0.0
        %1098 = vmatmul.mubr.f32.gmra.mxu0 %v899
        %v1099 = vpop.f32.mrf.mxu0
        %v1100 = vadd.f32 0.0, %v1099
        %v1101 = vpop.f32.mrf.mxu0
        %1102 = vmatprep.mubr.f32.mxu0 0.0
        %1103 = vmatmul.mubr.f32.gmra.mxu0 %v902
        %v1104 = vpop.f32.mrf.mxu0
        %v1105 = vadd.f32 0.0, %v1104
        %v1106 = vpop.f32.mrf.mxu0
        %1107 = vmatprep.mubr.f32.mxu0 0.0
        %1108 = vmatmul.mubr.f32.gmra.mxu0 %v905
        %v1109 = vpop.f32.mrf.mxu0
        %v1110 = vadd.f32 0.0, %v1109
        %v1111 = vpop.f32.mrf.mxu0
        %1112 = vmatprep.mubr.f32.mxu0 0.0
        %1113 = vmatmul.mubr.f32.gmra.mxu0 %v908
        %v1114 = vpop.f32.mrf.mxu0
        %v1115 = vadd.f32 0.0, %v1114
        %v1116 = vpop.f32.mrf.mxu0
        %1117 = vmatprep.mubr.f32.mxu0 0.0
        %1118 = vmatmul.mubr.f32.gmra.mxu0 %v911
        %v1119 = vpop.f32.mrf.mxu0
        %v1120 = vadd.f32 0.0, %v1119
        %v1121 = vpop.f32.mrf.mxu0
        %1122 = vmatprep.mubr.f32.mxu0 0.0
        %1123 = vmatmul.mubr.f32.gmra.mxu0 %v914
        %v1124 = vpop.f32.mrf.mxu0
        %v1125 = vadd.f32 0.0, %v1124
        %v1126 = vpop.f32.mrf.mxu0
        %1127 = vmatprep.mubr.f32.mxu0 0.0
        %1128 = vmatmul.mubr.f32.gmra.mxu0 %v917
        %v1129 = vpop.f32.mrf.mxu0
        %v1130 = vadd.f32 0.0, %v1129
        %v1131 = vpop.f32.mrf.mxu0
        %1132 = vmatprep.mubr.f32.mxu0 0.0
        %1133 = vmatmul.mubr.f32.gmra.mxu0 %v920
        %v1134 = vpop.f32.mrf.mxu0
        %v1135 = vadd.f32 0.0, %v1134
        %v1136 = vpop.f32.mrf.mxu0
        %1137 = vmatprep.mubr.f32.mxu0 0.0
        %1138 = vmatmul.mubr.f32.gmra.mxu0 %v923
        %v1139 = vpop.f32.mrf.mxu0
        %v1140 = vadd.f32 0.0, %v1139
        %v1141 = vpop.f32.mrf.mxu0
        %1142 = vmatprep.mubr.f32.mxu0 0.0
        %1143 = vmatmul.mubr.f32.gmra.mxu0 %v926
        %v1144 = vpop.f32.mrf.mxu0
        %v1145 = vadd.f32 0.0, %v1144
        %v1146 = vpop.f32.mrf.mxu0
        %1147 = vmatprep.mubr.f32.mxu0 0.0
        %1148 = vmatmul.mubr.f32.gmra.mxu0 %v929
        %v1149 = vpop.f32.mrf.mxu0
        %v1150 = vadd.f32 0.0, %v1149
        %v1151 = vpop.f32.mrf.mxu0
        %1152 = vmatprep.mubr.f32.mxu0 0.0
        %1153 = vmatmul.mubr.f32.gmra.mxu0 %v932
        %v1154 = vpop.f32.mrf.mxu0
        %v1155 = vadd.f32 0.0, %v1154
        %v1156 = vpop.f32.mrf.mxu0
        %1157 = vmatprep.mubr.f32.mxu0 0.0
        %1158 = vmatmul.mubr.f32.gmra.mxu0 %v935
        %v1159 = vpop.f32.mrf.mxu0
        %v1160 = vadd.f32 0.0, %v1159
        %v1161 = vpop.f32.mrf.mxu0
        %1162 = vmatprep.mubr.f32.mxu0 0.0
        %1163 = vmatmul.mubr.f32.gmra.mxu0 %v938
        %v1164 = vpop.f32.mrf.mxu0
        %v1165 = vadd.f32 0.0, %v1164
        %v1166 = vpop.f32.mrf.mxu0
        %1167 = vdwg.mxu0
        %v1168 = vadd.f32 %v774, %v1010
        %v1169 = vadd.f32 %v775, %v1015
        %v1170 = vadd.f32 %v776, %v1020
        %v1171 = vadd.f32 %v777, %v1025
        %v1172 = vadd.f32 %v778, %v1030
        %v1173 = vadd.f32 %v779, %v1035
        %v1174 = vadd.f32 %v780, %v1040
        %v1175 = vadd.f32 %v781, %v1045
        %v1176 = vadd.f32 %v782, %v1050
        %v1177 = vadd.f32 %v783, %v1055
        %v1178 = vadd.f32 %v784, %v1060
        %v1179 = vadd.f32 %v785, %v1065
        %v1180 = vadd.f32 %v786, %v1070
        %v1181 = vadd.f32 %v787, %v1075
        %v1182 = vadd.f32 %v788, %v1080
        %v1183 = vadd.f32 %v789, %v1085
        %v1184 = vadd.f32 %v790, %v1090
        %v1185 = vadd.f32 %v791, %v1095
        %v1186 = vadd.f32 %v792, %v1100
        %v1187 = vadd.f32 %v793, %v1105
        %v1188 = vadd.f32 %v794, %v1110
        %v1189 = vadd.f32 %v795, %v1115
        %v1190 = vadd.f32 %v796, %v1120
        %v1191 = vadd.f32 %v797, %v1125
        %v1192 = vadd.f32 %v798, %v1130
        %v1193 = vadd.f32 %v799, %v1135
        %v1194 = vadd.f32 %v800, %v1140
        %v1195 = vadd.f32 %v801, %v1145
        %v1196 = vadd.f32 %v802, %v1150
        %v1197 = vadd.f32 %v803, %v1155
        %v1198 = vadd.f32 %v804, %v1160
        %v1199 = vadd.f32 %v805, %v1165
        %v1200 = vld [vmem:[#allocation2 + $0x2] sm:$0xff]
        %v1201 = vld [vmem:[#allocation2 + $0xa] sm:$0xff]
        %v1202 = vld [vmem:[#allocation2 + $0x1a] sm:$0xff]
        %v1203 = vld [vmem:[#allocation2 + $0x22] sm:$0xff]
        %v1204 = vld [vmem:[#allocation2 + $0x32] sm:$0xff]
        %v1205 = vld [vmem:[#allocation2 + $0x3a] sm:$0xff]
        %v1206 = vld [vmem:[#allocation2 + $0x4a] sm:$0xff]
        %v1207 = vld [vmem:[#allocation2 + $0x52] sm:$0xff]
        %v1208 = vld [vmem:[#allocation2 + $0x62] sm:$0xff]
        %v1209 = vld [vmem:[#allocation2 + $0x6a] sm:$0xff]
        %v1210 = vld [vmem:[#allocation2 + $0x7a] sm:$0xff]
        %v1211 = vld [vmem:[#allocation2 + $0x82] sm:$0xff]
        %v1212 = vld [vmem:[#allocation2 + $0x92] sm:$0xff]
        %v1213 = vld [vmem:[#allocation2 + $0x9a] sm:$0xff]
        %v1214 = vld [vmem:[#allocation2 + $0xaa] sm:$0xff]
        %v1215 = vld [vmem:[#allocation2 + $0xb2] sm:$0xff]
        %v1216 = vld [vmem:[#allocation2 + $0xc2] sm:$0xff]
        %v1217 = vld [vmem:[#allocation2 + $0xca] sm:$0xff]
        %v1218 = vld [vmem:[#allocation2 + $0xda] sm:$0xff]
        %v1219 = vld [vmem:[#allocation2 + $0xe2] sm:$0xff]
        %v1220 = vld [vmem:[#allocation2 + $0xf2] sm:$0xff]
        %v1221 = vld [vmem:[#allocation2 + $0xfa] sm:$0xff]
        %v1222 = vld [vmem:[#allocation2 + $0x10a] sm:$0xff]
        %v1223 = vld [vmem:[#allocation2 + $0x112] sm:$0xff]
        %v1224 = vld [vmem:[#allocation2 + $0x122] sm:$0xff]
        %v1225 = vld [vmem:[#allocation2 + $0x12a] sm:$0xff]
        %v1226 = vld [vmem:[#allocation2 + $0x13a] sm:$0xff]
        %v1227 = vld [vmem:[#allocation2 + $0x142] sm:$0xff]
        %v1228 = vld [vmem:[#allocation2 + $0x152] sm:$0xff]
        %v1229 = vld [vmem:[#allocation2 + $0x15a] sm:$0xff]
        %v1230 = vld [vmem:[#allocation2 + $0x16a] sm:$0xff]
        %v1231 = vld [vmem:[#allocation2 + $0x172] sm:$0xff]
        %s1232 = scalar_lea.vmem %s1, 80
        %v1233 = vld [vmem:[%s1232] sm:$0xff]
        %v1234 = vld [vmem:[%s1232 + $0x8] sm:$0xff]
        %v1235 = vld [vmem:[%s1232 + $0x10] sm:$0xff]
        %v1236 = vld [vmem:[%s1232 + $0x18] sm:$0xff]
        %v1237 = vld [vmem:[%s1232 + $0x20] sm:$0xf]
        %v1239 = vsel %vm448, %v1200, 0
        %v1242 = vsel %vm448, %v1201, 0
        %v1245 = vsel %vm448, %v1202, 0
        %v1248 = vsel %vm448, %v1203, 0
        %v1251 = vsel %vm448, %v1204, 0
        %v1254 = vsel %vm448, %v1205, 0
        %v1257 = vsel %vm448, %v1206, 0
        %v1260 = vsel %vm448, %v1207, 0
        %v1263 = vsel %vm448, %v1208, 0
        %v1266 = vsel %vm448, %v1209, 0
        %v1269 = vsel %vm448, %v1210, 0
        %v1272 = vsel %vm448, %v1211, 0
        %v1275 = vsel %vm448, %v1212, 0
        %v1278 = vsel %vm448, %v1213, 0
        %v1281 = vsel %vm448, %v1214, 0
        %v1284 = vsel %vm448, %v1215, 0
        %v1287 = vsel %vm448, %v1216, 0
        %v1290 = vsel %vm448, %v1217, 0
        %v1293 = vsel %vm448, %v1218, 0
        %v1296 = vsel %vm448, %v1219, 0
        %v1299 = vsel %vm448, %v1220, 0
        %v1302 = vsel %vm448, %v1221, 0
        %v1305 = vsel %vm448, %v1222, 0
        %v1308 = vsel %vm448, %v1223, 0
        %v1311 = vsel %vm448, %v1224, 0
        %v1314 = vsel %vm448, %v1225, 0
        %v1317 = vsel %vm448, %v1226, 0
        %v1320 = vsel %vm448, %v1227, 0
        %v1323 = vsel %vm448, %v1228, 0
        %v1326 = vsel %vm448, %v1229, 0
        %v1329 = vsel %vm448, %v1230, 0
        %v1332 = vsel %vm448, %v1231, 0
        %v1335 = vsel %vm545, %v1237, 0
        %1337 = vmatprep.subr.mxu0 0.0
        %1338 = vmatpush1.msra.mxu0 0.0
        %1339 = vmatprep.subr.mxu0 0.0
        %1340 = vmatpush1.msra.mxu0 0.0
        %1341 = vmatprep.subr.mxu0 0.0
        %1342 = vmatpush1.msra.mxu0 0.0
        %1343 = vmatprep.subr.mxu0 0.0
        %1344 = vmatpush1.msra.mxu0 0.0
        %1345 = vmatprep.subr.mxu0 0.0
        %1346 = vmatpush1.msra.mxu0 0.0
        %1347 = vmatprep.subr.mxu0 0.0
        %1348 = vmatpush1.msra.mxu0 0.0
        %1349 = vmatprep.subr.mxu0 0.0
        %1350 = vmatpush1.msra.mxu0 0.0
        %1351 = vmatprep.subr.mxu0 0.0
        %1352 = vmatpush1.msra.mxu0 0.0
        %1353 = vmatprep.subr.mxu0 0.0
        %1354 = vmatpush1.msra.mxu0 0.0
        %1355 = vmatprep.subr.mxu0 0.0
        %1356 = vmatpush1.msra.mxu0 0.0
        %1357 = vmatprep.subr.mxu0 0.0
        %1358 = vmatpush1.msra.mxu0 0.0
        %1359 = vmatprep.subr.mxu0 0.0
        %1360 = vmatpush1.msra.mxu0 %v1335
        %1361 = vmatprep.subr.mxu0 0.0
        %1362 = vmatpush1.msra.mxu0 %v1236
        %1363 = vmatprep.subr.mxu0 0.0
        %1364 = vmatpush1.msra.mxu0 %v1235
        %1365 = vmatprep.subr.mxu0 0.0
        %1366 = vmatpush1.msra.mxu0 %v1234
        %1367 = vmatprep.subr.mxu0 0.0
        %1368 = vmatpush1.msra.mxu0 %v1233
        %1369 = vmatprep.subr.mxu0 0.0
        %1370 = vmatpush2.msra.mxu0 0.0
        %1371 = vmatprep.subr.mxu0 0.0
        %1372 = vmatpush2.msra.mxu0 0.0
        %1373 = vmatprep.subr.mxu0 0.0
        %1374 = vmatpush2.msra.mxu0 0.0
        %1375 = vmatprep.subr.mxu0 0.0
        %1376 = vmatpush2.msra.mxu0 0.0
        %1377 = vmatprep.subr.mxu0 0.0
        %1378 = vmatpush2.msra.mxu0 0.0
        %1379 = vmatprep.subr.mxu0 0.0
        %1380 = vmatpush2.msra.mxu0 0.0
        %1381 = vmatprep.subr.mxu0 0.0
        %1382 = vmatpush2.msra.mxu0 0.0
        %1383 = vmatprep.subr.mxu0 0.0
        %1384 = vmatpush2.msra.mxu0 0.0
        %1385 = vmatprep.subr.mxu0 0.0
        %1386 = vmatpush2.msra.mxu0 0.0
        %1387 = vmatprep.subr.mxu0 0.0
        %1388 = vmatpush2.msra.mxu0 0.0
        %1389 = vmatprep.subr.mxu0 0.0
        %1390 = vmatpush2.msra.mxu0 0.0
        %1391 = vmatprep.subr.mxu0 0.0
        %1392 = vmatpush2.msra.mxu0 0.0
        %1393 = vmatprep.subr.mxu0 0.0
        %1394 = vmatpush2.msra.mxu0 0.0
        %1395 = vmatprep.subr.mxu0 0.0
        %1396 = vmatpush2.msra.mxu0 0.0
        %1397 = vmatprep.subr.mxu0 0.0
        %1398 = vmatpush2.msra.mxu0 0.0
        %1399 = vmatprep.subr.mxu0 0.0
        %1400 = vmatpush2.msra.mxu0 0.0
        %1401 = vmatprep.mubr.f32.mxu0 0.0
        %1402 = vmatmul.mubr.f32.gmra.mxu0 %v1239
        %v1403 = vpop.f32.mrf.mxu0
        %v1404 = vadd.f32 0.0, %v1403
        %v1405 = vpop.f32.mrf.mxu0
        %1406 = vmatprep.mubr.f32.mxu0 0.0
        %1407 = vmatmul.mubr.f32.gmra.mxu0 %v1242
        %v1408 = vpop.f32.mrf.mxu0
        %v1409 = vadd.f32 0.0, %v1408
        %v1410 = vpop.f32.mrf.mxu0
        %1411 = vmatprep.mubr.f32.mxu0 0.0
        %1412 = vmatmul.mubr.f32.gmra.mxu0 %v1245
        %v1413 = vpop.f32.mrf.mxu0
        %v1414 = vadd.f32 0.0, %v1413
        %v1415 = vpop.f32.mrf.mxu0
        %1416 = vmatprep.mubr.f32.mxu0 0.0
        %1417 = vmatmul.mubr.f32.gmra.mxu0 %v1248
        %v1418 = vpop.f32.mrf.mxu0
        %v1419 = vadd.f32 0.0, %v1418
        %v1420 = vpop.f32.mrf.mxu0
        %1421 = vmatprep.mubr.f32.mxu0 0.0
        %1422 = vmatmul.mubr.f32.gmra.mxu0 %v1251
        %v1423 = vpop.f32.mrf.mxu0
        %v1424 = vadd.f32 0.0, %v1423
        %v1425 = vpop.f32.mrf.mxu0
        %1426 = vmatprep.mubr.f32.mxu0 0.0
        %1427 = vmatmul.mubr.f32.gmra.mxu0 %v1254
        %v1428 = vpop.f32.mrf.mxu0
        %v1429 = vadd.f32 0.0, %v1428
        %v1430 = vpop.f32.mrf.mxu0
        %1431 = vmatprep.mubr.f32.mxu0 0.0
        %1432 = vmatmul.mubr.f32.gmra.mxu0 %v1257
        %v1433 = vpop.f32.mrf.mxu0
        %v1434 = vadd.f32 0.0, %v1433
        %v1435 = vpop.f32.mrf.mxu0
        %1436 = vmatprep.mubr.f32.mxu0 0.0
        %1437 = vmatmul.mubr.f32.gmra.mxu0 %v1260
        %v1438 = vpop.f32.mrf.mxu0
        %v1439 = vadd.f32 0.0, %v1438
        %v1440 = vpop.f32.mrf.mxu0
        %1441 = vmatprep.mubr.f32.mxu0 0.0
        %1442 = vmatmul.mubr.f32.gmra.mxu0 %v1263
        %v1443 = vpop.f32.mrf.mxu0
        %v1444 = vadd.f32 0.0, %v1443
        %v1445 = vpop.f32.mrf.mxu0
        %1446 = vmatprep.mubr.f32.mxu0 0.0
        %1447 = vmatmul.mubr.f32.gmra.mxu0 %v1266
        %v1448 = vpop.f32.mrf.mxu0
        %v1449 = vadd.f32 0.0, %v1448
        %v1450 = vpop.f32.mrf.mxu0
        %1451 = vmatprep.mubr.f32.mxu0 0.0
        %1452 = vmatmul.mubr.f32.gmra.mxu0 %v1269
        %v1453 = vpop.f32.mrf.mxu0
        %v1454 = vadd.f32 0.0, %v1453
        %v1455 = vpop.f32.mrf.mxu0
        %1456 = vmatprep.mubr.f32.mxu0 0.0
        %1457 = vmatmul.mubr.f32.gmra.mxu0 %v1272
        %v1458 = vpop.f32.mrf.mxu0
        %v1459 = vadd.f32 0.0, %v1458
        %v1460 = vpop.f32.mrf.mxu0
        %1461 = vmatprep.mubr.f32.mxu0 0.0
        %1462 = vmatmul.mubr.f32.gmra.mxu0 %v1275
        %v1463 = vpop.f32.mrf.mxu0
        %v1464 = vadd.f32 0.0, %v1463
        %v1465 = vpop.f32.mrf.mxu0
        %1466 = vmatprep.mubr.f32.mxu0 0.0
        %1467 = vmatmul.mubr.f32.gmra.mxu0 %v1278
        %v1468 = vpop.f32.mrf.mxu0
        %v1469 = vadd.f32 0.0, %v1468
        %v1470 = vpop.f32.mrf.mxu0
        %1471 = vmatprep.mubr.f32.mxu0 0.0
        %1472 = vmatmul.mubr.f32.gmra.mxu0 %v1281
        %v1473 = vpop.f32.mrf.mxu0
        %v1474 = vadd.f32 0.0, %v1473
        %v1475 = vpop.f32.mrf.mxu0
        %1476 = vmatprep.mubr.f32.mxu0 0.0
        %1477 = vmatmul.mubr.f32.gmra.mxu0 %v1284
        %v1478 = vpop.f32.mrf.mxu0
        %v1479 = vadd.f32 0.0, %v1478
        %v1480 = vpop.f32.mrf.mxu0
        %1481 = vmatprep.mubr.f32.mxu0 0.0
        %1482 = vmatmul.mubr.f32.gmra.mxu0 %v1287
        %v1483 = vpop.f32.mrf.mxu0
        %v1484 = vadd.f32 0.0, %v1483
        %v1485 = vpop.f32.mrf.mxu0
        %1486 = vmatprep.mubr.f32.mxu0 0.0
        %1487 = vmatmul.mubr.f32.gmra.mxu0 %v1290
        %v1488 = vpop.f32.mrf.mxu0
        %v1489 = vadd.f32 0.0, %v1488
        %v1490 = vpop.f32.mrf.mxu0
        %1491 = vmatprep.mubr.f32.mxu0 0.0
        %1492 = vmatmul.mubr.f32.gmra.mxu0 %v1293
        %v1493 = vpop.f32.mrf.mxu0
        %v1494 = vadd.f32 0.0, %v1493
        %v1495 = vpop.f32.mrf.mxu0
        %1496 = vmatprep.mubr.f32.mxu0 0.0
        %1497 = vmatmul.mubr.f32.gmra.mxu0 %v1296
        %v1498 = vpop.f32.mrf.mxu0
        %v1499 = vadd.f32 0.0, %v1498
        %v1500 = vpop.f32.mrf.mxu0
        %1501 = vmatprep.mubr.f32.mxu0 0.0
        %1502 = vmatmul.mubr.f32.gmra.mxu0 %v1299
        %v1503 = vpop.f32.mrf.mxu0
        %v1504 = vadd.f32 0.0, %v1503
        %v1505 = vpop.f32.mrf.mxu0
        %1506 = vmatprep.mubr.f32.mxu0 0.0
        %1507 = vmatmul.mubr.f32.gmra.mxu0 %v1302
        %v1508 = vpop.f32.mrf.mxu0
        %v1509 = vadd.f32 0.0, %v1508
        %v1510 = vpop.f32.mrf.mxu0
        %1511 = vmatprep.mubr.f32.mxu0 0.0
        %1512 = vmatmul.mubr.f32.gmra.mxu0 %v1305
        %v1513 = vpop.f32.mrf.mxu0
        %v1514 = vadd.f32 0.0, %v1513
        %v1515 = vpop.f32.mrf.mxu0
        %1516 = vmatprep.mubr.f32.mxu0 0.0
        %1517 = vmatmul.mubr.f32.gmra.mxu0 %v1308
        %v1518 = vpop.f32.mrf.mxu0
        %v1519 = vadd.f32 0.0, %v1518
        %v1520 = vpop.f32.mrf.mxu0
        %1521 = vmatprep.mubr.f32.mxu0 0.0
        %1522 = vmatmul.mubr.f32.gmra.mxu0 %v1311
        %v1523 = vpop.f32.mrf.mxu0
        %v1524 = vadd.f32 0.0, %v1523
        %v1525 = vpop.f32.mrf.mxu0
        %1526 = vmatprep.mubr.f32.mxu0 0.0
        %1527 = vmatmul.mubr.f32.gmra.mxu0 %v1314
        %v1528 = vpop.f32.mrf.mxu0
        %v1529 = vadd.f32 0.0, %v1528
        %v1530 = vpop.f32.mrf.mxu0
        %1531 = vmatprep.mubr.f32.mxu0 0.0
        %1532 = vmatmul.mubr.f32.gmra.mxu0 %v1317
        %v1533 = vpop.f32.mrf.mxu0
        %v1534 = vadd.f32 0.0, %v1533
        %v1535 = vpop.f32.mrf.mxu0
        %1536 = vmatprep.mubr.f32.mxu0 0.0
        %1537 = vmatmul.mubr.f32.gmra.mxu0 %v1320
        %v1538 = vpop.f32.mrf.mxu0
        %v1539 = vadd.f32 0.0, %v1538
        %v1540 = vpop.f32.mrf.mxu0
        %1541 = vmatprep.mubr.f32.mxu0 0.0
        %1542 = vmatmul.mubr.f32.gmra.mxu0 %v1323
        %v1543 = vpop.f32.mrf.mxu0
        %v1544 = vadd.f32 0.0, %v1543
        %v1545 = vpop.f32.mrf.mxu0
        %1546 = vmatprep.mubr.f32.mxu0 0.0
        %1547 = vmatmul.mubr.f32.gmra.mxu0 %v1326
        %v1548 = vpop.f32.mrf.mxu0
        %v1549 = vadd.f32 0.0, %v1548
        %v1550 = vpop.f32.mrf.mxu0
        %1551 = vmatprep.mubr.f32.mxu0 0.0
        %1552 = vmatmul.mubr.f32.gmra.mxu0 %v1329
        %v1553 = vpop.f32.mrf.mxu0
        %v1554 = vadd.f32 0.0, %v1553
        %v1555 = vpop.f32.mrf.mxu0
        %1556 = vmatprep.mubr.f32.mxu0 0.0
        %1557 = vmatmul.mubr.f32.gmra.mxu0 %v1332
        %v1558 = vpop.f32.mrf.mxu0
        %v1559 = vadd.f32 0.0, %v1558
        %v1560 = vpop.f32.mrf.mxu0
        %1561 = vdwg.mxu0
        %v1562 = vadd.f32 %v1168, %v1404
        %v1563 = vadd.f32 %v1169, %v1409
        %v1564 = vadd.f32 %v1170, %v1414
        %v1565 = vadd.f32 %v1171, %v1419
        %v1566 = vadd.f32 %v1172, %v1424
        %v1567 = vadd.f32 %v1173, %v1429
        %v1568 = vadd.f32 %v1174, %v1434
        %v1569 = vadd.f32 %v1175, %v1439
        %v1570 = vadd.f32 %v1176, %v1444
        %v1571 = vadd.f32 %v1177, %v1449
        %v1572 = vadd.f32 %v1178, %v1454
        %v1573 = vadd.f32 %v1179, %v1459
        %v1574 = vadd.f32 %v1180, %v1464
        %v1575 = vadd.f32 %v1181, %v1469
        %v1576 = vadd.f32 %v1182, %v1474
        %v1577 = vadd.f32 %v1183, %v1479
        %v1578 = vadd.f32 %v1184, %v1484
        %v1579 = vadd.f32 %v1185, %v1489
        %v1580 = vadd.f32 %v1186, %v1494
        %v1581 = vadd.f32 %v1187, %v1499
        %v1582 = vadd.f32 %v1188, %v1504
        %v1583 = vadd.f32 %v1189, %v1509
        %v1584 = vadd.f32 %v1190, %v1514
        %v1585 = vadd.f32 %v1191, %v1519
        %v1586 = vadd.f32 %v1192, %v1524
        %v1587 = vadd.f32 %v1193, %v1529
        %v1588 = vadd.f32 %v1194, %v1534
        %v1589 = vadd.f32 %v1195, %v1539
        %v1590 = vadd.f32 %v1196, %v1544
        %v1591 = vadd.f32 %v1197, %v1549
        %v1592 = vadd.f32 %v1198, %v1554
        %v1593 = vadd.f32 %v1199, %v1559
        %v1594 = vld [vmem:[%s370] sm:$0xff]
        %v1595 = vld [vmem:[%s370 + $0x8] sm:$0xff]
        %v1596 = vld [vmem:[%s370 + $0x18] sm:$0xff]
        %v1597 = vld [vmem:[%s370 + $0x20] sm:$0xff]
        %v1598 = vld [vmem:[%s370 + $0x30] sm:$0xff]
        %v1599 = vld [vmem:[%s370 + $0x38] sm:$0xff]
        %v1600 = vld [vmem:[%s370 + $0x48] sm:$0xff]
        %v1601 = vld [vmem:[%s370 + $0x50] sm:$0xff]
        %v1602 = vld [vmem:[%s370 + $0x60] sm:$0xff]
        %v1603 = vld [vmem:[%s370 + $0x68] sm:$0xff]
        %v1604 = vld [vmem:[%s370 + $0x78] sm:$0xff]
        %v1605 = vld [vmem:[%s370 + $0x80] sm:$0xff]
        %v1606 = vld [vmem:[%s370 + $0x90] sm:$0xff]
        %v1607 = vld [vmem:[%s370 + $0x98] sm:$0xff]
        %v1608 = vld [vmem:[%s370 + $0xa8] sm:$0xff]
        %v1609 = vld [vmem:[%s370 + $0xb0] sm:$0xff]
        %v1610 = vld [vmem:[%s370 + $0xc0] sm:$0xff]
        %v1611 = vld [vmem:[%s370 + $0xc8] sm:$0xff]
        %v1612 = vld [vmem:[%s370 + $0xd8] sm:$0xff]
        %v1613 = vld [vmem:[%s370 + $0xe0] sm:$0xff]
        %v1614 = vld [vmem:[%s370 + $0xf0] sm:$0xff]
        %v1615 = vld [vmem:[%s370 + $0xf8] sm:$0xff]
        %v1616 = vld [vmem:[%s370 + $0x108] sm:$0xff]
        %v1617 = vld [vmem:[%s370 + $0x110] sm:$0xff]
        %v1618 = vld [vmem:[%s370 + $0x120] sm:$0xff]
        %v1619 = vld [vmem:[%s370 + $0x128] sm:$0xff]
        %v1620 = vld [vmem:[%s370 + $0x138] sm:$0xff]
        %v1621 = vld [vmem:[%s370 + $0x140] sm:$0xff]
        %v1622 = vld [vmem:[%s370 + $0x150] sm:$0xff]
        %v1623 = vld [vmem:[%s370 + $0x158] sm:$0xff]
        %v1624 = vld [vmem:[%s370 + $0x168] sm:$0xff]
        %v1625 = vld [vmem:[%s370 + $0x170] sm:$0xff]
        %s1626 = scalar_lea.vmem %s1, 120
        %v1627 = vld [vmem:[%s1626] sm:$0xff]
        %v1628 = vld [vmem:[%s1626 + $0x8] sm:$0xff]
        %v1629 = vld [vmem:[%s1626 + $0x10] sm:$0xff]
        %v1630 = vld [vmem:[%s1626 + $0x18] sm:$0xff]
        %v1631 = vld [vmem:[%s1626 + $0x20] sm:$0xf]
        %v1633 = vsel %vm448, %v1594, 0
        %v1636 = vsel %vm448, %v1595, 0
        %v1639 = vsel %vm448, %v1596, 0
        %v1642 = vsel %vm448, %v1597, 0
        %v1645 = vsel %vm448, %v1598, 0
        %v1648 = vsel %vm448, %v1599, 0
        %v1651 = vsel %vm448, %v1600, 0
        %v1654 = vsel %vm448, %v1601, 0
        %v1657 = vsel %vm448, %v1602, 0
        %v1660 = vsel %vm448, %v1603, 0
        %v1663 = vsel %vm448, %v1604, 0
        %v1666 = vsel %vm448, %v1605, 0
        %v1669 = vsel %vm448, %v1606, 0
        %v1672 = vsel %vm448, %v1607, 0
        %v1675 = vsel %vm448, %v1608, 0
        %v1678 = vsel %vm448, %v1609, 0
        %v1681 = vsel %vm448, %v1610, 0
        %v1684 = vsel %vm448, %v1611, 0
        %v1687 = vsel %vm448, %v1612, 0
        %v1690 = vsel %vm448, %v1613, 0
        %v1693 = vsel %vm448, %v1614, 0
        %v1696 = vsel %vm448, %v1615, 0
        %v1699 = vsel %vm448, %v1616, 0
        %v1702 = vsel %vm448, %v1617, 0
        %v1705 = vsel %vm448, %v1618, 0
        %v1708 = vsel %vm448, %v1619, 0
        %v1711 = vsel %vm448, %v1620, 0
        %v1714 = vsel %vm448, %v1621, 0
        %v1717 = vsel %vm448, %v1622, 0
        %v1720 = vsel %vm448, %v1623, 0
        %v1723 = vsel %vm448, %v1624, 0
        %v1726 = vsel %vm448, %v1625, 0
        %v1729 = vsel %vm545, %v1631, 0
        %1731 = vmatprep.subr.mxu0 0.0
        %1732 = vmatpush1.msra.mxu0 0.0
        %1733 = vmatprep.subr.mxu0 0.0
        %1734 = vmatpush1.msra.mxu0 0.0
        %1735 = vmatprep.subr.mxu0 0.0
        %1736 = vmatpush1.msra.mxu0 0.0
        %1737 = vmatprep.subr.mxu0 0.0
        %1738 = vmatpush1.msra.mxu0 0.0
        %1739 = vmatprep.subr.mxu0 0.0
        %1740 = vmatpush1.msra.mxu0 0.0
        %1741 = vmatprep.subr.mxu0 0.0
        %1742 = vmatpush1.msra.mxu0 0.0
        %1743 = vmatprep.subr.mxu0 0.0
        %1744 = vmatpush1.msra.mxu0 0.0
        %1745 = vmatprep.subr.mxu0 0.0
        %1746 = vmatpush1.msra.mxu0 0.0
        %1747 = vmatprep.subr.mxu0 0.0
        %1748 = vmatpush1.msra.mxu0 0.0
        %1749 = vmatprep.subr.mxu0 0.0
        %1750 = vmatpush1.msra.mxu0 0.0
        %1751 = vmatprep.subr.mxu0 0.0
        %1752 = vmatpush1.msra.mxu0 0.0
        %1753 = vmatprep.subr.mxu0 0.0
        %1754 = vmatpush1.msra.mxu0 %v1729
        %1755 = vmatprep.subr.mxu0 0.0
        %1756 = vmatpush1.msra.mxu0 %v1630
        %1757 = vmatprep.subr.mxu0 0.0
        %1758 = vmatpush1.msra.mxu0 %v1629
        %1759 = vmatprep.subr.mxu0 0.0
        %1760 = vmatpush1.msra.mxu0 %v1628
        %1761 = vmatprep.subr.mxu0 0.0
        %1762 = vmatpush1.msra.mxu0 %v1627
        %1763 = vmatprep.subr.mxu0 0.0
        %1764 = vmatpush2.msra.mxu0 0.0
        %1765 = vmatprep.subr.mxu0 0.0
        %1766 = vmatpush2.msra.mxu0 0.0
        %1767 = vmatprep.subr.mxu0 0.0
        %1768 = vmatpush2.msra.mxu0 0.0
        %1769 = vmatprep.subr.mxu0 0.0
        %1770 = vmatpush2.msra.mxu0 0.0
        %1771 = vmatprep.subr.mxu0 0.0
        %1772 = vmatpush2.msra.mxu0 0.0
        %1773 = vmatprep.subr.mxu0 0.0
        %1774 = vmatpush2.msra.mxu0 0.0
        %1775 = vmatprep.subr.mxu0 0.0
        %1776 = vmatpush2.msra.mxu0 0.0
        %1777 = vmatprep.subr.mxu0 0.0
        %1778 = vmatpush2.msra.mxu0 0.0
        %1779 = vmatprep.subr.mxu0 0.0
        %1780 = vmatpush2.msra.mxu0 0.0
        %1781 = vmatprep.subr.mxu0 0.0
        %1782 = vmatpush2.msra.mxu0 0.0
        %1783 = vmatprep.subr.mxu0 0.0
        %1784 = vmatpush2.msra.mxu0 0.0
        %1785 = vmatprep.subr.mxu0 0.0
        %1786 = vmatpush2.msra.mxu0 0.0
        %1787 = vmatprep.subr.mxu0 0.0
        %1788 = vmatpush2.msra.mxu0 0.0
        %1789 = vmatprep.subr.mxu0 0.0
        %1790 = vmatpush2.msra.mxu0 0.0
        %1791 = vmatprep.subr.mxu0 0.0
        %1792 = vmatpush2.msra.mxu0 0.0
        %1793 = vmatprep.subr.mxu0 0.0
        %1794 = vmatpush2.msra.mxu0 0.0
        %1795 = vmatprep.mubr.f32.mxu0 0.0
        %1796 = vmatmul.mubr.f32.gmra.mxu0 %v1633
        %v1797 = vpop.f32.mrf.mxu0
        %v1798 = vadd.f32 0.0, %v1797
        %v1799 = vpop.f32.mrf.mxu0
        %1800 = vmatprep.mubr.f32.mxu0 0.0
        %1801 = vmatmul.mubr.f32.gmra.mxu0 %v1636
        %v1802 = vpop.f32.mrf.mxu0
        %v1803 = vadd.f32 0.0, %v1802
        %v1804 = vpop.f32.mrf.mxu0
        %1805 = vmatprep.mubr.f32.mxu0 0.0
        %1806 = vmatmul.mubr.f32.gmra.mxu0 %v1639
        %v1807 = vpop.f32.mrf.mxu0
        %v1808 = vadd.f32 0.0, %v1807
        %v1809 = vpop.f32.mrf.mxu0
        %1810 = vmatprep.mubr.f32.mxu0 0.0
        %1811 = vmatmul.mubr.f32.gmra.mxu0 %v1642
        %v1812 = vpop.f32.mrf.mxu0
        %v1813 = vadd.f32 0.0, %v1812
        %v1814 = vpop.f32.mrf.mxu0
        %1815 = vmatprep.mubr.f32.mxu0 0.0
        %1816 = vmatmul.mubr.f32.gmra.mxu0 %v1645
        %v1817 = vpop.f32.mrf.mxu0
        %v1818 = vadd.f32 0.0, %v1817
        %v1819 = vpop.f32.mrf.mxu0
        %1820 = vmatprep.mubr.f32.mxu0 0.0
        %1821 = vmatmul.mubr.f32.gmra.mxu0 %v1648
        %v1822 = vpop.f32.mrf.mxu0
        %v1823 = vadd.f32 0.0, %v1822
        %v1824 = vpop.f32.mrf.mxu0
        %1825 = vmatprep.mubr.f32.mxu0 0.0
        %1826 = vmatmul.mubr.f32.gmra.mxu0 %v1651
        %v1827 = vpop.f32.mrf.mxu0
        %v1828 = vadd.f32 0.0, %v1827
        %v1829 = vpop.f32.mrf.mxu0
        %1830 = vmatprep.mubr.f32.mxu0 0.0
        %1831 = vmatmul.mubr.f32.gmra.mxu0 %v1654
        %v1832 = vpop.f32.mrf.mxu0
        %v1833 = vadd.f32 0.0, %v1832
        %v1834 = vpop.f32.mrf.mxu0
        %1835 = vmatprep.mubr.f32.mxu0 0.0
        %1836 = vmatmul.mubr.f32.gmra.mxu0 %v1657
        %v1837 = vpop.f32.mrf.mxu0
        %v1838 = vadd.f32 0.0, %v1837
        %v1839 = vpop.f32.mrf.mxu0
        %1840 = vmatprep.mubr.f32.mxu0 0.0
        %1841 = vmatmul.mubr.f32.gmra.mxu0 %v1660
        %v1842 = vpop.f32.mrf.mxu0
        %v1843 = vadd.f32 0.0, %v1842
        %v1844 = vpop.f32.mrf.mxu0
        %1845 = vmatprep.mubr.f32.mxu0 0.0
        %1846 = vmatmul.mubr.f32.gmra.mxu0 %v1663
        %v1847 = vpop.f32.mrf.mxu0
        %v1848 = vadd.f32 0.0, %v1847
        %v1849 = vpop.f32.mrf.mxu0
        %1850 = vmatprep.mubr.f32.mxu0 0.0
        %1851 = vmatmul.mubr.f32.gmra.mxu0 %v1666
        %v1852 = vpop.f32.mrf.mxu0
        %v1853 = vadd.f32 0.0, %v1852
        %v1854 = vpop.f32.mrf.mxu0
        %1855 = vmatprep.mubr.f32.mxu0 0.0
        %1856 = vmatmul.mubr.f32.gmra.mxu0 %v1669
        %v1857 = vpop.f32.mrf.mxu0
        %v1858 = vadd.f32 0.0, %v1857
        %v1859 = vpop.f32.mrf.mxu0
        %1860 = vmatprep.mubr.f32.mxu0 0.0
        %1861 = vmatmul.mubr.f32.gmra.mxu0 %v1672
        %v1862 = vpop.f32.mrf.mxu0
        %v1863 = vadd.f32 0.0, %v1862
        %v1864 = vpop.f32.mrf.mxu0
        %1865 = vmatprep.mubr.f32.mxu0 0.0
        %1866 = vmatmul.mubr.f32.gmra.mxu0 %v1675
        %v1867 = vpop.f32.mrf.mxu0
        %v1868 = vadd.f32 0.0, %v1867
        %v1869 = vpop.f32.mrf.mxu0
        %1870 = vmatprep.mubr.f32.mxu0 0.0
        %1871 = vmatmul.mubr.f32.gmra.mxu0 %v1678
        %v1872 = vpop.f32.mrf.mxu0
        %v1873 = vadd.f32 0.0, %v1872
        %v1874 = vpop.f32.mrf.mxu0
        %1875 = vmatprep.mubr.f32.mxu0 0.0
        %1876 = vmatmul.mubr.f32.gmra.mxu0 %v1681
        %v1877 = vpop.f32.mrf.mxu0
        %v1878 = vadd.f32 0.0, %v1877
        %v1879 = vpop.f32.mrf.mxu0
        %1880 = vmatprep.mubr.f32.mxu0 0.0
        %1881 = vmatmul.mubr.f32.gmra.mxu0 %v1684
        %v1882 = vpop.f32.mrf.mxu0
        %v1883 = vadd.f32 0.0, %v1882
        %v1884 = vpop.f32.mrf.mxu0
        %1885 = vmatprep.mubr.f32.mxu0 0.0
        %1886 = vmatmul.mubr.f32.gmra.mxu0 %v1687
        %v1887 = vpop.f32.mrf.mxu0
        %v1888 = vadd.f32 0.0, %v1887
        %v1889 = vpop.f32.mrf.mxu0
        %1890 = vmatprep.mubr.f32.mxu0 0.0
        %1891 = vmatmul.mubr.f32.gmra.mxu0 %v1690
        %v1892 = vpop.f32.mrf.mxu0
        %v1893 = vadd.f32 0.0, %v1892
        %v1894 = vpop.f32.mrf.mxu0
        %1895 = vmatprep.mubr.f32.mxu0 0.0
        %1896 = vmatmul.mubr.f32.gmra.mxu0 %v1693
        %v1897 = vpop.f32.mrf.mxu0
        %v1898 = vadd.f32 0.0, %v1897
        %v1899 = vpop.f32.mrf.mxu0
        %1900 = vmatprep.mubr.f32.mxu0 0.0
        %1901 = vmatmul.mubr.f32.gmra.mxu0 %v1696
        %v1902 = vpop.f32.mrf.mxu0
        %v1903 = vadd.f32 0.0, %v1902
        %v1904 = vpop.f32.mrf.mxu0
        %1905 = vmatprep.mubr.f32.mxu0 0.0
        %1906 = vmatmul.mubr.f32.gmra.mxu0 %v1699
        %v1907 = vpop.f32.mrf.mxu0
        %v1908 = vadd.f32 0.0, %v1907
        %v1909 = vpop.f32.mrf.mxu0
        %1910 = vmatprep.mubr.f32.mxu0 0.0
        %1911 = vmatmul.mubr.f32.gmra.mxu0 %v1702
        %v1912 = vpop.f32.mrf.mxu0
        %v1913 = vadd.f32 0.0, %v1912
        %v1914 = vpop.f32.mrf.mxu0
        %1915 = vmatprep.mubr.f32.mxu0 0.0
        %1916 = vmatmul.mubr.f32.gmra.mxu0 %v1705
        %v1917 = vpop.f32.mrf.mxu0
        %v1918 = vadd.f32 0.0, %v1917
        %v1919 = vpop.f32.mrf.mxu0
        %1920 = vmatprep.mubr.f32.mxu0 0.0
        %1921 = vmatmul.mubr.f32.gmra.mxu0 %v1708
        %v1922 = vpop.f32.mrf.mxu0
        %v1923 = vadd.f32 0.0, %v1922
        %v1924 = vpop.f32.mrf.mxu0
        %1925 = vmatprep.mubr.f32.mxu0 0.0
        %1926 = vmatmul.mubr.f32.gmra.mxu0 %v1711
        %v1927 = vpop.f32.mrf.mxu0
        %v1928 = vadd.f32 0.0, %v1927
        %v1929 = vpop.f32.mrf.mxu0
        %1930 = vmatprep.mubr.f32.mxu0 0.0
        %1931 = vmatmul.mubr.f32.gmra.mxu0 %v1714
        %v1932 = vpop.f32.mrf.mxu0
        %v1933 = vadd.f32 0.0, %v1932
        %v1934 = vpop.f32.mrf.mxu0
        %1935 = vmatprep.mubr.f32.mxu0 0.0
        %1936 = vmatmul.mubr.f32.gmra.mxu0 %v1717
        %v1937 = vpop.f32.mrf.mxu0
        %v1938 = vadd.f32 0.0, %v1937
        %v1939 = vpop.f32.mrf.mxu0
        %1940 = vmatprep.mubr.f32.mxu0 0.0
        %1941 = vmatmul.mubr.f32.gmra.mxu0 %v1720
        %v1942 = vpop.f32.mrf.mxu0
        %v1943 = vadd.f32 0.0, %v1942
        %v1944 = vpop.f32.mrf.mxu0
        %1945 = vmatprep.mubr.f32.mxu0 0.0
        %1946 = vmatmul.mubr.f32.gmra.mxu0 %v1723
        %v1947 = vpop.f32.mrf.mxu0
        %v1948 = vadd.f32 0.0, %v1947
        %v1949 = vpop.f32.mrf.mxu0
        %1950 = vmatprep.mubr.f32.mxu0 0.0
        %1951 = vmatmul.mubr.f32.gmra.mxu0 %v1726
        %v1952 = vpop.f32.mrf.mxu0
        %v1953 = vadd.f32 0.0, %v1952
        %v1954 = vpop.f32.mrf.mxu0
        %1955 = vdwg.mxu0
        %v1956 = vadd.f32 %v1562, %v1798
        %v1957 = vadd.f32 %v1563, %v1803
        %v1958 = vadd.f32 %v1564, %v1808
        %v1959 = vadd.f32 %v1565, %v1813
        %v1960 = vadd.f32 %v1566, %v1818
        %v1961 = vadd.f32 %v1567, %v1823
        %v1962 = vadd.f32 %v1568, %v1828
        %v1963 = vadd.f32 %v1569, %v1833
        %v1964 = vadd.f32 %v1570, %v1838
        %v1965 = vadd.f32 %v1571, %v1843
        %v1966 = vadd.f32 %v1572, %v1848
        %v1967 = vadd.f32 %v1573, %v1853
        %v1968 = vadd.f32 %v1574, %v1858
        %v1969 = vadd.f32 %v1575, %v1863
        %v1970 = vadd.f32 %v1576, %v1868
        %v1971 = vadd.f32 %v1577, %v1873
        %v1972 = vadd.f32 %v1578, %v1878
        %v1973 = vadd.f32 %v1579, %v1883
        %v1974 = vadd.f32 %v1580, %v1888
        %v1975 = vadd.f32 %v1581, %v1893
        %v1976 = vadd.f32 %v1582, %v1898
        %v1977 = vadd.f32 %v1583, %v1903
        %v1978 = vadd.f32 %v1584, %v1908
        %v1979 = vadd.f32 %v1585, %v1913
        %v1980 = vadd.f32 %v1586, %v1918
        %v1981 = vadd.f32 %v1587, %v1923
        %v1982 = vadd.f32 %v1588, %v1928
        %v1983 = vadd.f32 %v1589, %v1933
        %v1984 = vadd.f32 %v1590, %v1938
        %v1985 = vadd.f32 %v1591, %v1943
        %v1986 = vadd.f32 %v1592, %v1948
        %v1987 = vadd.f32 %v1593, %v1953
        %v1988 = vld [vmem:[%s370 + $0x1] sm:$0xff]
        %v1989 = vld [vmem:[%s370 + $0x9] sm:$0xff]
        %v1990 = vld [vmem:[%s370 + $0x19] sm:$0xff]
        %v1991 = vld [vmem:[%s370 + $0x21] sm:$0xff]
        %v1992 = vld [vmem:[%s370 + $0x31] sm:$0xff]
        %v1993 = vld [vmem:[%s370 + $0x39] sm:$0xff]
        %v1994 = vld [vmem:[%s370 + $0x49] sm:$0xff]
        %v1995 = vld [vmem:[%s370 + $0x51] sm:$0xff]
        %v1996 = vld [vmem:[%s370 + $0x61] sm:$0xff]
        %v1997 = vld [vmem:[%s370 + $0x69] sm:$0xff]
        %v1998 = vld [vmem:[%s370 + $0x79] sm:$0xff]
        %v1999 = vld [vmem:[%s370 + $0x81] sm:$0xff]
        %v2000 = vld [vmem:[%s370 + $0x91] sm:$0xff]
        %v2001 = vld [vmem:[%s370 + $0x99] sm:$0xff]
        %v2002 = vld [vmem:[%s370 + $0xa9] sm:$0xff]
        %v2003 = vld [vmem:[%s370 + $0xb1] sm:$0xff]
        %v2004 = vld [vmem:[%s370 + $0xc1] sm:$0xff]
        %v2005 = vld [vmem:[%s370 + $0xc9] sm:$0xff]
        %v2006 = vld [vmem:[%s370 + $0xd9] sm:$0xff]
        %v2007 = vld [vmem:[%s370 + $0xe1] sm:$0xff]
        %v2008 = vld [vmem:[%s370 + $0xf1] sm:$0xff]
        %v2009 = vld [vmem:[%s370 + $0xf9] sm:$0xff]
        %v2010 = vld [vmem:[%s370 + $0x109] sm:$0xff]
        %v2011 = vld [vmem:[%s370 + $0x111] sm:$0xff]
        %v2012 = vld [vmem:[%s370 + $0x121] sm:$0xff]
        %v2013 = vld [vmem:[%s370 + $0x129] sm:$0xff]
        %v2014 = vld [vmem:[%s370 + $0x139] sm:$0xff]
        %v2015 = vld [vmem:[%s370 + $0x141] sm:$0xff]
        %v2016 = vld [vmem:[%s370 + $0x151] sm:$0xff]
        %v2017 = vld [vmem:[%s370 + $0x159] sm:$0xff]
        %v2018 = vld [vmem:[%s370 + $0x169] sm:$0xff]
        %v2019 = vld [vmem:[%s370 + $0x171] sm:$0xff]
        %s2020 = scalar_lea.vmem %s1, 160
        %v2021 = vld [vmem:[%s2020] sm:$0xff]
        %v2022 = vld [vmem:[%s2020 + $0x8] sm:$0xff]
        %v2023 = vld [vmem:[%s2020 + $0x10] sm:$0xff]
        %v2024 = vld [vmem:[%s2020 + $0x18] sm:$0xff]
        %v2025 = vld [vmem:[%s2020 + $0x20] sm:$0xf]
        %v2027 = vsel %vm448, %v1988, 0
        %v2030 = vsel %vm448, %v1989, 0
        %v2033 = vsel %vm448, %v1990, 0
        %v2036 = vsel %vm448, %v1991, 0
        %v2039 = vsel %vm448, %v1992, 0
        %v2042 = vsel %vm448, %v1993, 0
        %v2045 = vsel %vm448, %v1994, 0
        %v2048 = vsel %vm448, %v1995, 0
        %v2051 = vsel %vm448, %v1996, 0
        %v2054 = vsel %vm448, %v1997, 0
        %v2057 = vsel %vm448, %v1998, 0
        %v2060 = vsel %vm448, %v1999, 0
        %v2063 = vsel %vm448, %v2000, 0
        %v2066 = vsel %vm448, %v2001, 0
        %v2069 = vsel %vm448, %v2002, 0
        %v2072 = vsel %vm448, %v2003, 0
        %v2075 = vsel %vm448, %v2004, 0
        %v2078 = vsel %vm448, %v2005, 0
        %v2081 = vsel %vm448, %v2006, 0
        %v2084 = vsel %vm448, %v2007, 0
        %v2087 = vsel %vm448, %v2008, 0
        %v2090 = vsel %vm448, %v2009, 0
        %v2093 = vsel %vm448, %v2010, 0
        %v2096 = vsel %vm448, %v2011, 0
        %v2099 = vsel %vm448, %v2012, 0
        %v2102 = vsel %vm448, %v2013, 0
        %v2105 = vsel %vm448, %v2014, 0
        %v2108 = vsel %vm448, %v2015, 0
        %v2111 = vsel %vm448, %v2016, 0
        %v2114 = vsel %vm448, %v2017, 0
        %v2117 = vsel %vm448, %v2018, 0
        %v2120 = vsel %vm448, %v2019, 0
        %v2123 = vsel %vm545, %v2025, 0
        %2125 = vmatprep.subr.mxu0 0.0
        %2126 = vmatpush1.msra.mxu0 0.0
        %2127 = vmatprep.subr.mxu0 0.0
        %2128 = vmatpush1.msra.mxu0 0.0
        %2129 = vmatprep.subr.mxu0 0.0
        %2130 = vmatpush1.msra.mxu0 0.0
        %2131 = vmatprep.subr.mxu0 0.0
        %2132 = vmatpush1.msra.mxu0 0.0
        %2133 = vmatprep.subr.mxu0 0.0
        %2134 = vmatpush1.msra.mxu0 0.0
        %2135 = vmatprep.subr.mxu0 0.0
        %2136 = vmatpush1.msra.mxu0 0.0
        %2137 = vmatprep.subr.mxu0 0.0
        %2138 = vmatpush1.msra.mxu0 0.0
        %2139 = vmatprep.subr.mxu0 0.0
        %2140 = vmatpush1.msra.mxu0 0.0
        %2141 = vmatprep.subr.mxu0 0.0
        %2142 = vmatpush1.msra.mxu0 0.0
        %2143 = vmatprep.subr.mxu0 0.0
        %2144 = vmatpush1.msra.mxu0 0.0
        %2145 = vmatprep.subr.mxu0 0.0
        %2146 = vmatpush1.msra.mxu0 0.0
        %2147 = vmatprep.subr.mxu0 0.0
        %2148 = vmatpush1.msra.mxu0 %v2123
        %2149 = vmatprep.subr.mxu0 0.0
        %2150 = vmatpush1.msra.mxu0 %v2024
        %2151 = vmatprep.subr.mxu0 0.0
        %2152 = vmatpush1.msra.mxu0 %v2023
        %2153 = vmatprep.subr.mxu0 0.0
        %2154 = vmatpush1.msra.mxu0 %v2022
        %2155 = vmatprep.subr.mxu0 0.0
        %2156 = vmatpush1.msra.mxu0 %v2021
        %2157 = vmatprep.subr.mxu0 0.0
        %2158 = vmatpush2.msra.mxu0 0.0
        %2159 = vmatprep.subr.mxu0 0.0
        %2160 = vmatpush2.msra.mxu0 0.0
        %2161 = vmatprep.subr.mxu0 0.0
        %2162 = vmatpush2.msra.mxu0 0.0
        %2163 = vmatprep.subr.mxu0 0.0
        %2164 = vmatpush2.msra.mxu0 0.0
        %2165 = vmatprep.subr.mxu0 0.0
        %2166 = vmatpush2.msra.mxu0 0.0
        %2167 = vmatprep.subr.mxu0 0.0
        %2168 = vmatpush2.msra.mxu0 0.0
        %2169 = vmatprep.subr.mxu0 0.0
        %2170 = vmatpush2.msra.mxu0 0.0
        %2171 = vmatprep.subr.mxu0 0.0
        %2172 = vmatpush2.msra.mxu0 0.0
        %2173 = vmatprep.subr.mxu0 0.0
        %2174 = vmatpush2.msra.mxu0 0.0
        %2175 = vmatprep.subr.mxu0 0.0
        %2176 = vmatpush2.msra.mxu0 0.0
        %2177 = vmatprep.subr.mxu0 0.0
        %2178 = vmatpush2.msra.mxu0 0.0
        %2179 = vmatprep.subr.mxu0 0.0
        %2180 = vmatpush2.msra.mxu0 0.0
        %2181 = vmatprep.subr.mxu0 0.0
        %2182 = vmatpush2.msra.mxu0 0.0
        %2183 = vmatprep.subr.mxu0 0.0
        %2184 = vmatpush2.msra.mxu0 0.0
        %2185 = vmatprep.subr.mxu0 0.0
        %2186 = vmatpush2.msra.mxu0 0.0
        %2187 = vmatprep.subr.mxu0 0.0
        %2188 = vmatpush2.msra.mxu0 0.0
        %2189 = vmatprep.mubr.f32.mxu0 0.0
        %2190 = vmatmul.mubr.f32.gmra.mxu0 %v2027
        %v2191 = vpop.f32.mrf.mxu0
        %v2192 = vadd.f32 0.0, %v2191
        %v2193 = vpop.f32.mrf.mxu0
        %2194 = vmatprep.mubr.f32.mxu0 0.0
        %2195 = vmatmul.mubr.f32.gmra.mxu0 %v2030
        %v2196 = vpop.f32.mrf.mxu0
        %v2197 = vadd.f32 0.0, %v2196
        %v2198 = vpop.f32.mrf.mxu0
        %2199 = vmatprep.mubr.f32.mxu0 0.0
        %2200 = vmatmul.mubr.f32.gmra.mxu0 %v2033
        %v2201 = vpop.f32.mrf.mxu0
        %v2202 = vadd.f32 0.0, %v2201
        %v2203 = vpop.f32.mrf.mxu0
        %2204 = vmatprep.mubr.f32.mxu0 0.0
        %2205 = vmatmul.mubr.f32.gmra.mxu0 %v2036
        %v2206 = vpop.f32.mrf.mxu0
        %v2207 = vadd.f32 0.0, %v2206
        %v2208 = vpop.f32.mrf.mxu0
        %2209 = vmatprep.mubr.f32.mxu0 0.0
        %2210 = vmatmul.mubr.f32.gmra.mxu0 %v2039
        %v2211 = vpop.f32.mrf.mxu0
        %v2212 = vadd.f32 0.0, %v2211
        %v2213 = vpop.f32.mrf.mxu0
        %2214 = vmatprep.mubr.f32.mxu0 0.0
        %2215 = vmatmul.mubr.f32.gmra.mxu0 %v2042
        %v2216 = vpop.f32.mrf.mxu0
        %v2217 = vadd.f32 0.0, %v2216
        %v2218 = vpop.f32.mrf.mxu0
        %2219 = vmatprep.mubr.f32.mxu0 0.0
        %2220 = vmatmul.mubr.f32.gmra.mxu0 %v2045
        %v2221 = vpop.f32.mrf.mxu0
        %v2222 = vadd.f32 0.0, %v2221
        %v2223 = vpop.f32.mrf.mxu0
        %2224 = vmatprep.mubr.f32.mxu0 0.0
        %2225 = vmatmul.mubr.f32.gmra.mxu0 %v2048
        %v2226 = vpop.f32.mrf.mxu0
        %v2227 = vadd.f32 0.0, %v2226
        %v2228 = vpop.f32.mrf.mxu0
        %2229 = vmatprep.mubr.f32.mxu0 0.0
        %2230 = vmatmul.mubr.f32.gmra.mxu0 %v2051
        %v2231 = vpop.f32.mrf.mxu0
        %v2232 = vadd.f32 0.0, %v2231
        %v2233 = vpop.f32.mrf.mxu0
        %2234 = vmatprep.mubr.f32.mxu0 0.0
        %2235 = vmatmul.mubr.f32.gmra.mxu0 %v2054
        %v2236 = vpop.f32.mrf.mxu0
        %v2237 = vadd.f32 0.0, %v2236
        %v2238 = vpop.f32.mrf.mxu0
        %2239 = vmatprep.mubr.f32.mxu0 0.0
        %2240 = vmatmul.mubr.f32.gmra.mxu0 %v2057
        %v2241 = vpop.f32.mrf.mxu0
        %v2242 = vadd.f32 0.0, %v2241
        %v2243 = vpop.f32.mrf.mxu0
        %2244 = vmatprep.mubr.f32.mxu0 0.0
        %2245 = vmatmul.mubr.f32.gmra.mxu0 %v2060
        %v2246 = vpop.f32.mrf.mxu0
        %v2247 = vadd.f32 0.0, %v2246
        %v2248 = vpop.f32.mrf.mxu0
        %2249 = vmatprep.mubr.f32.mxu0 0.0
        %2250 = vmatmul.mubr.f32.gmra.mxu0 %v2063
        %v2251 = vpop.f32.mrf.mxu0
        %v2252 = vadd.f32 0.0, %v2251
        %v2253 = vpop.f32.mrf.mxu0
        %2254 = vmatprep.mubr.f32.mxu0 0.0
        %2255 = vmatmul.mubr.f32.gmra.mxu0 %v2066
        %v2256 = vpop.f32.mrf.mxu0
        %v2257 = vadd.f32 0.0, %v2256
        %v2258 = vpop.f32.mrf.mxu0
        %2259 = vmatprep.mubr.f32.mxu0 0.0
        %2260 = vmatmul.mubr.f32.gmra.mxu0 %v2069
        %v2261 = vpop.f32.mrf.mxu0
        %v2262 = vadd.f32 0.0, %v2261
        %v2263 = vpop.f32.mrf.mxu0
        %2264 = vmatprep.mubr.f32.mxu0 0.0
        %2265 = vmatmul.mubr.f32.gmra.mxu0 %v2072
        %v2266 = vpop.f32.mrf.mxu0
        %v2267 = vadd.f32 0.0, %v2266
        %v2268 = vpop.f32.mrf.mxu0
        %2269 = vmatprep.mubr.f32.mxu0 0.0
        %2270 = vmatmul.mubr.f32.gmra.mxu0 %v2075
        %v2271 = vpop.f32.mrf.mxu0
        %v2272 = vadd.f32 0.0, %v2271
        %v2273 = vpop.f32.mrf.mxu0
        %2274 = vmatprep.mubr.f32.mxu0 0.0
        %2275 = vmatmul.mubr.f32.gmra.mxu0 %v2078
        %v2276 = vpop.f32.mrf.mxu0
        %v2277 = vadd.f32 0.0, %v2276
        %v2278 = vpop.f32.mrf.mxu0
        %2279 = vmatprep.mubr.f32.mxu0 0.0
        %2280 = vmatmul.mubr.f32.gmra.mxu0 %v2081
        %v2281 = vpop.f32.mrf.mxu0
        %v2282 = vadd.f32 0.0, %v2281
        %v2283 = vpop.f32.mrf.mxu0
        %2284 = vmatprep.mubr.f32.mxu0 0.0
        %2285 = vmatmul.mubr.f32.gmra.mxu0 %v2084
        %v2286 = vpop.f32.mrf.mxu0
        %v2287 = vadd.f32 0.0, %v2286
        %v2288 = vpop.f32.mrf.mxu0
        %2289 = vmatprep.mubr.f32.mxu0 0.0
        %2290 = vmatmul.mubr.f32.gmra.mxu0 %v2087
        %v2291 = vpop.f32.mrf.mxu0
        %v2292 = vadd.f32 0.0, %v2291
        %v2293 = vpop.f32.mrf.mxu0
        %2294 = vmatprep.mubr.f32.mxu0 0.0
        %2295 = vmatmul.mubr.f32.gmra.mxu0 %v2090
        %v2296 = vpop.f32.mrf.mxu0
        %v2297 = vadd.f32 0.0, %v2296
        %v2298 = vpop.f32.mrf.mxu0
        %2299 = vmatprep.mubr.f32.mxu0 0.0
        %2300 = vmatmul.mubr.f32.gmra.mxu0 %v2093
        %v2301 = vpop.f32.mrf.mxu0
        %v2302 = vadd.f32 0.0, %v2301
        %v2303 = vpop.f32.mrf.mxu0
        %2304 = vmatprep.mubr.f32.mxu0 0.0
        %2305 = vmatmul.mubr.f32.gmra.mxu0 %v2096
        %v2306 = vpop.f32.mrf.mxu0
        %v2307 = vadd.f32 0.0, %v2306
        %v2308 = vpop.f32.mrf.mxu0
        %2309 = vmatprep.mubr.f32.mxu0 0.0
        %2310 = vmatmul.mubr.f32.gmra.mxu0 %v2099
        %v2311 = vpop.f32.mrf.mxu0
        %v2312 = vadd.f32 0.0, %v2311
        %v2313 = vpop.f32.mrf.mxu0
        %2314 = vmatprep.mubr.f32.mxu0 0.0
        %2315 = vmatmul.mubr.f32.gmra.mxu0 %v2102
        %v2316 = vpop.f32.mrf.mxu0
        %v2317 = vadd.f32 0.0, %v2316
        %v2318 = vpop.f32.mrf.mxu0
        %2319 = vmatprep.mubr.f32.mxu0 0.0
        %2320 = vmatmul.mubr.f32.gmra.mxu0 %v2105
        %v2321 = vpop.f32.mrf.mxu0
        %v2322 = vadd.f32 0.0, %v2321
        %v2323 = vpop.f32.mrf.mxu0
        %2324 = vmatprep.mubr.f32.mxu0 0.0
        %2325 = vmatmul.mubr.f32.gmra.mxu0 %v2108
        %v2326 = vpop.f32.mrf.mxu0
        %v2327 = vadd.f32 0.0, %v2326
        %v2328 = vpop.f32.mrf.mxu0
        %2329 = vmatprep.mubr.f32.mxu0 0.0
        %2330 = vmatmul.mubr.f32.gmra.mxu0 %v2111
        %v2331 = vpop.f32.mrf.mxu0
        %v2332 = vadd.f32 0.0, %v2331
        %v2333 = vpop.f32.mrf.mxu0
        %2334 = vmatprep.mubr.f32.mxu0 0.0
        %2335 = vmatmul.mubr.f32.gmra.mxu0 %v2114
        %v2336 = vpop.f32.mrf.mxu0
        %v2337 = vadd.f32 0.0, %v2336
        %v2338 = vpop.f32.mrf.mxu0
        %2339 = vmatprep.mubr.f32.mxu0 0.0
        %2340 = vmatmul.mubr.f32.gmra.mxu0 %v2117
        %v2341 = vpop.f32.mrf.mxu0
        %v2342 = vadd.f32 0.0, %v2341
        %v2343 = vpop.f32.mrf.mxu0
        %2344 = vmatprep.mubr.f32.mxu0 0.0
        %2345 = vmatmul.mubr.f32.gmra.mxu0 %v2120
        %v2346 = vpop.f32.mrf.mxu0
        %v2347 = vadd.f32 0.0, %v2346
        %v2348 = vpop.f32.mrf.mxu0
        %2349 = vdwg.mxu0
        %v2350 = vadd.f32 %v1956, %v2192
        %v2351 = vadd.f32 %v1957, %v2197
        %v2352 = vadd.f32 %v1958, %v2202
        %v2353 = vadd.f32 %v1959, %v2207
        %v2354 = vadd.f32 %v1960, %v2212
        %v2355 = vadd.f32 %v1961, %v2217
        %v2356 = vadd.f32 %v1962, %v2222
        %v2357 = vadd.f32 %v1963, %v2227
        %v2358 = vadd.f32 %v1964, %v2232
        %v2359 = vadd.f32 %v1965, %v2237
        %v2360 = vadd.f32 %v1966, %v2242
        %v2361 = vadd.f32 %v1967, %v2247
        %v2362 = vadd.f32 %v1968, %v2252
        %v2363 = vadd.f32 %v1969, %v2257
        %v2364 = vadd.f32 %v1970, %v2262
        %v2365 = vadd.f32 %v1971, %v2267
        %v2366 = vadd.f32 %v1972, %v2272
        %v2367 = vadd.f32 %v1973, %v2277
        %v2368 = vadd.f32 %v1974, %v2282
        %v2369 = vadd.f32 %v1975, %v2287
        %v2370 = vadd.f32 %v1976, %v2292
        %v2371 = vadd.f32 %v1977, %v2297
        %v2372 = vadd.f32 %v1978, %v2302
        %v2373 = vadd.f32 %v1979, %v2307
        %v2374 = vadd.f32 %v1980, %v2312
        %v2375 = vadd.f32 %v1981, %v2317
        %v2376 = vadd.f32 %v1982, %v2322
        %v2377 = vadd.f32 %v1983, %v2327
        %v2378 = vadd.f32 %v1984, %v2332
        %v2379 = vadd.f32 %v1985, %v2337
        %v2380 = vadd.f32 %v1986, %v2342
        %v2381 = vadd.f32 %v1987, %v2347
        %v2382 = vld [vmem:[%s370 + $0x2] sm:$0xff]
        %v2383 = vld [vmem:[%s370 + $0xa] sm:$0xff]
        %v2384 = vld [vmem:[%s370 + $0x1a] sm:$0xff]
        %v2385 = vld [vmem:[%s370 + $0x22] sm:$0xff]
        %v2386 = vld [vmem:[%s370 + $0x32] sm:$0xff]
        %v2387 = vld [vmem:[%s370 + $0x3a] sm:$0xff]
        %v2388 = vld [vmem:[%s370 + $0x4a] sm:$0xff]
        %v2389 = vld [vmem:[%s370 + $0x52] sm:$0xff]
        %v2390 = vld [vmem:[%s370 + $0x62] sm:$0xff]
        %v2391 = vld [vmem:[%s370 + $0x6a] sm:$0xff]
        %v2392 = vld [vmem:[%s370 + $0x7a] sm:$0xff]
        %v2393 = vld [vmem:[%s370 + $0x82] sm:$0xff]
        %v2394 = vld [vmem:[%s370 + $0x92] sm:$0xff]
        %v2395 = vld [vmem:[%s370 + $0x9a] sm:$0xff]
        %v2396 = vld [vmem:[%s370 + $0xaa] sm:$0xff]
        %v2397 = vld [vmem:[%s370 + $0xb2] sm:$0xff]
        %v2398 = vld [vmem:[%s370 + $0xc2] sm:$0xff]
        %v2399 = vld [vmem:[%s370 + $0xca] sm:$0xff]
        %v2400 = vld [vmem:[%s370 + $0xda] sm:$0xff]
        %v2401 = vld [vmem:[%s370 + $0xe2] sm:$0xff]
        %v2402 = vld [vmem:[%s370 + $0xf2] sm:$0xff]
        %v2403 = vld [vmem:[%s370 + $0xfa] sm:$0xff]
        %v2404 = vld [vmem:[%s370 + $0x10a] sm:$0xff]
        %v2405 = vld [vmem:[%s370 + $0x112] sm:$0xff]
        %v2406 = vld [vmem:[%s370 + $0x122] sm:$0xff]
        %v2407 = vld [vmem:[%s370 + $0x12a] sm:$0xff]
        %v2408 = vld [vmem:[%s370 + $0x13a] sm:$0xff]
        %v2409 = vld [vmem:[%s370 + $0x142] sm:$0xff]
        %v2410 = vld [vmem:[%s370 + $0x152] sm:$0xff]
        %v2411 = vld [vmem:[%s370 + $0x15a] sm:$0xff]
        %v2412 = vld [vmem:[%s370 + $0x16a] sm:$0xff]
        %v2413 = vld [vmem:[%s370 + $0x172] sm:$0xff]
        %s2414 = scalar_lea.vmem %s1, 200
        %v2415 = vld [vmem:[%s2414] sm:$0xff]
        %v2416 = vld [vmem:[%s2414 + $0x8] sm:$0xff]
        %v2417 = vld [vmem:[%s2414 + $0x10] sm:$0xff]
        %v2418 = vld [vmem:[%s2414 + $0x18] sm:$0xff]
        %v2419 = vld [vmem:[%s2414 + $0x20] sm:$0xf]
        %v2421 = vsel %vm448, %v2382, 0
        %v2424 = vsel %vm448, %v2383, 0
        %v2427 = vsel %vm448, %v2384, 0
        %v2430 = vsel %vm448, %v2385, 0
        %v2433 = vsel %vm448, %v2386, 0
        %v2436 = vsel %vm448, %v2387, 0
        %v2439 = vsel %vm448, %v2388, 0
        %v2442 = vsel %vm448, %v2389, 0
        %v2445 = vsel %vm448, %v2390, 0
        %v2448 = vsel %vm448, %v2391, 0
        %v2451 = vsel %vm448, %v2392, 0
        %v2454 = vsel %vm448, %v2393, 0
        %v2457 = vsel %vm448, %v2394, 0
        %v2460 = vsel %vm448, %v2395, 0
        %v2463 = vsel %vm448, %v2396, 0
        %v2466 = vsel %vm448, %v2397, 0
        %v2469 = vsel %vm448, %v2398, 0
        %v2472 = vsel %vm448, %v2399, 0
        %v2475 = vsel %vm448, %v2400, 0
        %v2478 = vsel %vm448, %v2401, 0
        %v2481 = vsel %vm448, %v2402, 0
        %v2484 = vsel %vm448, %v2403, 0
        %v2487 = vsel %vm448, %v2404, 0
        %v2490 = vsel %vm448, %v2405, 0
        %v2493 = vsel %vm448, %v2406, 0
        %v2496 = vsel %vm448, %v2407, 0
        %v2499 = vsel %vm448, %v2408, 0
        %v2502 = vsel %vm448, %v2409, 0
        %v2505 = vsel %vm448, %v2410, 0
        %v2508 = vsel %vm448, %v2411, 0
        %v2511 = vsel %vm448, %v2412, 0
        %v2514 = vsel %vm448, %v2413, 0
        %v2517 = vsel %vm545, %v2419, 0
        %2519 = vmatprep.subr.mxu0 0.0
        %2520 = vmatpush1.msra.mxu0 0.0
        %2521 = vmatprep.subr.mxu0 0.0
        %2522 = vmatpush1.msra.mxu0 0.0
        %2523 = vmatprep.subr.mxu0 0.0
        %2524 = vmatpush1.msra.mxu0 0.0
        %2525 = vmatprep.subr.mxu0 0.0
        %2526 = vmatpush1.msra.mxu0 0.0
        %2527 = vmatprep.subr.mxu0 0.0
        %2528 = vmatpush1.msra.mxu0 0.0
        %2529 = vmatprep.subr.mxu0 0.0
        %2530 = vmatpush1.msra.mxu0 0.0
        %2531 = vmatprep.subr.mxu0 0.0
        %2532 = vmatpush1.msra.mxu0 0.0
        %2533 = vmatprep.subr.mxu0 0.0
        %2534 = vmatpush1.msra.mxu0 0.0
        %2535 = vmatprep.subr.mxu0 0.0
        %2536 = vmatpush1.msra.mxu0 0.0
        %2537 = vmatprep.subr.mxu0 0.0
        %2538 = vmatpush1.msra.mxu0 0.0
        %2539 = vmatprep.subr.mxu0 0.0
        %2540 = vmatpush1.msra.mxu0 0.0
        %2541 = vmatprep.subr.mxu0 0.0
        %2542 = vmatpush1.msra.mxu0 %v2517
        %2543 = vmatprep.subr.mxu0 0.0
        %2544 = vmatpush1.msra.mxu0 %v2418
        %2545 = vmatprep.subr.mxu0 0.0
        %2546 = vmatpush1.msra.mxu0 %v2417
        %2547 = vmatprep.subr.mxu0 0.0
        %2548 = vmatpush1.msra.mxu0 %v2416
        %2549 = vmatprep.subr.mxu0 0.0
        %2550 = vmatpush1.msra.mxu0 %v2415
        %2551 = vmatprep.subr.mxu0 0.0
        %2552 = vmatpush2.msra.mxu0 0.0
        %2553 = vmatprep.subr.mxu0 0.0
        %2554 = vmatpush2.msra.mxu0 0.0
        %2555 = vmatprep.subr.mxu0 0.0
        %2556 = vmatpush2.msra.mxu0 0.0
        %2557 = vmatprep.subr.mxu0 0.0
        %2558 = vmatpush2.msra.mxu0 0.0
        %2559 = vmatprep.subr.mxu0 0.0
        %2560 = vmatpush2.msra.mxu0 0.0
        %2561 = vmatprep.subr.mxu0 0.0
        %2562 = vmatpush2.msra.mxu0 0.0
        %2563 = vmatprep.subr.mxu0 0.0
        %2564 = vmatpush2.msra.mxu0 0.0
        %2565 = vmatprep.subr.mxu0 0.0
        %2566 = vmatpush2.msra.mxu0 0.0
        %2567 = vmatprep.subr.mxu0 0.0
        %2568 = vmatpush2.msra.mxu0 0.0
        %2569 = vmatprep.subr.mxu0 0.0
        %2570 = vmatpush2.msra.mxu0 0.0
        %2571 = vmatprep.subr.mxu0 0.0
        %2572 = vmatpush2.msra.mxu0 0.0
        %2573 = vmatprep.subr.mxu0 0.0
        %2574 = vmatpush2.msra.mxu0 0.0
        %2575 = vmatprep.subr.mxu0 0.0
        %2576 = vmatpush2.msra.mxu0 0.0
        %2577 = vmatprep.subr.mxu0 0.0
        %2578 = vmatpush2.msra.mxu0 0.0
        %2579 = vmatprep.subr.mxu0 0.0
        %2580 = vmatpush2.msra.mxu0 0.0
        %2581 = vmatprep.subr.mxu0 0.0
        %2582 = vmatpush2.msra.mxu0 0.0
        %2583 = vmatprep.mubr.f32.mxu0 0.0
        %2584 = vmatmul.mubr.f32.gmra.mxu0 %v2421
        %v2585 = vpop.f32.mrf.mxu0
        %v2586 = vadd.f32 0.0, %v2585
        %v2587 = vpop.f32.mrf.mxu0
        %2588 = vmatprep.mubr.f32.mxu0 0.0
        %2589 = vmatmul.mubr.f32.gmra.mxu0 %v2424
        %v2590 = vpop.f32.mrf.mxu0
        %v2591 = vadd.f32 0.0, %v2590
        %v2592 = vpop.f32.mrf.mxu0
        %2593 = vmatprep.mubr.f32.mxu0 0.0
        %2594 = vmatmul.mubr.f32.gmra.mxu0 %v2427
        %v2595 = vpop.f32.mrf.mxu0
        %v2596 = vadd.f32 0.0, %v2595
        %v2597 = vpop.f32.mrf.mxu0
        %2598 = vmatprep.mubr.f32.mxu0 0.0
        %2599 = vmatmul.mubr.f32.gmra.mxu0 %v2430
        %v2600 = vpop.f32.mrf.mxu0
        %v2601 = vadd.f32 0.0, %v2600
        %v2602 = vpop.f32.mrf.mxu0
        %2603 = vmatprep.mubr.f32.mxu0 0.0
        %2604 = vmatmul.mubr.f32.gmra.mxu0 %v2433
        %v2605 = vpop.f32.mrf.mxu0
        %v2606 = vadd.f32 0.0, %v2605
        %v2607 = vpop.f32.mrf.mxu0
        %2608 = vmatprep.mubr.f32.mxu0 0.0
        %2609 = vmatmul.mubr.f32.gmra.mxu0 %v2436
        %v2610 = vpop.f32.mrf.mxu0
        %v2611 = vadd.f32 0.0, %v2610
        %v2612 = vpop.f32.mrf.mxu0
        %2613 = vmatprep.mubr.f32.mxu0 0.0
        %2614 = vmatmul.mubr.f32.gmra.mxu0 %v2439
        %v2615 = vpop.f32.mrf.mxu0
        %v2616 = vadd.f32 0.0, %v2615
        %v2617 = vpop.f32.mrf.mxu0
        %2618 = vmatprep.mubr.f32.mxu0 0.0
        %2619 = vmatmul.mubr.f32.gmra.mxu0 %v2442
        %v2620 = vpop.f32.mrf.mxu0
        %v2621 = vadd.f32 0.0, %v2620
        %v2622 = vpop.f32.mrf.mxu0
        %2623 = vmatprep.mubr.f32.mxu0 0.0
        %2624 = vmatmul.mubr.f32.gmra.mxu0 %v2445
        %v2625 = vpop.f32.mrf.mxu0
        %v2626 = vadd.f32 0.0, %v2625
        %v2627 = vpop.f32.mrf.mxu0
        %2628 = vmatprep.mubr.f32.mxu0 0.0
        %2629 = vmatmul.mubr.f32.gmra.mxu0 %v2448
        %v2630 = vpop.f32.mrf.mxu0
        %v2631 = vadd.f32 0.0, %v2630
        %v2632 = vpop.f32.mrf.mxu0
        %2633 = vmatprep.mubr.f32.mxu0 0.0
        %2634 = vmatmul.mubr.f32.gmra.mxu0 %v2451
        %v2635 = vpop.f32.mrf.mxu0
        %v2636 = vadd.f32 0.0, %v2635
        %v2637 = vpop.f32.mrf.mxu0
        %2638 = vmatprep.mubr.f32.mxu0 0.0
        %2639 = vmatmul.mubr.f32.gmra.mxu0 %v2454
        %v2640 = vpop.f32.mrf.mxu0
        %v2641 = vadd.f32 0.0, %v2640
        %v2642 = vpop.f32.mrf.mxu0
        %2643 = vmatprep.mubr.f32.mxu0 0.0
        %2644 = vmatmul.mubr.f32.gmra.mxu0 %v2457
        %v2645 = vpop.f32.mrf.mxu0
        %v2646 = vadd.f32 0.0, %v2645
        %v2647 = vpop.f32.mrf.mxu0
        %2648 = vmatprep.mubr.f32.mxu0 0.0
        %2649 = vmatmul.mubr.f32.gmra.mxu0 %v2460
        %v2650 = vpop.f32.mrf.mxu0
        %v2651 = vadd.f32 0.0, %v2650
        %v2652 = vpop.f32.mrf.mxu0
        %2653 = vmatprep.mubr.f32.mxu0 0.0
        %2654 = vmatmul.mubr.f32.gmra.mxu0 %v2463
        %v2655 = vpop.f32.mrf.mxu0
        %v2656 = vadd.f32 0.0, %v2655
        %v2657 = vpop.f32.mrf.mxu0
        %2658 = vmatprep.mubr.f32.mxu0 0.0
        %2659 = vmatmul.mubr.f32.gmra.mxu0 %v2466
        %v2660 = vpop.f32.mrf.mxu0
        %v2661 = vadd.f32 0.0, %v2660
        %v2662 = vpop.f32.mrf.mxu0
        %2663 = vmatprep.mubr.f32.mxu0 0.0
        %2664 = vmatmul.mubr.f32.gmra.mxu0 %v2469
        %v2665 = vpop.f32.mrf.mxu0
        %v2666 = vadd.f32 0.0, %v2665
        %v2667 = vpop.f32.mrf.mxu0
        %2668 = vmatprep.mubr.f32.mxu0 0.0
        %2669 = vmatmul.mubr.f32.gmra.mxu0 %v2472
        %v2670 = vpop.f32.mrf.mxu0
        %v2671 = vadd.f32 0.0, %v2670
        %v2672 = vpop.f32.mrf.mxu0
        %2673 = vmatprep.mubr.f32.mxu0 0.0
        %2674 = vmatmul.mubr.f32.gmra.mxu0 %v2475
        %v2675 = vpop.f32.mrf.mxu0
        %v2676 = vadd.f32 0.0, %v2675
        %v2677 = vpop.f32.mrf.mxu0
        %2678 = vmatprep.mubr.f32.mxu0 0.0
        %2679 = vmatmul.mubr.f32.gmra.mxu0 %v2478
        %v2680 = vpop.f32.mrf.mxu0
        %v2681 = vadd.f32 0.0, %v2680
        %v2682 = vpop.f32.mrf.mxu0
        %2683 = vmatprep.mubr.f32.mxu0 0.0
        %2684 = vmatmul.mubr.f32.gmra.mxu0 %v2481
        %v2685 = vpop.f32.mrf.mxu0
        %v2686 = vadd.f32 0.0, %v2685
        %v2687 = vpop.f32.mrf.mxu0
        %2688 = vmatprep.mubr.f32.mxu0 0.0
        %2689 = vmatmul.mubr.f32.gmra.mxu0 %v2484
        %v2690 = vpop.f32.mrf.mxu0
        %v2691 = vadd.f32 0.0, %v2690
        %v2692 = vpop.f32.mrf.mxu0
        %2693 = vmatprep.mubr.f32.mxu0 0.0
        %2694 = vmatmul.mubr.f32.gmra.mxu0 %v2487
        %v2695 = vpop.f32.mrf.mxu0
        %v2696 = vadd.f32 0.0, %v2695
        %v2697 = vpop.f32.mrf.mxu0
        %2698 = vmatprep.mubr.f32.mxu0 0.0
        %2699 = vmatmul.mubr.f32.gmra.mxu0 %v2490
        %v2700 = vpop.f32.mrf.mxu0
        %v2701 = vadd.f32 0.0, %v2700
        %v2702 = vpop.f32.mrf.mxu0
        %2703 = vmatprep.mubr.f32.mxu0 0.0
        %2704 = vmatmul.mubr.f32.gmra.mxu0 %v2493
        %v2705 = vpop.f32.mrf.mxu0
        %v2706 = vadd.f32 0.0, %v2705
        %v2707 = vpop.f32.mrf.mxu0
        %2708 = vmatprep.mubr.f32.mxu0 0.0
        %2709 = vmatmul.mubr.f32.gmra.mxu0 %v2496
        %v2710 = vpop.f32.mrf.mxu0
        %v2711 = vadd.f32 0.0, %v2710
        %v2712 = vpop.f32.mrf.mxu0
        %2713 = vmatprep.mubr.f32.mxu0 0.0
        %2714 = vmatmul.mubr.f32.gmra.mxu0 %v2499
        %v2715 = vpop.f32.mrf.mxu0
        %v2716 = vadd.f32 0.0, %v2715
        %v2717 = vpop.f32.mrf.mxu0
        %2718 = vmatprep.mubr.f32.mxu0 0.0
        %2719 = vmatmul.mubr.f32.gmra.mxu0 %v2502
        %v2720 = vpop.f32.mrf.mxu0
        %v2721 = vadd.f32 0.0, %v2720
        %v2722 = vpop.f32.mrf.mxu0
        %2723 = vmatprep.mubr.f32.mxu0 0.0
        %2724 = vmatmul.mubr.f32.gmra.mxu0 %v2505
        %v2725 = vpop.f32.mrf.mxu0
        %v2726 = vadd.f32 0.0, %v2725
        %v2727 = vpop.f32.mrf.mxu0
        %2728 = vmatprep.mubr.f32.mxu0 0.0
        %2729 = vmatmul.mubr.f32.gmra.mxu0 %v2508
        %v2730 = vpop.f32.mrf.mxu0
        %v2731 = vadd.f32 0.0, %v2730
        %v2732 = vpop.f32.mrf.mxu0
        %2733 = vmatprep.mubr.f32.mxu0 0.0
        %2734 = vmatmul.mubr.f32.gmra.mxu0 %v2511
        %v2735 = vpop.f32.mrf.mxu0
        %v2736 = vadd.f32 0.0, %v2735
        %v2737 = vpop.f32.mrf.mxu0
        %2738 = vmatprep.mubr.f32.mxu0 0.0
        %2739 = vmatmul.mubr.f32.gmra.mxu0 %v2514
        %v2740 = vpop.f32.mrf.mxu0
        %v2741 = vadd.f32 0.0, %v2740
        %v2742 = vpop.f32.mrf.mxu0
        %2743 = vdwg.mxu0
        %v2744 = vadd.f32 %v2350, %v2586
        %v2745 = vadd.f32 %v2351, %v2591
        %v2746 = vadd.f32 %v2352, %v2596
        %v2747 = vadd.f32 %v2353, %v2601
        %v2748 = vadd.f32 %v2354, %v2606
        %v2749 = vadd.f32 %v2355, %v2611
        %v2750 = vadd.f32 %v2356, %v2616
        %v2751 = vadd.f32 %v2357, %v2621
        %v2752 = vadd.f32 %v2358, %v2626
        %v2753 = vadd.f32 %v2359, %v2631
        %v2754 = vadd.f32 %v2360, %v2636
        %v2755 = vadd.f32 %v2361, %v2641
        %v2756 = vadd.f32 %v2362, %v2646
        %v2757 = vadd.f32 %v2363, %v2651
        %v2758 = vadd.f32 %v2364, %v2656
        %v2759 = vadd.f32 %v2365, %v2661
        %v2760 = vadd.f32 %v2366, %v2666
        %v2761 = vadd.f32 %v2367, %v2671
        %v2762 = vadd.f32 %v2368, %v2676
        %v2763 = vadd.f32 %v2369, %v2681
        %v2764 = vadd.f32 %v2370, %v2686
        %v2765 = vadd.f32 %v2371, %v2691
        %v2766 = vadd.f32 %v2372, %v2696
        %v2767 = vadd.f32 %v2373, %v2701
        %v2768 = vadd.f32 %v2374, %v2706
        %v2769 = vadd.f32 %v2375, %v2711
        %v2770 = vadd.f32 %v2376, %v2716
        %v2771 = vadd.f32 %v2377, %v2721
        %v2772 = vadd.f32 %v2378, %v2726
        %v2773 = vadd.f32 %v2379, %v2731
        %v2774 = vadd.f32 %v2380, %v2736
        %v2775 = vadd.f32 %v2381, %v2741
        %s2776 = scalar_lea.vmem [#allocation2], 48
        %v2777 = vld [vmem:[%s2776] sm:$0xff]
        %v2778 = vld [vmem:[%s2776 + $0x8] sm:$0xff]
        %v2779 = vld [vmem:[%s2776 + $0x18] sm:$0xff]
        %v2780 = vld [vmem:[%s2776 + $0x20] sm:$0xff]
        %v2781 = vld [vmem:[%s2776 + $0x30] sm:$0xff]
        %v2782 = vld [vmem:[%s2776 + $0x38] sm:$0xff]
        %v2783 = vld [vmem:[%s2776 + $0x48] sm:$0xff]
        %v2784 = vld [vmem:[%s2776 + $0x50] sm:$0xff]
        %v2785 = vld [vmem:[%s2776 + $0x60] sm:$0xff]
        %v2786 = vld [vmem:[%s2776 + $0x68] sm:$0xff]
        %v2787 = vld [vmem:[%s2776 + $0x78] sm:$0xff]
        %v2788 = vld [vmem:[%s2776 + $0x80] sm:$0xff]
        %v2789 = vld [vmem:[%s2776 + $0x90] sm:$0xff]
        %v2790 = vld [vmem:[%s2776 + $0x98] sm:$0xff]
        %v2791 = vld [vmem:[%s2776 + $0xa8] sm:$0xff]
        %v2792 = vld [vmem:[%s2776 + $0xb0] sm:$0xff]
        %v2793 = vld [vmem:[%s2776 + $0xc0] sm:$0xff]
        %v2794 = vld [vmem:[%s2776 + $0xc8] sm:$0xff]
        %v2795 = vld [vmem:[%s2776 + $0xd8] sm:$0xff]
        %v2796 = vld [vmem:[%s2776 + $0xe0] sm:$0xff]
        %v2797 = vld [vmem:[%s2776 + $0xf0] sm:$0xff]
        %v2798 = vld [vmem:[%s2776 + $0xf8] sm:$0xff]
        %v2799 = vld [vmem:[%s2776 + $0x108] sm:$0xff]
        %v2800 = vld [vmem:[%s2776 + $0x110] sm:$0xff]
        %v2801 = vld [vmem:[%s2776 + $0x120] sm:$0xff]
        %v2802 = vld [vmem:[%s2776 + $0x128] sm:$0xff]
        %v2803 = vld [vmem:[%s2776 + $0x138] sm:$0xff]
        %v2804 = vld [vmem:[%s2776 + $0x140] sm:$0xff]
        %v2805 = vld [vmem:[%s2776 + $0x150] sm:$0xff]
        %v2806 = vld [vmem:[%s2776 + $0x158] sm:$0xff]
        %v2807 = vld [vmem:[%s2776 + $0x168] sm:$0xff]
        %v2808 = vld [vmem:[%s2776 + $0x170] sm:$0xff]
        %s2809 = scalar_lea.vmem %s1, 240
        %v2810 = vld [vmem:[%s2809] sm:$0xff]
        %v2811 = vld [vmem:[%s2809 + $0x8] sm:$0xff]
        %v2812 = vld [vmem:[%s2809 + $0x10] sm:$0xff]
        %v2813 = vld [vmem:[%s2809 + $0x18] sm:$0xff]
        %v2814 = vld [vmem:[%s2809 + $0x20] sm:$0xf]
        %v2816 = vsel %vm448, %v2777, 0
        %v2819 = vsel %vm448, %v2778, 0
        %v2822 = vsel %vm448, %v2779, 0
        %v2825 = vsel %vm448, %v2780, 0
        %v2828 = vsel %vm448, %v2781, 0
        %v2831 = vsel %vm448, %v2782, 0
        %v2834 = vsel %vm448, %v2783, 0
        %v2837 = vsel %vm448, %v2784, 0
        %v2840 = vsel %vm448, %v2785, 0
        %v2843 = vsel %vm448, %v2786, 0
        %v2846 = vsel %vm448, %v2787, 0
        %v2849 = vsel %vm448, %v2788, 0
        %v2852 = vsel %vm448, %v2789, 0
        %v2855 = vsel %vm448, %v2790, 0
        %v2858 = vsel %vm448, %v2791, 0
        %v2861 = vsel %vm448, %v2792, 0
        %v2864 = vsel %vm448, %v2793, 0
        %v2867 = vsel %vm448, %v2794, 0
        %v2870 = vsel %vm448, %v2795, 0
        %v2873 = vsel %vm448, %v2796, 0
        %v2876 = vsel %vm448, %v2797, 0
        %v2879 = vsel %vm448, %v2798, 0
        %v2882 = vsel %vm448, %v2799, 0
        %v2885 = vsel %vm448, %v2800, 0
        %v2888 = vsel %vm448, %v2801, 0
        %v2891 = vsel %vm448, %v2802, 0
        %v2894 = vsel %vm448, %v2803, 0
        %v2897 = vsel %vm448, %v2804, 0
        %v2900 = vsel %vm448, %v2805, 0
        %v2903 = vsel %vm448, %v2806, 0
        %v2906 = vsel %vm448, %v2807, 0
        %v2909 = vsel %vm448, %v2808, 0
        %v2912 = vsel %vm545, %v2814, 0
        %2914 = vmatprep.subr.mxu0 0.0
        %2915 = vmatpush1.msra.mxu0 0.0
        %2916 = vmatprep.subr.mxu0 0.0
        %2917 = vmatpush1.msra.mxu0 0.0
        %2918 = vmatprep.subr.mxu0 0.0
        %2919 = vmatpush1.msra.mxu0 0.0
        %2920 = vmatprep.subr.mxu0 0.0
        %2921 = vmatpush1.msra.mxu0 0.0
        %2922 = vmatprep.subr.mxu0 0.0
        %2923 = vmatpush1.msra.mxu0 0.0
        %2924 = vmatprep.subr.mxu0 0.0
        %2925 = vmatpush1.msra.mxu0 0.0
        %2926 = vmatprep.subr.mxu0 0.0
        %2927 = vmatpush1.msra.mxu0 0.0
        %2928 = vmatprep.subr.mxu0 0.0
        %2929 = vmatpush1.msra.mxu0 0.0
        %2930 = vmatprep.subr.mxu0 0.0
        %2931 = vmatpush1.msra.mxu0 0.0
        %2932 = vmatprep.subr.mxu0 0.0
        %2933 = vmatpush1.msra.mxu0 0.0
        %2934 = vmatprep.subr.mxu0 0.0
        %2935 = vmatpush1.msra.mxu0 0.0
        %2936 = vmatprep.subr.mxu0 0.0
        %2937 = vmatpush1.msra.mxu0 %v2912
        %2938 = vmatprep.subr.mxu0 0.0
        %2939 = vmatpush1.msra.mxu0 %v2813
        %2940 = vmatprep.subr.mxu0 0.0
        %2941 = vmatpush1.msra.mxu0 %v2812
        %2942 = vmatprep.subr.mxu0 0.0
        %2943 = vmatpush1.msra.mxu0 %v2811
        %2944 = vmatprep.subr.mxu0 0.0
        %2945 = vmatpush1.msra.mxu0 %v2810
        %2946 = vmatprep.subr.mxu0 0.0
        %2947 = vmatpush2.msra.mxu0 0.0
        %2948 = vmatprep.subr.mxu0 0.0
        %2949 = vmatpush2.msra.mxu0 0.0
        %2950 = vmatprep.subr.mxu0 0.0
        %2951 = vmatpush2.msra.mxu0 0.0
        %2952 = vmatprep.subr.mxu0 0.0
        %2953 = vmatpush2.msra.mxu0 0.0
        %2954 = vmatprep.subr.mxu0 0.0
        %2955 = vmatpush2.msra.mxu0 0.0
        %2956 = vmatprep.subr.mxu0 0.0
        %2957 = vmatpush2.msra.mxu0 0.0
        %2958 = vmatprep.subr.mxu0 0.0
        %2959 = vmatpush2.msra.mxu0 0.0
        %2960 = vmatprep.subr.mxu0 0.0
        %2961 = vmatpush2.msra.mxu0 0.0
        %2962 = vmatprep.subr.mxu0 0.0
        %2963 = vmatpush2.msra.mxu0 0.0
        %2964 = vmatprep.subr.mxu0 0.0
        %2965 = vmatpush2.msra.mxu0 0.0
        %2966 = vmatprep.subr.mxu0 0.0
        %2967 = vmatpush2.msra.mxu0 0.0
        %2968 = vmatprep.subr.mxu0 0.0
        %2969 = vmatpush2.msra.mxu0 0.0
        %2970 = vmatprep.subr.mxu0 0.0
        %2971 = vmatpush2.msra.mxu0 0.0
        %2972 = vmatprep.subr.mxu0 0.0
        %2973 = vmatpush2.msra.mxu0 0.0
        %2974 = vmatprep.subr.mxu0 0.0
        %2975 = vmatpush2.msra.mxu0 0.0
        %2976 = vmatprep.subr.mxu0 0.0
        %2977 = vmatpush2.msra.mxu0 0.0
        %2978 = vmatprep.mubr.f32.mxu0 0.0
        %2979 = vmatmul.mubr.f32.gmra.mxu0 %v2816
        %v2980 = vpop.f32.mrf.mxu0
        %v2981 = vadd.f32 0.0, %v2980
        %v2982 = vpop.f32.mrf.mxu0
        %2983 = vmatprep.mubr.f32.mxu0 0.0
        %2984 = vmatmul.mubr.f32.gmra.mxu0 %v2819
        %v2985 = vpop.f32.mrf.mxu0
        %v2986 = vadd.f32 0.0, %v2985
        %v2987 = vpop.f32.mrf.mxu0
        %2988 = vmatprep.mubr.f32.mxu0 0.0
        %2989 = vmatmul.mubr.f32.gmra.mxu0 %v2822
        %v2990 = vpop.f32.mrf.mxu0
        %v2991 = vadd.f32 0.0, %v2990
        %v2992 = vpop.f32.mrf.mxu0
        %2993 = vmatprep.mubr.f32.mxu0 0.0
        %2994 = vmatmul.mubr.f32.gmra.mxu0 %v2825
        %v2995 = vpop.f32.mrf.mxu0
        %v2996 = vadd.f32 0.0, %v2995
        %v2997 = vpop.f32.mrf.mxu0
        %2998 = vmatprep.mubr.f32.mxu0 0.0
        %2999 = vmatmul.mubr.f32.gmra.mxu0 %v2828
        %v3000 = vpop.f32.mrf.mxu0
        %v3001 = vadd.f32 0.0, %v3000
        %v3002 = vpop.f32.mrf.mxu0
        %3003 = vmatprep.mubr.f32.mxu0 0.0
        %3004 = vmatmul.mubr.f32.gmra.mxu0 %v2831
        %v3005 = vpop.f32.mrf.mxu0
        %v3006 = vadd.f32 0.0, %v3005
        %v3007 = vpop.f32.mrf.mxu0
        %3008 = vmatprep.mubr.f32.mxu0 0.0
        %3009 = vmatmul.mubr.f32.gmra.mxu0 %v2834
        %v3010 = vpop.f32.mrf.mxu0
        %v3011 = vadd.f32 0.0, %v3010
        %v3012 = vpop.f32.mrf.mxu0
        %3013 = vmatprep.mubr.f32.mxu0 0.0
        %3014 = vmatmul.mubr.f32.gmra.mxu0 %v2837
        %v3015 = vpop.f32.mrf.mxu0
        %v3016 = vadd.f32 0.0, %v3015
        %v3017 = vpop.f32.mrf.mxu0
        %3018 = vmatprep.mubr.f32.mxu0 0.0
        %3019 = vmatmul.mubr.f32.gmra.mxu0 %v2840
        %v3020 = vpop.f32.mrf.mxu0
        %v3021 = vadd.f32 0.0, %v3020
        %v3022 = vpop.f32.mrf.mxu0
        %3023 = vmatprep.mubr.f32.mxu0 0.0
        %3024 = vmatmul.mubr.f32.gmra.mxu0 %v2843
        %v3025 = vpop.f32.mrf.mxu0
        %v3026 = vadd.f32 0.0, %v3025
        %v3027 = vpop.f32.mrf.mxu0
        %3028 = vmatprep.mubr.f32.mxu0 0.0
        %3029 = vmatmul.mubr.f32.gmra.mxu0 %v2846
        %v3030 = vpop.f32.mrf.mxu0
        %v3031 = vadd.f32 0.0, %v3030
        %v3032 = vpop.f32.mrf.mxu0
        %3033 = vmatprep.mubr.f32.mxu0 0.0
        %3034 = vmatmul.mubr.f32.gmra.mxu0 %v2849
        %v3035 = vpop.f32.mrf.mxu0
        %v3036 = vadd.f32 0.0, %v3035
        %v3037 = vpop.f32.mrf.mxu0
        %3038 = vmatprep.mubr.f32.mxu0 0.0
        %3039 = vmatmul.mubr.f32.gmra.mxu0 %v2852
        %v3040 = vpop.f32.mrf.mxu0
        %v3041 = vadd.f32 0.0, %v3040
        %v3042 = vpop.f32.mrf.mxu0
        %3043 = vmatprep.mubr.f32.mxu0 0.0
        %3044 = vmatmul.mubr.f32.gmra.mxu0 %v2855
        %v3045 = vpop.f32.mrf.mxu0
        %v3046 = vadd.f32 0.0, %v3045
        %v3047 = vpop.f32.mrf.mxu0
        %3048 = vmatprep.mubr.f32.mxu0 0.0
        %3049 = vmatmul.mubr.f32.gmra.mxu0 %v2858
        %v3050 = vpop.f32.mrf.mxu0
        %v3051 = vadd.f32 0.0, %v3050
        %v3052 = vpop.f32.mrf.mxu0
        %3053 = vmatprep.mubr.f32.mxu0 0.0
        %3054 = vmatmul.mubr.f32.gmra.mxu0 %v2861
        %v3055 = vpop.f32.mrf.mxu0
        %v3056 = vadd.f32 0.0, %v3055
        %v3057 = vpop.f32.mrf.mxu0
        %3058 = vmatprep.mubr.f32.mxu0 0.0
        %3059 = vmatmul.mubr.f32.gmra.mxu0 %v2864
        %v3060 = vpop.f32.mrf.mxu0
        %v3061 = vadd.f32 0.0, %v3060
        %v3062 = vpop.f32.mrf.mxu0
        %3063 = vmatprep.mubr.f32.mxu0 0.0
        %3064 = vmatmul.mubr.f32.gmra.mxu0 %v2867
        %v3065 = vpop.f32.mrf.mxu0
        %v3066 = vadd.f32 0.0, %v3065
        %v3067 = vpop.f32.mrf.mxu0
        %3068 = vmatprep.mubr.f32.mxu0 0.0
        %3069 = vmatmul.mubr.f32.gmra.mxu0 %v2870
        %v3070 = vpop.f32.mrf.mxu0
        %v3071 = vadd.f32 0.0, %v3070
        %v3072 = vpop.f32.mrf.mxu0
        %3073 = vmatprep.mubr.f32.mxu0 0.0
        %3074 = vmatmul.mubr.f32.gmra.mxu0 %v2873
        %v3075 = vpop.f32.mrf.mxu0
        %v3076 = vadd.f32 0.0, %v3075
        %v3077 = vpop.f32.mrf.mxu0
        %3078 = vmatprep.mubr.f32.mxu0 0.0
        %3079 = vmatmul.mubr.f32.gmra.mxu0 %v2876
        %v3080 = vpop.f32.mrf.mxu0
        %v3081 = vadd.f32 0.0, %v3080
        %v3082 = vpop.f32.mrf.mxu0
        %3083 = vmatprep.mubr.f32.mxu0 0.0
        %3084 = vmatmul.mubr.f32.gmra.mxu0 %v2879
        %v3085 = vpop.f32.mrf.mxu0
        %v3086 = vadd.f32 0.0, %v3085
        %v3087 = vpop.f32.mrf.mxu0
        %3088 = vmatprep.mubr.f32.mxu0 0.0
        %3089 = vmatmul.mubr.f32.gmra.mxu0 %v2882
        %v3090 = vpop.f32.mrf.mxu0
        %v3091 = vadd.f32 0.0, %v3090
        %v3092 = vpop.f32.mrf.mxu0
        %3093 = vmatprep.mubr.f32.mxu0 0.0
        %3094 = vmatmul.mubr.f32.gmra.mxu0 %v2885
        %v3095 = vpop.f32.mrf.mxu0
        %v3096 = vadd.f32 0.0, %v3095
        %v3097 = vpop.f32.mrf.mxu0
        %3098 = vmatprep.mubr.f32.mxu0 0.0
        %3099 = vmatmul.mubr.f32.gmra.mxu0 %v2888
        %v3100 = vpop.f32.mrf.mxu0
        %v3101 = vadd.f32 0.0, %v3100
        %v3102 = vpop.f32.mrf.mxu0
        %3103 = vmatprep.mubr.f32.mxu0 0.0
        %3104 = vmatmul.mubr.f32.gmra.mxu0 %v2891
        %v3105 = vpop.f32.mrf.mxu0
        %v3106 = vadd.f32 0.0, %v3105
        %v3107 = vpop.f32.mrf.mxu0
        %3108 = vmatprep.mubr.f32.mxu0 0.0
        %3109 = vmatmul.mubr.f32.gmra.mxu0 %v2894
        %v3110 = vpop.f32.mrf.mxu0
        %v3111 = vadd.f32 0.0, %v3110
        %v3112 = vpop.f32.mrf.mxu0
        %3113 = vmatprep.mubr.f32.mxu0 0.0
        %3114 = vmatmul.mubr.f32.gmra.mxu0 %v2897
        %v3115 = vpop.f32.mrf.mxu0
        %v3116 = vadd.f32 0.0, %v3115
        %v3117 = vpop.f32.mrf.mxu0
        %3118 = vmatprep.mubr.f32.mxu0 0.0
        %3119 = vmatmul.mubr.f32.gmra.mxu0 %v2900
        %v3120 = vpop.f32.mrf.mxu0
        %v3121 = vadd.f32 0.0, %v3120
        %v3122 = vpop.f32.mrf.mxu0
        %3123 = vmatprep.mubr.f32.mxu0 0.0
        %3124 = vmatmul.mubr.f32.gmra.mxu0 %v2903
        %v3125 = vpop.f32.mrf.mxu0
        %v3126 = vadd.f32 0.0, %v3125
        %v3127 = vpop.f32.mrf.mxu0
        %3128 = vmatprep.mubr.f32.mxu0 0.0
        %3129 = vmatmul.mubr.f32.gmra.mxu0 %v2906
        %v3130 = vpop.f32.mrf.mxu0
        %v3131 = vadd.f32 0.0, %v3130
        %v3132 = vpop.f32.mrf.mxu0
        %3133 = vmatprep.mubr.f32.mxu0 0.0
        %3134 = vmatmul.mubr.f32.gmra.mxu0 %v2909
        %v3135 = vpop.f32.mrf.mxu0
        %v3136 = vadd.f32 0.0, %v3135
        %v3137 = vpop.f32.mrf.mxu0
        %3138 = vdwg.mxu0
        %v3139 = vadd.f32 %v2744, %v2981
        %v3140 = vadd.f32 %v2745, %v2986
        %v3141 = vadd.f32 %v2746, %v2991
        %v3142 = vadd.f32 %v2747, %v2996
        %v3143 = vadd.f32 %v2748, %v3001
        %v3144 = vadd.f32 %v2749, %v3006
        %v3145 = vadd.f32 %v2750, %v3011
        %v3146 = vadd.f32 %v2751, %v3016
        %v3147 = vadd.f32 %v2752, %v3021
        %v3148 = vadd.f32 %v2753, %v3026
        %v3149 = vadd.f32 %v2754, %v3031
        %v3150 = vadd.f32 %v2755, %v3036
        %v3151 = vadd.f32 %v2756, %v3041
        %v3152 = vadd.f32 %v2757, %v3046
        %v3153 = vadd.f32 %v2758, %v3051
        %v3154 = vadd.f32 %v2759, %v3056
        %v3155 = vadd.f32 %v2760, %v3061
        %v3156 = vadd.f32 %v2761, %v3066
        %v3157 = vadd.f32 %v2762, %v3071
        %v3158 = vadd.f32 %v2763, %v3076
        %v3159 = vadd.f32 %v2764, %v3081
        %v3160 = vadd.f32 %v2765, %v3086
        %v3161 = vadd.f32 %v2766, %v3091
        %v3162 = vadd.f32 %v2767, %v3096
        %v3163 = vadd.f32 %v2768, %v3101
        %v3164 = vadd.f32 %v2769, %v3106
        %v3165 = vadd.f32 %v2770, %v3111
        %v3166 = vadd.f32 %v2771, %v3116
        %v3167 = vadd.f32 %v2772, %v3121
        %v3168 = vadd.f32 %v2773, %v3126
        %v3169 = vadd.f32 %v2774, %v3131
        %v3170 = vadd.f32 %v2775, %v3136
        %v3171 = vld [vmem:[%s2776 + $0x1] sm:$0xff]
        %v3172 = vld [vmem:[%s2776 + $0x9] sm:$0xff]
        %v3173 = vld [vmem:[%s2776 + $0x19] sm:$0xff]
        %v3174 = vld [vmem:[%s2776 + $0x21] sm:$0xff]
        %v3175 = vld [vmem:[%s2776 + $0x31] sm:$0xff]
        %v3176 = vld [vmem:[%s2776 + $0x39] sm:$0xff]
        %v3177 = vld [vmem:[%s2776 + $0x49] sm:$0xff]
        %v3178 = vld [vmem:[%s2776 + $0x51] sm:$0xff]
        %v3179 = vld [vmem:[%s2776 + $0x61] sm:$0xff]
        %v3180 = vld [vmem:[%s2776 + $0x69] sm:$0xff]
        %v3181 = vld [vmem:[%s2776 + $0x79] sm:$0xff]
        %v3182 = vld [vmem:[%s2776 + $0x81] sm:$0xff]
        %v3183 = vld [vmem:[%s2776 + $0x91] sm:$0xff]
        %v3184 = vld [vmem:[%s2776 + $0x99] sm:$0xff]
        %v3185 = vld [vmem:[%s2776 + $0xa9] sm:$0xff]
        %v3186 = vld [vmem:[%s2776 + $0xb1] sm:$0xff]
        %v3187 = vld [vmem:[%s2776 + $0xc1] sm:$0xff]
        %v3188 = vld [vmem:[%s2776 + $0xc9] sm:$0xff]
        %v3189 = vld [vmem:[%s2776 + $0xd9] sm:$0xff]
        %v3190 = vld [vmem:[%s2776 + $0xe1] sm:$0xff]
        %v3191 = vld [vmem:[%s2776 + $0xf1] sm:$0xff]
        %v3192 = vld [vmem:[%s2776 + $0xf9] sm:$0xff]
        %v3193 = vld [vmem:[%s2776 + $0x109] sm:$0xff]
        %v3194 = vld [vmem:[%s2776 + $0x111] sm:$0xff]
        %v3195 = vld [vmem:[%s2776 + $0x121] sm:$0xff]
        %v3196 = vld [vmem:[%s2776 + $0x129] sm:$0xff]
        %v3197 = vld [vmem:[%s2776 + $0x139] sm:$0xff]
        %v3198 = vld [vmem:[%s2776 + $0x141] sm:$0xff]
        %v3199 = vld [vmem:[%s2776 + $0x151] sm:$0xff]
        %v3200 = vld [vmem:[%s2776 + $0x159] sm:$0xff]
        %v3201 = vld [vmem:[%s2776 + $0x169] sm:$0xff]
        %v3202 = vld [vmem:[%s2776 + $0x171] sm:$0xff]
        %s3203 = scalar_lea.vmem %s1, 280
        %v3204 = vld [vmem:[%s3203] sm:$0xff]
        %v3205 = vld [vmem:[%s3203 + $0x8] sm:$0xff]
        %v3206 = vld [vmem:[%s3203 + $0x10] sm:$0xff]
        %v3207 = vld [vmem:[%s3203 + $0x18] sm:$0xff]
        %v3208 = vld [vmem:[%s3203 + $0x20] sm:$0xf]
        %v3210 = vsel %vm448, %v3171, 0
        %v3213 = vsel %vm448, %v3172, 0
        %v3216 = vsel %vm448, %v3173, 0
        %v3219 = vsel %vm448, %v3174, 0
        %v3222 = vsel %vm448, %v3175, 0
        %v3225 = vsel %vm448, %v3176, 0
        %v3228 = vsel %vm448, %v3177, 0
        %v3231 = vsel %vm448, %v3178, 0
        %v3234 = vsel %vm448, %v3179, 0
        %v3237 = vsel %vm448, %v3180, 0
        %v3240 = vsel %vm448, %v3181, 0
        %v3243 = vsel %vm448, %v3182, 0
        %v3246 = vsel %vm448, %v3183, 0
        %v3249 = vsel %vm448, %v3184, 0
        %v3252 = vsel %vm448, %v3185, 0
        %v3255 = vsel %vm448, %v3186, 0
        %v3258 = vsel %vm448, %v3187, 0
        %v3261 = vsel %vm448, %v3188, 0
        %v3264 = vsel %vm448, %v3189, 0
        %v3267 = vsel %vm448, %v3190, 0
        %v3270 = vsel %vm448, %v3191, 0
        %v3273 = vsel %vm448, %v3192, 0
        %v3276 = vsel %vm448, %v3193, 0
        %v3279 = vsel %vm448, %v3194, 0
        %v3282 = vsel %vm448, %v3195, 0
        %v3285 = vsel %vm448, %v3196, 0
        %v3288 = vsel %vm448, %v3197, 0
        %v3291 = vsel %vm448, %v3198, 0
        %v3294 = vsel %vm448, %v3199, 0
        %v3297 = vsel %vm448, %v3200, 0
        %v3300 = vsel %vm448, %v3201, 0
        %v3303 = vsel %vm448, %v3202, 0
        %v3306 = vsel %vm545, %v3208, 0
        %3308 = vmatprep.subr.mxu0 0.0
        %3309 = vmatpush1.msra.mxu0 0.0
        %3310 = vmatprep.subr.mxu0 0.0
        %3311 = vmatpush1.msra.mxu0 0.0
        %3312 = vmatprep.subr.mxu0 0.0
        %3313 = vmatpush1.msra.mxu0 0.0
        %3314 = vmatprep.subr.mxu0 0.0
        %3315 = vmatpush1.msra.mxu0 0.0
        %3316 = vmatprep.subr.mxu0 0.0
        %3317 = vmatpush1.msra.mxu0 0.0
        %3318 = vmatprep.subr.mxu0 0.0
        %3319 = vmatpush1.msra.mxu0 0.0
        %3320 = vmatprep.subr.mxu0 0.0
        %3321 = vmatpush1.msra.mxu0 0.0
        %3322 = vmatprep.subr.mxu0 0.0
        %3323 = vmatpush1.msra.mxu0 0.0
        %3324 = vmatprep.subr.mxu0 0.0
        %3325 = vmatpush1.msra.mxu0 0.0
        %3326 = vmatprep.subr.mxu0 0.0
        %3327 = vmatpush1.msra.mxu0 0.0
        %3328 = vmatprep.subr.mxu0 0.0
        %3329 = vmatpush1.msra.mxu0 0.0
        %3330 = vmatprep.subr.mxu0 0.0
        %3331 = vmatpush1.msra.mxu0 %v3306
        %3332 = vmatprep.subr.mxu0 0.0
        %3333 = vmatpush1.msra.mxu0 %v3207
        %3334 = vmatprep.subr.mxu0 0.0
        %3335 = vmatpush1.msra.mxu0 %v3206
        %3336 = vmatprep.subr.mxu0 0.0
        %3337 = vmatpush1.msra.mxu0 %v3205
        %3338 = vmatprep.subr.mxu0 0.0
        %3339 = vmatpush1.msra.mxu0 %v3204
        %3340 = vmatprep.subr.mxu0 0.0
        %3341 = vmatpush2.msra.mxu0 0.0
        %3342 = vmatprep.subr.mxu0 0.0
        %3343 = vmatpush2.msra.mxu0 0.0
        %3344 = vmatprep.subr.mxu0 0.0
        %3345 = vmatpush2.msra.mxu0 0.0
        %3346 = vmatprep.subr.mxu0 0.0
        %3347 = vmatpush2.msra.mxu0 0.0
        %3348 = vmatprep.subr.mxu0 0.0
        %3349 = vmatpush2.msra.mxu0 0.0
        %3350 = vmatprep.subr.mxu0 0.0
        %3351 = vmatpush2.msra.mxu0 0.0
        %3352 = vmatprep.subr.mxu0 0.0
        %3353 = vmatpush2.msra.mxu0 0.0
        %3354 = vmatprep.subr.mxu0 0.0
        %3355 = vmatpush2.msra.mxu0 0.0
        %3356 = vmatprep.subr.mxu0 0.0
        %3357 = vmatpush2.msra.mxu0 0.0
        %3358 = vmatprep.subr.mxu0 0.0
        %3359 = vmatpush2.msra.mxu0 0.0
        %3360 = vmatprep.subr.mxu0 0.0
        %3361 = vmatpush2.msra.mxu0 0.0
        %3362 = vmatprep.subr.mxu0 0.0
        %3363 = vmatpush2.msra.mxu0 0.0
        %3364 = vmatprep.subr.mxu0 0.0
        %3365 = vmatpush2.msra.mxu0 0.0
        %3366 = vmatprep.subr.mxu0 0.0
        %3367 = vmatpush2.msra.mxu0 0.0
        %3368 = vmatprep.subr.mxu0 0.0
        %3369 = vmatpush2.msra.mxu0 0.0
        %3370 = vmatprep.subr.mxu0 0.0
        %3371 = vmatpush2.msra.mxu0 0.0
        %3372 = vmatprep.mubr.f32.mxu0 0.0
        %3373 = vmatmul.mubr.f32.gmra.mxu0 %v3210
        %v3374 = vpop.f32.mrf.mxu0
        %v3375 = vadd.f32 0.0, %v3374
        %v3376 = vpop.f32.mrf.mxu0
        %3377 = vmatprep.mubr.f32.mxu0 0.0
        %3378 = vmatmul.mubr.f32.gmra.mxu0 %v3213
        %v3379 = vpop.f32.mrf.mxu0
        %v3380 = vadd.f32 0.0, %v3379
        %v3381 = vpop.f32.mrf.mxu0
        %3382 = vmatprep.mubr.f32.mxu0 0.0
        %3383 = vmatmul.mubr.f32.gmra.mxu0 %v3216
        %v3384 = vpop.f32.mrf.mxu0
        %v3385 = vadd.f32 0.0, %v3384
        %v3386 = vpop.f32.mrf.mxu0
        %3387 = vmatprep.mubr.f32.mxu0 0.0
        %3388 = vmatmul.mubr.f32.gmra.mxu0 %v3219
        %v3389 = vpop.f32.mrf.mxu0
        %v3390 = vadd.f32 0.0, %v3389
        %v3391 = vpop.f32.mrf.mxu0
        %3392 = vmatprep.mubr.f32.mxu0 0.0
        %3393 = vmatmul.mubr.f32.gmra.mxu0 %v3222
        %v3394 = vpop.f32.mrf.mxu0
        %v3395 = vadd.f32 0.0, %v3394
        %v3396 = vpop.f32.mrf.mxu0
        %3397 = vmatprep.mubr.f32.mxu0 0.0
        %3398 = vmatmul.mubr.f32.gmra.mxu0 %v3225
        %v3399 = vpop.f32.mrf.mxu0
        %v3400 = vadd.f32 0.0, %v3399
        %v3401 = vpop.f32.mrf.mxu0
        %3402 = vmatprep.mubr.f32.mxu0 0.0
        %3403 = vmatmul.mubr.f32.gmra.mxu0 %v3228
        %v3404 = vpop.f32.mrf.mxu0
        %v3405 = vadd.f32 0.0, %v3404
        %v3406 = vpop.f32.mrf.mxu0
        %3407 = vmatprep.mubr.f32.mxu0 0.0
        %3408 = vmatmul.mubr.f32.gmra.mxu0 %v3231
        %v3409 = vpop.f32.mrf.mxu0
        %v3410 = vadd.f32 0.0, %v3409
        %v3411 = vpop.f32.mrf.mxu0
        %3412 = vmatprep.mubr.f32.mxu0 0.0
        %3413 = vmatmul.mubr.f32.gmra.mxu0 %v3234
        %v3414 = vpop.f32.mrf.mxu0
        %v3415 = vadd.f32 0.0, %v3414
        %v3416 = vpop.f32.mrf.mxu0
        %3417 = vmatprep.mubr.f32.mxu0 0.0
        %3418 = vmatmul.mubr.f32.gmra.mxu0 %v3237
        %v3419 = vpop.f32.mrf.mxu0
        %v3420 = vadd.f32 0.0, %v3419
        %v3421 = vpop.f32.mrf.mxu0
        %3422 = vmatprep.mubr.f32.mxu0 0.0
        %3423 = vmatmul.mubr.f32.gmra.mxu0 %v3240
        %v3424 = vpop.f32.mrf.mxu0
        %v3425 = vadd.f32 0.0, %v3424
        %v3426 = vpop.f32.mrf.mxu0
        %3427 = vmatprep.mubr.f32.mxu0 0.0
        %3428 = vmatmul.mubr.f32.gmra.mxu0 %v3243
        %v3429 = vpop.f32.mrf.mxu0
        %v3430 = vadd.f32 0.0, %v3429
        %v3431 = vpop.f32.mrf.mxu0
        %3432 = vmatprep.mubr.f32.mxu0 0.0
        %3433 = vmatmul.mubr.f32.gmra.mxu0 %v3246
        %v3434 = vpop.f32.mrf.mxu0
        %v3435 = vadd.f32 0.0, %v3434
        %v3436 = vpop.f32.mrf.mxu0
        %3437 = vmatprep.mubr.f32.mxu0 0.0
        %3438 = vmatmul.mubr.f32.gmra.mxu0 %v3249
        %v3439 = vpop.f32.mrf.mxu0
        %v3440 = vadd.f32 0.0, %v3439
        %v3441 = vpop.f32.mrf.mxu0
        %3442 = vmatprep.mubr.f32.mxu0 0.0
        %3443 = vmatmul.mubr.f32.gmra.mxu0 %v3252
        %v3444 = vpop.f32.mrf.mxu0
        %v3445 = vadd.f32 0.0, %v3444
        %v3446 = vpop.f32.mrf.mxu0
        %3447 = vmatprep.mubr.f32.mxu0 0.0
        %3448 = vmatmul.mubr.f32.gmra.mxu0 %v3255
        %v3449 = vpop.f32.mrf.mxu0
        %v3450 = vadd.f32 0.0, %v3449
        %v3451 = vpop.f32.mrf.mxu0
        %3452 = vmatprep.mubr.f32.mxu0 0.0
        %3453 = vmatmul.mubr.f32.gmra.mxu0 %v3258
        %v3454 = vpop.f32.mrf.mxu0
        %v3455 = vadd.f32 0.0, %v3454
        %v3456 = vpop.f32.mrf.mxu0
        %3457 = vmatprep.mubr.f32.mxu0 0.0
        %3458 = vmatmul.mubr.f32.gmra.mxu0 %v3261
        %v3459 = vpop.f32.mrf.mxu0
        %v3460 = vadd.f32 0.0, %v3459
        %v3461 = vpop.f32.mrf.mxu0
        %3462 = vmatprep.mubr.f32.mxu0 0.0
        %3463 = vmatmul.mubr.f32.gmra.mxu0 %v3264
        %v3464 = vpop.f32.mrf.mxu0
        %v3465 = vadd.f32 0.0, %v3464
        %v3466 = vpop.f32.mrf.mxu0
        %3467 = vmatprep.mubr.f32.mxu0 0.0
        %3468 = vmatmul.mubr.f32.gmra.mxu0 %v3267
        %v3469 = vpop.f32.mrf.mxu0
        %v3470 = vadd.f32 0.0, %v3469
        %v3471 = vpop.f32.mrf.mxu0
        %3472 = vmatprep.mubr.f32.mxu0 0.0
        %3473 = vmatmul.mubr.f32.gmra.mxu0 %v3270
        %v3474 = vpop.f32.mrf.mxu0
        %v3475 = vadd.f32 0.0, %v3474
        %v3476 = vpop.f32.mrf.mxu0
        %3477 = vmatprep.mubr.f32.mxu0 0.0
        %3478 = vmatmul.mubr.f32.gmra.mxu0 %v3273
        %v3479 = vpop.f32.mrf.mxu0
        %v3480 = vadd.f32 0.0, %v3479
        %v3481 = vpop.f32.mrf.mxu0
        %3482 = vmatprep.mubr.f32.mxu0 0.0
        %3483 = vmatmul.mubr.f32.gmra.mxu0 %v3276
        %v3484 = vpop.f32.mrf.mxu0
        %v3485 = vadd.f32 0.0, %v3484
        %v3486 = vpop.f32.mrf.mxu0
        %3487 = vmatprep.mubr.f32.mxu0 0.0
        %3488 = vmatmul.mubr.f32.gmra.mxu0 %v3279
        %v3489 = vpop.f32.mrf.mxu0
        %v3490 = vadd.f32 0.0, %v3489
        %v3491 = vpop.f32.mrf.mxu0
        %3492 = vmatprep.mubr.f32.mxu0 0.0
        %3493 = vmatmul.mubr.f32.gmra.mxu0 %v3282
        %v3494 = vpop.f32.mrf.mxu0
        %v3495 = vadd.f32 0.0, %v3494
        %v3496 = vpop.f32.mrf.mxu0
        %3497 = vmatprep.mubr.f32.mxu0 0.0
        %3498 = vmatmul.mubr.f32.gmra.mxu0 %v3285
        %v3499 = vpop.f32.mrf.mxu0
        %v3500 = vadd.f32 0.0, %v3499
        %v3501 = vpop.f32.mrf.mxu0
        %3502 = vmatprep.mubr.f32.mxu0 0.0
        %3503 = vmatmul.mubr.f32.gmra.mxu0 %v3288
        %v3504 = vpop.f32.mrf.mxu0
        %v3505 = vadd.f32 0.0, %v3504
        %v3506 = vpop.f32.mrf.mxu0
        %3507 = vmatprep.mubr.f32.mxu0 0.0
        %3508 = vmatmul.mubr.f32.gmra.mxu0 %v3291
        %v3509 = vpop.f32.mrf.mxu0
        %v3510 = vadd.f32 0.0, %v3509
        %v3511 = vpop.f32.mrf.mxu0
        %3512 = vmatprep.mubr.f32.mxu0 0.0
        %3513 = vmatmul.mubr.f32.gmra.mxu0 %v3294
        %v3514 = vpop.f32.mrf.mxu0
        %v3515 = vadd.f32 0.0, %v3514
        %v3516 = vpop.f32.mrf.mxu0
        %3517 = vmatprep.mubr.f32.mxu0 0.0
        %3518 = vmatmul.mubr.f32.gmra.mxu0 %v3297
        %v3519 = vpop.f32.mrf.mxu0
        %v3520 = vadd.f32 0.0, %v3519
        %v3521 = vpop.f32.mrf.mxu0
        %3522 = vmatprep.mubr.f32.mxu0 0.0
        %3523 = vmatmul.mubr.f32.gmra.mxu0 %v3300
        %v3524 = vpop.f32.mrf.mxu0
        %v3525 = vadd.f32 0.0, %v3524
        %v3526 = vpop.f32.mrf.mxu0
        %3527 = vmatprep.mubr.f32.mxu0 0.0
        %3528 = vmatmul.mubr.f32.gmra.mxu0 %v3303
        %v3529 = vpop.f32.mrf.mxu0
        %v3530 = vadd.f32 0.0, %v3529
        %v3531 = vpop.f32.mrf.mxu0
        %3532 = vdwg.mxu0
        %v3533 = vadd.f32 %v3139, %v3375
        %v3534 = vadd.f32 %v3140, %v3380
        %v3535 = vadd.f32 %v3141, %v3385
        %v3536 = vadd.f32 %v3142, %v3390
        %v3537 = vadd.f32 %v3143, %v3395
        %v3538 = vadd.f32 %v3144, %v3400
        %v3539 = vadd.f32 %v3145, %v3405
        %v3540 = vadd.f32 %v3146, %v3410
        %v3541 = vadd.f32 %v3147, %v3415
        %v3542 = vadd.f32 %v3148, %v3420
        %v3543 = vadd.f32 %v3149, %v3425
        %v3544 = vadd.f32 %v3150, %v3430
        %v3545 = vadd.f32 %v3151, %v3435
        %v3546 = vadd.f32 %v3152, %v3440
        %v3547 = vadd.f32 %v3153, %v3445
        %v3548 = vadd.f32 %v3154, %v3450
        %v3549 = vadd.f32 %v3155, %v3455
        %v3550 = vadd.f32 %v3156, %v3460
        %v3551 = vadd.f32 %v3157, %v3465
        %v3552 = vadd.f32 %v3158, %v3470
        %v3553 = vadd.f32 %v3159, %v3475
        %v3554 = vadd.f32 %v3160, %v3480
        %v3555 = vadd.f32 %v3161, %v3485
        %v3556 = vadd.f32 %v3162, %v3490
        %v3557 = vadd.f32 %v3163, %v3495
        %v3558 = vadd.f32 %v3164, %v3500
        %v3559 = vadd.f32 %v3165, %v3505
        %v3560 = vadd.f32 %v3166, %v3510
        %v3561 = vadd.f32 %v3167, %v3515
        %v3562 = vadd.f32 %v3168, %v3520
        %v3563 = vadd.f32 %v3169, %v3525
        %v3564 = vadd.f32 %v3170, %v3530
        %v3565 = vld [vmem:[%s2776 + $0x2] sm:$0xff]
        %v3566 = vld [vmem:[%s2776 + $0xa] sm:$0xff]
        %v3567 = vld [vmem:[%s2776 + $0x1a] sm:$0xff]
        %v3568 = vld [vmem:[%s2776 + $0x22] sm:$0xff]
        %v3569 = vld [vmem:[%s2776 + $0x32] sm:$0xff]
        %v3570 = vld [vmem:[%s2776 + $0x3a] sm:$0xff]
        %v3571 = vld [vmem:[%s2776 + $0x4a] sm:$0xff]
        %v3572 = vld [vmem:[%s2776 + $0x52] sm:$0xff]
        %v3573 = vld [vmem:[%s2776 + $0x62] sm:$0xff]
        %v3574 = vld [vmem:[%s2776 + $0x6a] sm:$0xff]
        %v3575 = vld [vmem:[%s2776 + $0x7a] sm:$0xff]
        %v3576 = vld [vmem:[%s2776 + $0x82] sm:$0xff]
        %v3577 = vld [vmem:[%s2776 + $0x92] sm:$0xff]
        %v3578 = vld [vmem:[%s2776 + $0x9a] sm:$0xff]
        %v3579 = vld [vmem:[%s2776 + $0xaa] sm:$0xff]
        %v3580 = vld [vmem:[%s2776 + $0xb2] sm:$0xff]
        %v3581 = vld [vmem:[%s2776 + $0xc2] sm:$0xff]
        %v3582 = vld [vmem:[%s2776 + $0xca] sm:$0xff]
        %v3583 = vld [vmem:[%s2776 + $0xda] sm:$0xff]
        %v3584 = vld [vmem:[%s2776 + $0xe2] sm:$0xff]
        %v3585 = vld [vmem:[%s2776 + $0xf2] sm:$0xff]
        %v3586 = vld [vmem:[%s2776 + $0xfa] sm:$0xff]
        %v3587 = vld [vmem:[%s2776 + $0x10a] sm:$0xff]
        %v3588 = vld [vmem:[%s2776 + $0x112] sm:$0xff]
        %v3589 = vld [vmem:[%s2776 + $0x122] sm:$0xff]
        %v3590 = vld [vmem:[%s2776 + $0x12a] sm:$0xff]
        %v3591 = vld [vmem:[%s2776 + $0x13a] sm:$0xff]
        %v3592 = vld [vmem:[%s2776 + $0x142] sm:$0xff]
        %v3593 = vld [vmem:[%s2776 + $0x152] sm:$0xff]
        %v3594 = vld [vmem:[%s2776 + $0x15a] sm:$0xff]
        %v3595 = vld [vmem:[%s2776 + $0x16a] sm:$0xff]
        %v3596 = vld [vmem:[%s2776 + $0x172] sm:$0xff]
        %s3597 = scalar_lea.vmem %s1, 320
        %v3598 = vld [vmem:[%s3597] sm:$0xff]
        %v3599 = vld [vmem:[%s3597 + $0x8] sm:$0xff]
        %v3600 = vld [vmem:[%s3597 + $0x10] sm:$0xff]
        %v3601 = vld [vmem:[%s3597 + $0x18] sm:$0xff]
        %v3602 = vld [vmem:[%s3597 + $0x20] sm:$0xf]
        %v3604 = vsel %vm448, %v3565, 0
        %v3607 = vsel %vm448, %v3566, 0
        %v3610 = vsel %vm448, %v3567, 0
        %v3613 = vsel %vm448, %v3568, 0
        %v3616 = vsel %vm448, %v3569, 0
        %v3619 = vsel %vm448, %v3570, 0
        %v3622 = vsel %vm448, %v3571, 0
        %v3625 = vsel %vm448, %v3572, 0
        %v3628 = vsel %vm448, %v3573, 0
        %v3631 = vsel %vm448, %v3574, 0
        %v3634 = vsel %vm448, %v3575, 0
        %v3637 = vsel %vm448, %v3576, 0
        %v3640 = vsel %vm448, %v3577, 0
        %v3643 = vsel %vm448, %v3578, 0
        %v3646 = vsel %vm448, %v3579, 0
        %v3649 = vsel %vm448, %v3580, 0
        %v3652 = vsel %vm448, %v3581, 0
        %v3655 = vsel %vm448, %v3582, 0
        %v3658 = vsel %vm448, %v3583, 0
        %v3661 = vsel %vm448, %v3584, 0
        %v3664 = vsel %vm448, %v3585, 0
        %v3667 = vsel %vm448, %v3586, 0
        %v3670 = vsel %vm448, %v3587, 0
        %v3673 = vsel %vm448, %v3588, 0
        %v3676 = vsel %vm448, %v3589, 0
        %v3679 = vsel %vm448, %v3590, 0
        %v3682 = vsel %vm448, %v3591, 0
        %v3685 = vsel %vm448, %v3592, 0
        %v3688 = vsel %vm448, %v3593, 0
        %v3691 = vsel %vm448, %v3594, 0
        %v3694 = vsel %vm448, %v3595, 0
        %v3697 = vsel %vm448, %v3596, 0
        %v3700 = vsel %vm545, %v3602, 0
        %3702 = vmatprep.subr.mxu0 0.0
        %3703 = vmatpush1.msra.mxu0 0.0
        %3704 = vmatprep.subr.mxu0 0.0
        %3705 = vmatpush1.msra.mxu0 0.0
        %3706 = vmatprep.subr.mxu0 0.0
        %3707 = vmatpush1.msra.mxu0 0.0
        %3708 = vmatprep.subr.mxu0 0.0
        %3709 = vmatpush1.msra.mxu0 0.0
        %3710 = vmatprep.subr.mxu0 0.0
        %3711 = vmatpush1.msra.mxu0 0.0
        %3712 = vmatprep.subr.mxu0 0.0
        %3713 = vmatpush1.msra.mxu0 0.0
        %3714 = vmatprep.subr.mxu0 0.0
        %3715 = vmatpush1.msra.mxu0 0.0
        %3716 = vmatprep.subr.mxu0 0.0
        %3717 = vmatpush1.msra.mxu0 0.0
        %3718 = vmatprep.subr.mxu0 0.0
        %3719 = vmatpush1.msra.mxu0 0.0
        %3720 = vmatprep.subr.mxu0 0.0
        %3721 = vmatpush1.msra.mxu0 0.0
        %3722 = vmatprep.subr.mxu0 0.0
        %3723 = vmatpush1.msra.mxu0 0.0
        %3724 = vmatprep.subr.mxu0 0.0
        %3725 = vmatpush1.msra.mxu0 %v3700
        %3726 = vmatprep.subr.mxu0 0.0
        %3727 = vmatpush1.msra.mxu0 %v3601
        %3728 = vmatprep.subr.mxu0 0.0
        %3729 = vmatpush1.msra.mxu0 %v3600
        %3730 = vmatprep.subr.mxu0 0.0
        %3731 = vmatpush1.msra.mxu0 %v3599
        %3732 = vmatprep.subr.mxu0 0.0
        %3733 = vmatpush1.msra.mxu0 %v3598
        %3734 = vmatprep.subr.mxu0 0.0
        %3735 = vmatpush2.msra.mxu0 0.0
        %3736 = vmatprep.subr.mxu0 0.0
        %3737 = vmatpush2.msra.mxu0 0.0
        %3738 = vmatprep.subr.mxu0 0.0
        %3739 = vmatpush2.msra.mxu0 0.0
        %3740 = vmatprep.subr.mxu0 0.0
        %3741 = vmatpush2.msra.mxu0 0.0
        %3742 = vmatprep.subr.mxu0 0.0
        %3743 = vmatpush2.msra.mxu0 0.0
        %3744 = vmatprep.subr.mxu0 0.0
        %3745 = vmatpush2.msra.mxu0 0.0
        %3746 = vmatprep.subr.mxu0 0.0
        %3747 = vmatpush2.msra.mxu0 0.0
        %3748 = vmatprep.subr.mxu0 0.0
        %3749 = vmatpush2.msra.mxu0 0.0
        %3750 = vmatprep.subr.mxu0 0.0
        %3751 = vmatpush2.msra.mxu0 0.0
        %3752 = vmatprep.subr.mxu0 0.0
        %3753 = vmatpush2.msra.mxu0 0.0
        %3754 = vmatprep.subr.mxu0 0.0
        %3755 = vmatpush2.msra.mxu0 0.0
        %3756 = vmatprep.subr.mxu0 0.0
        %3757 = vmatpush2.msra.mxu0 0.0
        %3758 = vmatprep.subr.mxu0 0.0
        %3759 = vmatpush2.msra.mxu0 0.0
        %3760 = vmatprep.subr.mxu0 0.0
        %3761 = vmatpush2.msra.mxu0 0.0
        %3762 = vmatprep.subr.mxu0 0.0
        %3763 = vmatpush2.msra.mxu0 0.0
        %3764 = vmatprep.subr.mxu0 0.0
        %3765 = vmatpush2.msra.mxu0 0.0
        %3766 = vmatprep.mubr.f32.mxu0 0.0
        %3767 = vmatmul.mubr.f32.gmra.mxu0 %v3604
        %v3768 = vpop.f32.mrf.mxu0
        %v3769 = vadd.f32 0.0, %v3768
        %v3770 = vpop.f32.mrf.mxu0
        %3771 = vmatprep.mubr.f32.mxu0 0.0
        %3772 = vmatmul.mubr.f32.gmra.mxu0 %v3607
        %v3773 = vpop.f32.mrf.mxu0
        %v3774 = vadd.f32 0.0, %v3773
        %v3775 = vpop.f32.mrf.mxu0
        %3776 = vmatprep.mubr.f32.mxu0 0.0
        %3777 = vmatmul.mubr.f32.gmra.mxu0 %v3610
        %v3778 = vpop.f32.mrf.mxu0
        %v3779 = vadd.f32 0.0, %v3778
        %v3780 = vpop.f32.mrf.mxu0
        %3781 = vmatprep.mubr.f32.mxu0 0.0
        %3782 = vmatmul.mubr.f32.gmra.mxu0 %v3613
        %v3783 = vpop.f32.mrf.mxu0
        %v3784 = vadd.f32 0.0, %v3783
        %v3785 = vpop.f32.mrf.mxu0
        %3786 = vmatprep.mubr.f32.mxu0 0.0
        %3787 = vmatmul.mubr.f32.gmra.mxu0 %v3616
        %v3788 = vpop.f32.mrf.mxu0
        %v3789 = vadd.f32 0.0, %v3788
        %v3790 = vpop.f32.mrf.mxu0
        %3791 = vmatprep.mubr.f32.mxu0 0.0
        %3792 = vmatmul.mubr.f32.gmra.mxu0 %v3619
        %v3793 = vpop.f32.mrf.mxu0
        %v3794 = vadd.f32 0.0, %v3793
        %v3795 = vpop.f32.mrf.mxu0
        %3796 = vmatprep.mubr.f32.mxu0 0.0
        %3797 = vmatmul.mubr.f32.gmra.mxu0 %v3622
        %v3798 = vpop.f32.mrf.mxu0
        %v3799 = vadd.f32 0.0, %v3798
        %v3800 = vpop.f32.mrf.mxu0
        %3801 = vmatprep.mubr.f32.mxu0 0.0
        %3802 = vmatmul.mubr.f32.gmra.mxu0 %v3625
        %v3803 = vpop.f32.mrf.mxu0
        %v3804 = vadd.f32 0.0, %v3803
        %v3805 = vpop.f32.mrf.mxu0
        %3806 = vmatprep.mubr.f32.mxu0 0.0
        %3807 = vmatmul.mubr.f32.gmra.mxu0 %v3628
        %v3808 = vpop.f32.mrf.mxu0
        %v3809 = vadd.f32 0.0, %v3808
        %v3810 = vpop.f32.mrf.mxu0
        %3811 = vmatprep.mubr.f32.mxu0 0.0
        %3812 = vmatmul.mubr.f32.gmra.mxu0 %v3631
        %v3813 = vpop.f32.mrf.mxu0
        %v3814 = vadd.f32 0.0, %v3813
        %v3815 = vpop.f32.mrf.mxu0
        %3816 = vmatprep.mubr.f32.mxu0 0.0
        %3817 = vmatmul.mubr.f32.gmra.mxu0 %v3634
        %v3818 = vpop.f32.mrf.mxu0
        %v3819 = vadd.f32 0.0, %v3818
        %v3820 = vpop.f32.mrf.mxu0
        %3821 = vmatprep.mubr.f32.mxu0 0.0
        %3822 = vmatmul.mubr.f32.gmra.mxu0 %v3637
        %v3823 = vpop.f32.mrf.mxu0
        %v3824 = vadd.f32 0.0, %v3823
        %v3825 = vpop.f32.mrf.mxu0
        %3826 = vmatprep.mubr.f32.mxu0 0.0
        %3827 = vmatmul.mubr.f32.gmra.mxu0 %v3640
        %v3828 = vpop.f32.mrf.mxu0
        %v3829 = vadd.f32 0.0, %v3828
        %v3830 = vpop.f32.mrf.mxu0
        %3831 = vmatprep.mubr.f32.mxu0 0.0
        %3832 = vmatmul.mubr.f32.gmra.mxu0 %v3643
        %v3833 = vpop.f32.mrf.mxu0
        %v3834 = vadd.f32 0.0, %v3833
        %v3835 = vpop.f32.mrf.mxu0
        %3836 = vmatprep.mubr.f32.mxu0 0.0
        %3837 = vmatmul.mubr.f32.gmra.mxu0 %v3646
        %v3838 = vpop.f32.mrf.mxu0
        %v3839 = vadd.f32 0.0, %v3838
        %v3840 = vpop.f32.mrf.mxu0
        %3841 = vmatprep.mubr.f32.mxu0 0.0
        %3842 = vmatmul.mubr.f32.gmra.mxu0 %v3649
        %v3843 = vpop.f32.mrf.mxu0
        %v3844 = vadd.f32 0.0, %v3843
        %v3845 = vpop.f32.mrf.mxu0
        %3846 = vmatprep.mubr.f32.mxu0 0.0
        %3847 = vmatmul.mubr.f32.gmra.mxu0 %v3652
        %v3848 = vpop.f32.mrf.mxu0
        %v3849 = vadd.f32 0.0, %v3848
        %v3850 = vpop.f32.mrf.mxu0
        %3851 = vmatprep.mubr.f32.mxu0 0.0
        %3852 = vmatmul.mubr.f32.gmra.mxu0 %v3655
        %v3853 = vpop.f32.mrf.mxu0
        %v3854 = vadd.f32 0.0, %v3853
        %v3855 = vpop.f32.mrf.mxu0
        %3856 = vmatprep.mubr.f32.mxu0 0.0
        %3857 = vmatmul.mubr.f32.gmra.mxu0 %v3658
        %v3858 = vpop.f32.mrf.mxu0
        %v3859 = vadd.f32 0.0, %v3858
        %v3860 = vpop.f32.mrf.mxu0
        %3861 = vmatprep.mubr.f32.mxu0 0.0
        %3862 = vmatmul.mubr.f32.gmra.mxu0 %v3661
        %v3863 = vpop.f32.mrf.mxu0
        %v3864 = vadd.f32 0.0, %v3863
        %v3865 = vpop.f32.mrf.mxu0
        %3866 = vmatprep.mubr.f32.mxu0 0.0
        %3867 = vmatmul.mubr.f32.gmra.mxu0 %v3664
        %v3868 = vpop.f32.mrf.mxu0
        %v3869 = vadd.f32 0.0, %v3868
        %v3870 = vpop.f32.mrf.mxu0
        %3871 = vmatprep.mubr.f32.mxu0 0.0
        %3872 = vmatmul.mubr.f32.gmra.mxu0 %v3667
        %v3873 = vpop.f32.mrf.mxu0
        %v3874 = vadd.f32 0.0, %v3873
        %v3875 = vpop.f32.mrf.mxu0
        %3876 = vmatprep.mubr.f32.mxu0 0.0
        %3877 = vmatmul.mubr.f32.gmra.mxu0 %v3670
        %v3878 = vpop.f32.mrf.mxu0
        %v3879 = vadd.f32 0.0, %v3878
        %v3880 = vpop.f32.mrf.mxu0
        %3881 = vmatprep.mubr.f32.mxu0 0.0
        %3882 = vmatmul.mubr.f32.gmra.mxu0 %v3673
        %v3883 = vpop.f32.mrf.mxu0
        %v3884 = vadd.f32 0.0, %v3883
        %v3885 = vpop.f32.mrf.mxu0
        %3886 = vmatprep.mubr.f32.mxu0 0.0
        %3887 = vmatmul.mubr.f32.gmra.mxu0 %v3676
        %v3888 = vpop.f32.mrf.mxu0
        %v3889 = vadd.f32 0.0, %v3888
        %v3890 = vpop.f32.mrf.mxu0
        %3891 = vmatprep.mubr.f32.mxu0 0.0
        %3892 = vmatmul.mubr.f32.gmra.mxu0 %v3679
        %v3893 = vpop.f32.mrf.mxu0
        %v3894 = vadd.f32 0.0, %v3893
        %v3895 = vpop.f32.mrf.mxu0
        %3896 = vmatprep.mubr.f32.mxu0 0.0
        %3897 = vmatmul.mubr.f32.gmra.mxu0 %v3682
        %v3898 = vpop.f32.mrf.mxu0
        %v3899 = vadd.f32 0.0, %v3898
        %v3900 = vpop.f32.mrf.mxu0
        %3901 = vmatprep.mubr.f32.mxu0 0.0
        %3902 = vmatmul.mubr.f32.gmra.mxu0 %v3685
        %v3903 = vpop.f32.mrf.mxu0
        %v3904 = vadd.f32 0.0, %v3903
        %v3905 = vpop.f32.mrf.mxu0
        %3906 = vmatprep.mubr.f32.mxu0 0.0
        %3907 = vmatmul.mubr.f32.gmra.mxu0 %v3688
        %v3908 = vpop.f32.mrf.mxu0
        %v3909 = vadd.f32 0.0, %v3908
        %v3910 = vpop.f32.mrf.mxu0
        %3911 = vmatprep.mubr.f32.mxu0 0.0
        %3912 = vmatmul.mubr.f32.gmra.mxu0 %v3691
        %v3913 = vpop.f32.mrf.mxu0
        %v3914 = vadd.f32 0.0, %v3913
        %v3915 = vpop.f32.mrf.mxu0
        %3916 = vmatprep.mubr.f32.mxu0 0.0
        %3917 = vmatmul.mubr.f32.gmra.mxu0 %v3694
        %v3918 = vpop.f32.mrf.mxu0
        %v3919 = vadd.f32 0.0, %v3918
        %v3920 = vpop.f32.mrf.mxu0
        %3921 = vmatprep.mubr.f32.mxu0 0.0
        %3922 = vmatmul.mubr.f32.gmra.mxu0 %v3697
        %v3923 = vpop.f32.mrf.mxu0
        %v3924 = vadd.f32 0.0, %v3923
        %v3925 = vpop.f32.mrf.mxu0
        %3926 = vdwg.mxu0
        %v3927 = vadd.f32 %v3533, %v3769
        %v3928 = vadd.f32 %v3534, %v3774
        %v3929 = vadd.f32 %v3535, %v3779
        %v3930 = vadd.f32 %v3536, %v3784
        %v3931 = vadd.f32 %v3537, %v3789
        %v3932 = vadd.f32 %v3538, %v3794
        %v3933 = vadd.f32 %v3539, %v3799
        %v3934 = vadd.f32 %v3540, %v3804
        %v3935 = vadd.f32 %v3541, %v3809
        %v3936 = vadd.f32 %v3542, %v3814
        %v3937 = vadd.f32 %v3543, %v3819
        %v3938 = vadd.f32 %v3544, %v3824
        %v3939 = vadd.f32 %v3545, %v3829
        %v3940 = vadd.f32 %v3546, %v3834
        %v3941 = vadd.f32 %v3547, %v3839
        %v3942 = vadd.f32 %v3548, %v3844
        %v3943 = vadd.f32 %v3549, %v3849
        %v3944 = vadd.f32 %v3550, %v3854
        %v3945 = vadd.f32 %v3551, %v3859
        %v3946 = vadd.f32 %v3552, %v3864
        %v3947 = vadd.f32 %v3553, %v3869
        %v3948 = vadd.f32 %v3554, %v3874
        %v3949 = vadd.f32 %v3555, %v3879
        %v3950 = vadd.f32 %v3556, %v3884
        %v3951 = vadd.f32 %v3557, %v3889
        %v3952 = vadd.f32 %v3558, %v3894
        %v3953 = vadd.f32 %v3559, %v3899
        %v3954 = vadd.f32 %v3560, %v3904
        %v3955 = vadd.f32 %v3561, %v3909
        %v3956 = vadd.f32 %v3562, %v3914
        %v3957 = vadd.f32 %v3563, %v3919
        %v3958 = vadd.f32 %v3564, %v3924
        %v3959 = vxor.u32 %v3927, 2147483648
        %v3960 = vxor.u32 %v3928, 2147483648
        %v3961 = vxor.u32 %v3929, 2147483648
        %v3962 = vxor.u32 %v3930, 2147483648
        %v3963 = vxor.u32 %v3931, 2147483648
        %v3964 = vxor.u32 %v3932, 2147483648
        %v3965 = vxor.u32 %v3933, 2147483648
        %v3966 = vxor.u32 %v3934, 2147483648
        %v3967 = vxor.u32 %v3935, 2147483648
        %v3968 = vxor.u32 %v3936, 2147483648
        %v3969 = vxor.u32 %v3937, 2147483648
        %v3970 = vxor.u32 %v3938, 2147483648
        %v3971 = vxor.u32 %v3939, 2147483648
        %v3972 = vxor.u32 %v3940, 2147483648
        %v3973 = vxor.u32 %v3941, 2147483648
        %v3974 = vxor.u32 %v3942, 2147483648
        %v3975 = vxor.u32 %v3943, 2147483648
        %v3976 = vxor.u32 %v3944, 2147483648
        %v3977 = vxor.u32 %v3945, 2147483648
        %v3978 = vxor.u32 %v3946, 2147483648
        %v3979 = vxor.u32 %v3947, 2147483648
        %v3980 = vxor.u32 %v3948, 2147483648
        %v3981 = vxor.u32 %v3949, 2147483648
        %v3982 = vxor.u32 %v3950, 2147483648
        %v3983 = vxor.u32 %v3951, 2147483648
        %v3984 = vxor.u32 %v3952, 2147483648
        %v3985 = vxor.u32 %v3953, 2147483648
        %v3986 = vxor.u32 %v3954, 2147483648
        %v3987 = vxor.u32 %v3955, 2147483648
        %v3988 = vxor.u32 %v3956, 2147483648
        %v3989 = vxor.u32 %v3957, 2147483648
        %v3990 = vxor.u32 %v3958, 2147483648
        %v3991 = vmul.f32 %v3959, 1.442695
        %v3992 = vpow.pop %v3991
        %v3993 = vmul.f32 %v3960, 1.442695
        %v3994 = vpow.pop %v3993
        %v3995 = vmul.f32 %v3961, 1.442695
        %v3996 = vpow.pop %v3995
        %v3997 = vmul.f32 %v3962, 1.442695
        %v3998 = vpow.pop %v3997
        %v3999 = vmul.f32 %v3963, 1.442695
        %v4000 = vpow.pop %v3999
        %v4001 = vmul.f32 %v3964, 1.442695
        %v4002 = vpow.pop %v4001
        %v4003 = vmul.f32 %v3965, 1.442695
        %v4004 = vpow.pop %v4003
        %v4005 = vmul.f32 %v3966, 1.442695
        %v4006 = vpow.pop %v4005
        %v4007 = vmul.f32 %v3967, 1.442695
        %v4008 = vpow.pop %v4007
        %v4009 = vmul.f32 %v3968, 1.442695
        %v4010 = vpow.pop %v4009
        %v4011 = vmul.f32 %v3969, 1.442695
        %v4012 = vpow.pop %v4011
        %v4013 = vmul.f32 %v3970, 1.442695
        %v4014 = vpow.pop %v4013
        %v4015 = vmul.f32 %v3971, 1.442695
        %v4016 = vpow.pop %v4015
        %v4017 = vmul.f32 %v3972, 1.442695
        %v4018 = vpow.pop %v4017
        %v4019 = vmul.f32 %v3973, 1.442695
        %v4020 = vpow.pop %v4019
        %v4021 = vmul.f32 %v3974, 1.442695
        %v4022 = vpow.pop %v4021
        %v4023 = vmul.f32 %v3975, 1.442695
        %v4024 = vpow.pop %v4023
        %v4025 = vmul.f32 %v3976, 1.442695
        %v4026 = vpow.pop %v4025
        %v4027 = vmul.f32 %v3977, 1.442695
        %v4028 = vpow.pop %v4027
        %v4029 = vmul.f32 %v3978, 1.442695
        %v4030 = vpow.pop %v4029
        %v4031 = vmul.f32 %v3979, 1.442695
        %v4032 = vpow.pop %v4031
        %v4033 = vmul.f32 %v3980, 1.442695
        %v4034 = vpow.pop %v4033
        %v4035 = vmul.f32 %v3981, 1.442695
        %v4036 = vpow.pop %v4035
        %v4037 = vmul.f32 %v3982, 1.442695
        %v4038 = vpow.pop %v4037
        %v4039 = vmul.f32 %v3983, 1.442695
        %v4040 = vpow.pop %v4039
        %v4041 = vmul.f32 %v3984, 1.442695
        %v4042 = vpow.pop %v4041
        %v4043 = vmul.f32 %v3985, 1.442695
        %v4044 = vpow.pop %v4043
        %v4045 = vmul.f32 %v3986, 1.442695
        %v4046 = vpow.pop %v4045
        %v4047 = vmul.f32 %v3987, 1.442695
        %v4048 = vpow.pop %v4047
        %v4049 = vmul.f32 %v3988, 1.442695
        %v4050 = vpow.pop %v4049
        %v4051 = vmul.f32 %v3989, 1.442695
        %v4052 = vpow.pop %v4051
        %v4053 = vmul.f32 %v3990, 1.442695
        %v4054 = vpow.pop %v4053
        %v4055 = vadd.f32 %v3992, 1.0
        %v4056 = vadd.f32 %v3994, 1.0
        %v4057 = vadd.f32 %v3996, 1.0
        %v4058 = vadd.f32 %v3998, 1.0
        %v4059 = vadd.f32 %v4000, 1.0
        %v4060 = vadd.f32 %v4002, 1.0
        %v4061 = vadd.f32 %v4004, 1.0
        %v4062 = vadd.f32 %v4006, 1.0
        %v4063 = vadd.f32 %v4008, 1.0
        %v4064 = vadd.f32 %v4010, 1.0
        %v4065 = vadd.f32 %v4012, 1.0
        %v4066 = vadd.f32 %v4014, 1.0
        %v4067 = vadd.f32 %v4016, 1.0
        %v4068 = vadd.f32 %v4018, 1.0
        %v4069 = vadd.f32 %v4020, 1.0
        %v4070 = vadd.f32 %v4022, 1.0
        %v4071 = vadd.f32 %v4024, 1.0
        %v4072 = vadd.f32 %v4026, 1.0
        %v4073 = vadd.f32 %v4028, 1.0
        %v4074 = vadd.f32 %v4030, 1.0
        %v4075 = vadd.f32 %v4032, 1.0
        %v4076 = vadd.f32 %v4034, 1.0
        %v4077 = vadd.f32 %v4036, 1.0
        %v4078 = vadd.f32 %v4038, 1.0
        %v4079 = vadd.f32 %v4040, 1.0
        %v4080 = vadd.f32 %v4042, 1.0
        %v4081 = vadd.f32 %v4044, 1.0
        %v4082 = vadd.f32 %v4046, 1.0
        %v4083 = vadd.f32 %v4048, 1.0
        %v4084 = vadd.f32 %v4050, 1.0
        %v4085 = vadd.f32 %v4052, 1.0
        %v4086 = vadd.f32 %v4054, 1.0
        %v4087 = vrcp.pop %v4055
        %v4088 = vmul.f32 1.0, %v4087
        %v4089 = vrcp.pop %v4056
        %v4090 = vmul.f32 1.0, %v4089
        %v4091 = vrcp.pop %v4057
        %v4092 = vmul.f32 1.0, %v4091
        %v4093 = vrcp.pop %v4058
        %v4094 = vmul.f32 1.0, %v4093
        %v4095 = vrcp.pop %v4059
        %v4096 = vmul.f32 1.0, %v4095
        %v4097 = vrcp.pop %v4060
        %v4098 = vmul.f32 1.0, %v4097
        %v4099 = vrcp.pop %v4061
        %v4100 = vmul.f32 1.0, %v4099
        %v4101 = vrcp.pop %v4062
        %v4102 = vmul.f32 1.0, %v4101
        %v4103 = vrcp.pop %v4063
        %v4104 = vmul.f32 1.0, %v4103
        %v4105 = vrcp.pop %v4064
        %v4106 = vmul.f32 1.0, %v4105
        %v4107 = vrcp.pop %v4065
        %v4108 = vmul.f32 1.0, %v4107
        %v4109 = vrcp.pop %v4066
        %v4110 = vmul.f32 1.0, %v4109
        %v4111 = vrcp.pop %v4067
        %v4112 = vmul.f32 1.0, %v4111
        %v4113 = vrcp.pop %v4068
        %v4114 = vmul.f32 1.0, %v4113
        %v4115 = vrcp.pop %v4069
        %v4116 = vmul.f32 1.0, %v4115
        %v4117 = vrcp.pop %v4070
        %v4118 = vmul.f32 1.0, %v4117
        %v4119 = vrcp.pop %v4071
        %v4120 = vmul.f32 1.0, %v4119
        %v4121 = vrcp.pop %v4072
        %v4122 = vmul.f32 1.0, %v4121
        %v4123 = vrcp.pop %v4073
        %v4124 = vmul.f32 1.0, %v4123
        %v4125 = vrcp.pop %v4074
        %v4126 = vmul.f32 1.0, %v4125
        %v4127 = vrcp.pop %v4075
        %v4128 = vmul.f32 1.0, %v4127
        %v4129 = vrcp.pop %v4076
        %v4130 = vmul.f32 1.0, %v4129
        %v4131 = vrcp.pop %v4077
        %v4132 = vmul.f32 1.0, %v4131
        %v4133 = vrcp.pop %v4078
        %v4134 = vmul.f32 1.0, %v4133
        %v4135 = vrcp.pop %v4079
        %v4136 = vmul.f32 1.0, %v4135
        %v4137 = vrcp.pop %v4080
        %v4138 = vmul.f32 1.0, %v4137
        %v4139 = vrcp.pop %v4081
        %v4140 = vmul.f32 1.0, %v4139
        %v4141 = vrcp.pop %v4082
        %v4142 = vmul.f32 1.0, %v4141
        %v4143 = vrcp.pop %v4083
        %v4144 = vmul.f32 1.0, %v4143
        %v4145 = vrcp.pop %v4084
        %v4146 = vmul.f32 1.0, %v4145
        %v4147 = vrcp.pop %v4085
        %v4148 = vmul.f32 1.0, %v4147
        %v4149 = vrcp.pop %v4086
        %v4150 = vmul.f32 1.0, %v4149
        %v4151 = vtanh.pop %v3927
        %v4152 = vtanh.pop %v3928
        %v4153 = vtanh.pop %v3929
        %v4154 = vtanh.pop %v3930
        %v4155 = vtanh.pop %v3931
        %v4156 = vtanh.pop %v3932
        %v4157 = vtanh.pop %v3933
        %v4158 = vtanh.pop %v3934
        %v4159 = vtanh.pop %v3935
        %v4160 = vtanh.pop %v3936
        %v4161 = vtanh.pop %v3937
        %v4162 = vtanh.pop %v3938
        %v4163 = vtanh.pop %v3939
        %v4164 = vtanh.pop %v3940
        %v4165 = vtanh.pop %v3941
        %v4166 = vtanh.pop %v3942
        %v4167 = vtanh.pop %v3943
        %v4168 = vtanh.pop %v3944
        %v4169 = vtanh.pop %v3945
        %v4170 = vtanh.pop %v3946
        %v4171 = vtanh.pop %v3947
        %v4172 = vtanh.pop %v3948
        %v4173 = vtanh.pop %v3949
        %v4174 = vtanh.pop %v3950
        %v4175 = vtanh.pop %v3951
        %v4176 = vtanh.pop %v3952
        %v4177 = vtanh.pop %v3953
        %v4178 = vtanh.pop %v3954
        %v4179 = vtanh.pop %v3955
        %v4180 = vtanh.pop %v3956
        %v4181 = vtanh.pop %v3957
        %v4182 = vtanh.pop %v3958
        %v4183 = vld [vmem:[%s226] sm:$0xff]
        %v4184 = vld [vmem:[%s226 + $0x8] sm:$0xff]
        %v4185 = vld [vmem:[%s226 + $0x10] sm:$0xff]
        %v4186 = vld [vmem:[%s226 + $0x18] sm:$0xff]
        %v4187 = vld [vmem:[%s226 + $0x20] sm:$0xff]
        %v4188 = vld [vmem:[%s226 + $0x28] sm:$0xff]
        %v4189 = vld [vmem:[%s226 + $0x30] sm:$0xff]
        %v4190 = vld [vmem:[%s226 + $0x38] sm:$0xff]
        %v4191 = vld [vmem:[%s226 + $0x40] sm:$0xff]
        %v4192 = vld [vmem:[%s226 + $0x48] sm:$0xff]
        %v4193 = vld [vmem:[%s226 + $0x50] sm:$0xff]
        %v4194 = vld [vmem:[%s226 + $0x58] sm:$0xff]
        %v4195 = vld [vmem:[%s226 + $0x60] sm:$0xff]
        %v4196 = vld [vmem:[%s226 + $0x68] sm:$0xff]
        %v4197 = vld [vmem:[%s226 + $0x70] sm:$0xff]
        %v4198 = vld [vmem:[%s226 + $0x78] sm:$0xff]
        %v4199 = vld [vmem:[%s226 + $0x80] sm:$0xff]
        %v4200 = vld [vmem:[%s226 + $0x88] sm:$0xff]
        %v4201 = vld [vmem:[%s226 + $0x90] sm:$0xff]
        %v4202 = vld [vmem:[%s226 + $0x98] sm:$0xff]
        %v4203 = vld [vmem:[%s226 + $0xa0] sm:$0xff]
        %v4204 = vld [vmem:[%s226 + $0xa8] sm:$0xff]
        %v4205 = vld [vmem:[%s226 + $0xb0] sm:$0xff]
        %v4206 = vld [vmem:[%s226 + $0xb8] sm:$0xff]
        %v4207 = vld [vmem:[%s226 + $0xc0] sm:$0xff]
        %v4208 = vld [vmem:[%s226 + $0xc8] sm:$0xff]
        %v4209 = vld [vmem:[%s226 + $0xd0] sm:$0xff]
        %v4210 = vld [vmem:[%s226 + $0xd8] sm:$0xff]
        %v4211 = vld [vmem:[%s226 + $0xe0] sm:$0xff]
        %v4212 = vld [vmem:[%s226 + $0xe8] sm:$0xff]
        %v4213 = vld [vmem:[%s226 + $0xf0] sm:$0xff]
        %v4214 = vld [vmem:[%s226 + $0xf8] sm:$0xff]
        %4247 = vrot.lane.b32.xlu0 %v4183, 32
        %v4248 = vpop.permute.xlu0 %4247
        %4249 = vrot.lane.b32.xlu0 %v4184, 32
        %v4250 = vpop.permute.xlu0 %4249
        %4251 = vrot.lane.b32.xlu0 %v4185, 32
        %v4252 = vpop.permute.xlu0 %4251
        %4253 = vrot.lane.b32.xlu0 %v4186, 32
        %v4254 = vpop.permute.xlu0 %4253
        %4255 = vrot.lane.b32.xlu0 %v4187, 32
        %v4256 = vpop.permute.xlu0 %4255
        %4257 = vrot.lane.b32.xlu0 %v4188, 32
        %v4258 = vpop.permute.xlu0 %4257
        %4259 = vrot.lane.b32.xlu0 %v4189, 32
        %v4260 = vpop.permute.xlu0 %4259
        %4261 = vrot.lane.b32.xlu0 %v4190, 32
        %v4262 = vpop.permute.xlu0 %4261
        %4263 = vrot.lane.b32.xlu0 %v4191, 32
        %v4264 = vpop.permute.xlu0 %4263
        %4265 = vrot.lane.b32.xlu0 %v4192, 32
        %v4266 = vpop.permute.xlu0 %4265
        %4267 = vrot.lane.b32.xlu0 %v4193, 32
        %v4268 = vpop.permute.xlu0 %4267
        %4269 = vrot.lane.b32.xlu0 %v4194, 32
        %v4270 = vpop.permute.xlu0 %4269
        %4271 = vrot.lane.b32.xlu0 %v4195, 32
        %v4272 = vpop.permute.xlu0 %4271
        %4273 = vrot.lane.b32.xlu0 %v4196, 32
        %v4274 = vpop.permute.xlu0 %4273
        %4275 = vrot.lane.b32.xlu0 %v4197, 32
        %v4276 = vpop.permute.xlu0 %4275
        %4277 = vrot.lane.b32.xlu0 %v4198, 32
        %v4278 = vpop.permute.xlu0 %4277
        %4279 = vrot.lane.b32.xlu0 %v4199, 32
        %v4280 = vpop.permute.xlu0 %4279
        %4281 = vrot.lane.b32.xlu0 %v4200, 32
        %v4282 = vpop.permute.xlu0 %4281
        %4283 = vrot.lane.b32.xlu0 %v4201, 32
        %v4284 = vpop.permute.xlu0 %4283
        %4285 = vrot.lane.b32.xlu0 %v4202, 32
        %v4286 = vpop.permute.xlu0 %4285
        %4287 = vrot.lane.b32.xlu0 %v4203, 32
        %v4288 = vpop.permute.xlu0 %4287
        %4289 = vrot.lane.b32.xlu0 %v4204, 32
        %v4290 = vpop.permute.xlu0 %4289
        %4291 = vrot.lane.b32.xlu0 %v4205, 32
        %v4292 = vpop.permute.xlu0 %4291
        %4293 = vrot.lane.b32.xlu0 %v4206, 32
        %v4294 = vpop.permute.xlu0 %4293
        %4295 = vrot.lane.b32.xlu0 %v4207, 32
        %v4296 = vpop.permute.xlu0 %4295
        %4297 = vrot.lane.b32.xlu0 %v4208, 32
        %v4298 = vpop.permute.xlu0 %4297
        %4299 = vrot.lane.b32.xlu0 %v4209, 32
        %v4300 = vpop.permute.xlu0 %4299
        %4301 = vrot.lane.b32.xlu0 %v4210, 32
        %v4302 = vpop.permute.xlu0 %4301
        %4303 = vrot.lane.b32.xlu0 %v4211, 32
        %v4304 = vpop.permute.xlu0 %4303
        %4305 = vrot.lane.b32.xlu0 %v4212, 32
        %v4306 = vpop.permute.xlu0 %4305
        %4307 = vrot.lane.b32.xlu0 %v4213, 32
        %v4308 = vpop.permute.xlu0 %4307
        %4309 = vrot.lane.b32.xlu0 %v4214, 32
        %v4310 = vpop.permute.xlu0 %4309
        %v4343 = vmul.f32 %v4088, %v4248
        %v4344 = vmul.f32 %v4090, %v4250
        %v4345 = vmul.f32 %v4092, %v4252
        %v4346 = vmul.f32 %v4094, %v4254
        %v4347 = vmul.f32 %v4096, %v4256
        %v4348 = vmul.f32 %v4098, %v4258
        %v4349 = vmul.f32 %v4100, %v4260
        %v4350 = vmul.f32 %v4102, %v4262
        %v4351 = vmul.f32 %v4104, %v4264
        %v4352 = vmul.f32 %v4106, %v4266
        %v4353 = vmul.f32 %v4108, %v4268
        %v4354 = vmul.f32 %v4110, %v4270
        %v4355 = vmul.f32 %v4112, %v4272
        %v4356 = vmul.f32 %v4114, %v4274
        %v4357 = vmul.f32 %v4116, %v4276
        %v4358 = vmul.f32 %v4118, %v4278
        %v4359 = vmul.f32 %v4120, %v4280
        %v4360 = vmul.f32 %v4122, %v4282
        %v4361 = vmul.f32 %v4124, %v4284
        %v4362 = vmul.f32 %v4126, %v4286
        %v4363 = vmul.f32 %v4128, %v4288
        %v4364 = vmul.f32 %v4130, %v4290
        %v4365 = vmul.f32 %v4132, %v4292
        %v4366 = vmul.f32 %v4134, %v4294
        %v4367 = vmul.f32 %v4136, %v4296
        %v4368 = vmul.f32 %v4138, %v4298
        %v4369 = vmul.f32 %v4140, %v4300
        %v4370 = vmul.f32 %v4142, %v4302
        %v4371 = vmul.f32 %v4144, %v4304
        %v4372 = vmul.f32 %v4146, %v4306
        %v4373 = vmul.f32 %v4148, %v4308
        %v4374 = vmul.f32 %v4150, %v4310
        %4407 = vrot.lane.b32.xlu0 %v4151, 32
        %v4408 = vpop.permute.xlu0 %4407
        %4409 = vrot.lane.b32.xlu0 %v4152, 32
        %v4410 = vpop.permute.xlu0 %4409
        %4411 = vrot.lane.b32.xlu0 %v4153, 32
        %v4412 = vpop.permute.xlu0 %4411
        %4413 = vrot.lane.b32.xlu0 %v4154, 32
        %v4414 = vpop.permute.xlu0 %4413
        %4415 = vrot.lane.b32.xlu0 %v4155, 32
        %v4416 = vpop.permute.xlu0 %4415
        %4417 = vrot.lane.b32.xlu0 %v4156, 32
        %v4418 = vpop.permute.xlu0 %4417
        %4419 = vrot.lane.b32.xlu0 %v4157, 32
        %v4420 = vpop.permute.xlu0 %4419
        %4421 = vrot.lane.b32.xlu0 %v4158, 32
        %v4422 = vpop.permute.xlu0 %4421
        %4423 = vrot.lane.b32.xlu0 %v4159, 32
        %v4424 = vpop.permute.xlu0 %4423
        %4425 = vrot.lane.b32.xlu0 %v4160, 32
        %v4426 = vpop.permute.xlu0 %4425
        %4427 = vrot.lane.b32.xlu0 %v4161, 32
        %v4428 = vpop.permute.xlu0 %4427
        %4429 = vrot.lane.b32.xlu0 %v4162, 32
        %v4430 = vpop.permute.xlu0 %4429
        %4431 = vrot.lane.b32.xlu0 %v4163, 32
        %v4432 = vpop.permute.xlu0 %4431
        %4433 = vrot.lane.b32.xlu0 %v4164, 32
        %v4434 = vpop.permute.xlu0 %4433
        %4435 = vrot.lane.b32.xlu0 %v4165, 32
        %v4436 = vpop.permute.xlu0 %4435
        %4437 = vrot.lane.b32.xlu0 %v4166, 32
        %v4438 = vpop.permute.xlu0 %4437
        %4439 = vrot.lane.b32.xlu0 %v4167, 32
        %v4440 = vpop.permute.xlu0 %4439
        %4441 = vrot.lane.b32.xlu0 %v4168, 32
        %v4442 = vpop.permute.xlu0 %4441
        %4443 = vrot.lane.b32.xlu0 %v4169, 32
        %v4444 = vpop.permute.xlu0 %4443
        %4445 = vrot.lane.b32.xlu0 %v4170, 32
        %v4446 = vpop.permute.xlu0 %4445
        %4447 = vrot.lane.b32.xlu0 %v4171, 32
        %v4448 = vpop.permute.xlu0 %4447
        %4449 = vrot.lane.b32.xlu0 %v4172, 32
        %v4450 = vpop.permute.xlu0 %4449
        %4451 = vrot.lane.b32.xlu0 %v4173, 32
        %v4452 = vpop.permute.xlu0 %4451
        %4453 = vrot.lane.b32.xlu0 %v4174, 32
        %v4454 = vpop.permute.xlu0 %4453
        %4455 = vrot.lane.b32.xlu0 %v4175, 32
        %v4456 = vpop.permute.xlu0 %4455
        %4457 = vrot.lane.b32.xlu0 %v4176, 32
        %v4458 = vpop.permute.xlu0 %4457
        %4459 = vrot.lane.b32.xlu0 %v4177, 32
        %v4460 = vpop.permute.xlu0 %4459
        %4461 = vrot.lane.b32.xlu0 %v4178, 32
        %v4462 = vpop.permute.xlu0 %4461
        %4463 = vrot.lane.b32.xlu0 %v4179, 32
        %v4464 = vpop.permute.xlu0 %4463
        %4465 = vrot.lane.b32.xlu0 %v4180, 32
        %v4466 = vpop.permute.xlu0 %4465
        %4467 = vrot.lane.b32.xlu0 %v4181, 32
        %v4468 = vpop.permute.xlu0 %4467
        %4469 = vrot.lane.b32.xlu0 %v4182, 32
        %v4470 = vpop.permute.xlu0 %4469
        %v4503 = vmul.f32 %v4088, %v4408
        %v4504 = vmul.f32 %v4090, %v4410
        %v4505 = vmul.f32 %v4092, %v4412
        %v4506 = vmul.f32 %v4094, %v4414
        %v4507 = vmul.f32 %v4096, %v4416
        %v4508 = vmul.f32 %v4098, %v4418
        %v4509 = vmul.f32 %v4100, %v4420
        %v4510 = vmul.f32 %v4102, %v4422
        %v4511 = vmul.f32 %v4104, %v4424
        %v4512 = vmul.f32 %v4106, %v4426
        %v4513 = vmul.f32 %v4108, %v4428
        %v4514 = vmul.f32 %v4110, %v4430
        %v4515 = vmul.f32 %v4112, %v4432
        %v4516 = vmul.f32 %v4114, %v4434
        %v4517 = vmul.f32 %v4116, %v4436
        %v4518 = vmul.f32 %v4118, %v4438
        %v4519 = vmul.f32 %v4120, %v4440
        %v4520 = vmul.f32 %v4122, %v4442
        %v4521 = vmul.f32 %v4124, %v4444
        %v4522 = vmul.f32 %v4126, %v4446
        %v4523 = vmul.f32 %v4128, %v4448
        %v4524 = vmul.f32 %v4130, %v4450
        %v4525 = vmul.f32 %v4132, %v4452
        %v4526 = vmul.f32 %v4134, %v4454
        %v4527 = vmul.f32 %v4136, %v4456
        %v4528 = vmul.f32 %v4138, %v4458
        %v4529 = vmul.f32 %v4140, %v4460
        %v4530 = vmul.f32 %v4142, %v4462
        %v4531 = vmul.f32 %v4144, %v4464
        %v4532 = vmul.f32 %v4146, %v4466
        %v4533 = vmul.f32 %v4148, %v4468
        %v4534 = vmul.f32 %v4150, %v4470
        %4567 = vrot.lane.b32.xlu0 %v4503, 32
        %v4568 = vpop.permute.xlu0 %4567
        %4569 = vrot.lane.b32.xlu0 %v4504, 32
        %v4570 = vpop.permute.xlu0 %4569
        %4571 = vrot.lane.b32.xlu0 %v4505, 32
        %v4572 = vpop.permute.xlu0 %4571
        %4573 = vrot.lane.b32.xlu0 %v4506, 32
        %v4574 = vpop.permute.xlu0 %4573
        %4575 = vrot.lane.b32.xlu0 %v4507, 32
        %v4576 = vpop.permute.xlu0 %4575
        %4577 = vrot.lane.b32.xlu0 %v4508, 32
        %v4578 = vpop.permute.xlu0 %4577
        %4579 = vrot.lane.b32.xlu0 %v4509, 32
        %v4580 = vpop.permute.xlu0 %4579
        %4581 = vrot.lane.b32.xlu0 %v4510, 32
        %v4582 = vpop.permute.xlu0 %4581
        %4583 = vrot.lane.b32.xlu0 %v4511, 32
        %v4584 = vpop.permute.xlu0 %4583
        %4585 = vrot.lane.b32.xlu0 %v4512, 32
        %v4586 = vpop.permute.xlu0 %4585
        %4587 = vrot.lane.b32.xlu0 %v4513, 32
        %v4588 = vpop.permute.xlu0 %4587
        %4589 = vrot.lane.b32.xlu0 %v4514, 32
        %v4590 = vpop.permute.xlu0 %4589
        %4591 = vrot.lane.b32.xlu0 %v4515, 32
        %v4592 = vpop.permute.xlu0 %4591
        %4593 = vrot.lane.b32.xlu0 %v4516, 32
        %v4594 = vpop.permute.xlu0 %4593
        %4595 = vrot.lane.b32.xlu0 %v4517, 32
        %v4596 = vpop.permute.xlu0 %4595
        %4597 = vrot.lane.b32.xlu0 %v4518, 32
        %v4598 = vpop.permute.xlu0 %4597
        %4599 = vrot.lane.b32.xlu0 %v4519, 32
        %v4600 = vpop.permute.xlu0 %4599
        %4601 = vrot.lane.b32.xlu0 %v4520, 32
        %v4602 = vpop.permute.xlu0 %4601
        %4603 = vrot.lane.b32.xlu0 %v4521, 32
        %v4604 = vpop.permute.xlu0 %4603
        %4605 = vrot.lane.b32.xlu0 %v4522, 32
        %v4606 = vpop.permute.xlu0 %4605
        %4607 = vrot.lane.b32.xlu0 %v4523, 32
        %v4608 = vpop.permute.xlu0 %4607
        %4609 = vrot.lane.b32.xlu0 %v4524, 32
        %v4610 = vpop.permute.xlu0 %4609
        %4611 = vrot.lane.b32.xlu0 %v4525, 32
        %v4612 = vpop.permute.xlu0 %4611
        %4613 = vrot.lane.b32.xlu0 %v4526, 32
        %v4614 = vpop.permute.xlu0 %4613
        %4615 = vrot.lane.b32.xlu0 %v4527, 32
        %v4616 = vpop.permute.xlu0 %4615
        %4617 = vrot.lane.b32.xlu0 %v4528, 32
        %v4618 = vpop.permute.xlu0 %4617
        %4619 = vrot.lane.b32.xlu0 %v4529, 32
        %v4620 = vpop.permute.xlu0 %4619
        %4621 = vrot.lane.b32.xlu0 %v4530, 32
        %v4622 = vpop.permute.xlu0 %4621
        %4623 = vrot.lane.b32.xlu0 %v4531, 32
        %v4624 = vpop.permute.xlu0 %4623
        %4625 = vrot.lane.b32.xlu0 %v4532, 32
        %v4626 = vpop.permute.xlu0 %4625
        %4627 = vrot.lane.b32.xlu0 %v4533, 32
        %v4628 = vpop.permute.xlu0 %4627
        %4629 = vrot.lane.b32.xlu0 %v4534, 32
        %v4630 = vpop.permute.xlu0 %4629
        %v4663 = vadd.f32 %v4343, %v4568
        %v4664 = vadd.f32 %v4344, %v4570
        %v4665 = vadd.f32 %v4345, %v4572
        %v4666 = vadd.f32 %v4346, %v4574
        %v4667 = vadd.f32 %v4347, %v4576
        %v4668 = vadd.f32 %v4348, %v4578
        %v4669 = vadd.f32 %v4349, %v4580
        %v4670 = vadd.f32 %v4350, %v4582
        %v4671 = vadd.f32 %v4351, %v4584
        %v4672 = vadd.f32 %v4352, %v4586
        %v4673 = vadd.f32 %v4353, %v4588
        %v4674 = vadd.f32 %v4354, %v4590
        %v4675 = vadd.f32 %v4355, %v4592
        %v4676 = vadd.f32 %v4356, %v4594
        %v4677 = vadd.f32 %v4357, %v4596
        %v4678 = vadd.f32 %v4358, %v4598
        %v4679 = vadd.f32 %v4359, %v4600
        %v4680 = vadd.f32 %v4360, %v4602
        %v4681 = vadd.f32 %v4361, %v4604
        %v4682 = vadd.f32 %v4362, %v4606
        %v4683 = vadd.f32 %v4363, %v4608
        %v4684 = vadd.f32 %v4364, %v4610
        %v4685 = vadd.f32 %v4365, %v4612
        %v4686 = vadd.f32 %v4366, %v4614
        %v4687 = vadd.f32 %v4367, %v4616
        %v4688 = vadd.f32 %v4368, %v4618
        %v4689 = vadd.f32 %v4369, %v4620
        %v4690 = vadd.f32 %v4370, %v4622
        %v4691 = vadd.f32 %v4371, %v4624
        %v4692 = vadd.f32 %v4372, %v4626
        %v4693 = vadd.f32 %v4373, %v4628
        %v4694 = vadd.f32 %v4374, %v4630
        %v4695 = vtanh.pop %v4663
        %v4696 = vtanh.pop %v4664
        %v4697 = vtanh.pop %v4665
        %v4698 = vtanh.pop %v4666
        %v4699 = vtanh.pop %v4667
        %v4700 = vtanh.pop %v4668
        %v4701 = vtanh.pop %v4669
        %v4702 = vtanh.pop %v4670
        %v4703 = vtanh.pop %v4671
        %v4704 = vtanh.pop %v4672
        %v4705 = vtanh.pop %v4673
        %v4706 = vtanh.pop %v4674
        %v4707 = vtanh.pop %v4675
        %v4708 = vtanh.pop %v4676
        %v4709 = vtanh.pop %v4677
        %v4710 = vtanh.pop %v4678
        %v4711 = vtanh.pop %v4679
        %v4712 = vtanh.pop %v4680
        %v4713 = vtanh.pop %v4681
        %v4714 = vtanh.pop %v4682
        %v4715 = vtanh.pop %v4683
        %v4716 = vtanh.pop %v4684
        %v4717 = vtanh.pop %v4685
        %v4718 = vtanh.pop %v4686
        %v4719 = vtanh.pop %v4687
        %v4720 = vtanh.pop %v4688
        %v4721 = vtanh.pop %v4689
        %v4722 = vtanh.pop %v4690
        %v4723 = vtanh.pop %v4691
        %v4724 = vtanh.pop %v4692
        %v4725 = vtanh.pop %v4693
        %v4726 = vtanh.pop %v4694
        %4759 = vrot.lane.b32.xlu0 %v4695, 32
        %v4760 = vpop.permute.xlu0 %4759
        %4761 = vrot.lane.b32.xlu0 %v4696, 32
        %v4762 = vpop.permute.xlu0 %4761
        %4763 = vrot.lane.b32.xlu0 %v4697, 32
        %v4764 = vpop.permute.xlu0 %4763
        %4765 = vrot.lane.b32.xlu0 %v4698, 32
        %v4766 = vpop.permute.xlu0 %4765
        %4767 = vrot.lane.b32.xlu0 %v4699, 32
        %v4768 = vpop.permute.xlu0 %4767
        %4769 = vrot.lane.b32.xlu0 %v4700, 32
        %v4770 = vpop.permute.xlu0 %4769
        %4771 = vrot.lane.b32.xlu0 %v4701, 32
        %v4772 = vpop.permute.xlu0 %4771
        %4773 = vrot.lane.b32.xlu0 %v4702, 32
        %v4774 = vpop.permute.xlu0 %4773
        %4775 = vrot.lane.b32.xlu0 %v4703, 32
        %v4776 = vpop.permute.xlu0 %4775
        %4777 = vrot.lane.b32.xlu0 %v4704, 32
        %v4778 = vpop.permute.xlu0 %4777
        %4779 = vrot.lane.b32.xlu0 %v4705, 32
        %v4780 = vpop.permute.xlu0 %4779
        %4781 = vrot.lane.b32.xlu0 %v4706, 32
        %v4782 = vpop.permute.xlu0 %4781
        %4783 = vrot.lane.b32.xlu0 %v4707, 32
        %v4784 = vpop.permute.xlu0 %4783
        %4785 = vrot.lane.b32.xlu0 %v4708, 32
        %v4786 = vpop.permute.xlu0 %4785
        %4787 = vrot.lane.b32.xlu0 %v4709, 32
        %v4788 = vpop.permute.xlu0 %4787
        %4789 = vrot.lane.b32.xlu0 %v4710, 32
        %v4790 = vpop.permute.xlu0 %4789
        %4791 = vrot.lane.b32.xlu0 %v4711, 32
        %v4792 = vpop.permute.xlu0 %4791
        %4793 = vrot.lane.b32.xlu0 %v4712, 32
        %v4794 = vpop.permute.xlu0 %4793
        %4795 = vrot.lane.b32.xlu0 %v4713, 32
        %v4796 = vpop.permute.xlu0 %4795
        %4797 = vrot.lane.b32.xlu0 %v4714, 32
        %v4798 = vpop.permute.xlu0 %4797
        %4799 = vrot.lane.b32.xlu0 %v4715, 32
        %v4800 = vpop.permute.xlu0 %4799
        %4801 = vrot.lane.b32.xlu0 %v4716, 32
        %v4802 = vpop.permute.xlu0 %4801
        %4803 = vrot.lane.b32.xlu0 %v4717, 32
        %v4804 = vpop.permute.xlu0 %4803
        %4805 = vrot.lane.b32.xlu0 %v4718, 32
        %v4806 = vpop.permute.xlu0 %4805
        %4807 = vrot.lane.b32.xlu0 %v4719, 32
        %v4808 = vpop.permute.xlu0 %4807
        %4809 = vrot.lane.b32.xlu0 %v4720, 32
        %v4810 = vpop.permute.xlu0 %4809
        %4811 = vrot.lane.b32.xlu0 %v4721, 32
        %v4812 = vpop.permute.xlu0 %4811
        %4813 = vrot.lane.b32.xlu0 %v4722, 32
        %v4814 = vpop.permute.xlu0 %4813
        %4815 = vrot.lane.b32.xlu0 %v4723, 32
        %v4816 = vpop.permute.xlu0 %4815
        %4817 = vrot.lane.b32.xlu0 %v4724, 32
        %v4818 = vpop.permute.xlu0 %4817
        %4819 = vrot.lane.b32.xlu0 %v4725, 32
        %v4820 = vpop.permute.xlu0 %4819
        %4821 = vrot.lane.b32.xlu0 %v4726, 32
        %v4822 = vpop.permute.xlu0 %4821
        %v4855 = vmul.f32 %v4088, %v4760
        %v4856 = vmul.f32 %v4090, %v4762
        %v4857 = vmul.f32 %v4092, %v4764
        %v4858 = vmul.f32 %v4094, %v4766
        %v4859 = vmul.f32 %v4096, %v4768
        %v4860 = vmul.f32 %v4098, %v4770
        %v4861 = vmul.f32 %v4100, %v4772
        %v4862 = vmul.f32 %v4102, %v4774
        %v4863 = vmul.f32 %v4104, %v4776
        %v4864 = vmul.f32 %v4106, %v4778
        %v4865 = vmul.f32 %v4108, %v4780
        %v4866 = vmul.f32 %v4110, %v4782
        %v4867 = vmul.f32 %v4112, %v4784
        %v4868 = vmul.f32 %v4114, %v4786
        %v4869 = vmul.f32 %v4116, %v4788
        %v4870 = vmul.f32 %v4118, %v4790
        %v4871 = vmul.f32 %v4120, %v4792
        %v4872 = vmul.f32 %v4122, %v4794
        %v4873 = vmul.f32 %v4124, %v4796
        %v4874 = vmul.f32 %v4126, %v4798
        %v4875 = vmul.f32 %v4128, %v4800
        %v4876 = vmul.f32 %v4130, %v4802
        %v4877 = vmul.f32 %v4132, %v4804
        %v4878 = vmul.f32 %v4134, %v4806
        %v4879 = vmul.f32 %v4136, %v4808
        %v4880 = vmul.f32 %v4138, %v4810
        %v4881 = vmul.f32 %v4140, %v4812
        %v4882 = vmul.f32 %v4142, %v4814
        %v4883 = vmul.f32 %v4144, %v4816
        %v4884 = vmul.f32 %v4146, %v4818
        %v4885 = vmul.f32 %v4148, %v4820
        %v4886 = vmul.f32 %v4150, %v4822
        %4919 = vrot.lane.b32.xlu0 %v4663, 96
        %v4920 = vpop.permute.xlu0 %4919
        %4921 = vrot.lane.b32.xlu0 %v4664, 96
        %v4922 = vpop.permute.xlu0 %4921
        %4923 = vrot.lane.b32.xlu0 %v4665, 96
        %v4924 = vpop.permute.xlu0 %4923
        %4925 = vrot.lane.b32.xlu0 %v4666, 96
        %v4926 = vpop.permute.xlu0 %4925
        %4927 = vrot.lane.b32.xlu0 %v4667, 96
        %v4928 = vpop.permute.xlu0 %4927
        %4929 = vrot.lane.b32.xlu0 %v4668, 96
        %v4930 = vpop.permute.xlu0 %4929
        %4931 = vrot.lane.b32.xlu0 %v4669, 96
        %v4932 = vpop.permute.xlu0 %4931
        %4933 = vrot.lane.b32.xlu0 %v4670, 96
        %v4934 = vpop.permute.xlu0 %4933
        %4935 = vrot.lane.b32.xlu0 %v4671, 96
        %v4936 = vpop.permute.xlu0 %4935
        %4937 = vrot.lane.b32.xlu0 %v4672, 96
        %v4938 = vpop.permute.xlu0 %4937
        %4939 = vrot.lane.b32.xlu0 %v4673, 96
        %v4940 = vpop.permute.xlu0 %4939
        %4941 = vrot.lane.b32.xlu0 %v4674, 96
        %v4942 = vpop.permute.xlu0 %4941
        %4943 = vrot.lane.b32.xlu0 %v4675, 96
        %v4944 = vpop.permute.xlu0 %4943
        %4945 = vrot.lane.b32.xlu0 %v4676, 96
        %v4946 = vpop.permute.xlu0 %4945
        %4947 = vrot.lane.b32.xlu0 %v4677, 96
        %v4948 = vpop.permute.xlu0 %4947
        %4949 = vrot.lane.b32.xlu0 %v4678, 96
        %v4950 = vpop.permute.xlu0 %4949
        %4951 = vrot.lane.b32.xlu0 %v4679, 96
        %v4952 = vpop.permute.xlu0 %4951
        %4953 = vrot.lane.b32.xlu0 %v4680, 96
        %v4954 = vpop.permute.xlu0 %4953
        %4955 = vrot.lane.b32.xlu0 %v4681, 96
        %v4956 = vpop.permute.xlu0 %4955
        %4957 = vrot.lane.b32.xlu0 %v4682, 96
        %v4958 = vpop.permute.xlu0 %4957
        %4959 = vrot.lane.b32.xlu0 %v4683, 96
        %v4960 = vpop.permute.xlu0 %4959
        %4961 = vrot.lane.b32.xlu0 %v4684, 96
        %v4962 = vpop.permute.xlu0 %4961
        %4963 = vrot.lane.b32.xlu0 %v4685, 96
        %v4964 = vpop.permute.xlu0 %4963
        %4965 = vrot.lane.b32.xlu0 %v4686, 96
        %v4966 = vpop.permute.xlu0 %4965
        %4967 = vrot.lane.b32.xlu0 %v4687, 96
        %v4968 = vpop.permute.xlu0 %4967
        %4969 = vrot.lane.b32.xlu0 %v4688, 96
        %v4970 = vpop.permute.xlu0 %4969
        %4971 = vrot.lane.b32.xlu0 %v4689, 96
        %v4972 = vpop.permute.xlu0 %4971
        %4973 = vrot.lane.b32.xlu0 %v4690, 96
        %v4974 = vpop.permute.xlu0 %4973
        %4975 = vrot.lane.b32.xlu0 %v4691, 96
        %v4976 = vpop.permute.xlu0 %4975
        %4977 = vrot.lane.b32.xlu0 %v4692, 96
        %v4978 = vpop.permute.xlu0 %4977
        %4979 = vrot.lane.b32.xlu0 %v4693, 96
        %v4980 = vpop.permute.xlu0 %4979
        %4981 = vrot.lane.b32.xlu0 %v4694, 96
        %v4982 = vpop.permute.xlu0 %4981
        %vm5015 = vcmask 261120
        %5016 = vst.msk [vmem:[%s226] sm:$0xff] %vm5015, %v4920
        %5017 = vst.msk [vmem:[%s226 + $0x8] sm:$0xff] %vm5015, %v4922
        %5018 = vst.msk [vmem:[%s226 + $0x10] sm:$0xff] %vm5015, %v4924
        %5019 = vst.msk [vmem:[%s226 + $0x18] sm:$0xff] %vm5015, %v4926
        %5020 = vst.msk [vmem:[%s226 + $0x20] sm:$0xff] %vm5015, %v4928
        %5021 = vst.msk [vmem:[%s226 + $0x28] sm:$0xff] %vm5015, %v4930
        %5022 = vst.msk [vmem:[%s226 + $0x30] sm:$0xff] %vm5015, %v4932
        %5023 = vst.msk [vmem:[%s226 + $0x38] sm:$0xff] %vm5015, %v4934
        %5024 = vst.msk [vmem:[%s226 + $0x40] sm:$0xff] %vm5015, %v4936
        %5025 = vst.msk [vmem:[%s226 + $0x48] sm:$0xff] %vm5015, %v4938
        %5026 = vst.msk [vmem:[%s226 + $0x50] sm:$0xff] %vm5015, %v4940
        %5027 = vst.msk [vmem:[%s226 + $0x58] sm:$0xff] %vm5015, %v4942
        %5028 = vst.msk [vmem:[%s226 + $0x60] sm:$0xff] %vm5015, %v4944
        %5029 = vst.msk [vmem:[%s226 + $0x68] sm:$0xff] %vm5015, %v4946
        %5030 = vst.msk [vmem:[%s226 + $0x70] sm:$0xff] %vm5015, %v4948
        %5031 = vst.msk [vmem:[%s226 + $0x78] sm:$0xff] %vm5015, %v4950
        %5032 = vst.msk [vmem:[%s226 + $0x80] sm:$0xff] %vm5015, %v4952
        %5033 = vst.msk [vmem:[%s226 + $0x88] sm:$0xff] %vm5015, %v4954
        %5034 = vst.msk [vmem:[%s226 + $0x90] sm:$0xff] %vm5015, %v4956
        %5035 = vst.msk [vmem:[%s226 + $0x98] sm:$0xff] %vm5015, %v4958
        %5036 = vst.msk [vmem:[%s226 + $0xa0] sm:$0xff] %vm5015, %v4960
        %5037 = vst.msk [vmem:[%s226 + $0xa8] sm:$0xff] %vm5015, %v4962
        %5038 = vst.msk [vmem:[%s226 + $0xb0] sm:$0xff] %vm5015, %v4964
        %5039 = vst.msk [vmem:[%s226 + $0xb8] sm:$0xff] %vm5015, %v4966
        %5040 = vst.msk [vmem:[%s226 + $0xc0] sm:$0xff] %vm5015, %v4968
        %5041 = vst.msk [vmem:[%s226 + $0xc8] sm:$0xff] %vm5015, %v4970
        %5042 = vst.msk [vmem:[%s226 + $0xd0] sm:$0xff] %vm5015, %v4972
        %5043 = vst.msk [vmem:[%s226 + $0xd8] sm:$0xff] %vm5015, %v4974
        %5044 = vst.msk [vmem:[%s226 + $0xe0] sm:$0xff] %vm5015, %v4976
        %5045 = vst.msk [vmem:[%s226 + $0xe8] sm:$0xff] %vm5015, %v4978
        %5046 = vst.msk [vmem:[%s226 + $0xf0] sm:$0xff] %vm5015, %v4980
        %5047 = vst.msk [vmem:[%s226 + $0xf8] sm:$0xff] %vm5015, %v4982
        %5080 = vrot.lane.b32.xlu0 %v4855, 64
        %v5081 = vpop.permute.xlu0 %5080
        %5082 = vrot.lane.b32.xlu0 %v4856, 64
        %v5083 = vpop.permute.xlu0 %5082
        %5084 = vrot.lane.b32.xlu0 %v4857, 64
        %v5085 = vpop.permute.xlu0 %5084
        %5086 = vrot.lane.b32.xlu0 %v4858, 64
        %v5087 = vpop.permute.xlu0 %5086
        %5088 = vrot.lane.b32.xlu0 %v4859, 64
        %v5089 = vpop.permute.xlu0 %5088
        %5090 = vrot.lane.b32.xlu0 %v4860, 64
        %v5091 = vpop.permute.xlu0 %5090
        %5092 = vrot.lane.b32.xlu0 %v4861, 64
        %v5093 = vpop.permute.xlu0 %5092
        %5094 = vrot.lane.b32.xlu0 %v4862, 64
        %v5095 = vpop.permute.xlu0 %5094
        %5096 = vrot.lane.b32.xlu0 %v4863, 64
        %v5097 = vpop.permute.xlu0 %5096
        %5098 = vrot.lane.b32.xlu0 %v4864, 64
        %v5099 = vpop.permute.xlu0 %5098
        %5100 = vrot.lane.b32.xlu0 %v4865, 64
        %v5101 = vpop.permute.xlu0 %5100
        %5102 = vrot.lane.b32.xlu0 %v4866, 64
        %v5103 = vpop.permute.xlu0 %5102
        %5104 = vrot.lane.b32.xlu0 %v4867, 64
        %v5105 = vpop.permute.xlu0 %5104
        %5106 = vrot.lane.b32.xlu0 %v4868, 64
        %v5107 = vpop.permute.xlu0 %5106
        %5108 = vrot.lane.b32.xlu0 %v4869, 64
        %v5109 = vpop.permute.xlu0 %5108
        %5110 = vrot.lane.b32.xlu0 %v4870, 64
        %v5111 = vpop.permute.xlu0 %5110
        %5112 = vrot.lane.b32.xlu0 %v4871, 64
        %v5113 = vpop.permute.xlu0 %5112
        %5114 = vrot.lane.b32.xlu0 %v4872, 64
        %v5115 = vpop.permute.xlu0 %5114
        %5116 = vrot.lane.b32.xlu0 %v4873, 64
        %v5117 = vpop.permute.xlu0 %5116
        %5118 = vrot.lane.b32.xlu0 %v4874, 64
        %v5119 = vpop.permute.xlu0 %5118
        %5120 = vrot.lane.b32.xlu0 %v4875, 64
        %v5121 = vpop.permute.xlu0 %5120
        %5122 = vrot.lane.b32.xlu0 %v4876, 64
        %v5123 = vpop.permute.xlu0 %5122
        %5124 = vrot.lane.b32.xlu0 %v4877, 64
        %v5125 = vpop.permute.xlu0 %5124
        %5126 = vrot.lane.b32.xlu0 %v4878, 64
        %v5127 = vpop.permute.xlu0 %5126
        %5128 = vrot.lane.b32.xlu0 %v4879, 64
        %v5129 = vpop.permute.xlu0 %5128
        %5130 = vrot.lane.b32.xlu0 %v4880, 64
        %v5131 = vpop.permute.xlu0 %5130
        %5132 = vrot.lane.b32.xlu0 %v4881, 64
        %v5133 = vpop.permute.xlu0 %5132
        %5134 = vrot.lane.b32.xlu0 %v4882, 64
        %v5135 = vpop.permute.xlu0 %5134
        %5136 = vrot.lane.b32.xlu0 %v4883, 64
        %v5137 = vpop.permute.xlu0 %5136
        %5138 = vrot.lane.b32.xlu0 %v4884, 64
        %v5139 = vpop.permute.xlu0 %5138
        %5140 = vrot.lane.b32.xlu0 %v4885, 64
        %v5141 = vpop.permute.xlu0 %5140
        %5142 = vrot.lane.b32.xlu0 %v4886, 64
        %v5143 = vpop.permute.xlu0 %5142
        %5176 = vst.msk [vmem:[%s244] sm:$0xff] %vm5015, %v5081
        %5177 = vst.msk [vmem:[%s244 + $0x8] sm:$0xff] %vm5015, %v5083
        %5178 = vst.msk [vmem:[%s244 + $0x10] sm:$0xff] %vm5015, %v5085
        %5179 = vst.msk [vmem:[%s244 + $0x18] sm:$0xff] %vm5015, %v5087
        %5180 = vst.msk [vmem:[%s244 + $0x20] sm:$0xff] %vm5015, %v5089
        %5181 = vst.msk [vmem:[%s244 + $0x28] sm:$0xff] %vm5015, %v5091
        %5182 = vst.msk [vmem:[%s244 + $0x30] sm:$0xff] %vm5015, %v5093
        %5183 = vst.msk [vmem:[%s244 + $0x38] sm:$0xff] %vm5015, %v5095
        %5184 = vst.msk [vmem:[%s244 + $0x40] sm:$0xff] %vm5015, %v5097
        %5185 = vst.msk [vmem:[%s244 + $0x48] sm:$0xff] %vm5015, %v5099
        %5186 = vst.msk [vmem:[%s244 + $0x50] sm:$0xff] %vm5015, %v5101
        %5187 = vst.msk [vmem:[%s244 + $0x58] sm:$0xff] %vm5015, %v5103
        %5188 = vst.msk [vmem:[%s244 + $0x60] sm:$0xff] %vm5015, %v5105
        %5189 = vst.msk [vmem:[%s244 + $0x68] sm:$0xff] %vm5015, %v5107
        %5190 = vst.msk [vmem:[%s244 + $0x70] sm:$0xff] %vm5015, %v5109
        %5191 = vst.msk [vmem:[%s244 + $0x78] sm:$0xff] %vm5015, %v5111
        %5192 = vst.msk [vmem:[%s244 + $0x80] sm:$0xff] %vm5015, %v5113
        %5193 = vst.msk [vmem:[%s244 + $0x88] sm:$0xff] %vm5015, %v5115
        %5194 = vst.msk [vmem:[%s244 + $0x90] sm:$0xff] %vm5015, %v5117
        %5195 = vst.msk [vmem:[%s244 + $0x98] sm:$0xff] %vm5015, %v5119
        %5196 = vst.msk [vmem:[%s244 + $0xa0] sm:$0xff] %vm5015, %v5121
        %5197 = vst.msk [vmem:[%s244 + $0xa8] sm:$0xff] %vm5015, %v5123
        %5198 = vst.msk [vmem:[%s244 + $0xb0] sm:$0xff] %vm5015, %v5125
        %5199 = vst.msk [vmem:[%s244 + $0xb8] sm:$0xff] %vm5015, %v5127
        %5200 = vst.msk [vmem:[%s244 + $0xc0] sm:$0xff] %vm5015, %v5129
        %5201 = vst.msk [vmem:[%s244 + $0xc8] sm:$0xff] %vm5015, %v5131
        %5202 = vst.msk [vmem:[%s244 + $0xd0] sm:$0xff] %vm5015, %v5133
        %5203 = vst.msk [vmem:[%s244 + $0xd8] sm:$0xff] %vm5015, %v5135
        %5204 = vst.msk [vmem:[%s244 + $0xe0] sm:$0xff] %vm5015, %v5137
        %5205 = vst.msk [vmem:[%s244 + $0xe8] sm:$0xff] %vm5015, %v5139
        %5206 = vst.msk [vmem:[%s244 + $0xf0] sm:$0xff] %vm5015, %v5141
        %5207 = vst.msk [vmem:[%s244 + $0xf8] sm:$0xff] %vm5015, %v5143
        %5208 = vrot.lane.b32.xlu0 %v4855, 68
        %v5209 = vpop.permute.xlu0 %5208
        %5210 = vrot.lane.b32.xlu0 %v4856, 68
        %v5211 = vpop.permute.xlu0 %5210
        %5212 = vrot.lane.b32.xlu0 %v4857, 68
        %v5213 = vpop.permute.xlu0 %5212
        %5214 = vrot.lane.b32.xlu0 %v4858, 68
        %v5215 = vpop.permute.xlu0 %5214
        %5216 = vrot.lane.b32.xlu0 %v4859, 68
        %v5217 = vpop.permute.xlu0 %5216
        %5218 = vrot.lane.b32.xlu0 %v4860, 68
        %v5219 = vpop.permute.xlu0 %5218
        %5220 = vrot.lane.b32.xlu0 %v4861, 68
        %v5221 = vpop.permute.xlu0 %5220
        %5222 = vrot.lane.b32.xlu0 %v4862, 68
        %v5223 = vpop.permute.xlu0 %5222
        %5224 = vrot.lane.b32.xlu0 %v4863, 68
        %v5225 = vpop.permute.xlu0 %5224
        %5226 = vrot.lane.b32.xlu0 %v4864, 68
        %v5227 = vpop.permute.xlu0 %5226
        %5228 = vrot.lane.b32.xlu0 %v4865, 68
        %v5229 = vpop.permute.xlu0 %5228
        %5230 = vrot.lane.b32.xlu0 %v4866, 68
        %v5231 = vpop.permute.xlu0 %5230
        %5232 = vrot.lane.b32.xlu0 %v4867, 68
        %v5233 = vpop.permute.xlu0 %5232
        %5234 = vrot.lane.b32.xlu0 %v4868, 68
        %v5235 = vpop.permute.xlu0 %5234
        %5236 = vrot.lane.b32.xlu0 %v4869, 68
        %v5237 = vpop.permute.xlu0 %5236
        %5238 = vrot.lane.b32.xlu0 %v4870, 68
        %v5239 = vpop.permute.xlu0 %5238
        %5240 = vrot.lane.b32.xlu0 %v4871, 68
        %v5241 = vpop.permute.xlu0 %5240
        %5242 = vrot.lane.b32.xlu0 %v4872, 68
        %v5243 = vpop.permute.xlu0 %5242
        %5244 = vrot.lane.b32.xlu0 %v4873, 68
        %v5245 = vpop.permute.xlu0 %5244
        %5246 = vrot.lane.b32.xlu0 %v4874, 68
        %v5247 = vpop.permute.xlu0 %5246
        %5248 = vrot.lane.b32.xlu0 %v4875, 68
        %v5249 = vpop.permute.xlu0 %5248
        %5250 = vrot.lane.b32.xlu0 %v4876, 68
        %v5251 = vpop.permute.xlu0 %5250
        %5252 = vrot.lane.b32.xlu0 %v4877, 68
        %v5253 = vpop.permute.xlu0 %5252
        %5254 = vrot.lane.b32.xlu0 %v4878, 68
        %v5255 = vpop.permute.xlu0 %5254
        %5256 = vrot.lane.b32.xlu0 %v4879, 68
        %v5257 = vpop.permute.xlu0 %5256
        %5258 = vrot.lane.b32.xlu0 %v4880, 68
        %v5259 = vpop.permute.xlu0 %5258
        %5260 = vrot.lane.b32.xlu0 %v4881, 68
        %v5261 = vpop.permute.xlu0 %5260
        %5262 = vrot.lane.b32.xlu0 %v4882, 68
        %v5263 = vpop.permute.xlu0 %5262
        %5264 = vrot.lane.b32.xlu0 %v4883, 68
        %v5265 = vpop.permute.xlu0 %5264
        %5266 = vrot.lane.b32.xlu0 %v4884, 68
        %v5267 = vpop.permute.xlu0 %5266
        %5268 = vrot.lane.b32.xlu0 %v4885, 68
        %v5269 = vpop.permute.xlu0 %5268
        %5270 = vrot.lane.b32.xlu0 %v4886, 68
        %v5271 = vpop.permute.xlu0 %5270
        %vm5304 = vcmask 293920
        %5305 = vst.msk [vmem:[%s370 + $0x1] sm:$0xff] %vm5304, %v5209
        %5306 = vst.msk [vmem:[%s370 + $0x9] sm:$0xff] %vm5304, %v5211
        %5307 = vst.msk [vmem:[%s370 + $0x19] sm:$0xff] %vm5304, %v5213
        %5308 = vst.msk [vmem:[%s370 + $0x21] sm:$0xff] %vm5304, %v5215
        %5309 = vst.msk [vmem:[%s370 + $0x31] sm:$0xff] %vm5304, %v5217
        %5310 = vst.msk [vmem:[%s370 + $0x39] sm:$0xff] %vm5304, %v5219
        %5311 = vst.msk [vmem:[%s370 + $0x49] sm:$0xff] %vm5304, %v5221
        %5312 = vst.msk [vmem:[%s370 + $0x51] sm:$0xff] %vm5304, %v5223
        %5313 = vst.msk [vmem:[%s370 + $0x61] sm:$0xff] %vm5304, %v5225
        %5314 = vst.msk [vmem:[%s370 + $0x69] sm:$0xff] %vm5304, %v5227
        %5315 = vst.msk [vmem:[%s370 + $0x79] sm:$0xff] %vm5304, %v5229
        %5316 = vst.msk [vmem:[%s370 + $0x81] sm:$0xff] %vm5304, %v5231
        %5317 = vst.msk [vmem:[%s370 + $0x91] sm:$0xff] %vm5304, %v5233
        %5318 = vst.msk [vmem:[%s370 + $0x99] sm:$0xff] %vm5304, %v5235
        %5319 = vst.msk [vmem:[%s370 + $0xa9] sm:$0xff] %vm5304, %v5237
        %5320 = vst.msk [vmem:[%s370 + $0xb1] sm:$0xff] %vm5304, %v5239
        %5321 = vst.msk [vmem:[%s370 + $0xc1] sm:$0xff] %vm5304, %v5241
        %5322 = vst.msk [vmem:[%s370 + $0xc9] sm:$0xff] %vm5304, %v5243
        %5323 = vst.msk [vmem:[%s370 + $0xd9] sm:$0xff] %vm5304, %v5245
        %5324 = vst.msk [vmem:[%s370 + $0xe1] sm:$0xff] %vm5304, %v5247
        %5325 = vst.msk [vmem:[%s370 + $0xf1] sm:$0xff] %vm5304, %v5249
        %5326 = vst.msk [vmem:[%s370 + $0xf9] sm:$0xff] %vm5304, %v5251
        %5327 = vst.msk [vmem:[%s370 + $0x109] sm:$0xff] %vm5304, %v5253
        %5328 = vst.msk [vmem:[%s370 + $0x111] sm:$0xff] %vm5304, %v5255
        %5329 = vst.msk [vmem:[%s370 + $0x121] sm:$0xff] %vm5304, %v5257
        %5330 = vst.msk [vmem:[%s370 + $0x129] sm:$0xff] %vm5304, %v5259
        %5331 = vst.msk [vmem:[%s370 + $0x139] sm:$0xff] %vm5304, %v5261
        %5332 = vst.msk [vmem:[%s370 + $0x141] sm:$0xff] %vm5304, %v5263
        %5333 = vst.msk [vmem:[%s370 + $0x151] sm:$0xff] %vm5304, %v5265
        %5334 = vst.msk [vmem:[%s370 + $0x159] sm:$0xff] %vm5304, %v5267
        %5335 = vst.msk [vmem:[%s370 + $0x169] sm:$0xff] %vm5304, %v5269
        %5336 = vst.msk [vmem:[%s370 + $0x171] sm:$0xff] %vm5304, %v5271
        %p5337 = scmp.lt.s32.totalorder %s24, 7
        %s5338 = scalar_select %p5337, %s24, 7
        %p5339 = scmp.lt.s32.totalorder %s23, 1
        %s5340 = scalar_select %p5339, %s23, 1
        %s5341 = smul.addr %s5340, 32
        %s5342 = smul.addr %s5338, 64
        %s5343 = sadd.s32 %s5341, %s5342
        %s5344 = smul.addr %s5343, 8
        %s5345 = scalar_lea.vmem %s3, %s5344
        %s5346 = sand.u32 %s137, 1
        %s5347 = scalar_lea.sflag [#allocation4], %s5346
        %s5348 = sand.u32 %s137, 1
        %s5349 = smul.addr %s5348, 256
        %s5350 = scalar_lea.vmem [#allocation3], %s5349
        // Predicated region
        $region37: #{convlstm_forward.2} parent=31 // pred_check
          %p5351 = pneg %p121
        $region38: #{convlstm_forward.2} parent=31 // pred_check_branch
          %5353 = sbr.rel (%p5351) target = $region40
        $region39: #{convlstm_forward.2} parent=31 // pred_region
          _
        $region40: #{convlstm_forward.2} parent=31 // pred_fallthru
          _
        // Predicated region
        $region41: #{convlstm_forward.2} parent=31 // pred_check
          %p5354 = pneg %p147
        $region42: #{convlstm_forward.2} parent=31 // pred_check_branch
          %5356 = sbr.rel (%p5354) target = $region44
        $region43: #{convlstm_forward.2} parent=31 // pred_region
          %s5358 = ssub.s32 4096, 4096
          %5359 = vsyncadd %s5347, %s5358
          %s5360 = smul.addr %s23, 32
          %s5361 = smul.addr %s5360, 128
          %s5362 = scalar_lea.hbm %s4, %s5361
          %s5363 = sshll.u32 %s5350, 4
          %s5364 = int_to_ptr.vmem [resolvable:$true] %s5363
          %5369 = dma.vmem_to_hbm [thread:$0]  %s5364, 4096, %s5362, %s5347, 128, 128, 8
        $region44: #{convlstm_forward.2} parent=31 // pred_fallthru
          _
      $region32: #{convlstm_forward.2} parent=5 // pred_fallthru
        _
      %p5370 = scmp.le.s32.totalorder 2, %s14
      // Predicated region
      $region45: #{convlstm_forward.2} parent=5 // pred_check
        %p5371 = pneg %p5370
      $region46: #{convlstm_forward.2} parent=5 // pred_check_branch
        %5373 = sbr.rel (%p5371) target = $region48
      $region47: #{convlstm_forward.2} parent=5 // pred_region
        %s5374 = ssub.s32 %s14, 2
        // Predicated region
        $region49: #{convlstm_forward.2} parent=47 // pred_check
          %p5375 = pneg %p127
        $region50: #{convlstm_forward.2} parent=47 // pred_check_branch
          %5377 = sbr.rel (%p5375) target = $region52
        $region51: #{convlstm_forward.2} parent=47 // pred_region
          %p5378 = scmp.lt.s32.totalorder %s26, 7
          %s5379 = scalar_select %p5378, %s26, 7
          %p5380 = scmp.lt.s32.totalorder %s25, 1
          %s5381 = scalar_select %p5380, %s25, 1
          %s5382 = smul.addr %s5381, 32
          %s5383 = smul.addr %s5379, 64
          %s5384 = sadd.s32 %s5382, %s5383
          %s5385 = smul.addr %s5384, 8
          %s5386 = scalar_lea.vmem %s3, %s5385
        $region52: #{convlstm_forward.2} parent=47 // pred_fallthru
          _
        // Predicated region
        $region53: #{convlstm_forward.2} parent=47 // pred_check
          %p5387 = pneg %p153
        $region54: #{convlstm_forward.2} parent=47 // pred_check_branch
          %5389 = sbr.rel (%p5387) target = $region56
        $region55: #{convlstm_forward.2} parent=47 // pred_region
          %s5390 = sand.u32 %s138, 1
          %s5391 = scalar_lea.sflag [#allocation4], %s5390
          %s5392 = sand.u32 %s138, 1
          %s5393 = smul.addr %s5392, 256
          %s5394 = scalar_lea.vmem [#allocation3], %s5393
          %5395 = dma.done %s5391, 4096
        $region56: #{convlstm_forward.2} parent=47 // pred_fallthru
          _
      $region48: #{convlstm_forward.2} parent=5 // pred_fallthru
        _
    $region6: #{convlstm_forward.2} parent=1 // loop_footer
      %s18 = sadd.s32 1, %s14
    $region7: #{convlstm_forward.2} parent=1 // loop_footer_branch
      %13 = sbr.rel target = $region3
    $region8: #{convlstm_forward.2} parent=1 // loop_exit
      _
    %5396 = vsyncpa [#allocation4], 1
    %s5397 = scalar_lea.sflag [#allocation4], 1
    %5398 = vsyncpa %s5397, 1

</llo_original>
